<compile_context>
chip_gen: v7x
topology: tpu7x:2x2x1
jax: 0.10.0
libtpu: 0.0.40
codegen_flags: <defaults>
</compile_context>

<pallas_src>
from functools import partial

import jax
import jax.numpy as jnp
from jax.experimental import pallas as pl
from jax.experimental.pallas import tpu as pltpu

_ACT_DTYPE = jnp.bfloat16            # activation/weight stream dtype (f32 accum in-kernel)


def _vmem_limit_bytes():
    # ~50% of physical VMEM: 64 MiB on v5e/v6e (128 MiB), 32 MiB on v7x (64 MiB/TC).
    try:
        cap = int(pltpu.get_tpu_info().vmem_capacity_bytes)
    except Exception:
        cap = 64 * 1024 * 1024
    return max(32 * 1024 * 1024, min(cap // 2, 96 * 1024 * 1024))


_VMEM_LIMIT = _vmem_limit_bytes()
_BIG_VMEM = _VMEM_LIMIT >= 48 * 1024 * 1024
_TM_PREF = 1024 if _BIG_VMEM else 512
_TN_PREF = 512
_TK_PREF = 512
_ATTN_TQ = 512 if _BIG_VMEM else 256


# ----------------------------------------------------------------------------
# helpers
# ----------------------------------------------------------------------------

def _round_up(x, m):
    return ((x + m - 1) // m) * m


def _pick_tile(dim, pref, align=1):
    """Largest aligned divisor of `dim` <= pref, else the full dim (always legal)."""
    if dim <= pref:
        return dim
    t = (pref // align) * align
    while t >= align:
        if dim % t == 0:
            return t
        t -= align
    return dim


def _tile_pad(dim, pref, align):
    """(tile, padded_dim).  Prefers 2*align (256-wide MXU) multiples; when no aligned
    divisor exists the dim is padded up instead of silently using one giant block."""
    if dim <= pref:
        return dim, dim
    for a in sorted({2 * align, align}, reverse=True):
        t = (pref // a) * a
        while t >= a:
            if dim % t == 0:
                return t, dim
            t -= a
    t = (pref // align) * align
    return t, _round_up(dim, t)


def _gelu_tanh(x):
    # TODO(synk): exact erf GELU of nn.GELU() replaced by tanh approximation so the
    # transcendental lands on the EUP inside the kernel.
    c = 0.7978845608028654  # sqrt(2/pi)
    return 0.5 * x * (1.0 + jnp.tanh(c * (x + 0.044715 * x * x * x)))


def _apply_act(x, act):
    if act == "relu":
        return jnp.maximum(x, 0.0)
    if act == "gelu":
        return _gelu_tanh(x)
    if act == "sigmoid":
        return jax.nn.sigmoid(x)
    return x


# ----------------------------------------------------------------------------
# fused tiled matmul: out = act(rmsnorm?(a) @ b + bias) + sum(residuals)
# ----------------------------------------------------------------------------

def _mm_kernel(*refs, act, has_norm, n_res, eps):
    idx = 0
    a_ref = refs[idx]; idx += 1
    nw_ref = None
    if has_norm:
        nw_ref = refs[idx]; idx += 1
    b_ref = refs[idx]; idx += 1
    bias_ref = refs[idx]; idx += 1
    res_refs = refs[idx:idx + n_res]; idx += n_res
    o_ref = refs[idx]; idx += 1
    acc_ref = refs[idx]; idx += 1
    an_ref = refs[idx] if has_norm else None

    kidx = pl.program_id(2)

    @pl.when(kidx == 0)
    def _init():
        acc_ref[...] = jnp.zeros_like(acc_ref)

    if has_norm:
        # RMS-normalize the (tm, K) A tile once per M tile (first N tile) and reuse
        # it for all remaining N tiles (N axis is 'arbitrary' when it has >1 tile,
        # so this cache is safe under megacore sharding).
        @pl.when(pl.program_id(1) == 0)
        def _norm():
            af = a_ref[...].astype(jnp.float32)
            ms = jnp.mean(af * af, axis=-1, keepdims=True)
            an_ref[...] = (af * jax.lax.rsqrt(ms + eps)
                           * nw_ref[...].astype(jnp.float32)).astype(an_ref.dtype)
        a = an_ref[...]
    else:
        a = a_ref[...]

    acc_ref[...] += jnp.dot(a, b_ref[...], preferred_element_type=jnp.float32)

    @pl.when(kidx == pl.num_programs(2) - 1)
    def _finalize():
        out = acc_ref[...] + bias_ref[...].astype(jnp.float32)
        out = _apply_act(out, act)
        for r in res_refs:
            out = out + r[...].astype(jnp.float32)
        o_ref[...] = out.astype(o_ref.dtype)


def matmul_fused(a, b, bias, *, act=None, norm_w=None, residuals=(), eps=1e-8,
                 out_dtype=_ACT_DTYPE, tm=None, tn=None, tk=None):
    M, K = a.shape
    K2, N = b.shape
    assert K == K2
    tm, Mp = _tile_pad(M, tm or _TM_PREF, 16)      # 16-row tiles for bf16 sublanes
    tn, Np = _tile_pad(N, tn or _TN_PREF, 128)
    if norm_w is not None:
        tk, Kp = K, K                              # RMSNorm needs the full K row
    else:
        tk, Kp = _tile_pad(K, tk or _TK_PREF, 128)

    residuals = tuple(residuals)
    if Mp != M:
        a = jnp.pad(a, ((0, Mp - M), (0, 0)))
        residuals = tuple(jnp.pad(r, ((0, Mp - M), (0, 0))) for r in residuals)
    if Kp != K:
        a = jnp.pad(a, ((0, 0), (0, Kp - K)))
        b = jnp.pad(b, ((0, Kp - K), (0, 0)))
    if Np != N:
        b = jnp.pad(b, ((0, 0), (0, Np - N)))
        bias = jnp.pad(bias, ((0, Np - N),))
        residuals = tuple(jnp.pad(r, ((0, 0), (0, Np - N))) for r in residuals)

    grid = (Mp // tm, Np // tn, Kp // tk)
    nj = grid[1]

    in_specs = [pl.BlockSpec((tm, tk), lambda i, j, kk: (i, kk))]
    inputs = [a]
    if norm_w is not None:
        in_specs.append(pl.BlockSpec((1, tk), lambda i, j, kk: (0, kk)))
        inputs.append(norm_w.reshape(1, K))
    in_specs.append(pl.BlockSpec((tk, tn), lambda i, j, kk: (kk, j)))
    inputs.append(b)
    in_specs.append(pl.BlockSpec((1, tn), lambda i, j, kk: (0, j)))
    inputs.append(bias.reshape(1, Np))
    for r in residuals:
        in_specs.append(pl.BlockSpec((tm, tn), lambda i, j, kk: (i, j)))
        inputs.append(r)

    scratch = [pltpu.VMEM((tm, tn), jnp.float32)]
    if norm_w is not None:
        scratch.append(pltpu.VMEM((tm, Kp), b.dtype))

    cost = pl.CostEstimate(
        flops=int(2 * Mp * Np * Kp),
        transcendentals=int(Mp * Np if act in ("gelu", "sigmoid") else 0),
        bytes_accessed=int(a.size * a.dtype.itemsize + b.size * b.dtype.itemsize
                           + Mp * Np * jnp.dtype(out_dtype).itemsize))

    # cached fused-norm makes the N axis carry a scratch dependency
    j_sem = "arbitrary" if (norm_w is not None and nj > 1) else "parallel"

    out = pl.pallas_call(
        partial(_mm_kernel, act=act, has_norm=norm_w is not None,
                n_res=len(residuals), eps=eps),
        out_shape=jax.ShapeDtypeStruct((Mp, Np), out_dtype),
        grid=grid,
        in_specs=in_specs,
        out_specs=pl.BlockSpec((tm, tn), lambda i, j, kk: (i, j)),
        scratch_shapes=scratch,
        compiler_params=pltpu.CompilerParams(
            dimension_semantics=("parallel", j_sem, "arbitrary"),
            vmem_limit_bytes=_VMEM_LIMIT),
        cost_estimate=cost,
    )(*inputs)
    if Mp != M or Np != N:
        out = out[:M, :N]
    return out


# ----------------------------------------------------------------------------
# stride-1 (dilated) Conv1d: in-kernel shifted-window matmul accumulation
# ----------------------------------------------------------------------------

def _conv1d_kernel(x_ref, w_ref, b_ref, o_ref, *, k, dilation, act):
    # x_ref: (1, Lp, Cin) padded; w_ref: (k, Cin, tn); o_ref: (1, Lout, tn)
    L = o_ref.shape[1]
    acc = jnp.zeros((L, o_ref.shape[2]), jnp.float32)
    for kk in range(k):
        xs = x_ref[0, kk * dilation: kk * dilation + L, :]
        acc += jnp.dot(xs, w_ref[kk], preferred_element_type=jnp.float32)
    acc += b_ref[...].astype(jnp.float32)
    o_ref[0] = _apply_act(acc, act).astype(o_ref.dtype)


def conv1d_same(x, w, b, *, k, padding, dilation=1, act=None, out_dtype=_ACT_DTYPE):
    # TODO(synk): the whole padded L axis is resident per grid step; add an L-tile
    # axis with a (k-1)*dilation halo for very long sequences.
    B, L, Cin = x.shape
    Cout = w.shape[2]
    xp = jnp.pad(x, ((0, 0), (padding, padding), (0, 0)))
    Lp = L + 2 * padding
    Lout = Lp - dilation * (k - 1)
    tn = _pick_tile(Cout, 512, 128)
    return pl.pallas_call(
        partial(_conv1d_kernel, k=k, dilation=dilation, act=act),
        out_shape=jax.ShapeDtypeStruct((B, Lout, Cout), out_dtype),
        grid=(B, Cout // tn),
        in_specs=[
            pl.BlockSpec((1, Lp, Cin), lambda bi, j: (bi, 0, 0)),
            pl.BlockSpec((k, Cin, tn), lambda bi, j: (0, 0, j)),
            pl.BlockSpec((1, tn), lambda bi, j: (0, j)),
        ],
        out_specs=pl.BlockSpec((1, Lout, tn), lambda bi, j: (bi, 0, j)),
        compiler_params=pltpu.CompilerParams(
            dimension_semantics=("parallel", "parallel"),
            vmem_limit_bytes=_VMEM_LIMIT),
    )(xp, w, b.reshape(1, Cout))


# ----------------------------------------------------------------------------
# strided Conv1d (waveform path): stride-phase decomposition, no im2col HBM blow-up
# ----------------------------------------------------------------------------

def _conv1d_phase_kernel(*refs, k, stride, act):
    # refs: phase_0..phase_{stride-1} (1, Lq, Cin), w (k, Cin, tn), b (1, tn), o (1, Lout, tn)
    phase_refs = refs[:stride]
    w_ref, b_ref, o_ref = refs[stride], refs[stride + 1], refs[stride + 2]
    Lout, tn = o_ref.shape[1], o_ref.shape[2]
    cin = phase_refs[0].shape[2]
    acc = jnp.zeros((Lout, tn), jnp.float32)
    for kk in range(k):
        sh = kk // stride
        xs = phase_refs[kk % stride][0, sh:sh + Lout, :]
        wk = w_ref[kk]
        if cin == 1:
            acc += xs.astype(jnp.float32) * wk.astype(jnp.float32)   # outer-product tap
        else:
            acc += jnp.dot(xs, wk, preferred_element_type=jnp.float32)
    acc += b_ref[...].astype(jnp.float32)
    o_ref[0] = _apply_act(acc, act).astype(o_ref.dtype)


def conv1d_strided(x, w, b, *, k, stride, padding, act=None, out_dtype=_ACT_DTYPE):
    """Strided Conv1d: x split into `stride` phase streams in XLA (total size == x,
    unlike im2col's ~k/stride x blow-up); kernel accumulates k shifted dense matmuls."""
    B, L, Cin = x.shape
    Cout = w.shape[2]
    Lp = L + 2 * padding
    Lout = (Lp - k) // stride + 1
    Lq = Lout + (k - 1) // stride             # per-phase length incl. halo
    total = stride * Lq
    rp = max(total - L - padding, padding)
    xp = jnp.pad(x, ((0, 0), (padding, rp), (0, 0)))
    phases = [jax.lax.slice(xp, (0, r, 0), (B, total, Cin), (1, stride, 1))
              for r in range(stride)]
    tn = _pick_tile(Cout, 512, 128)
    # TODO(synk): add an Lout-tile axis with halo for very long waveforms.
    in_specs = ([pl.BlockSpec((1, Lq, Cin), lambda bi, j: (bi, 0, 0))
                 for _ in range(stride)]
                + [pl.BlockSpec((k, Cin, tn), lambda bi, j: (0, 0, j)),
                   pl.BlockSpec((1, tn), lambda bi, j: (0, j))])
    return pl.pallas_call(
        partial(_conv1d_phase_kernel, k=k, stride=stride, act=act),
        out_shape=jax.ShapeDtypeStruct((B, Lout, Cout), out_dtype),
        grid=(B, Cout // tn),
        in_specs=in_specs,
        out_specs=pl.BlockSpec((1, Lout, tn), lambda bi, j: (bi, 0, j)),
        compiler_params=pltpu.CompilerParams(
            dimension_semantics=("parallel", "parallel"),
            vmem_limit_bytes=_VMEM_LIMIT),
    )(*phases, w, b.reshape(1, Cout))


# ----------------------------------------------------------------------------
# depthwise conv (k=3) fused with the following 1x1 conv
# ----------------------------------------------------------------------------

def _dw_pw_kernel(x_ref, wd_ref, bd_ref, wp_ref, bp_ref, o_ref):
    L = o_ref.shape[1]
    C = x_ref.shape[2]
    acc = jnp.zeros((L, C), jnp.float32)
    for kk in range(3):
        acc += (x_ref[0, kk:kk + L, :].astype(jnp.float32)
                * wd_ref[kk:kk + 1, :].astype(jnp.float32))
    acc += bd_ref[...].astype(jnp.float32)
    out = jnp.dot(acc.astype(wp_ref.dtype), wp_ref[...],
                  preferred_element_type=jnp.float32)
    out += bp_ref[...].astype(jnp.float32)
    o_ref[0] = out.astype(o_ref.dtype)


def dwconv3_pointwise(x, wd, bd, wp, bp, *, padding=1, out_dtype=_ACT_DTYPE):
    B, L, C = x.shape
    xp = jnp.pad(x, ((0, 0), (padding, padding), (0, 0)))
    return pl.pallas_call(
        _dw_pw_kernel,
        out_shape=jax.ShapeDtypeStruct((B, L, C), out_dtype),
        grid=(B,),
        in_specs=[
            pl.BlockSpec((1, L + 2 * padding, C), lambda b: (b, 0, 0)),
            pl.BlockSpec((3, C), lambda b: (0, 0)),
            pl.BlockSpec((1, C), lambda b: (0, 0)),
            pl.BlockSpec((C, C), lambda b: (0, 0)),
            pl.BlockSpec((1, C), lambda b: (0, 0)),
        ],
        out_specs=pl.BlockSpec((1, L, C), lambda b: (b, 0, 0)),
        compiler_params=pltpu.CompilerParams(
            dimension_semantics=("parallel",), vmem_limit_bytes=_VMEM_LIMIT),
    )(xp, wd, bd.reshape(1, C), wp, bp.reshape(1, C))


# ----------------------------------------------------------------------------
# SE block (mean-pool -> fc -> relu -> fc -> sigmoid -> scale), fused GELU
# ----------------------------------------------------------------------------

def _se_kernel(x_ref, w1_ref, b1_ref, w2_ref, b2_ref, o_ref, *, act):
    x = x_ref[0].astype(jnp.float32)                      # (L, C)
    y = jnp.mean(x, axis=0, keepdims=True)                # AdaptiveAvgPool1d(1)
    h = jnp.dot(y, w1_ref[...].astype(jnp.float32),
                preferred_element_type=jnp.float32) + b1_ref[...].astype(jnp.float32)
    h = jnp.maximum(h, 0.0)
    s = jnp.dot(h, w2_ref[...].astype(jnp.float32),
                preferred_element_type=jnp.float32) + b2_ref[...].astype(jnp.float32)
    s = jax.nn.sigmoid(s)                                  # (1, C)
    o_ref[0] = _apply_act(x * s, act).astype(o_ref.dtype)


def se_block(x, w1, b1, w2, b2, *, act=None, out_dtype=_ACT_DTYPE):
    B, L, C = x.shape
    Cr = w1.shape[1]
    return pl.pallas_call(
        partial(_se_kernel, act=act),
        out_shape=jax.ShapeDtypeStruct((B, L, C), out_dtype),
        grid=(B,),
        in_specs=[
            pl.BlockSpec((1, L, C), lambda b: (b, 0, 0)),
            pl.BlockSpec((C, Cr), lambda b: (0, 0)),
            pl.BlockSpec((1, Cr), lambda b: (0, 0)),
            pl.BlockSpec((Cr, C), lambda b: (0, 0)),
            pl.BlockSpec((1, C), lambda b: (0, 0)),
        ],
        out_specs=pl.BlockSpec((1, L, C), lambda b: (b, 0, 0)),
        compiler_params=pltpu.CompilerParams(
            dimension_semantics=("parallel",), vmem_limit_bytes=_VMEM_LIMIT),
    )(x, w1, b1.reshape(1, Cr), w2, b2.reshape(1, C))


# ----------------------------------------------------------------------------
# standalone RMSNorm (only for the final ln_enc; the others are fused into matmuls)
# ----------------------------------------------------------------------------

def _rmsnorm_kernel(x_ref, w_ref, o_ref, *, eps):
    x = x_ref[...].astype(jnp.float32)
    ms = jnp.mean(x * x, axis=-1, keepdims=True)
    o_ref[...] = (x * jax.lax.rsqrt(ms + eps)
                  * w_ref[...].astype(jnp.float32)).astype(o_ref.dtype)


def rmsnorm(x, w, *, eps=1e-8, out_dtype=jnp.float32):
    B, T, C = x.shape
    M = B * T
    x2 = x.reshape(M, C)
    tm, Mp = _tile_pad(M, _TM_PREF, 16)
    if Mp != M:
        x2 = jnp.pad(x2, ((0, Mp - M), (0, 0)))
    out = pl.pallas_call(
        partial(_rmsnorm_kernel, eps=eps),
        out_shape=jax.ShapeDtypeStruct((Mp, C), out_dtype),
        grid=(Mp // tm,),
        in_specs=[pl.BlockSpec((tm, C), lambda i: (i, 0)),
                  pl.BlockSpec((1, C), lambda i: (0, 0))],
        out_specs=pl.BlockSpec((tm, C), lambda i: (i, 0)),
        compiler_params=pltpu.CompilerParams(
            dimension_semantics=("parallel",), vmem_limit_bytes=_VMEM_LIMIT),
    )(x2, w.reshape(1, C))
    if Mp != M:
        out = out[:M]
    return out.reshape(B, T, C)


# ----------------------------------------------------------------------------
# blend of the two branches + positional embedding
# ----------------------------------------------------------------------------

def _blend_kernel(blend_ref, x_ref, w_ref, pos_ref, o_ref):
    b = blend_ref[0, 0]
    x = x_ref[0].astype(jnp.float32)
    wv = w_ref[0].astype(jnp.float32)
    pos = pos_ref[...].astype(jnp.float32)
    o_ref[0] = (b * (x + pos) + (1.0 - b) * (wv + pos)).astype(o_ref.dtype)


def blend_add_pos(x, wv, pos, blend_logit, *, out_dtype=_ACT_DTYPE):
    B, T, C = x.shape
    tr = _pick_tile(T, 512, 8)
    blend = jax.nn.sigmoid(blend_logit).reshape(1, 1).astype(jnp.float32)
    return pl.pallas_call(
        _blend_kernel,
        out_shape=jax.ShapeDtypeStruct((B, T, C), out_dtype),
        grid=(B, T // tr),
        in_specs=[
            pl.BlockSpec((1, 1), lambda b, i: (0, 0),
                         memory_space=pltpu.MemorySpace.SMEM),
            pl.BlockSpec((1, tr, C), lambda b, i: (b, i, 0)),
            pl.BlockSpec((1, tr, C), lambda b, i: (b, i, 0)),
            pl.BlockSpec((tr, C), lambda b, i: (i, 0)),
        ],
        out_specs=pl.BlockSpec((1, tr, C), lambda b, i: (b, i, 0)),
        compiler_params=pltpu.CompilerParams(
            dimension_semantics=("parallel", "parallel"),
            vmem_limit_bytes=_VMEM_LIMIT),
    )(blend, x, wv, pos)


# ----------------------------------------------------------------------------
# attention core: head-major q/k/v, grid over (batch, q-tile, head)
# ----------------------------------------------------------------------------

def _attn_kernel(zf_ref, sq_ref, cq_ref, sk_ref, ck_ref, q_ref, k_ref, v_ref,
                 o_ref, acc_ref, *, scale_sq):
    h = pl.program_id(2)
    tq = q_ref.shape[2]
    T = k_ref.shape[2]
    D = q_ref.shape[3]
    d2 = D // 2
    q0 = pl.program_id(1) * tq
    zf = zf_ref[0, 0]

    q = q_ref[0, 0].astype(jnp.float32)        # (tq, D)
    k = k_ref[0, 0].astype(jnp.float32)        # (T, D)
    v = v_ref[0, 0]                            # (T, D) bf16

    # zero-token factor from the pre-RoPE key's first component (the reference reads
    # k[..., 0] after rotary, but a rotated zero key is still zero; pre-RoPE is robust)
    scaled_zero = jnp.where(k[:, 0] == 0.0, zf, 1.0)           # (T,)

    sq = sq_ref[...].astype(jnp.float32)       # (tq, d2)
    cq = cq_ref[...].astype(jnp.float32)
    sk = sk_ref[...].astype(jnp.float32)       # (T, d2)
    ck = ck_ref[...].astype(jnp.float32)

    # half-split RoPE; concat once so the score matmul is a single D-deep contraction
    q1, q2 = q[:, :d2], q[:, d2:]
    k1, k2 = k[:, :d2], k[:, d2:]
    qr = jnp.concatenate([q1 * cq - q2 * sq, q1 * sq + q2 * cq], axis=-1)   # (tq, D)
    kr = jnp.concatenate([k1 * ck - k2 * sk, k1 * sk + k2 * ck], axis=-1)   # (T, D)

    s = jax.lax.dot_general(qr, kr, (((1,), (1,)), ((), ())),
                            preferred_element_type=jnp.float32) * scale_sq  # (tq, T)

    # multiplicative causal mask * zero-token factor (exactly what the reference does)
    rows = q0 + jax.lax.broadcasted_iota(jnp.int32, (tq, T), 0)
    cols = jax.lax.broadcasted_iota(jnp.int32, (tq, T), 1)
    s = s * ((cols <= rows).astype(jnp.float32) * scaled_zero[None, :])

    m = jnp.max(s, axis=-1, keepdims=True)
    e = jnp.exp(s - m)
    w = e / jnp.sum(e, axis=-1, keepdims=True)
    acc_ref[h] = jnp.dot(w.astype(v.dtype), v, preferred_element_type=jnp.float32)

    @pl.when(h == pl.num_programs(2) - 1)
    def _store():
        nh = acc_ref.shape[0]
        o_ref[0] = jnp.concatenate([acc_ref[i] for i in range(nh)],
                                   axis=-1).astype(o_ref.dtype)   # lane-dense store


def attention_core(q, k, v, sin, cos, zero_factor, *, scale_sq, out_dtype=_ACT_DTYPE):
    """q/k/v: (B, H, T, D) head-major.  Per-head results are staged in a (H, tq, D)
    f32 VMEM scratch and flushed with one lane-dense (tq, H*D) store at the last head."""
    B, H, T, D = q.shape
    C = H * D
    d2 = D // 2
    tq, Tp = _tile_pad(T, _ATTN_TQ, 8)
    sin_q, cos_q = sin, cos
    if Tp != T:                      # pad only the query side; keys stay exact
        q = jnp.pad(q, ((0, 0), (0, 0), (0, Tp - T), (0, 0)))
        sin_q = jnp.pad(sin, ((0, Tp - T), (0, 0)))
        cos_q = jnp.pad(cos, ((0, Tp - T), (0, 0)))
    nq = Tp // tq
    zf = zero_factor.reshape(1, 1).astype(jnp.float32)

    cost = pl.CostEstimate(
        flops=int(4 * B * H * Tp * T * D),
        transcendentals=int(B * H * Tp * T),
        bytes_accessed=int((q.size + (k.size + v.size) * nq) * q.dtype.itemsize
                           + B * Tp * C * jnp.dtype(out_dtype).itemsize))

    out = pl.pallas_call(
        partial(_attn_kernel, scale_sq=scale_sq),
        out_shape=jax.ShapeDtypeStruct((B, Tp, C), out_dtype),
        grid=(B, nq, H),
        in_specs=[
            pl.BlockSpec((1, 1), lambda b, i, h: (0, 0),
                         memory_space=pltpu.MemorySpace.SMEM),
            pl.BlockSpec((tq, d2), lambda b, i, h: (i, 0)),
            pl.BlockSpec((tq, d2), lambda b, i, h: (i, 0)),
            pl.BlockSpec((T, d2), lambda b, i, h: (0, 0)),
            pl.BlockSpec((T, d2), lambda b, i, h: (0, 0)),
            pl.BlockSpec((1, 1, tq, D), lambda b, i, h: (b, h, i, 0)),
            pl.BlockSpec((1, 1, T, D), lambda b, i, h: (b, h, 0, 0)),
            pl.BlockSpec((1, 1, T, D), lambda b, i, h: (b, h, 0, 0)),
        ],
        out_specs=pl.BlockSpec((1, tq, C), lambda b, i, h: (b, i, 0)),
        scratch_shapes=[pltpu.VMEM((H, tq, D), jnp.float32)],
        compiler_params=pltpu.CompilerParams(
            dimension_semantics=("parallel", "parallel", "arbitrary"),
            vmem_limit_bytes=_VMEM_LIMIT),
        cost_estimate=cost,
    )(zf, sin_q, cos_q, sin, cos, q, k, v)
    return out[:, :T] if Tp != T else out


# ----------------------------------------------------------------------------
# tables, parameters, module wiring
# ----------------------------------------------------------------------------

def sinusoids(length, channels, max_timescale=10000.0):
    assert channels % 2 == 0
    log_inc = jnp.log(max_timescale) / (channels // 2 - 1)
    inv = jnp.exp(-log_inc * jnp.arange(channels // 2, dtype=jnp.float32))
    t = jnp.arange(length, dtype=jnp.float32)[:, None] * inv[None, :]
    return jnp.concatenate([jnp.sin(t), jnp.cos(t)], axis=1)


def rotary_sin_cos(ctx, head_dim, theta=10000.0):
    # TODO(synk): `rotary` is dependency-injected and undefined in the reference;
    # a standard half-split RoPE table is assumed.
    inv = 1.0 / (theta ** (jnp.arange(0, head_dim, 2, dtype=jnp.float32) / head_dim))
    ang = jnp.arange(ctx, dtype=jnp.float32)[:, None] * inv[None, :]
    return jnp.sin(ang), jnp.cos(ang)


def init_params(key, mels, ctx, dims, head, layer):
    keys = iter(jax.random.split(key, 256))
    wdt = _ACT_DTYPE

    def rn(shape, scale=0.05, dtype=wdt):
        return (scale * jax.random.normal(next(keys), shape, dtype=jnp.float32)).astype(dtype)

    def conv_w(cout, cin, k):   # torch (out, in, k) -> pallas conv layout (k, in, out)
        w = rn((cout, cin, k), dtype=jnp.float32)
        return jnp.transpose(w, (2, 1, 0)).astype(wdt)

    p = {}
    # se path
    p["se0_w"], p["se0_b"] = conv_w(dims, mels, 3), rn((dims,))
    p["se2_w"], p["se2_b"] = conv_w(dims, dims, 3), rn((dims,))
    w_dw = rn((dims, 1, 3), dtype=jnp.float32)          # depthwise torch (C, 1, 3)
    p["se3_w"], p["se3_b"] = jnp.transpose(w_dw[:, 0, :], (1, 0)).astype(wdt), rn((dims,))
    w4 = rn((dims, dims, 1), dtype=jnp.float32)          # 1x1 conv -> (Cin, Cout)
    p["se4_w"], p["se4_b"] = jnp.transpose(w4[:, :, 0], (1, 0)).astype(wdt), rn((dims,))
    red = max(dims // 16, 1)
    p["se_fc1_w"], p["se_fc1_b"] = rn((dims, red), dtype=jnp.float32), rn((red,), dtype=jnp.float32)
    p["se_fc2_w"], p["se_fc2_b"] = rn((red, dims), dtype=jnp.float32), rn((dims,), dtype=jnp.float32)
    p["se8_w"], p["se8_b"] = conv_w(dims, dims, 3), rn((dims,))
    # we path (strided convs, phase-decomposed kernel)
    p["we0_w"], p["we0_b"] = conv_w(dims, 1, 11), rn((dims,))
    p["we2_w"], p["we2_b"] = conv_w(dims, dims, 5), rn((dims,))
    # encoder-level params
    p["blend_sw"] = jnp.float32(0.5)
    p["pos"] = sinusoids(ctx, dims).astype(wdt)
    p["ln_enc_w"] = jnp.ones((dims,), jnp.float32)
    p["head"] = head
    p["rope_sin"], p["rope_cos"] = rotary_sin_cos(ctx, dims // head)
    # residual blocks (q/k/v fused; k has no bias)
    layers = []
    for _ in range(layer):
        qw, kw_, vw = rn((dims, dims)), rn((dims, dims)), rn((dims, dims))
        qb, vb = rn((dims,)), rn((dims,))
        layers.append({
            "lna_w": jnp.ones((dims,), jnp.float32),
            "lnc_w": jnp.ones((dims,), jnp.float32),
            "qkv_w": jnp.concatenate([qw, kw_, vw], axis=1),
            "qkv_b": jnp.concatenate([qb, jnp.zeros((dims,), wdt), vb]),
            "o_w": rn((dims, dims)), "o_b": rn((dims,)),
            "fc1_w": rn((dims, 4 * dims)), "fc1_b": rn((4 * dims,)),
            "fc2_w": rn((4 * dims, dims)), "fc2_b": rn((dims,)),
            "factor": jnp.float32(0.001),
        })
    p["layers"] = layers
    return p


def residual_block(x, p, sin, cos, head):
    B, T, C = x.shape
    x2d = x.reshape(B * T, C)
    # fused RMSNorm(lna) + q|k|v projection
    qkv = matmul_fused(x2d, p["qkv_w"], p["qkv_b"], norm_w=p["lna_w"], eps=1e-8)
    D = C // head
    qkv4 = qkv.reshape(B, T, 3, head, D)
    # head-major (B, H, T, D): every attention block is a clean aligned BlockSpec window
    q = jnp.transpose(qkv4[:, :, 0], (0, 2, 1, 3))
    k = jnp.transpose(qkv4[:, :, 1], (0, 2, 1, 3))
    v = jnp.transpose(qkv4[:, :, 2], (0, 2, 1, 3))
    zero_factor = jnp.clip(jax.nn.softplus(p["factor"]), 1e-5, 0.1)
    attn = attention_core(q, k, v, sin, cos, zero_factor, scale_sq=float(D) ** (-0.5))
    # o-projection with the residual add fused:  x1 = x0 + out(wv)
    x1 = matmul_fused(attn.reshape(B * T, C), p["o_w"], p["o_b"], residuals=(x2d,))
    # fused RMSNorm(lnc) + fc1 + ReLU
    h = matmul_fused(x1, p["fc1_w"], p["fc1_b"], norm_w=p["lnc_w"], eps=1e-8, act="relu")
    # fc2 with both residuals fused:  x3 = fc2(h) + x1 + x0   (== x + mlp + r)
    out = matmul_fused(h, p["fc2_w"], p["fc2_b"], residuals=(x1, x2d))
    return out.reshape(B, T, C)


def audio_encoder_forward(params, x, w):
    # x: (B, mels, ctx) NCL; w: (B, 1, samples) NCL
    # TODO(synk): plot_waveform_and_spectrogram is a matplotlib side effect; skipped.
    B = x.shape[0]

    # --- se path (spectrogram), channels-last bf16 ---
    xc = jnp.transpose(x, (0, 2, 1)).astype(_ACT_DTYPE)
    h = conv1d_same(xc, params["se0_w"], params["se0_b"], k=3, padding=1, act="gelu")
    h = conv1d_same(h, params["se2_w"], params["se2_b"], k=3, padding=2, dilation=2)
    h = dwconv3_pointwise(h, params["se3_w"], params["se3_b"],
                          params["se4_w"], params["se4_b"], padding=1)
    h = se_block(h, params["se_fc1_w"], params["se_fc1_b"],
                 params["se_fc2_w"], params["se_fc2_b"], act="gelu")
    # Dropout(p=0.1): identity (eval mode)
    x_se = conv1d_same(h, params["se8_w"], params["se8_b"], k=3, padding=1)

    # --- we path (waveform) ---
    wc = jnp.transpose(w, (0, 2, 1)).astype(_ACT_DTYPE)
    g = conv1d_strided(wc, params["we0_w"], params["we0_b"],
                       k=11, stride=5, padding=5, act="gelu")
    g = conv1d_strided(g, params["we2_w"], params["we2_b"],
                       k=5, stride=2, padding=2, act="gelu")
    ctx = params["pos"].shape[0]
    L = g.shape[1]
    # TODO(synk): AdaptiveAvgPool1d with non-divisible bins not implemented (L % ctx == 0 here).
    assert L % ctx == 0
    g = jnp.mean(g.reshape(B, ctx, L // ctx, -1).astype(jnp.float32),
                 axis=2).astype(_ACT_DTYPE)

    # --- blend + positional embedding ---
    xb = blend_add_pos(x_se, g, params["pos"], params["blend_sw"])

    # --- residual transformer blocks ---
    for lp in params["layers"]:
        xb = residual_block(xb, lp, params["rope_sin"], params["rope_cos"],
                            head=params["head"])

    # --- final RMSNorm (f32 output) ---
    return rmsnorm(xb, params["ln_enc_w"], eps=1e-8, out_dtype=jnp.float32)


if __name__ == "__main__":
    B, MELS, CTX, DIMS, HEAD, LAYER = 2, 8, 16, 32, 4, 2
    SAMPLES = 320   # conv stack: 320 -> 64 -> 32 -> adaptive pool to CTX=16

    key = jax.random.PRNGKey(0)
    kx, kw, kp = jax.random.split(key, 3)
    x = jax.random.normal(kx, (B, MELS, CTX), dtype=jnp.float32)   # spectrogram (NCL)
    w = jax.random.normal(kw, (B, 1, SAMPLES), dtype=jnp.float32)  # waveform (NCL)

    params = init_params(kp, MELS, CTX, DIMS, HEAD, LAYER)
    fwd = jax.jit(partial(audio_encoder_forward, params))
    out = jax.block_until_ready(fwd(x, w))

    assert out.shape == (B, CTX, DIMS), out.shape
    assert bool(jnp.all(jnp.isfinite(out)))
    print("KERNEL_OK")
</pallas_src>

<mosaic_0001>
module attributes {stable_mosaic.version = 11 : i64} {
  func.func @_conv1d_phase_kernel(%arg0: i32, %arg1: i32, %arg2: memref<1x34x32xbf16, #tpu.memory_space<vmem>>, %arg3: memref<1x34x32xbf16, #tpu.memory_space<vmem>>, %arg4: memref<5x32x32xbf16, #tpu.memory_space<vmem>>, %arg5: memref<1x32xbf16, #tpu.memory_space<vmem>>, %arg6: memref<1x32x32xbf16, #tpu.memory_space<vmem>>) attributes {dimension_semantics = [#tpu.dimension_semantics<parallel>, #tpu.dimension_semantics<parallel>], iteration_bounds = array<i64: 2, 1>, scalar_prefetch = 0 : i64, scratch_operands = 0 : i64, tpu.core_type = #tpu.core_type<tc>, window_params = [{transform_indices = @transform_0, window_bounds = array<i64: 1, 34, 32>}, {transform_indices = @transform_1, window_bounds = array<i64: 1, 34, 32>}, {transform_indices = @transform_2, window_bounds = array<i64: 5, 32, 32>}, {transform_indices = @transform_3, window_bounds = array<i64: 1, 32>}, {transform_indices = @transform_4, window_bounds = array<i64: 1, 32, 32>}]} {
    %cst = arith.constant 0.000000e+00 : f32
    %0 = vector.broadcast %cst : f32 to vector<32x32xf32>
    %c0 = arith.constant 0 : index
    %c0_0 = arith.constant 0 : index
    %c0_1 = arith.constant 0 : index
    %1 = vector.load %arg2[%c0, %c0_0, %c0_1] : memref<1x34x32xbf16, #tpu.memory_space<vmem>>, vector<1x32x32xbf16>
    %2 = vector.shape_cast %1 : vector<1x32x32xbf16> to vector<32x32xbf16>
    %c0_2 = arith.constant 0 : index
    %c0_3 = arith.constant 0 : index
    %c0_4 = arith.constant 0 : index
    %3 = vector.load %arg4[%c0_2, %c0_3, %c0_4] : memref<5x32x32xbf16, #tpu.memory_space<vmem>>, vector<1x32x32xbf16>
    %4 = vector.shape_cast %3 : vector<1x32x32xbf16> to vector<32x32xbf16>
    %cst_5 = arith.constant dense<0.000000e+00> : vector<32x32xf32>
    %5 = tpu.matmul %2, %4, %cst_5 {dimension_numbers = #tpu.dot_dimension_numbers<[1], [0], [0], [1], [0, 0, 1, 1], [], []>} : vector<32x32xbf16>, vector<32x32xbf16>, vector<32x32xf32> -> vector<32x32xf32>
    %6 = arith.addf %0, %5 : vector<32x32xf32>
    %c0_6 = arith.constant 0 : index
    %c0_7 = arith.constant 0 : index
    %c0_8 = arith.constant 0 : index
    %7 = vector.load %arg3[%c0_6, %c0_7, %c0_8] : memref<1x34x32xbf16, #tpu.memory_space<vmem>>, vector<1x32x32xbf16>
    %8 = vector.shape_cast %7 : vector<1x32x32xbf16> to vector<32x32xbf16>
    %c1 = arith.constant 1 : index
    %c0_9 = arith.constant 0 : index
    %c0_10 = arith.constant 0 : index
    %9 = vector.load %arg4[%c1, %c0_9, %c0_10] : memref<5x32x32xbf16, #tpu.memory_space<vmem>>, vector<1x32x32xbf16>
    %10 = vector.shape_cast %9 : vector<1x32x32xbf16> to vector<32x32xbf16>
    %cst_11 = arith.constant dense<0.000000e+00> : vector<32x32xf32>
    %11 = tpu.matmul %8, %10, %cst_11 {dimension_numbers = #tpu.dot_dimension_numbers<[1], [0], [0], [1], [0, 0, 1, 1], [], []>} : vector<32x32xbf16>, vector<32x32xbf16>, vector<32x32xf32> -> vector<32x32xf32>
    %12 = arith.addf %6, %11 : vector<32x32xf32>
    %c0_12 = arith.constant 0 : index
    %c1_13 = arith.constant 1 : index
    %c0_14 = arith.constant 0 : index
    %13 = vector.load %arg2[%c0_12, %c1_13, %c0_14] : memref<1x34x32xbf16, #tpu.memory_space<vmem>>, vector<1x32x32xbf16>
    %14 = vector.shape_cast %13 : vector<1x32x32xbf16> to vector<32x32xbf16>
    %c2 = arith.constant 2 : index
    %c0_15 = arith.constant 0 : index
    %c0_16 = arith.constant 0 : index
    %15 = vector.load %arg4[%c2, %c0_15, %c0_16] : memref<5x32x32xbf16, #tpu.memory_space<vmem>>, vector<1x32x32xbf16>
    %16 = vector.shape_cast %15 : vector<1x32x32xbf16> to vector<32x32xbf16>
    %cst_17 = arith.constant dense<0.000000e+00> : vector<32x32xf32>
    %17 = tpu.matmul %14, %16, %cst_17 {dimension_numbers = #tpu.dot_dimension_numbers<[1], [0], [0], [1], [0, 0, 1, 1], [], []>} : vector<32x32xbf16>, vector<32x32xbf16>, vector<32x32xf32> -> vector<32x32xf32>
    %18 = arith.addf %12, %17 : vector<32x32xf32>
    %c0_18 = arith.constant 0 : index
    %c1_19 = arith.constant 1 : index
    %c0_20 = arith.constant 0 : index
    %19 = vector.load %arg3[%c0_18, %c1_19, %c0_20] : memref<1x34x32xbf16, #tpu.memory_space<vmem>>, vector<1x32x32xbf16>
    %20 = vector.shape_cast %19 : vector<1x32x32xbf16> to vector<32x32xbf16>
    %c3 = arith.constant 3 : index
    %c0_21 = arith.constant 0 : index
    %c0_22 = arith.constant 0 : index
    %21 = vector.load %arg4[%c3, %c0_21, %c0_22] : memref<5x32x32xbf16, #tpu.memory_space<vmem>>, vector<1x32x32xbf16>
    %22 = vector.shape_cast %21 : vector<1x32x32xbf16> to vector<32x32xbf16>
    %cst_23 = arith.constant dense<0.000000e+00> : vector<32x32xf32>
    %23 = tpu.matmul %20, %22, %cst_23 {dimension_numbers = #tpu.dot_dimension_numbers<[1], [0], [0], [1], [0, 0, 1, 1], [], []>} : vector<32x32xbf16>, vector<32x32xbf16>, vector<32x32xf32> -> vector<32x32xf32>
    %24 = arith.addf %18, %23 : vector<32x32xf32>
    %c0_24 = arith.constant 0 : index
    %c2_25 = arith.constant 2 : index
    %c0_26 = arith.constant 0 : index
    %25 = vector.load %arg2[%c0_24, %c2_25, %c0_26] : memref<1x34x32xbf16, #tpu.memory_space<vmem>>, vector<1x32x32xbf16>
    %26 = vector.shape_cast %25 : vector<1x32x32xbf16> to vector<32x32xbf16>
    %c4 = arith.constant 4 : index
    %c0_27 = arith.constant 0 : index
    %c0_28 = arith.constant 0 : index
    %27 = vector.load %arg4[%c4, %c0_27, %c0_28] : memref<5x32x32xbf16, #tpu.memory_space<vmem>>, vector<1x32x32xbf16>
    %28 = vector.shape_cast %27 : vector<1x32x32xbf16> to vector<32x32xbf16>
    %cst_29 = arith.constant dense<0.000000e+00> : vector<32x32xf32>
    %29 = tpu.matmul %26, %28, %cst_29 {dimension_numbers = #tpu.dot_dimension_numbers<[1], [0], [0], [1], [0, 0, 1, 1], [], []>} : vector<32x32xbf16>, vector<32x32xbf16>, vector<32x32xf32> -> vector<32x32xf32>
    %30 = arith.addf %24, %29 : vector<32x32xf32>
    %c0_30 = arith.constant 0 : index
    %c0_31 = arith.constant 0 : index
    %31 = vector.load %arg5[%c0_30, %c0_31] : memref<1x32xbf16, #tpu.memory_space<vmem>>, vector<1x32xbf16>
    %32 = arith.extf %31 : vector<1x32xbf16> to vector<1x32xf32>
    %33 = vector.broadcast %32 : vector<1x32xf32> to vector<32x32xf32>
    %34 = arith.addf %30, %33 : vector<32x32xf32>
    %cst_32 = arith.constant 5.000000e-01 : f32
    %35 = vector.broadcast %cst_32 : f32 to vector<32x32xf32>
    %36 = arith.mulf %35, %34 : vector<32x32xf32>
    %cst_33 = arith.constant 4.471500e-02 : f32
    %37 = vector.broadcast %cst_33 : f32 to vector<32x32xf32>
    %38 = arith.mulf %37, %34 : vector<32x32xf32>
    %39 = arith.mulf %38, %34 : vector<32x32xf32>
    %40 = arith.mulf %39, %34 : vector<32x32xf32>
    %41 = arith.addf %34, %40 : vector<32x32xf32>
    %cst_34 = arith.constant 0.797884583 : f32
    %42 = vector.broadcast %cst_34 : f32 to vector<32x32xf32>
    %43 = arith.mulf %42, %41 : vector<32x32xf32>
    %44 = math.tanh %43 : vector<32x32xf32>
    %cst_35 = arith.constant 1.000000e+00 : f32
    %45 = vector.broadcast %cst_35 : f32 to vector<32x32xf32>
    %46 = arith.addf %45, %44 : vector<32x32xf32>
    %47 = arith.mulf %36, %46 : vector<32x32xf32>
    %48 = arith.truncf %47 : vector<32x32xf32> to vector<32x32xbf16>
    %c0_36 = arith.constant 0 : index
    %c0_37 = arith.constant 0 : index
    %c0_38 = arith.constant 0 : index
    %49 = vector.load %arg6[%c0_36, %c0_37, %c0_38] : memref<1x32x32xbf16, #tpu.memory_space<vmem>>, vector<1x32x32xbf16>
    %50 = vector.shape_cast %49 : vector<1x32x32xbf16> to vector<32x32xbf16>
    %51 = vector.shape_cast %48 : vector<32x32xbf16> to vector<1x32x32xbf16>
    tpu.vector_store %arg6[%c0_36, %c0_37, %c0_38], %51 {strides = array<i32>} : memref<1x32x32xbf16, #tpu.memory_space<vmem>>, vector<1x32x32xbf16>,
    return
  }
  func.func @transform_0(%arg0: i32, %arg1: i32) -> (i32, i32, i32) {
    %c0_i32 = arith.constant 0 : i32
    %c0_i32_0 = arith.constant 0 : i32
    %c0_i32_1 = arith.constant 0 : i32
    return %arg0, %c0_i32, %c0_i32_0 : i32, i32, i32
  }
  func.func @transform_1(%arg0: i32, %arg1: i32) -> (i32, i32, i32) {
    %c0_i32 = arith.constant 0 : i32
    %c0_i32_0 = arith.constant 0 : i32
    %c0_i32_1 = arith.constant 0 : i32
    return %arg0, %c0_i32, %c0_i32_0 : i32, i32, i32
  }
  func.func @transform_2(%arg0: i32, %arg1: i32) -> (i32, i32, i32) {
    %c0_i32 = arith.constant 0 : i32
    %c0_i32_0 = arith.constant 0 : i32
    %c0_i32_1 = arith.constant 0 : i32
    return %c0_i32, %c0_i32_0, %arg1 : i32, i32, i32
  }
  func.func @transform_3(%arg0: i32, %arg1: i32) -> (i32, i32) {
    %c0_i32 = arith.constant 0 : i32
    %c0_i32_0 = arith.constant 0 : i32
    return %c0_i32, %arg1 : i32, i32
  }
  func.func @transform_4(%arg0: i32, %arg1: i32) -> (i32, i32, i32) {
    %c0_i32 = arith.constant 0 : i32
    %c0_i32_0 = arith.constant 0 : i32
    return %arg0, %c0_i32, %arg1 : i32, i32, i32
  }
}

module attributes {stable_mosaic.version = 11 : i64} {
  func.func @_conv1d_phase_kernel(%arg0: i32, %arg1: i32, %arg2: memref<1x66x1xbf16, #tpu.memory_space<vmem>>, %arg3: memref<1x66x1xbf16, #tpu.memory_space<vmem>>, %arg4: memref<1x66x1xbf16, #tpu.memory_space<vmem>>, %arg5: memref<1x66x1xbf16, #tpu.memory_space<vmem>>, %arg6: memref<1x66x1xbf16, #tpu.memory_space<vmem>>, %arg7: memref<11x1x32xbf16, #tpu.memory_space<vmem>>, %arg8: memref<1x32xbf16, #tpu.memory_space<vmem>>, %arg9: memref<1x64x32xbf16, #tpu.memory_space<vmem>>) attributes {dimension_semantics = [#tpu.dimension_semantics<parallel>, #tpu.dimension_semantics<parallel>], iteration_bounds = array<i64: 2, 1>, scalar_prefetch = 0 : i64, scratch_operands = 0 : i64, tpu.core_type = #tpu.core_type<tc>, window_params = [{transform_indices = @transform_0, window_bounds = array<i64: 1, 66, 1>}, {transform_indices = @transform_1, window_bounds = array<i64: 1, 66, 1>}, {transform_indices = @transform_2, window_bounds = array<i64: 1, 66, 1>}, {transform_indices = @transform_3, window_bounds = array<i64: 1, 66, 1>}, {transform_indices = @transform_4, window_bounds = array<i64: 1, 66, 1>}, {transform_indices = @transform_5, window_bounds = array<i64: 11, 1, 32>}, {transform_indices = @transform_6, window_bounds = array<i64: 1, 32>}, {transform_indices = @transform_7, window_bounds = array<i64: 1, 64, 32>}]} {
    %cst = arith.constant 0.000000e+00 : f32
    %0 = vector.broadcast %cst : f32 to vector<64x32xf32>
    %c0 = arith.constant 0 : index
    %c0_0 = arith.constant 0 : index
    %c0_1 = arith.constant 0 : index
    %1 = vector.load %arg2[%c0, %c0_0, %c0_1] : memref<1x66x1xbf16, #tpu.memory_space<vmem>>, vector<1x64x1xbf16>
    %2 = vector.shape_cast %1 : vector<1x64x1xbf16> to vector<64x1xbf16>
    %c0_2 = arith.constant 0 : index
    %c0_3 = arith.constant 0 : index
    %c0_4 = arith.constant 0 : index
    %3 = vector.load %arg7[%c0_2, %c0_3, %c0_4] : memref<11x1x32xbf16, #tpu.memory_space<vmem>>, vector<1x1x32xbf16>
    %4 = vector.shape_cast %3 : vector<1x1x32xbf16> to vector<1x32xbf16>
    %5 = arith.extf %2 : vector<64x1xbf16> to vector<64x1xf32>
    %6 = arith.extf %4 : vector<1x32xbf16> to vector<1x32xf32>
    %7 = vector.broadcast %5 : vector<64x1xf32> to vector<64x32xf32>
    %8 = vector.broadcast %6 : vector<1x32xf32> to vector<64x32xf32>
    %9 = arith.mulf %7, %8 : vector<64x32xf32>
    %10 = arith.addf %0, %9 : vector<64x32xf32>
    %c0_5 = arith.constant 0 : index
    %c0_6 = arith.constant 0 : index
    %c0_7 = arith.constant 0 : index
    %11 = vector.load %arg3[%c0_5, %c0_6, %c0_7] : memref<1x66x1xbf16, #tpu.memory_space<vmem>>, vector<1x64x1xbf16>
    %12 = vector.shape_cast %11 : vector<1x64x1xbf16> to vector<64x1xbf16>
    %c1 = arith.constant 1 : index
    %c0_8 = arith.constant 0 : index
    %c0_9 = arith.constant 0 : index
    %13 = vector.load %arg7[%c1, %c0_8, %c0_9] : memref<11x1x32xbf16, #tpu.memory_space<vmem>>, vector<1x1x32xbf16>
    %14 = vector.shape_cast %13 : vector<1x1x32xbf16> to vector<1x32xbf16>
    %15 = arith.extf %12 : vector<64x1xbf16> to vector<64x1xf32>
    %16 = arith.extf %14 : vector<1x32xbf16> to vector<1x32xf32>
    %17 = vector.broadcast %15 : vector<64x1xf32> to vector<64x32xf32>
    %18 = vector.broadcast %16 : vector<1x32xf32> to vector<64x32xf32>
    %19 = arith.mulf %17, %18 : vector<64x32xf32>
    %20 = arith.addf %10, %19 : vector<64x32xf32>
    %c0_10 = arith.constant 0 : index
    %c0_11 = arith.constant 0 : index
    %c0_12 = arith.constant 0 : index
    %21 = vector.load %arg4[%c0_10, %c0_11, %c0_12] : memref<1x66x1xbf16, #tpu.memory_space<vmem>>, vector<1x64x1xbf16>
    %22 = vector.shape_cast %21 : vector<1x64x1xbf16> to vector<64x1xbf16>
    %c2 = arith.constant 2 : index
    %c0_13 = arith.constant 0 : index
    %c0_14 = arith.constant 0 : index
    %23 = vector.load %arg7[%c2, %c0_13, %c0_14] : memref<11x1x32xbf16, #tpu.memory_space<vmem>>, vector<1x1x32xbf16>
    %24 = vector.shape_cast %23 : vector<1x1x32xbf16> to vector<1x32xbf16>
    %25 = arith.extf %22 : vector<64x1xbf16> to vector<64x1xf32>
    %26 = arith.extf %24 : vector<1x32xbf16> to vector<1x32xf32>
    %27 = vector.broadcast %25 : vector<64x1xf32> to vector<64x32xf32>
    %28 = vector.broadcast %26 : vector<1x32xf32> to vector<64x32xf32>
    %29 = arith.mulf %27, %28 : vector<64x32xf32>
    %30 = arith.addf %20, %29 : vector<64x32xf32>
    %c0_15 = arith.constant 0 : index
    %c0_16 = arith.constant 0 : index
    %c0_17 = arith.constant 0 : index
    %31 = vector.load %arg5[%c0_15, %c0_16, %c0_17] : memref<1x66x1xbf16, #tpu.memory_space<vmem>>, vector<1x64x1xbf16>
    %32 = vector.shape_cast %31 : vector<1x64x1xbf16> to vector<64x1xbf16>
    %c3 = arith.constant 3 : index
    %c0_18 = arith.constant 0 : index
    %c0_19 = arith.constant 0 : index
    %33 = vector.load %arg7[%c3, %c0_18, %c0_19] : memref<11x1x32xbf16, #tpu.memory_space<vmem>>, vector<1x1x32xbf16>
    %34 = vector.shape_cast %33 : vector<1x1x32xbf16> to vector<1x32xbf16>
    %35 = arith.extf %32 : vector<64x1xbf16> to vector<64x1xf32>
    %36 = arith.extf %34 : vector<1x32xbf16> to vector<1x32xf32>
    %37 = vector.broadcast %35 : vector<64x1xf32> to vector<64x32xf32>
    %38 = vector.broadcast %36 : vector<1x32xf32> to vector<64x32xf32>
    %39 = arith.mulf %37, %38 : vector<64x32xf32>
    %40 = arith.addf %30, %39 : vector<64x32xf32>
    %c0_20 = arith.constant 0 : index
    %c0_21 = arith.constant 0 : index
    %c0_22 = arith.constant 0 : index
    %41 = vector.load %arg6[%c0_20, %c0_21, %c0_22] : memref<1x66x1xbf16, #tpu.memory_space<vmem>>, vector<1x64x1xbf16>
    %42 = vector.shape_cast %41 : vector<1x64x1xbf16> to vector<64x1xbf16>
    %c4 = arith.constant 4 : index
    %c0_23 = arith.constant 0 : index
    %c0_24 = arith.constant 0 : index
    %43 = vector.load %arg7[%c4, %c0_23, %c0_24] : memref<11x1x32xbf16, #tpu.memory_space<vmem>>, vector<1x1x32xbf16>
    %44 = vector.shape_cast %43 : vector<1x1x32xbf16> to vector<1x32xbf16>
    %45 = arith.extf %42 : vector<64x1xbf16> to vector<64x1xf32>
    %46 = arith.extf %44 : vector<1x32xbf16> to vector<1x32xf32>
    %47 = vector.broadcast %45 : vector<64x1xf32> to vector<64x32xf32>
    %48 = vector.broadcast %46 : vector<1x32xf32> to vector<64x32xf32>
    %49 = arith.mulf %47, %48 : vector<64x32xf32>
    %50 = arith.addf %40, %49 : vector<64x32xf32>
    %c0_25 = arith.constant 0 : index
    %c1_26 = arith.constant 1 : index
    %c0_27 = arith.constant 0 : index
    %51 = vector.load %arg2[%c0_25, %c1_26, %c0_27] : memref<1x66x1xbf16, #tpu.memory_space<vmem>>, vector<1x64x1xbf16>
    %52 = vector.shape_cast %51 : vector<1x64x1xbf16> to vector<64x1xbf16>
    %c5 = arith.constant 5 : index
    %c0_28 = arith.constant 0 : index
    %c0_29 = arith.constant 0 : index
    %53 = vector.load %arg7[%c5, %c0_28, %c0_29] : memref<11x1x32xbf16, #tpu.memory_space<vmem>>, vector<1x1x32xbf16>
    %54 = vector.shape_cast %53 : vector<1x1x32xbf16> to vector<1x32xbf16>
    %55 = arith.extf %52 : vector<64x1xbf16> to vector<64x1xf32>
    %56 = arith.extf %54 : vector<1x32xbf16> to vector<1x32xf32>
    %57 = vector.broadcast %55 : vector<64x1xf32> to vector<64x32xf32>
    %58 = vector.broadcast %56 : vector<1x32xf32> to vector<64x32xf32>
    %59 = arith.mulf %57, %58 : vector<64x32xf32>
    %60 = arith.addf %50, %59 : vector<64x32xf32>
    %c0_30 = arith.constant 0 : index
    %c1_31 = arith.constant 1 : index
    %c0_32 = arith.constant 0 : index
    %61 = vector.load %arg3[%c0_30, %c1_31, %c0_32] : memref<1x66x1xbf16, #tpu.memory_space<vmem>>, vector<1x64x1xbf16>
    %62 = vector.shape_cast %61 : vector<1x64x1xbf16> to vector<64x1xbf16>
    %c6 = arith.constant 6 : index
    %c0_33 = arith.constant 0 : index
    %c0_34 = arith.constant 0 : index
    %63 = vector.load %arg7[%c6, %c0_33, %c0_34] : memref<11x1x32xbf16, #tpu.memory_space<vmem>>, vector<1x1x32xbf16>
    %64 = vector.shape_cast %63 : vector<1x1x32xbf16> to vector<1x32xbf16>
    %65 = arith.extf %62 : vector<64x1xbf16> to vector<64x1xf32>
    %66 = arith.extf %64 : vector<1x32xbf16> to vector<1x32xf32>
    %67 = vector.broadcast %65 : vector<64x1xf32> to vector<64x32xf32>
    %68 = vector.broadcast %66 : vector<1x32xf32> to vector<64x32xf32>
    %69 = arith.mulf %67, %68 : vector<64x32xf32>
    %70 = arith.addf %60, %69 : vector<64x32xf32>
    %c0_35 = arith.constant 0 : index
    %c1_36 = arith.constant 1 : index
    %c0_37 = arith.constant 0 : index
    %71 = vector.load %arg4[%c0_35, %c1_36, %c0_37] : memref<1x66x1xbf16, #tpu.memory_space<vmem>>, vector<1x64x1xbf16>
    %72 = vector.shape_cast %71 : vector<1x64x1xbf16> to vector<64x1xbf16>
    %c7 = arith.constant 7 : index
    %c0_38 = arith.constant 0 : index
    %c0_39 = arith.constant 0 : index
    %73 = vector.load %arg7[%c7, %c0_38, %c0_39] : memref<11x1x32xbf16, #tpu.memory_space<vmem>>, vector<1x1x32xbf16>
    %74 = vector.shape_cast %73 : vector<1x1x32xbf16> to vector<1x32xbf16>
    %75 = arith.extf %72 : vector<64x1xbf16> to vector<64x1xf32>
    %76 = arith.extf %74 : vector<1x32xbf16> to vector<1x32xf32>
    %77 = vector.broadcast %75 : vector<64x1xf32> to vector<64x32xf32>
    %78 = vector.broadcast %76 : vector<1x32xf32> to vector<64x32xf32>
    %79 = arith.mulf %77, %78 : vector<64x32xf32>
    %80 = arith.addf %70, %79 : vector<64x32xf32>
    %c0_40 = arith.constant 0 : index
    %c1_41 = arith.constant 1 : index
    %c0_42 = arith.constant 0 : index
    %81 = vector.load %arg5[%c0_40, %c1_41, %c0_42] : memref<1x66x1xbf16, #tpu.memory_space<vmem>>, vector<1x64x1xbf16>
    %82 = vector.shape_cast %81 : vector<1x64x1xbf16> to vector<64x1xbf16>
    %c8 = arith.constant 8 : index
    %c0_43 = arith.constant 0 : index
    %c0_44 = arith.constant 0 : index
    %83 = vector.load %arg7[%c8, %c0_43, %c0_44] : memref<11x1x32xbf16, #tpu.memory_space<vmem>>, vector<1x1x32xbf16>
    %84 = vector.shape_cast %83 : vector<1x1x32xbf16> to vector<1x32xbf16>
    %85 = arith.extf %82 : vector<64x1xbf16> to vector<64x1xf32>
    %86 = arith.extf %84 : vector<1x32xbf16> to vector<1x32xf32>
    %87 = vector.broadcast %85 : vector<64x1xf32> to vector<64x32xf32>
    %88 = vector.broadcast %86 : vector<1x32xf32> to vector<64x32xf32>
    %89 = arith.mulf %87, %88 : vector<64x32xf32>
    %90 = arith.addf %80, %89 : vector<64x32xf32>
    %c0_45 = arith.constant 0 : index
    %c1_46 = arith.constant 1 : index
    %c0_47 = arith.constant 0 : index
    %91 = vector.load %arg6[%c0_45, %c1_46, %c0_47] : memref<1x66x1xbf16, #tpu.memory_space<vmem>>, vector<1x64x1xbf16>
    %92 = vector.shape_cast %91 : vector<1x64x1xbf16> to vector<64x1xbf16>
    %c9 = arith.constant 9 : index
    %c0_48 = arith.constant 0 : index
    %c0_49 = arith.constant 0 : index
    %93 = vector.load %arg7[%c9, %c0_48, %c0_49] : memref<11x1x32xbf16, #tpu.memory_space<vmem>>, vector<1x1x32xbf16>
    %94 = vector.shape_cast %93 : vector<1x1x32xbf16> to vector<1x32xbf16>
    %95 = arith.extf %92 : vector<64x1xbf16> to vector<64x1xf32>
    %96 = arith.extf %94 : vector<1x32xbf16> to vector<1x32xf32>
    %97 = vector.broadcast %95 : vector<64x1xf32> to vector<64x32xf32>
    %98 = vector.broadcast %96 : vector<1x32xf32> to vector<64x32xf32>
    %99 = arith.mulf %97, %98 : vector<64x32xf32>
    %100 = arith.addf %90, %99 : vector<64x32xf32>
    %c0_50 = arith.constant 0 : index
    %c2_51 = arith.constant 2 : index
    %c0_52 = arith.constant 0 : index
    %101 = vector.load %arg2[%c0_50, %c2_51, %c0_52] : memref<1x66x1xbf16, #tpu.memory_space<vmem>>, vector<1x64x1xbf16>
    %102 = vector.shape_cast %101 : vector<1x64x1xbf16> to vector<64x1xbf16>
    %c10 = arith.constant 10 : index
    %c0_53 = arith.constant 0 : index
    %c0_54 = arith.constant 0 : index
    %103 = vector.load %arg7[%c10, %c0_53, %c0_54] : memref<11x1x32xbf16, #tpu.memory_space<vmem>>, vector<1x1x32xbf16>
    %104 = vector.shape_cast %103 : vector<1x1x32xbf16> to vector<1x32xbf16>
    %105 = arith.extf %102 : vector<64x1xbf16> to vector<64x1xf32>
    %106 = arith.extf %104 : vector<1x32xbf16> to vector<1x32xf32>
    %107 = vector.broadcast %105 : vector<64x1xf32> to vector<64x32xf32>
    %108 = vector.broadcast %106 : vector<1x32xf32> to vector<64x32xf32>
    %109 = arith.mulf %107, %108 : vector<64x32xf32>
    %110 = arith.addf %100, %109 : vector<64x32xf32>
    %c0_55 = arith.constant 0 : index
    %c0_56 = arith.constant 0 : index
    %111 = vector.load %arg8[%c0_55, %c0_56] : memref<1x32xbf16, #tpu.memory_space<vmem>>, vector<1x32xbf16>
    %112 = arith.extf %111 : vector<1x32xbf16> to vector<1x32xf32>
    %113 = vector.broadcast %112 : vector<1x32xf32> to vector<64x32xf32>
    %114 = arith.addf %110, %113 : vector<64x32xf32>
    %cst_57 = arith.constant 5.000000e-01 : f32
    %115 = vector.broadcast %cst_57 : f32 to vector<64x32xf32>
    %116 = arith.mulf %115, %114 : vector<64x32xf32>
    %cst_58 = arith.constant 4.471500e-02 : f32
    %117 = vector.broadcast %cst_58 : f32 to vector<64x32xf32>
    %118 = arith.mulf %117, %114 : vector<64x32xf32>
    %119 = arith.mulf %118, %114 : vector<64x32xf32>
    %120 = arith.mulf %119, %114 : vector<64x32xf32>
    %121 = arith.addf %114, %120 : vector<64x32xf32>
    %cst_59 = arith.constant 0.797884583 : f32
    %122 = vector.broadcast %cst_59 : f32 to vector<64x32xf32>
    %123 = arith.mulf %122, %121 : vector<64x32xf32>
    %124 = math.tanh %123 : vector<64x32xf32>
    %cst_60 = arith.constant 1.000000e+00 : f32
    %125 = vector.broadcast %cst_60 : f32 to vector<64x32xf32>
    %126 = arith.addf %125, %124 : vector<64x32xf32>
    %127 = arith.mulf %116, %126 : vector<64x32xf32>
    %128 = arith.truncf %127 : vector<64x32xf32> to vector<64x32xbf16>
    %c0_61 = arith.constant 0 : index
    %c0_62 = arith.constant 0 : index
    %c0_63 = arith.constant 0 : index
    %129 = vector.load %arg9[%c0_61, %c0_62, %c0_63] : memref<1x64x32xbf16, #tpu.memory_space<vmem>>, vector<1x64x32xbf16>
    %130 = vector.shape_cast %129 : vector<1x64x32xbf16> to vector<64x32xbf16>
    %131 = vector.shape_cast %128 : vector<64x32xbf16> to vector<1x64x32xbf16>
    tpu.vector_store %arg9[%c0_61, %c0_62, %c0_63], %131 {strides = array<i32>} : memref<1x64x32xbf16, #tpu.memory_space<vmem>>, vector<1x64x32xbf16>,
    return
  }
  func.func @transform_0(%arg0: i32, %arg1: i32) -> (i32, i32, i32) {
    %c0_i32 = arith.constant 0 : i32
    %c0_i32_0 = arith.constant 0 : i32
    %c0_i32_1 = arith.constant 0 : i32
    return %arg0, %c0_i32, %c0_i32_0 : i32, i32, i32
  }
  func.func @transform_1(%arg0: i32, %arg1: i32) -> (i32, i32, i32) {
    %c0_i32 = arith.constant 0 : i32
    %c0_i32_0 = arith.constant 0 : i32
    %c0_i32_1 = arith.constant 0 : i32
    return %arg0, %c0_i32, %c0_i32_0 : i32, i32, i32
  }
  func.func @transform_2(%arg0: i32, %arg1: i32) -> (i32, i32, i32) {
    %c0_i32 = arith.constant 0 : i32
    %c0_i32_0 = arith.constant 0 : i32
    %c0_i32_1 = arith.constant 0 : i32
    return %arg0, %c0_i32, %c0_i32_0 : i32, i32, i32
  }
  func.func @transform_3(%arg0: i32, %arg1: i32) -> (i32, i32, i32) {
    %c0_i32 = arith.constant 0 : i32
    %c0_i32_0 = arith.constant 0 : i32
    %c0_i32_1 = arith.constant 0 : i32
    return %arg0, %c0_i32, %c0_i32_0 : i32, i32, i32
  }
  func.func @transform_4(%arg0: i32, %arg1: i32) -> (i32, i32, i32) {
    %c0_i32 = arith.constant 0 : i32
    %c0_i32_0 = arith.constant 0 : i32
    %c0_i32_1 = arith.constant 0 : i32
    return %arg0, %c0_i32, %c0_i32_0 : i32, i32, i32
  }
  func.func @transform_5(%arg0: i32, %arg1: i32) -> (i32, i32, i32) {
    %c0_i32 = arith.constant 0 : i32
    %c0_i32_0 = arith.constant 0 : i32
    %c0_i32_1 = arith.constant 0 : i32
    return %c0_i32, %c0_i32_0, %arg1 : i32, i32, i32
  }
  func.func @transform_6(%arg0: i32, %arg1: i32) -> (i32, i32) {
    %c0_i32 = arith.constant 0 : i32
    %c0_i32_0 = arith.constant 0 : i32
    return %c0_i32, %arg1 : i32, i32
  }
  func.func @transform_7(%arg0: i32, %arg1: i32) -> (i32, i32, i32) {
    %c0_i32 = arith.constant 0 : i32
    %c0_i32_0 = arith.constant 0 : i32
    return %arg0, %c0_i32, %arg1 : i32, i32, i32
  }
}

module attributes {stable_mosaic.version = 11 : i64} {
  func.func @_conv1d_kernel(%arg0: i32, %arg1: i32, %arg2: memref<1x18x8xbf16, #tpu.memory_space<vmem>>, %arg3: memref<3x8x32xbf16, #tpu.memory_space<vmem>>, %arg4: memref<1x32xbf16, #tpu.memory_space<vmem>>, %arg5: memref<1x16x32xbf16, #tpu.memory_space<vmem>>) attributes {dimension_semantics = [#tpu.dimension_semantics<parallel>, #tpu.dimension_semantics<parallel>], iteration_bounds = array<i64: 2, 1>, scalar_prefetch = 0 : i64, scratch_operands = 0 : i64, tpu.core_type = #tpu.core_type<tc>, window_params = [{transform_indices = @transform_0, window_bounds = array<i64: 1, 18, 8>}, {transform_indices = @transform_1, window_bounds = array<i64: 3, 8, 32>}, {transform_indices = @transform_2, window_bounds = array<i64: 1, 32>}, {transform_indices = @transform_3, window_bounds = array<i64: 1, 16, 32>}]} {
    %cst = arith.constant 0.000000e+00 : f32
    %0 = vector.broadcast %cst : f32 to vector<16x32xf32>
    %c0 = arith.constant 0 : index
    %c0_0 = arith.constant 0 : index
    %c0_1 = arith.constant 0 : index
    %1 = vector.load %arg2[%c0, %c0_0, %c0_1] : memref<1x18x8xbf16, #tpu.memory_space<vmem>>, vector<1x16x8xbf16>
    %2 = vector.shape_cast %1 : vector<1x16x8xbf16> to vector<16x8xbf16>
    %c0_2 = arith.constant 0 : index
    %c0_3 = arith.constant 0 : index
    %c0_4 = arith.constant 0 : index
    %3 = vector.load %arg3[%c0_2, %c0_3, %c0_4] : memref<3x8x32xbf16, #tpu.memory_space<vmem>>, vector<1x8x32xbf16>
    %4 = vector.shape_cast %3 : vector<1x8x32xbf16> to vector<8x32xbf16>
    %cst_5 = arith.constant dense<0.000000e+00> : vector<16x32xf32>
    %5 = tpu.matmul %2, %4, %cst_5 {dimension_numbers = #tpu.dot_dimension_numbers<[1], [0], [0], [1], [0, 0, 1, 1], [], []>} : vector<16x8xbf16>, vector<8x32xbf16>, vector<16x32xf32> -> vector<16x32xf32>
    %6 = arith.addf %0, %5 : vector<16x32xf32>
    %c0_6 = arith.constant 0 : index
    %c1 = arith.constant 1 : index
    %c0_7 = arith.constant 0 : index
    %7 = vector.load %arg2[%c0_6, %c1, %c0_7] : memref<1x18x8xbf16, #tpu.memory_space<vmem>>, vector<1x16x8xbf16>
    %8 = vector.shape_cast %7 : vector<1x16x8xbf16> to vector<16x8xbf16>
    %c1_8 = arith.constant 1 : index
    %c0_9 = arith.constant 0 : index
    %c0_10 = arith.constant 0 : index
    %9 = vector.load %arg3[%c1_8, %c0_9, %c0_10] : memref<3x8x32xbf16, #tpu.memory_space<vmem>>, vector<1x8x32xbf16>
    %10 = vector.shape_cast %9 : vector<1x8x32xbf16> to vector<8x32xbf16>
    %cst_11 = arith.constant dense<0.000000e+00> : vector<16x32xf32>
    %11 = tpu.matmul %8, %10, %cst_11 {dimension_numbers = #tpu.dot_dimension_numbers<[1], [0], [0], [1], [0, 0, 1, 1], [], []>} : vector<16x8xbf16>, vector<8x32xbf16>, vector<16x32xf32> -> vector<16x32xf32>
    %12 = arith.addf %6, %11 : vector<16x32xf32>
    %c0_12 = arith.constant 0 : index
    %c2 = arith.constant 2 : index
    %c0_13 = arith.constant 0 : index
    %13 = vector.load %arg2[%c0_12, %c2, %c0_13] : memref<1x18x8xbf16, #tpu.memory_space<vmem>>, vector<1x16x8xbf16>
    %14 = vector.shape_cast %13 : vector<1x16x8xbf16> to vector<16x8xbf16>
    %c2_14 = arith.constant 2 : index
    %c0_15 = arith.constant 0 : index
    %c0_16 = arith.constant 0 : index
    %15 = vector.load %arg3[%c2_14, %c0_15, %c0_16] : memref<3x8x32xbf16, #tpu.memory_space<vmem>>, vector<1x8x32xbf16>
    %16 = vector.shape_cast %15 : vector<1x8x32xbf16> to vector<8x32xbf16>
    %cst_17 = arith.constant dense<0.000000e+00> : vector<16x32xf32>
    %17 = tpu.matmul %14, %16, %cst_17 {dimension_numbers = #tpu.dot_dimension_numbers<[1], [0], [0], [1], [0, 0, 1, 1], [], []>} : vector<16x8xbf16>, vector<8x32xbf16>, vector<16x32xf32> -> vector<16x32xf32>
    %18 = arith.addf %12, %17 : vector<16x32xf32>
    %c0_18 = arith.constant 0 : index
    %c0_19 = arith.constant 0 : index
    %19 = vector.load %arg4[%c0_18, %c0_19] : memref<1x32xbf16, #tpu.memory_space<vmem>>, vector<1x32xbf16>
    %20 = arith.extf %19 : vector<1x32xbf16> to vector<1x32xf32>
    %21 = vector.broadcast %20 : vector<1x32xf32> to vector<16x32xf32>
    %22 = arith.addf %18, %21 : vector<16x32xf32>
    %cst_20 = arith.constant 5.000000e-01 : f32
    %23 = vector.broadcast %cst_20 : f32 to vector<16x32xf32>
    %24 = arith.mulf %23, %22 : vector<16x32xf32>
    %cst_21 = arith.constant 4.471500e-02 : f32
    %25 = vector.broadcast %cst_21 : f32 to vector<16x32xf32>
    %26 = arith.mulf %25, %22 : vector<16x32xf32>
    %27 = arith.mulf %26, %22 : vector<16x32xf32>
    %28 = arith.mulf %27, %22 : vector<16x32xf32>
    %29 = arith.addf %22, %28 : vector<16x32xf32>
    %cst_22 = arith.constant 0.797884583 : f32
    %30 = vector.broadcast %cst_22 : f32 to vector<16x32xf32>
    %31 = arith.mulf %30, %29 : vector<16x32xf32>
    %32 = math.tanh %31 : vector<16x32xf32>
    %cst_23 = arith.constant 1.000000e+00 : f32
    %33 = vector.broadcast %cst_23 : f32 to vector<16x32xf32>
    %34 = arith.addf %33, %32 : vector<16x32xf32>
    %35 = arith.mulf %24, %34 : vector<16x32xf32>
    %36 = arith.truncf %35 : vector<16x32xf32> to vector<16x32xbf16>
    %c0_24 = arith.constant 0 : index
    %c0_25 = arith.constant 0 : index
    %c0_26 = arith.constant 0 : index
    %37 = vector.load %arg5[%c0_24, %c0_25, %c0_26] : memref<1x16x32xbf16, #tpu.memory_space<vmem>>, vector<1x16x32xbf16>
    %38 = vector.shape_cast %37 : vector<1x16x32xbf16> to vector<16x32xbf16>
    %39 = vector.shape_cast %36 : vector<16x32xbf16> to vector<1x16x32xbf16>
    tpu.vector_store %arg5[%c0_24, %c0_25, %c0_26], %39 {strides = array<i32>} : memref<1x16x32xbf16, #tpu.memory_space<vmem>>, vector<1x16x32xbf16>,
    return
  }
  func.func @transform_0(%arg0: i32, %arg1: i32) -> (i32, i32, i32) {
    %c0_i32 = arith.constant 0 : i32
    %c0_i32_0 = arith.constant 0 : i32
    %c0_i32_1 = arith.constant 0 : i32
    return %arg0, %c0_i32, %c0_i32_0 : i32, i32, i32
  }
  func.func @transform_1(%arg0: i32, %arg1: i32) -> (i32, i32, i32) {
    %c0_i32 = arith.constant 0 : i32
    %c0_i32_0 = arith.constant 0 : i32
    %c0_i32_1 = arith.constant 0 : i32
    return %c0_i32, %c0_i32_0, %arg1 : i32, i32, i32
  }
  func.func @transform_2(%arg0: i32, %arg1: i32) -> (i32, i32) {
    %c0_i32 = arith.constant 0 : i32
    %c0_i32_0 = arith.constant 0 : i32
    return %c0_i32, %arg1 : i32, i32
  }
  func.func @transform_3(%arg0: i32, %arg1: i32) -> (i32, i32, i32) {
    %c0_i32 = arith.constant 0 : i32
    %c0_i32_0 = arith.constant 0 : i32
    return %arg0, %c0_i32, %arg1 : i32, i32, i32
  }
}

module attributes {stable_mosaic.version = 11 : i64} {
  func.func @_conv1d_kernel(%arg0: i32, %arg1: i32, %arg2: memref<1x20x32xbf16, #tpu.memory_space<vmem>>, %arg3: memref<3x32x32xbf16, #tpu.memory_space<vmem>>, %arg4: memref<1x32xbf16, #tpu.memory_space<vmem>>, %arg5: memref<1x16x32xbf16, #tpu.memory_space<vmem>>) attributes {dimension_semantics = [#tpu.dimension_semantics<parallel>, #tpu.dimension_semantics<parallel>], iteration_bounds = array<i64: 2, 1>, scalar_prefetch = 0 : i64, scratch_operands = 0 : i64, tpu.core_type = #tpu.core_type<tc>, window_params = [{transform_indices = @transform_0, window_bounds = array<i64: 1, 20, 32>}, {transform_indices = @transform_1, window_bounds = array<i64: 3, 32, 32>}, {transform_indices = @transform_2, window_bounds = array<i64: 1, 32>}, {transform_indices = @transform_3, window_bounds = array<i64: 1, 16, 32>}]} {
    %cst = arith.constant 0.000000e+00 : f32
    %0 = vector.broadcast %cst : f32 to vector<16x32xf32>
    %c0 = arith.constant 0 : index
    %c0_0 = arith.constant 0 : index
    %c0_1 = arith.constant 0 : index
    %1 = vector.load %arg2[%c0, %c0_0, %c0_1] : memref<1x20x32xbf16, #tpu.memory_space<vmem>>, vector<1x16x32xbf16>
    %2 = vector.shape_cast %1 : vector<1x16x32xbf16> to vector<16x32xbf16>
    %c0_2 = arith.constant 0 : index
    %c0_3 = arith.constant 0 : index
    %c0_4 = arith.constant 0 : index
    %3 = vector.load %arg3[%c0_2, %c0_3, %c0_4] : memref<3x32x32xbf16, #tpu.memory_space<vmem>>, vector<1x32x32xbf16>
    %4 = vector.shape_cast %3 : vector<1x32x32xbf16> to vector<32x32xbf16>
    %cst_5 = arith.constant dense<0.000000e+00> : vector<16x32xf32>
    %5 = tpu.matmul %2, %4, %cst_5 {dimension_numbers = #tpu.dot_dimension_numbers<[1], [0], [0], [1], [0, 0, 1, 1], [], []>} : vector<16x32xbf16>, vector<32x32xbf16>, vector<16x32xf32> -> vector<16x32xf32>
    %6 = arith.addf %0, %5 : vector<16x32xf32>
    %c0_6 = arith.constant 0 : index
    %c2 = arith.constant 2 : index
    %c0_7 = arith.constant 0 : index
    %7 = vector.load %arg2[%c0_6, %c2, %c0_7] : memref<1x20x32xbf16, #tpu.memory_space<vmem>>, vector<1x16x32xbf16>
    %8 = vector.shape_cast %7 : vector<1x16x32xbf16> to vector<16x32xbf16>
    %c1 = arith.constant 1 : index
    %c0_8 = arith.constant 0 : index
    %c0_9 = arith.constant 0 : index
    %9 = vector.load %arg3[%c1, %c0_8, %c0_9] : memref<3x32x32xbf16, #tpu.memory_space<vmem>>, vector<1x32x32xbf16>
    %10 = vector.shape_cast %9 : vector<1x32x32xbf16> to vector<32x32xbf16>
    %cst_10 = arith.constant dense<0.000000e+00> : vector<16x32xf32>
    %11 = tpu.matmul %8, %10, %cst_10 {dimension_numbers = #tpu.dot_dimension_numbers<[1], [0], [0], [1], [0, 0, 1, 1], [], []>} : vector<16x32xbf16>, vector<32x32xbf16>, vector<16x32xf32> -> vector<16x32xf32>
    %12 = arith.addf %6, %11 : vector<16x32xf32>
    %c0_11 = arith.constant 0 : index
    %c4 = arith.constant 4 : index
    %c0_12 = arith.constant 0 : index
    %13 = vector.load %arg2[%c0_11, %c4, %c0_12] : memref<1x20x32xbf16, #tpu.memory_space<vmem>>, vector<1x16x32xbf16>
    %14 = vector.shape_cast %13 : vector<1x16x32xbf16> to vector<16x32xbf16>
    %c2_13 = arith.constant 2 : index
    %c0_14 = arith.constant 0 : index
    %c0_15 = arith.constant 0 : index
    %15 = vector.load %arg3[%c2_13, %c0_14, %c0_15] : memref<3x32x32xbf16, #tpu.memory_space<vmem>>, vector<1x32x32xbf16>
    %16 = vector.shape_cast %15 : vector<1x32x32xbf16> to vector<32x32xbf16>
    %cst_16 = arith.constant dense<0.000000e+00> : vector<16x32xf32>
    %17 = tpu.matmul %14, %16, %cst_16 {dimension_numbers = #tpu.dot_dimension_numbers<[1], [0], [0], [1], [0, 0, 1, 1], [], []>} : vector<16x32xbf16>, vector<32x32xbf16>, vector<16x32xf32> -> vector<16x32xf32>
    %18 = arith.addf %12, %17 : vector<16x32xf32>
    %c0_17 = arith.constant 0 : index
    %c0_18 = arith.constant 0 : index
    %19 = vector.load %arg4[%c0_17, %c0_18] : memref<1x32xbf16, #tpu.memory_space<vmem>>, vector<1x32xbf16>
    %20 = arith.extf %19 : vector<1x32xbf16> to vector<1x32xf32>
    %21 = vector.broadcast %20 : vector<1x32xf32> to vector<16x32xf32>
    %22 = arith.addf %18, %21 : vector<16x32xf32>
    %23 = arith.truncf %22 : vector<16x32xf32> to vector<16x32xbf16>
    %c0_19 = arith.constant 0 : index
    %c0_20 = arith.constant 0 : index
    %c0_21 = arith.constant 0 : index
    %24 = vector.load %arg5[%c0_19, %c0_20, %c0_21] : memref<1x16x32xbf16, #tpu.memory_space<vmem>>, vector<1x16x32xbf16>
    %25 = vector.shape_cast %24 : vector<1x16x32xbf16> to vector<16x32xbf16>
    %26 = vector.shape_cast %23 : vector<16x32xbf16> to vector<1x16x32xbf16>
    tpu.vector_store %arg5[%c0_19, %c0_20, %c0_21], %26 {strides = array<i32>} : memref<1x16x32xbf16, #tpu.memory_space<vmem>>, vector<1x16x32xbf16>,
    return
  }
  func.func @transform_0(%arg0: i32, %arg1: i32) -> (i32, i32, i32) {
    %c0_i32 = arith.constant 0 : i32
    %c0_i32_0 = arith.constant 0 : i32
    %c0_i32_1 = arith.constant 0 : i32
    return %arg0, %c0_i32, %c0_i32_0 : i32, i32, i32
  }
  func.func @transform_1(%arg0: i32, %arg1: i32) -> (i32, i32, i32) {
    %c0_i32 = arith.constant 0 : i32
    %c0_i32_0 = arith.constant 0 : i32
    %c0_i32_1 = arith.constant 0 : i32
    return %c0_i32, %c0_i32_0, %arg1 : i32, i32, i32
  }
  func.func @transform_2(%arg0: i32, %arg1: i32) -> (i32, i32) {
    %c0_i32 = arith.constant 0 : i32
    %c0_i32_0 = arith.constant 0 : i32
    return %c0_i32, %arg1 : i32, i32
  }
  func.func @transform_3(%arg0: i32, %arg1: i32) -> (i32, i32, i32) {
    %c0_i32 = arith.constant 0 : i32
    %c0_i32_0 = arith.constant 0 : i32
    return %arg0, %c0_i32, %arg1 : i32, i32, i32
  }
}

module attributes {stable_mosaic.version = 11 : i64} {
  func.func @_se_kernel(%arg0: i32, %arg1: memref<1x16x32xbf16, #tpu.memory_space<vmem>>, %arg2: memref<32x2xf32, #tpu.memory_space<vmem>>, %arg3: memref<1x2xf32, #tpu.memory_space<vmem>>, %arg4: memref<2x32xf32, #tpu.memory_space<vmem>>, %arg5: memref<1x32xf32, #tpu.memory_space<vmem>>, %arg6: memref<1x16x32xbf16, #tpu.memory_space<vmem>>) attributes {dimension_semantics = [#tpu.dimension_semantics<parallel>], iteration_bounds = array<i64: 2>, scalar_prefetch = 0 : i64, scratch_operands = 0 : i64, tpu.core_type = #tpu.core_type<tc>, window_params = [{transform_indices = @transform_0, window_bounds = array<i64: 1, 16, 32>}, {pipeline_mode = #tpu.pipeline_mode<synchronous>, transform_indices = @transform_1, window_bounds = array<i64: 32, 2>}, {pipeline_mode = #tpu.pipeline_mode<synchronous>, transform_indices = @transform_2, window_bounds = array<i64: 1, 2>}, {pipeline_mode = #tpu.pipeline_mode<synchronous>, transform_indices = @transform_3, window_bounds = array<i64: 2, 32>}, {pipeline_mode = #tpu.pipeline_mode<synchronous>, transform_indices = @transform_4, window_bounds = array<i64: 1, 32>}, {transform_indices = @transform_5, window_bounds = array<i64: 1, 16, 32>}]} {
    %c0 = arith.constant 0 : index
    %c0_0 = arith.constant 0 : index
    %c0_1 = arith.constant 0 : index
    %0 = vector.load %arg1[%c0, %c0_0, %c0_1] : memref<1x16x32xbf16, #tpu.memory_space<vmem>>, vector<1x16x32xbf16>
    %1 = vector.shape_cast %0 : vector<1x16x32xbf16> to vector<16x32xbf16>
    %2 = arith.extf %1 : vector<16x32xbf16> to vector<16x32xf32>
    %cst = arith.constant dense<0.000000e+00> : vector<32xf32>
    %3 = vector.multi_reduction <add>, %2, %cst [0] : vector<16x32xf32> to vector<32xf32>
    %4 = vector.shape_cast %3 : vector<32xf32> to vector<1x32xf32>
    %cst_2 = arith.constant 1.600000e+01 : f32
    %5 = vector.broadcast %cst_2 : f32 to vector<1x32xf32>
    %6 = arith.divf %4, %5 : vector<1x32xf32>
    %c0_3 = arith.constant 0 : index
    %c0_4 = arith.constant 0 : index
    %7 = vector.load %arg2[%c0_3, %c0_4] : memref<32x2xf32, #tpu.memory_space<vmem>>, vector<32x2xf32>
    %cst_5 = arith.constant dense<0.000000e+00> : vector<1x2xf32>
    %8 = tpu.matmul %6, %7, %cst_5 {dimension_numbers = #tpu.dot_dimension_numbers<[1], [0], [0], [1], [0, 0, 1, 1], [], []>} : vector<1x32xf32>, vector<32x2xf32>, vector<1x2xf32> -> vector<1x2xf32>
    %c0_6 = arith.constant 0 : index
    %c0_7 = arith.constant 0 : index
    %9 = vector.load %arg3[%c0_6, %c0_7] : memref<1x2xf32, #tpu.memory_space<vmem>>, vector<1x2xf32>
    %10 = arith.addf %8, %9 : vector<1x2xf32>
    %cst_8 = arith.constant 0.000000e+00 : f32
    %11 = vector.broadcast %cst_8 : f32 to vector<1x2xf32>
    %12 = arith.maximumf %10, %11 : vector<1x2xf32>
    %c0_9 = arith.constant 0 : index
    %c0_10 = arith.constant 0 : index
    %13 = vector.load %arg4[%c0_9, %c0_10] : memref<2x32xf32, #tpu.memory_space<vmem>>, vector<2x32xf32>
    %cst_11 = arith.constant dense<0.000000e+00> : vector<1x32xf32>
    %14 = tpu.matmul %12, %13, %cst_11 {dimension_numbers = #tpu.dot_dimension_numbers<[1], [0], [0], [1], [0, 0, 1, 1], [], []>} : vector<1x2xf32>, vector<2x32xf32>, vector<1x32xf32> -> vector<1x32xf32>
    %c0_12 = arith.constant 0 : index
    %c0_13 = arith.constant 0 : index
    %15 = vector.load %arg5[%c0_12, %c0_13] : memref<1x32xf32, #tpu.memory_space<vmem>>, vector<1x32xf32>
    %16 = arith.addf %14, %15 : vector<1x32xf32>
    %17 = arith.negf %16 : vector<1x32xf32>
    %18 = math.exp %17 : vector<1x32xf32>
    %cst_14 = arith.constant 1.000000e+00 : f32
    %19 = vector.broadcast %cst_14 : f32 to vector<1x32xf32>
    %20 = arith.addf %19, %18 : vector<1x32xf32>
    %21 = arith.divf %19, %20 : vector<1x32xf32>
    %22 = vector.broadcast %21 : vector<1x32xf32> to vector<16x32xf32>
    %23 = arith.mulf %2, %22 : vector<16x32xf32>
    %cst_15 = arith.constant 5.000000e-01 : f32
    %24 = vector.broadcast %cst_15 : f32 to vector<16x32xf32>
    %25 = arith.mulf %24, %23 : vector<16x32xf32>
    %cst_16 = arith.constant 4.471500e-02 : f32
    %26 = vector.broadcast %cst_16 : f32 to vector<16x32xf32>
    %27 = arith.mulf %26, %23 : vector<16x32xf32>
    %28 = arith.mulf %27, %23 : vector<16x32xf32>
    %29 = arith.mulf %28, %23 : vector<16x32xf32>
    %30 = arith.addf %23, %29 : vector<16x32xf32>
    %cst_17 = arith.constant 0.797884583 : f32
    %31 = vector.broadcast %cst_17 : f32 to vector<16x32xf32>
    %32 = arith.mulf %31, %30 : vector<16x32xf32>
    %33 = math.tanh %32 : vector<16x32xf32>
    %cst_18 = arith.constant 1.000000e+00 : f32
    %34 = vector.broadcast %cst_18 : f32 to vector<16x32xf32>
    %35 = arith.addf %34, %33 : vector<16x32xf32>
    %36 = arith.mulf %25, %35 : vector<16x32xf32>
    %37 = arith.truncf %36 : vector<16x32xf32> to vector<16x32xbf16>
    %c0_19 = arith.constant 0 : index
    %c0_20 = arith.constant 0 : index
    %c0_21 = arith.constant 0 : index
    %38 = vector.load %arg6[%c0_19, %c0_20, %c0_21] : memref<1x16x32xbf16, #tpu.memory_space<vmem>>, vector<1x16x32xbf16>
    %39 = vector.shape_cast %38 : vector<1x16x32xbf16> to vector<16x32xbf16>
    %40 = vector.shape_cast %37 : vector<16x32xbf16> to vector<1x16x32xbf16>
    tpu.vector_store %arg6[%c0_19, %c0_20, %c0_21], %40 {strides = array<i32>} : memref<1x16x32xbf16, #tpu.memory_space<vmem>>, vector<1x16x32xbf16>,
    return
  }
  func.func @transform_0(%arg0: i32) -> (i32, i32, i32) {
    %c0_i32 = arith.constant 0 : i32
    %c0_i32_0 = arith.constant 0 : i32
    %c0_i32_1 = arith.constant 0 : i32
    return %arg0, %c0_i32, %c0_i32_0 : i32, i32, i32
  }
  func.func @transform_1(%arg0: i32) -> (i32, i32) {
    %c0_i32 = arith.constant 0 : i32
    %c0_i32_0 = arith.constant 0 : i32
    %c0_i32_1 = arith.constant 0 : i32
    return %c0_i32, %c0_i32_0 : i32, i32
  }
  func.func @transform_2(%arg0: i32) -> (i32, i32) {
    %c0_i32 = arith.constant 0 : i32
    %c0_i32_0 = arith.constant 0 : i32
    %c0_i32_1 = arith.constant 0 : i32
    return %c0_i32, %c0_i32_0 : i32, i32
  }
  func.func @transform_3(%arg0: i32) -> (i32, i32) {
    %c0_i32 = arith.constant 0 : i32
    %c0_i32_0 = arith.constant 0 : i32
    %c0_i32_1 = arith.constant 0 : i32
    return %c0_i32, %c0_i32_0 : i32, i32
  }
  func.func @transform_4(%arg0: i32) -> (i32, i32) {
    %c0_i32 = arith.constant 0 : i32
    %c0_i32_0 = arith.constant 0 : i32
    %c0_i32_1 = arith.constant 0 : i32
    return %c0_i32, %c0_i32_0 : i32, i32
  }
  func.func @transform_5(%arg0: i32) -> (i32, i32, i32) {
    %c0_i32 = arith.constant 0 : i32
    %c0_i32_0 = arith.constant 0 : i32
    %c0_i32_1 = arith.constant 0 : i32
    return %arg0, %c0_i32, %c0_i32_0 : i32, i32, i32
  }
}

module attributes {stable_mosaic.version = 11 : i64} {
  func.func @_dw_pw_kernel(%arg0: i32, %arg1: memref<1x18x32xbf16, #tpu.memory_space<vmem>>, %arg2: memref<3x32xbf16, #tpu.memory_space<vmem>>, %arg3: memref<1x32xbf16, #tpu.memory_space<vmem>>, %arg4: memref<32x32xbf16, #tpu.memory_space<vmem>>, %arg5: memref<1x32xbf16, #tpu.memory_space<vmem>>, %arg6: memref<1x16x32xbf16, #tpu.memory_space<vmem>>) attributes {dimension_semantics = [#tpu.dimension_semantics<parallel>], iteration_bounds = array<i64: 2>, scalar_prefetch = 0 : i64, scratch_operands = 0 : i64, tpu.core_type = #tpu.core_type<tc>, window_params = [{transform_indices = @transform_0, window_bounds = array<i64: 1, 18, 32>}, {pipeline_mode = #tpu.pipeline_mode<synchronous>, transform_indices = @transform_1, window_bounds = array<i64: 3, 32>}, {pipeline_mode = #tpu.pipeline_mode<synchronous>, transform_indices = @transform_2, window_bounds = array<i64: 1, 32>}, {pipeline_mode = #tpu.pipeline_mode<synchronous>, transform_indices = @transform_3, window_bounds = array<i64: 32, 32>}, {pipeline_mode = #tpu.pipeline_mode<synchronous>, transform_indices = @transform_4, window_bounds = array<i64: 1, 32>}, {transform_indices = @transform_5, window_bounds = array<i64: 1, 16, 32>}]} {
    %cst = arith.constant 0.000000e+00 : f32
    %0 = vector.broadcast %cst : f32 to vector<16x32xf32>
    %c0 = arith.constant 0 : index
    %c0_0 = arith.constant 0 : index
    %c0_1 = arith.constant 0 : index
    %1 = vector.load %arg1[%c0, %c0_0, %c0_1] : memref<1x18x32xbf16, #tpu.memory_space<vmem>>, vector<1x16x32xbf16>
    %2 = vector.shape_cast %1 : vector<1x16x32xbf16> to vector<16x32xbf16>
    %3 = arith.extf %2 : vector<16x32xbf16> to vector<16x32xf32>
    %c0_2 = arith.constant 0 : index
    %c0_3 = arith.constant 0 : index
    %4 = vector.load %arg2[%c0_2, %c0_3] : memref<3x32xbf16, #tpu.memory_space<vmem>>, vector<1x32xbf16>
    %5 = arith.extf %4 : vector<1x32xbf16> to vector<1x32xf32>
    %6 = vector.broadcast %5 : vector<1x32xf32> to vector<16x32xf32>
    %7 = arith.mulf %3, %6 : vector<16x32xf32>
    %8 = arith.addf %0, %7 : vector<16x32xf32>
    %c0_4 = arith.constant 0 : index
    %c1 = arith.constant 1 : index
    %c0_5 = arith.constant 0 : index
    %9 = vector.load %arg1[%c0_4, %c1, %c0_5] : memref<1x18x32xbf16, #tpu.memory_space<vmem>>, vector<1x16x32xbf16>
    %10 = vector.shape_cast %9 : vector<1x16x32xbf16> to vector<16x32xbf16>
    %11 = arith.extf %10 : vector<16x32xbf16> to vector<16x32xf32>
    %c1_6 = arith.constant 1 : index
    %c0_7 = arith.constant 0 : index
    %12 = vector.load %arg2[%c1_6, %c0_7] : memref<3x32xbf16, #tpu.memory_space<vmem>>, vector<1x32xbf16>
    %13 = arith.extf %12 : vector<1x32xbf16> to vector<1x32xf32>
    %14 = vector.broadcast %13 : vector<1x32xf32> to vector<16x32xf32>
    %15 = arith.mulf %11, %14 : vector<16x32xf32>
    %16 = arith.addf %8, %15 : vector<16x32xf32>
    %c0_8 = arith.constant 0 : index
    %c2 = arith.constant 2 : index
    %c0_9 = arith.constant 0 : index
    %17 = vector.load %arg1[%c0_8, %c2, %c0_9] : memref<1x18x32xbf16, #tpu.memory_space<vmem>>, vector<1x16x32xbf16>
    %18 = vector.shape_cast %17 : vector<1x16x32xbf16> to vector<16x32xbf16>
    %19 = arith.extf %18 : vector<16x32xbf16> to vector<16x32xf32>
    %c2_10 = arith.constant 2 : index
    %c0_11 = arith.constant 0 : index
    %20 = vector.load %arg2[%c2_10, %c0_11] : memref<3x32xbf16, #tpu.memory_space<vmem>>, vector<1x32xbf16>
    %21 = arith.extf %20 : vector<1x32xbf16> to vector<1x32xf32>
    %22 = vector.broadcast %21 : vector<1x32xf32> to vector<16x32xf32>
    %23 = arith.mulf %19, %22 : vector<16x32xf32>
    %24 = arith.addf %16, %23 : vector<16x32xf32>
    %c0_12 = arith.constant 0 : index
    %c0_13 = arith.constant 0 : index
    %25 = vector.load %arg3[%c0_12, %c0_13] : memref<1x32xbf16, #tpu.memory_space<vmem>>, vector<1x32xbf16>
    %26 = arith.extf %25 : vector<1x32xbf16> to vector<1x32xf32>
    %27 = vector.broadcast %26 : vector<1x32xf32> to vector<16x32xf32>
    %28 = arith.addf %24, %27 : vector<16x32xf32>
    %29 = arith.truncf %28 : vector<16x32xf32> to vector<16x32xbf16>
    %c0_14 = arith.constant 0 : index
    %c0_15 = arith.constant 0 : index
    %30 = vector.load %arg4[%c0_14, %c0_15] : memref<32x32xbf16, #tpu.memory_space<vmem>>, vector<32x32xbf16>
    %cst_16 = arith.constant dense<0.000000e+00> : vector<16x32xf32>
    %31 = tpu.matmul %29, %30, %cst_16 {dimension_numbers = #tpu.dot_dimension_numbers<[1], [0], [0], [1], [0, 0, 1, 1], [], []>} : vector<16x32xbf16>, vector<32x32xbf16>, vector<16x32xf32> -> vector<16x32xf32>
    %c0_17 = arith.constant 0 : index
    %c0_18 = arith.constant 0 : index
    %32 = vector.load %arg5[%c0_17, %c0_18] : memref<1x32xbf16, #tpu.memory_space<vmem>>, vector<1x32xbf16>
    %33 = arith.extf %32 : vector<1x32xbf16> to vector<1x32xf32>
    %34 = vector.broadcast %33 : vector<1x32xf32> to vector<16x32xf32>
    %35 = arith.addf %31, %34 : vector<16x32xf32>
    %36 = arith.truncf %35 : vector<16x32xf32> to vector<16x32xbf16>
    %c0_19 = arith.constant 0 : index
    %c0_20 = arith.constant 0 : index
    %c0_21 = arith.constant 0 : index
    %37 = vector.load %arg6[%c0_19, %c0_20, %c0_21] : memref<1x16x32xbf16, #tpu.memory_space<vmem>>, vector<1x16x32xbf16>
    %38 = vector.shape_cast %37 : vector<1x16x32xbf16> to vector<16x32xbf16>
    %39 = vector.shape_cast %36 : vector<16x32xbf16> to vector<1x16x32xbf16>
    tpu.vector_store %arg6[%c0_19, %c0_20, %c0_21], %39 {strides = array<i32>} : memref<1x16x32xbf16, #tpu.memory_space<vmem>>, vector<1x16x32xbf16>,
    return
  }
  func.func @transform_0(%arg0: i32) -> (i32, i32, i32) {
    %c0_i32 = arith.constant 0 : i32
    %c0_i32_0 = arith.constant 0 : i32
    %c0_i32_1 = arith.constant 0 : i32
    return %arg0, %c0_i32, %c0_i32_0 : i32, i32, i32
  }
  func.func @transform_1(%arg0: i32) -> (i32, i32) {
    %c0_i32 = arith.constant 0 : i32
    %c0_i32_0 = arith.constant 0 : i32
    %c0_i32_1 = arith.constant 0 : i32
    return %c0_i32, %c0_i32_0 : i32, i32
  }
  func.func @transform_2(%arg0: i32) -> (i32, i32) {
    %c0_i32 = arith.constant 0 : i32
    %c0_i32_0 = arith.constant 0 : i32
    %c0_i32_1 = arith.constant 0 : i32
    return %c0_i32, %c0_i32_0 : i32, i32
  }
  func.func @transform_3(%arg0: i32) -> (i32, i32) {
    %c0_i32 = arith.constant 0 : i32
    %c0_i32_0 = arith.constant 0 : i32
    %c0_i32_1 = arith.constant 0 : i32
    return %c0_i32, %c0_i32_0 : i32, i32
  }
  func.func @transform_4(%arg0: i32) -> (i32, i32) {
    %c0_i32 = arith.constant 0 : i32
    %c0_i32_0 = arith.constant 0 : i32
    %c0_i32_1 = arith.constant 0 : i32
    return %c0_i32, %c0_i32_0 : i32, i32
  }
  func.func @transform_5(%arg0: i32) -> (i32, i32, i32) {
    %c0_i32 = arith.constant 0 : i32
    %c0_i32_0 = arith.constant 0 : i32
    %c0_i32_1 = arith.constant 0 : i32
    return %arg0, %c0_i32, %c0_i32_0 : i32, i32, i32
  }
}

module attributes {stable_mosaic.version = 11 : i64} {
  func.func @_conv1d_kernel(%arg0: i32, %arg1: i32, %arg2: memref<1x18x32xbf16, #tpu.memory_space<vmem>>, %arg3: memref<3x32x32xbf16, #tpu.memory_space<vmem>>, %arg4: memref<1x32xbf16, #tpu.memory_space<vmem>>, %arg5: memref<1x16x32xbf16, #tpu.memory_space<vmem>>) attributes {dimension_semantics = [#tpu.dimension_semantics<parallel>, #tpu.dimension_semantics<parallel>], iteration_bounds = array<i64: 2, 1>, scalar_prefetch = 0 : i64, scratch_operands = 0 : i64, tpu.core_type = #tpu.core_type<tc>, window_params = [{transform_indices = @transform_0, window_bounds = array<i64: 1, 18, 32>}, {transform_indices = @transform_1, window_bounds = array<i64: 3, 32, 32>}, {transform_indices = @transform_2, window_bounds = array<i64: 1, 32>}, {transform_indices = @transform_3, window_bounds = array<i64: 1, 16, 32>}]} {
    %cst = arith.constant 0.000000e+00 : f32
    %0 = vector.broadcast %cst : f32 to vector<16x32xf32>
    %c0 = arith.constant 0 : index
    %c0_0 = arith.constant 0 : index
    %c0_1 = arith.constant 0 : index
    %1 = vector.load %arg2[%c0, %c0_0, %c0_1] : memref<1x18x32xbf16, #tpu.memory_space<vmem>>, vector<1x16x32xbf16>
    %2 = vector.shape_cast %1 : vector<1x16x32xbf16> to vector<16x32xbf16>
    %c0_2 = arith.constant 0 : index
    %c0_3 = arith.constant 0 : index
    %c0_4 = arith.constant 0 : index
    %3 = vector.load %arg3[%c0_2, %c0_3, %c0_4] : memref<3x32x32xbf16, #tpu.memory_space<vmem>>, vector<1x32x32xbf16>
    %4 = vector.shape_cast %3 : vector<1x32x32xbf16> to vector<32x32xbf16>
    %cst_5 = arith.constant dense<0.000000e+00> : vector<16x32xf32>
    %5 = tpu.matmul %2, %4, %cst_5 {dimension_numbers = #tpu.dot_dimension_numbers<[1], [0], [0], [1], [0, 0, 1, 1], [], []>} : vector<16x32xbf16>, vector<32x32xbf16>, vector<16x32xf32> -> vector<16x32xf32>
    %6 = arith.addf %0, %5 : vector<16x32xf32>
    %c0_6 = arith.constant 0 : index
    %c1 = arith.constant 1 : index
    %c0_7 = arith.constant 0 : index
    %7 = vector.load %arg2[%c0_6, %c1, %c0_7] : memref<1x18x32xbf16, #tpu.memory_space<vmem>>, vector<1x16x32xbf16>
    %8 = vector.shape_cast %7 : vector<1x16x32xbf16> to vector<16x32xbf16>
    %c1_8 = arith.constant 1 : index
    %c0_9 = arith.constant 0 : index
    %c0_10 = arith.constant 0 : index
    %9 = vector.load %arg3[%c1_8, %c0_9, %c0_10] : memref<3x32x32xbf16, #tpu.memory_space<vmem>>, vector<1x32x32xbf16>
    %10 = vector.shape_cast %9 : vector<1x32x32xbf16> to vector<32x32xbf16>
    %cst_11 = arith.constant dense<0.000000e+00> : vector<16x32xf32>
    %11 = tpu.matmul %8, %10, %cst_11 {dimension_numbers = #tpu.dot_dimension_numbers<[1], [0], [0], [1], [0, 0, 1, 1], [], []>} : vector<16x32xbf16>, vector<32x32xbf16>, vector<16x32xf32> -> vector<16x32xf32>
    %12 = arith.addf %6, %11 : vector<16x32xf32>
    %c0_12 = arith.constant 0 : index
    %c2 = arith.constant 2 : index
    %c0_13 = arith.constant 0 : index
    %13 = vector.load %arg2[%c0_12, %c2, %c0_13] : memref<1x18x32xbf16, #tpu.memory_space<vmem>>, vector<1x16x32xbf16>
    %14 = vector.shape_cast %13 : vector<1x16x32xbf16> to vector<16x32xbf16>
    %c2_14 = arith.constant 2 : index
    %c0_15 = arith.constant 0 : index
    %c0_16 = arith.constant 0 : index
    %15 = vector.load %arg3[%c2_14, %c0_15, %c0_16] : memref<3x32x32xbf16, #tpu.memory_space<vmem>>, vector<1x32x32xbf16>
    %16 = vector.shape_cast %15 : vector<1x32x32xbf16> to vector<32x32xbf16>
    %cst_17 = arith.constant dense<0.000000e+00> : vector<16x32xf32>
    %17 = tpu.matmul %14, %16, %cst_17 {dimension_numbers = #tpu.dot_dimension_numbers<[1], [0], [0], [1], [0, 0, 1, 1], [], []>} : vector<16x32xbf16>, vector<32x32xbf16>, vector<16x32xf32> -> vector<16x32xf32>
    %18 = arith.addf %12, %17 : vector<16x32xf32>
    %c0_18 = arith.constant 0 : index
    %c0_19 = arith.constant 0 : index
    %19 = vector.load %arg4[%c0_18, %c0_19] : memref<1x32xbf16, #tpu.memory_space<vmem>>, vector<1x32xbf16>
    %20 = arith.extf %19 : vector<1x32xbf16> to vector<1x32xf32>
    %21 = vector.broadcast %20 : vector<1x32xf32> to vector<16x32xf32>
    %22 = arith.addf %18, %21 : vector<16x32xf32>
    %23 = arith.truncf %22 : vector<16x32xf32> to vector<16x32xbf16>
    %c0_20 = arith.constant 0 : index
    %c0_21 = arith.constant 0 : index
    %c0_22 = arith.constant 0 : index
    %24 = vector.load %arg5[%c0_20, %c0_21, %c0_22] : memref<1x16x32xbf16, #tpu.memory_space<vmem>>, vector<1x16x32xbf16>
    %25 = vector.shape_cast %24 : vector<1x16x32xbf16> to vector<16x32xbf16>
    %26 = vector.shape_cast %23 : vector<16x32xbf16> to vector<1x16x32xbf16>
    tpu.vector_store %arg5[%c0_20, %c0_21, %c0_22], %26 {strides = array<i32>} : memref<1x16x32xbf16, #tpu.memory_space<vmem>>, vector<1x16x32xbf16>,
    return
  }
  func.func @transform_0(%arg0: i32, %arg1: i32) -> (i32, i32, i32) {
    %c0_i32 = arith.constant 0 : i32
    %c0_i32_0 = arith.constant 0 : i32
    %c0_i32_1 = arith.constant 0 : i32
    return %arg0, %c0_i32, %c0_i32_0 : i32, i32, i32
  }
  func.func @transform_1(%arg0: i32, %arg1: i32) -> (i32, i32, i32) {
    %c0_i32 = arith.constant 0 : i32
    %c0_i32_0 = arith.constant 0 : i32
    %c0_i32_1 = arith.constant 0 : i32
    return %c0_i32, %c0_i32_0, %arg1 : i32, i32, i32
  }
  func.func @transform_2(%arg0: i32, %arg1: i32) -> (i32, i32) {
    %c0_i32 = arith.constant 0 : i32
    %c0_i32_0 = arith.constant 0 : i32
    return %c0_i32, %arg1 : i32, i32
  }
  func.func @transform_3(%arg0: i32, %arg1: i32) -> (i32, i32, i32) {
    %c0_i32 = arith.constant 0 : i32
    %c0_i32_0 = arith.constant 0 : i32
    return %arg0, %c0_i32, %arg1 : i32, i32, i32
  }
}

module attributes {stable_mosaic.version = 11 : i64} {
  func.func @_blend_kernel(%arg0: i32, %arg1: i32, %arg2: memref<1x1xf32, #tpu.memory_space<smem>>, %arg3: memref<1x16x32xbf16, #tpu.memory_space<vmem>>, %arg4: memref<1x16x32xbf16, #tpu.memory_space<vmem>>, %arg5: memref<16x32xbf16, #tpu.memory_space<vmem>>, %arg6: memref<1x16x32xbf16, #tpu.memory_space<vmem>>) attributes {dimension_semantics = [#tpu.dimension_semantics<parallel>, #tpu.dimension_semantics<parallel>], iteration_bounds = array<i64: 2, 1>, scalar_prefetch = 0 : i64, scratch_operands = 0 : i64, tpu.core_type = #tpu.core_type<tc>, window_params = [{transform_indices = @transform_0, window_bounds = array<i64: 1, 1>}, {transform_indices = @transform_1, window_bounds = array<i64: 1, 16, 32>}, {transform_indices = @transform_2, window_bounds = array<i64: 1, 16, 32>}, {transform_indices = @transform_3, window_bounds = array<i64: 16, 32>}, {transform_indices = @transform_4, window_bounds = array<i64: 1, 16, 32>}]} {
    %c0 = arith.constant 0 : index
    %c0_0 = arith.constant 0 : index
    %0 = memref.load %arg2[%c0, %c0_0] : memref<1x1xf32, #tpu.memory_space<smem>>
    %c0_1 = arith.constant 0 : index
    %c0_2 = arith.constant 0 : index
    %c0_3 = arith.constant 0 : index
    %1 = vector.load %arg3[%c0_1, %c0_2, %c0_3] : memref<1x16x32xbf16, #tpu.memory_space<vmem>>, vector<1x16x32xbf16>
    %2 = vector.shape_cast %1 : vector<1x16x32xbf16> to vector<16x32xbf16>
    %3 = arith.extf %2 : vector<16x32xbf16> to vector<16x32xf32>
    %c0_4 = arith.constant 0 : index
    %c0_5 = arith.constant 0 : index
    %c0_6 = arith.constant 0 : index
    %4 = vector.load %arg4[%c0_4, %c0_5, %c0_6] : memref<1x16x32xbf16, #tpu.memory_space<vmem>>, vector<1x16x32xbf16>
    %5 = vector.shape_cast %4 : vector<1x16x32xbf16> to vector<16x32xbf16>
    %6 = arith.extf %5 : vector<16x32xbf16> to vector<16x32xf32>
    %c0_7 = arith.constant 0 : index
    %c0_8 = arith.constant 0 : index
    %7 = vector.load %arg5[%c0_7, %c0_8] : memref<16x32xbf16, #tpu.memory_space<vmem>>, vector<16x32xbf16>
    %8 = arith.extf %7 : vector<16x32xbf16> to vector<16x32xf32>
    %9 = arith.addf %3, %8 : vector<16x32xf32>
    %10 = vector.broadcast %0 : f32 to vector<16x32xf32>
    %11 = arith.mulf %10, %9 : vector<16x32xf32>
    %cst = arith.constant 1.000000e+00 : f32
    %12 = arith.subf %cst, %0 : f32
    %13 = arith.addf %6, %8 : vector<16x32xf32>
    %14 = vector.broadcast %12 : f32 to vector<16x32xf32>
    %15 = arith.mulf %14, %13 : vector<16x32xf32>
    %16 = arith.addf %11, %15 : vector<16x32xf32>
    %17 = arith.truncf %16 : vector<16x32xf32> to vector<16x32xbf16>
    %c0_9 = arith.constant 0 : index
    %c0_10 = arith.constant 0 : index
    %c0_11 = arith.constant 0 : index
    %18 = vector.load %arg6[%c0_9, %c0_10, %c0_11] : memref<1x16x32xbf16, #tpu.memory_space<vmem>>, vector<1x16x32xbf16>
    %19 = vector.shape_cast %18 : vector<1x16x32xbf16> to vector<16x32xbf16>
    %20 = vector.shape_cast %17 : vector<16x32xbf16> to vector<1x16x32xbf16>
    tpu.vector_store %arg6[%c0_9, %c0_10, %c0_11], %20 {strides = array<i32>} : memref<1x16x32xbf16, #tpu.memory_space<vmem>>, vector<1x16x32xbf16>,
    return
  }
  func.func @transform_0(%arg0: i32, %arg1: i32) -> (i32, i32) {
    %c0_i32 = arith.constant 0 : i32
    %c0_i32_0 = arith.constant 0 : i32
    %c0_i32_1 = arith.constant 0 : i32
    return %c0_i32, %c0_i32_0 : i32, i32
  }
  func.func @transform_1(%arg0: i32, %arg1: i32) -> (i32, i32, i32) {
    %c0_i32 = arith.constant 0 : i32
    %c0_i32_0 = arith.constant 0 : i32
    return %arg0, %arg1, %c0_i32 : i32, i32, i32
  }
  func.func @transform_2(%arg0: i32, %arg1: i32) -> (i32, i32, i32) {
    %c0_i32 = arith.constant 0 : i32
    %c0_i32_0 = arith.constant 0 : i32
    return %arg0, %arg1, %c0_i32 : i32, i32, i32
  }
  func.func @transform_3(%arg0: i32, %arg1: i32) -> (i32, i32) {
    %c0_i32 = arith.constant 0 : i32
    %c0_i32_0 = arith.constant 0 : i32
    return %arg1, %c0_i32 : i32, i32
  }
  func.func @transform_4(%arg0: i32, %arg1: i32) -> (i32, i32, i32) {
    %c0_i32 = arith.constant 0 : i32
    %c0_i32_0 = arith.constant 0 : i32
    return %arg0, %arg1, %c0_i32 : i32, i32, i32
  }
}

module attributes {stable_mosaic.version = 11 : i64} {
  func.func @_mm_kernel(%arg0: i32, %arg1: i32, %arg2: i32, %arg3: memref<32x32xbf16, #tpu.memory_space<vmem>>, %arg4: memref<1x32xf32, #tpu.memory_space<vmem>>, %arg5: memref<32x96xbf16, #tpu.memory_space<vmem>>, %arg6: memref<1x96xbf16, #tpu.memory_space<vmem>>, %arg7: memref<32x96xbf16, #tpu.memory_space<vmem>>, %arg8: memref<32x96xf32, #tpu.memory_space<vmem>>, %arg9: memref<32x32xbf16, #tpu.memory_space<vmem>>) attributes {dimension_semantics = [#tpu.dimension_semantics<parallel>, #tpu.dimension_semantics<parallel>, #tpu.dimension_semantics<arbitrary>], iteration_bounds = array<i64: 1, 1, 1>, scalar_prefetch = 0 : i64, scratch_operands = 2 : i64, tpu.core_type = #tpu.core_type<tc>, window_params = [{transform_indices = @transform_0, window_bounds = array<i64: 32, 32>}, {transform_indices = @transform_1, window_bounds = array<i64: 1, 32>}, {transform_indices = @transform_2, window_bounds = array<i64: 32, 96>}, {transform_indices = @transform_3, window_bounds = array<i64: 1, 96>}, {transform_indices = @transform_4, window_bounds = array<i64: 32, 96>}]} {
    %c0_i32 = arith.constant 0 : i32
    %0 = arith.cmpi eq, %arg2, %c0_i32 : i32
    %1 = arith.extui %0 : i1 to i32
    %c0_i32_0 = arith.constant 0 : i32
    %2 = arith.cmpi ne, %1, %c0_i32_0 : i32
    scf.if %2 {
      %cst_12 = arith.constant 0.000000e+00 : f32
      %15 = vector.broadcast %cst_12 : f32 to vector<32x96xf32>
      %c0_13 = arith.constant 0 : index
      %c0_14 = arith.constant 0 : index
      %16 = vector.load %arg8[%c0_13, %c0_14] : memref<32x96xf32, #tpu.memory_space<vmem>>, vector<32x96xf32>
      tpu.vector_store %arg8[%c0_13, %c0_14], %15 {strides = array<i32>} : memref<32x96xf32, #tpu.memory_space<vmem>>, vector<32x96xf32>,
    } else {
    }
    %c0_i32_1 = arith.constant 0 : i32
    %3 = arith.cmpi eq, %arg1, %c0_i32_1 : i32
    %4 = arith.extui %3 : i1 to i32
    %c0_i32_2 = arith.constant 0 : i32
    %5 = arith.cmpi ne, %4, %c0_i32_2 : i32
    scf.if %5 {
      %c0_12 = arith.constant 0 : index
      %c0_13 = arith.constant 0 : index
      %15 = vector.load %arg3[%c0_12, %c0_13] : memref<32x32xbf16, #tpu.memory_space<vmem>>, vector<32x32xbf16>
      %16 = arith.extf %15 : vector<32x32xbf16> to vector<32x32xf32>
      %17 = arith.mulf %16, %16 : vector<32x32xf32>
      %cst_14 = arith.constant dense<0.000000e+00> : vector<32xf32>
      %18 = vector.multi_reduction <add>, %17, %cst_14 [1] : vector<32x32xf32> to vector<32xf32>
      %19 = vector.shape_cast %18 : vector<32xf32> to vector<32x1xf32>
      %cst_15 = arith.constant 3.200000e+01 : f32
      %20 = vector.broadcast %cst_15 : f32 to vector<32x1xf32>
      %21 = arith.divf %19, %20 : vector<32x1xf32>
      %cst_16 = arith.constant 9.99999993E-9 : f32
      %22 = vector.broadcast %cst_16 : f32 to vector<32x1xf32>
      %23 = arith.addf %21, %22 : vector<32x1xf32>
      %24 = math.rsqrt %23 : vector<32x1xf32>
      %25 = vector.broadcast %24 : vector<32x1xf32> to vector<32x32xf32>
      %26 = arith.mulf %16, %25 : vector<32x32xf32>
      %c0_17 = arith.constant 0 : index
      %c0_18 = arith.constant 0 : index
      %27 = vector.load %arg4[%c0_17, %c0_18] : memref<1x32xf32, #tpu.memory_space<vmem>>, vector<1x32xf32>
      %28 = vector.broadcast %27 : vector<1x32xf32> to vector<32x32xf32>
      %29 = arith.mulf %26, %28 : vector<32x32xf32>
      %30 = arith.truncf %29 : vector<32x32xf32> to vector<32x32xbf16>
      %c0_19 = arith.constant 0 : index
      %c0_20 = arith.constant 0 : index
      %31 = vector.load %arg9[%c0_19, %c0_20] : memref<32x32xbf16, #tpu.memory_space<vmem>>, vector<32x32xbf16>
      tpu.vector_store %arg9[%c0_19, %c0_20], %30 {strides = array<i32>} : memref<32x32xbf16, #tpu.memory_space<vmem>>, vector<32x32xbf16>,
    } else {
    }
    %c0 = arith.constant 0 : index
    %c0_3 = arith.constant 0 : index
    %6 = vector.load %arg9[%c0, %c0_3] : memref<32x32xbf16, #tpu.memory_space<vmem>>, vector<32x32xbf16>
    %c0_4 = arith.constant 0 : index
    %c0_5 = arith.constant 0 : index
    %7 = vector.load %arg8[%c0_4, %c0_5] : memref<32x96xf32, #tpu.memory_space<vmem>>, vector<32x96xf32>
    %c0_6 = arith.constant 0 : index
    %c0_7 = arith.constant 0 : index
    %8 = vector.load %arg5[%c0_6, %c0_7] : memref<32x96xbf16, #tpu.memory_space<vmem>>, vector<32x96xbf16>
    %cst = arith.constant dense<0.000000e+00> : vector<32x96xf32>
    %9 = tpu.matmul %6, %8, %cst {dimension_numbers = #tpu.dot_dimension_numbers<[1], [0], [0], [1], [0, 0, 1, 1], [], []>} : vector<32x32xbf16>, vector<32x96xbf16>, vector<32x96xf32> -> vector<32x96xf32>
    %10 = arith.addf %7, %9 : vector<32x96xf32>
    %c0_8 = arith.constant 0 : index
    %c0_9 = arith.constant 0 : index
    %11 = vector.load %arg8[%c0_8, %c0_9] : memref<32x96xf32, #tpu.memory_space<vmem>>, vector<32x96xf32>
    tpu.vector_store %arg8[%c0_8, %c0_9], %10 {strides = array<i32>} : memref<32x96xf32, #tpu.memory_space<vmem>>, vector<32x96xf32>,
    %c0_i32_10 = arith.constant 0 : i32
    %12 = arith.cmpi eq, %arg2, %c0_i32_10 : i32
    %13 = arith.extui %12 : i1 to i32
    %c0_i32_11 = arith.constant 0 : i32
    %14 = arith.cmpi ne, %13, %c0_i32_11 : i32
    scf.if %14 {
      %c0_12 = arith.constant 0 : index
      %c0_13 = arith.constant 0 : index
      %15 = vector.load %arg8[%c0_12, %c0_13] : memref<32x96xf32, #tpu.memory_space<vmem>>, vector<32x96xf32>
      %c0_14 = arith.constant 0 : index
      %c0_15 = arith.constant 0 : index
      %16 = vector.load %arg6[%c0_14, %c0_15] : memref<1x96xbf16, #tpu.memory_space<vmem>>, vector<1x96xbf16>
      %17 = arith.extf %16 : vector<1x96xbf16> to vector<1x96xf32>
      %18 = vector.broadcast %17 : vector<1x96xf32> to vector<32x96xf32>
      %19 = arith.addf %15, %18 : vector<32x96xf32>
      %20 = arith.truncf %19 : vector<32x96xf32> to vector<32x96xbf16>
      %c0_16 = arith.constant 0 : index
      %c0_17 = arith.constant 0 : index
      %21 = vector.load %arg7[%c0_16, %c0_17] : memref<32x96xbf16, #tpu.memory_space<vmem>>, vector<32x96xbf16>
      tpu.vector_store %arg7[%c0_16, %c0_17], %20 {strides = array<i32>} : memref<32x96xbf16, #tpu.memory_space<vmem>>, vector<32x96xbf16>,
    } else {
    }
    return
  }
  func.func @transform_0(%arg0: i32, %arg1: i32, %arg2: i32) -> (i32, i32) {
    %c0_i32 = arith.constant 0 : i32
    return %arg0, %arg2 : i32, i32
  }
  func.func @transform_1(%arg0: i32, %arg1: i32, %arg2: i32) -> (i32, i32) {
    %c0_i32 = arith.constant 0 : i32
    %c0_i32_0 = arith.constant 0 : i32
    return %c0_i32, %arg2 : i32, i32
  }
  func.func @transform_2(%arg0: i32, %arg1: i32, %arg2: i32) -> (i32, i32) {
    %c0_i32 = arith.constant 0 : i32
    return %arg2, %arg1 : i32, i32
  }
  func.func @transform_3(%arg0: i32, %arg1: i32, %arg2: i32) -> (i32, i32) {
    %c0_i32 = arith.constant 0 : i32
    %c0_i32_0 = arith.constant 0 : i32
    return %c0_i32, %arg1 : i32, i32
  }
  func.func @transform_4(%arg0: i32, %arg1: i32, %arg2: i32) -> (i32, i32) {
    %c0_i32 = arith.constant 0 : i32
    return %arg0, %arg1 : i32, i32
  }
}

module attributes {stable_mosaic.version = 11 : i64} {
  func.func @_attn_kernel(%arg0: i32, %arg1: i32, %arg2: i32, %arg3: memref<1x1xf32, #tpu.memory_space<smem>>, %arg4: memref<16x4xf32, #tpu.memory_space<vmem>>, %arg5: memref<16x4xf32, #tpu.memory_space<vmem>>, %arg6: memref<16x4xf32, #tpu.memory_space<vmem>>, %arg7: memref<16x4xf32, #tpu.memory_space<vmem>>, %arg8: memref<1x1x16x8xbf16, #tpu.memory_space<vmem>>, %arg9: memref<1x1x16x8xbf16, #tpu.memory_space<vmem>>, %arg10: memref<1x1x16x8xbf16, #tpu.memory_space<vmem>>, %arg11: memref<1x16x32xbf16, #tpu.memory_space<vmem>>, %arg12: memref<4x16x8xf32, #tpu.memory_space<vmem>>) attributes {dimension_semantics = [#tpu.dimension_semantics<parallel>, #tpu.dimension_semantics<parallel>, #tpu.dimension_semantics<arbitrary>], iteration_bounds = array<i64: 2, 1, 4>, scalar_prefetch = 0 : i64, scratch_operands = 1 : i64, tpu.core_type = #tpu.core_type<tc>, window_params = [{transform_indices = @transform_0, window_bounds = array<i64: 1, 1>}, {transform_indices = @transform_1, window_bounds = array<i64: 16, 4>}, {transform_indices = @transform_2, window_bounds = array<i64: 16, 4>}, {pipeline_mode = #tpu.pipeline_mode<synchronous>, transform_indices = @transform_3, window_bounds = array<i64: 16, 4>}, {pipeline_mode = #tpu.pipeline_mode<synchronous>, transform_indices = @transform_4, window_bounds = array<i64: 16, 4>}, {transform_indices = @transform_5, window_bounds = array<i64: 1, 1, 16, 8>}, {transform_indices = @transform_6, window_bounds = array<i64: 1, 1, 16, 8>}, {transform_indices = @transform_7, window_bounds = array<i64: 1, 1, 16, 8>}, {transform_indices = @transform_8, window_bounds = array<i64: 1, 16, 32>}]} {
    %c16_i32 = arith.constant 16 : i32
    %0 = arith.muli %arg1, %c16_i32 : i32
    %c0 = arith.constant 0 : index
    %c0_0 = arith.constant 0 : index
    %1 = memref.load %arg3[%c0, %c0_0] : memref<1x1xf32, #tpu.memory_space<smem>>
    %c0_1 = arith.constant 0 : index
    %c0_2 = arith.constant 0 : index
    %c0_3 = arith.constant 0 : index
    %c0_4 = arith.constant 0 : index
    %2 = vector.load %arg8[%c0_1, %c0_2, %c0_3, %c0_4] : memref<1x1x16x8xbf16, #tpu.memory_space<vmem>>, vector<1x1x16x8xbf16>
    %3 = vector.shape_cast %2 : vector<1x1x16x8xbf16> to vector<16x8xbf16>
    %4 = arith.extf %3 : vector<16x8xbf16> to vector<16x8xf32>
    %c0_5 = arith.constant 0 : index
    %c0_6 = arith.constant 0 : index
    %c0_7 = arith.constant 0 : index
    %c0_8 = arith.constant 0 : index
    %5 = vector.load %arg9[%c0_5, %c0_6, %c0_7, %c0_8] : memref<1x1x16x8xbf16, #tpu.memory_space<vmem>>, vector<1x1x16x8xbf16>
    %6 = vector.shape_cast %5 : vector<1x1x16x8xbf16> to vector<16x8xbf16>
    %7 = arith.extf %6 : vector<16x8xbf16> to vector<16x8xf32>
    %c0_9 = arith.constant 0 : index
    %c0_10 = arith.constant 0 : index
    %c0_11 = arith.constant 0 : index
    %c0_12 = arith.constant 0 : index
    %8 = vector.load %arg10[%c0_9, %c0_10, %c0_11, %c0_12] : memref<1x1x16x8xbf16, #tpu.memory_space<vmem>>, vector<1x1x16x8xbf16>
    %9 = vector.shape_cast %8 : vector<1x1x16x8xbf16> to vector<16x8xbf16>
    %10 = vector.extract_strided_slice %7 {offsets = [0, 0], sizes = [16, 1], strides = [1, 1]} : vector<16x8xf32> to vector<16x1xf32>
    %11 = vector.shape_cast %10 : vector<16x1xf32> to vector<16xf32>
    %cst = arith.constant 0.000000e+00 : f32
    %12 = vector.broadcast %cst : f32 to vector<16xf32>
    %13 = arith.cmpf oeq, %11, %12 : vector<16xf32>
    %cst_13 = arith.constant 1.000000e+00 : f32
    %14 = vector.broadcast %1 : f32 to vector<16xf32>
    %15 = vector.broadcast %cst_13 : f32 to vector<16xf32>
    %16 = arith.select %13, %14, %15 : vector<16xi1>, vector<16xf32>
    %c0_14 = arith.constant 0 : index
    %c0_15 = arith.constant 0 : index
    %17 = vector.load %arg4[%c0_14, %c0_15] : memref<16x4xf32, #tpu.memory_space<vmem>>, vector<16x4xf32>
    %c0_16 = arith.constant 0 : index
    %c0_17 = arith.constant 0 : index
    %18 = vector.load %arg5[%c0_16, %c0_17] : memref<16x4xf32, #tpu.memory_space<vmem>>, vector<16x4xf32>
    %c0_18 = arith.constant 0 : index
    %c0_19 = arith.constant 0 : index
    %19 = vector.load %arg6[%c0_18, %c0_19] : memref<16x4xf32, #tpu.memory_space<vmem>>, vector<16x4xf32>
    %c0_20 = arith.constant 0 : index
    %c0_21 = arith.constant 0 : index
    %20 = vector.load %arg7[%c0_20, %c0_21] : memref<16x4xf32, #tpu.memory_space<vmem>>, vector<16x4xf32>
    %21 = vector.extract_strided_slice %4 {offsets = [0, 0], sizes = [16, 4], strides = [1, 1]} : vector<16x8xf32> to vector<16x4xf32>
    %22 = vector.extract_strided_slice %4 {offsets = [0, 4], sizes = [16, 4], strides = [1, 1]} : vector<16x8xf32> to vector<16x4xf32>
    %23 = vector.extract_strided_slice %7 {offsets = [0, 0], sizes = [16, 4], strides = [1, 1]} : vector<16x8xf32> to vector<16x4xf32>
    %24 = vector.extract_strided_slice %7 {offsets = [0, 4], sizes = [16, 4], strides = [1, 1]} : vector<16x8xf32> to vector<16x4xf32>
    %25 = arith.mulf %21, %18 : vector<16x4xf32>
    %26 = arith.mulf %22, %17 : vector<16x4xf32>
    %27 = arith.subf %25, %26 : vector<16x4xf32>
    %28 = arith.mulf %21, %17 : vector<16x4xf32>
    %29 = arith.mulf %22, %18 : vector<16x4xf32>
    %30 = arith.addf %28, %29 : vector<16x4xf32>
    %31 = tpu.concatenate %27, %30 in 1 : vector<16x4xf32>, vector<16x4xf32> -> vector<16x8xf32>
    %32 = arith.mulf %23, %20 : vector<16x4xf32>
    %33 = arith.mulf %24, %19 : vector<16x4xf32>
    %34 = arith.subf %32, %33 : vector<16x4xf32>
    %35 = arith.mulf %23, %19 : vector<16x4xf32>
    %36 = arith.mulf %24, %20 : vector<16x4xf32>
    %37 = arith.addf %35, %36 : vector<16x4xf32>
    %38 = tpu.concatenate %34, %37 in 1 : vector<16x4xf32>, vector<16x4xf32> -> vector<16x8xf32>
    %cst_22 = arith.constant dense<0.000000e+00> : vector<16x16xf32>
    %39 = tpu.matmul %31, %38, %cst_22 {dimension_numbers = #tpu.dot_dimension_numbers<[1], [1], [0], [0], [0, 0, 1, 0], [], []>} : vector<16x8xf32>, vector<16x8xf32>, vector<16x16xf32> -> vector<16x16xf32>
    %cst_23 = arith.constant 0.353553385 : f32
    %40 = vector.broadcast %cst_23 : f32 to vector<16x16xf32>
    %41 = arith.mulf %39, %40 : vector<16x16xf32>
    %42 = tpu.iota {dimensions = array<i32: 0>} : vector<16x16xi32>
    %43 = vector.broadcast %0 : i32 to vector<16x16xi32>
    %44 = arith.addi %43, %42 : vector<16x16xi32>
    %45 = tpu.iota {dimensions = array<i32: 1>} : vector<16x16xi32>
    %46 = arith.cmpi sle, %45, %44 : vector<16x16xi32>
    %47 = arith.extui %46 : vector<16x16xi1> to vector<16x16xi32>
    %48 = arith.sitofp %47 : vector<16x16xi32> to vector<16x16xf32>
    %49 = vector.shape_cast %16 : vector<16xf32> to vector<1x16xf32>
    %50 = vector.broadcast %49 : vector<1x16xf32> to vector<16x16xf32>
    %51 = arith.mulf %48, %50 : vector<16x16xf32>
    %52 = arith.mulf %41, %51 : vector<16x16xf32>
    %cst_24 = arith.constant dense<0xFF800000> : vector<16xf32>
    %53 = vector.multi_reduction <maximumf>, %52, %cst_24 [1] : vector<16x16xf32> to vector<16xf32>
    %54 = vector.shape_cast %53 : vector<16xf32> to vector<16x1xf32>
    %55 = vector.broadcast %54 : vector<16x1xf32> to vector<16x16xf32>
    %56 = arith.subf %52, %55 : vector<16x16xf32>
    %57 = math.exp %56 : vector<16x16xf32>
    %cst_25 = arith.constant dense<0.000000e+00> : vector<16xf32>
    %58 = vector.multi_reduction <add>, %57, %cst_25 [1] : vector<16x16xf32> to vector<16xf32>
    %59 = vector.shape_cast %58 : vector<16xf32> to vector<16x1xf32>
    %60 = vector.broadcast %59 : vector<16x1xf32> to vector<16x16xf32>
    %61 = arith.divf %57, %60 : vector<16x16xf32>
    %62 = arith.truncf %61 : vector<16x16xf32> to vector<16x16xbf16>
    %cst_26 = arith.constant dense<0.000000e+00> : vector<16x8xf32>
    %63 = tpu.matmul %62, %9, %cst_26 {dimension_numbers = #tpu.dot_dimension_numbers<[1], [0], [0], [1], [0, 0, 1, 1], [], []>} : vector<16x16xbf16>, vector<16x8xbf16>, vector<16x8xf32> -> vector<16x8xf32>
    %64 = arith.index_cast %arg2 : i32 to index
    %c0_27 = arith.constant 0 : index
    %c0_28 = arith.constant 0 : index
    %65 = vector.load %arg12[%64, %c0_27, %c0_28] : memref<4x16x8xf32, #tpu.memory_space<vmem>>, vector<1x16x8xf32>
    %66 = vector.shape_cast %65 : vector<1x16x8xf32> to vector<16x8xf32>
    %67 = vector.shape_cast %63 : vector<16x8xf32> to vector<1x16x8xf32>
    tpu.vector_store %arg12[%64, %c0_27, %c0_28], %67 {strides = array<i32>} : memref<4x16x8xf32, #tpu.memory_space<vmem>>, vector<1x16x8xf32>,
    %c3_i32 = arith.constant 3 : i32
    %68 = arith.cmpi eq, %arg2, %c3_i32 : i32
    %69 = arith.extui %68 : i1 to i32
    %c0_i32 = arith.constant 0 : i32
    %70 = arith.cmpi ne, %69, %c0_i32 : i32
    scf.if %70 {
      %c0_29 = arith.constant 0 : index
      %c0_30 = arith.constant 0 : index
      %c0_31 = arith.constant 0 : index
      %71 = vector.load %arg12[%c0_29, %c0_30, %c0_31] : memref<4x16x8xf32, #tpu.memory_space<vmem>>, vector<1x16x8xf32>
      %72 = vector.shape_cast %71 : vector<1x16x8xf32> to vector<16x8xf32>
      %c1 = arith.constant 1 : index
      %c0_32 = arith.constant 0 : index
      %c0_33 = arith.constant 0 : index
      %73 = vector.load %arg12[%c1, %c0_32, %c0_33] : memref<4x16x8xf32, #tpu.memory_space<vmem>>, vector<1x16x8xf32>
      %74 = vector.shape_cast %73 : vector<1x16x8xf32> to vector<16x8xf32>
      %c2 = arith.constant 2 : index
      %c0_34 = arith.constant 0 : index
      %c0_35 = arith.constant 0 : index
      %75 = vector.load %arg12[%c2, %c0_34, %c0_35] : memref<4x16x8xf32, #tpu.memory_space<vmem>>, vector<1x16x8xf32>
      %76 = vector.shape_cast %75 : vector<1x16x8xf32> to vector<16x8xf32>
      %c3 = arith.constant 3 : index
      %c0_36 = arith.constant 0 : index
      %c0_37 = arith.constant 0 : index
      %77 = vector.load %arg12[%c3, %c0_36, %c0_37] : memref<4x16x8xf32, #tpu.memory_space<vmem>>, vector<1x16x8xf32>
      %78 = vector.shape_cast %77 : vector<1x16x8xf32> to vector<16x8xf32>
      %79 = tpu.concatenate %72, %74, %76, %78 in 1 : vector<16x8xf32>, vector<16x8xf32>, vector<16x8xf32>, vector<16x8xf32> -> vector<16x32xf32>
      %80 = arith.truncf %79 : vector<16x32xf32> to vector<16x32xbf16>
      %c0_38 = arith.constant 0 : index
      %c0_39 = arith.constant 0 : index
      %c0_40 = arith.constant 0 : index
      %81 = vector.load %arg11[%c0_38, %c0_39, %c0_40] : memref<1x16x32xbf16, #tpu.memory_space<vmem>>, vector<1x16x32xbf16>
      %82 = vector.shape_cast %81 : vector<1x16x32xbf16> to vector<16x32xbf16>
      %83 = vector.shape_cast %80 : vector<16x32xbf16> to vector<1x16x32xbf16>
      tpu.vector_store %arg11[%c0_38, %c0_39, %c0_40], %83 {strides = array<i32>} : memref<1x16x32xbf16, #tpu.memory_space<vmem>>, vector<1x16x32xbf16>,
    } else {
    }
    return
  }
  func.func @transform_0(%arg0: i32, %arg1: i32, %arg2: i32) -> (i32, i32) {
    %c0_i32 = arith.constant 0 : i32
    %c0_i32_0 = arith.constant 0 : i32
    %c0_i32_1 = arith.constant 0 : i32
    return %c0_i32, %c0_i32_0 : i32, i32
  }
  func.func @transform_1(%arg0: i32, %arg1: i32, %arg2: i32) -> (i32, i32) {
    %c0_i32 = arith.constant 0 : i32
    %c0_i32_0 = arith.constant 0 : i32
    return %arg1, %c0_i32 : i32, i32
  }
  func.func @transform_2(%arg0: i32, %arg1: i32, %arg2: i32) -> (i32, i32) {
    %c0_i32 = arith.constant 0 : i32
    %c0_i32_0 = arith.constant 0 : i32
    return %arg1, %c0_i32 : i32, i32
  }
  func.func @transform_3(%arg0: i32, %arg1: i32, %arg2: i32) -> (i32, i32) {
    %c0_i32 = arith.constant 0 : i32
    %c0_i32_0 = arith.constant 0 : i32
    %c0_i32_1 = arith.constant 0 : i32
    return %c0_i32, %c0_i32_0 : i32, i32
  }
  func.func @transform_4(%arg0: i32, %arg1: i32, %arg2: i32) -> (i32, i32) {
    %c0_i32 = arith.constant 0 : i32
    %c0_i32_0 = arith.constant 0 : i32
    %c0_i32_1 = arith.constant 0 : i32
    return %c0_i32, %c0_i32_0 : i32, i32
  }
  func.func @transform_5(%arg0: i32, %arg1: i32, %arg2: i32) -> (i32, i32, i32, i32) {
    %c0_i32 = arith.constant 0 : i32
    %c0_i32_0 = arith.constant 0 : i32
    return %arg0, %arg2, %arg1, %c0_i32 : i32, i32, i32, i32
  }
  func.func @transform_6(%arg0: i32, %arg1: i32, %arg2: i32) -> (i32, i32, i32, i32) {
    %c0_i32 = arith.constant 0 : i32
    %c0_i32_0 = arith.constant 0 : i32
    %c0_i32_1 = arith.constant 0 : i32
    return %arg0, %arg2, %c0_i32, %c0_i32_0 : i32, i32, i32, i32
  }
  func.func @transform_7(%arg0: i32, %arg1: i32, %arg2: i32) -> (i32, i32, i32, i32) {
    %c0_i32 = arith.constant 0 : i32
    %c0_i32_0 = arith.constant 0 : i32
    %c0_i32_1 = arith.constant 0 : i32
    return %arg0, %arg2, %c0_i32, %c0_i32_0 : i32, i32, i32, i32
  }
  func.func @transform_8(%arg0: i32, %arg1: i32, %arg2: i32) -> (i32, i32, i32) {
    %c0_i32 = arith.constant 0 : i32
    %c0_i32_0 = arith.constant 0 : i32
    return %arg0, %arg1, %c0_i32 : i32, i32, i32
  }
}

module attributes {stable_mosaic.version = 11 : i64} {
  func.func @_mm_kernel(%arg0: i32, %arg1: i32, %arg2: i32, %arg3: memref<32x32xbf16, #tpu.memory_space<vmem>>, %arg4: memref<1x32xf32, #tpu.memory_space<vmem>>, %arg5: memref<32x128xbf16, #tpu.memory_space<vmem>>, %arg6: memref<1x128xbf16, #tpu.memory_space<vmem>>, %arg7: memref<32x128xbf16, #tpu.memory_space<vmem>>, %arg8: memref<32x128xf32, #tpu.memory_space<vmem>>, %arg9: memref<32x32xbf16, #tpu.memory_space<vmem>>) attributes {dimension_semantics = [#tpu.dimension_semantics<parallel>, #tpu.dimension_semantics<parallel>, #tpu.dimension_semantics<arbitrary>], iteration_bounds = array<i64: 1, 1, 1>, scalar_prefetch = 0 : i64, scratch_operands = 2 : i64, tpu.core_type = #tpu.core_type<tc>, window_params = [{transform_indices = @transform_0, window_bounds = array<i64: 32, 32>}, {transform_indices = @transform_1, window_bounds = array<i64: 1, 32>}, {transform_indices = @transform_2, window_bounds = array<i64: 32, 128>}, {transform_indices = @transform_3, window_bounds = array<i64: 1, 128>}, {transform_indices = @transform_4, window_bounds = array<i64: 32, 128>}]} {
    %c0_i32 = arith.constant 0 : i32
    %0 = arith.cmpi eq, %arg2, %c0_i32 : i32
    %1 = arith.extui %0 : i1 to i32
    %c0_i32_0 = arith.constant 0 : i32
    %2 = arith.cmpi ne, %1, %c0_i32_0 : i32
    scf.if %2 {
      %cst_12 = arith.constant 0.000000e+00 : f32
      %15 = vector.broadcast %cst_12 : f32 to vector<32x128xf32>
      %c0_13 = arith.constant 0 : index
      %c0_14 = arith.constant 0 : index
      %16 = vector.load %arg8[%c0_13, %c0_14] : memref<32x128xf32, #tpu.memory_space<vmem>>, vector<32x128xf32>
      tpu.vector_store %arg8[%c0_13, %c0_14], %15 {strides = array<i32>} : memref<32x128xf32, #tpu.memory_space<vmem>>, vector<32x128xf32>,
    } else {
    }
    %c0_i32_1 = arith.constant 0 : i32
    %3 = arith.cmpi eq, %arg1, %c0_i32_1 : i32
    %4 = arith.extui %3 : i1 to i32
    %c0_i32_2 = arith.constant 0 : i32
    %5 = arith.cmpi ne, %4, %c0_i32_2 : i32
    scf.if %5 {
      %c0_12 = arith.constant 0 : index
      %c0_13 = arith.constant 0 : index
      %15 = vector.load %arg3[%c0_12, %c0_13] : memref<32x32xbf16, #tpu.memory_space<vmem>>, vector<32x32xbf16>
      %16 = arith.extf %15 : vector<32x32xbf16> to vector<32x32xf32>
      %17 = arith.mulf %16, %16 : vector<32x32xf32>
      %cst_14 = arith.constant dense<0.000000e+00> : vector<32xf32>
      %18 = vector.multi_reduction <add>, %17, %cst_14 [1] : vector<32x32xf32> to vector<32xf32>
      %19 = vector.shape_cast %18 : vector<32xf32> to vector<32x1xf32>
      %cst_15 = arith.constant 3.200000e+01 : f32
      %20 = vector.broadcast %cst_15 : f32 to vector<32x1xf32>
      %21 = arith.divf %19, %20 : vector<32x1xf32>
      %cst_16 = arith.constant 9.99999993E-9 : f32
      %22 = vector.broadcast %cst_16 : f32 to vector<32x1xf32>
      %23 = arith.addf %21, %22 : vector<32x1xf32>
      %24 = math.rsqrt %23 : vector<32x1xf32>
      %25 = vector.broadcast %24 : vector<32x1xf32> to vector<32x32xf32>
      %26 = arith.mulf %16, %25 : vector<32x32xf32>
      %c0_17 = arith.constant 0 : index
      %c0_18 = arith.constant 0 : index
      %27 = vector.load %arg4[%c0_17, %c0_18] : memref<1x32xf32, #tpu.memory_space<vmem>>, vector<1x32xf32>
      %28 = vector.broadcast %27 : vector<1x32xf32> to vector<32x32xf32>
      %29 = arith.mulf %26, %28 : vector<32x32xf32>
      %30 = arith.truncf %29 : vector<32x32xf32> to vector<32x32xbf16>
      %c0_19 = arith.constant 0 : index
      %c0_20 = arith.constant 0 : index
      %31 = vector.load %arg9[%c0_19, %c0_20] : memref<32x32xbf16, #tpu.memory_space<vmem>>, vector<32x32xbf16>
      tpu.vector_store %arg9[%c0_19, %c0_20], %30 {strides = array<i32>} : memref<32x32xbf16, #tpu.memory_space<vmem>>, vector<32x32xbf16>,
    } else {
    }
    %c0 = arith.constant 0 : index
    %c0_3 = arith.constant 0 : index
    %6 = vector.load %arg9[%c0, %c0_3] : memref<32x32xbf16, #tpu.memory_space<vmem>>, vector<32x32xbf16>
    %c0_4 = arith.constant 0 : index
    %c0_5 = arith.constant 0 : index
    %7 = vector.load %arg8[%c0_4, %c0_5] : memref<32x128xf32, #tpu.memory_space<vmem>>, vector<32x128xf32>
    %c0_6 = arith.constant 0 : index
    %c0_7 = arith.constant 0 : index
    %8 = vector.load %arg5[%c0_6, %c0_7] : memref<32x128xbf16, #tpu.memory_space<vmem>>, vector<32x128xbf16>
    %cst = arith.constant dense<0.000000e+00> : vector<32x128xf32>
    %9 = tpu.matmul %6, %8, %cst {dimension_numbers = #tpu.dot_dimension_numbers<[1], [0], [0], [1], [0, 0, 1, 1], [], []>} : vector<32x32xbf16>, vector<32x128xbf16>, vector<32x128xf32> -> vector<32x128xf32>
    %10 = arith.addf %7, %9 : vector<32x128xf32>
    %c0_8 = arith.constant 0 : index
    %c0_9 = arith.constant 0 : index
    %11 = vector.load %arg8[%c0_8, %c0_9] : memref<32x128xf32, #tpu.memory_space<vmem>>, vector<32x128xf32>
    tpu.vector_store %arg8[%c0_8, %c0_9], %10 {strides = array<i32>} : memref<32x128xf32, #tpu.memory_space<vmem>>, vector<32x128xf32>,
    %c0_i32_10 = arith.constant 0 : i32
    %12 = arith.cmpi eq, %arg2, %c0_i32_10 : i32
    %13 = arith.extui %12 : i1 to i32
    %c0_i32_11 = arith.constant 0 : i32
    %14 = arith.cmpi ne, %13, %c0_i32_11 : i32
    scf.if %14 {
      %c0_12 = arith.constant 0 : index
      %c0_13 = arith.constant 0 : index
      %15 = vector.load %arg8[%c0_12, %c0_13] : memref<32x128xf32, #tpu.memory_space<vmem>>, vector<32x128xf32>
      %c0_14 = arith.constant 0 : index
      %c0_15 = arith.constant 0 : index
      %16 = vector.load %arg6[%c0_14, %c0_15] : memref<1x128xbf16, #tpu.memory_space<vmem>>, vector<1x128xbf16>
      %17 = arith.extf %16 : vector<1x128xbf16> to vector<1x128xf32>
      %18 = vector.broadcast %17 : vector<1x128xf32> to vector<32x128xf32>
      %19 = arith.addf %15, %18 : vector<32x128xf32>
      %cst_16 = arith.constant 0.000000e+00 : f32
      %20 = vector.broadcast %cst_16 : f32 to vector<32x128xf32>
      %21 = arith.maximumf %19, %20 : vector<32x128xf32>
      %22 = arith.truncf %21 : vector<32x128xf32> to vector<32x128xbf16>
      %c0_17 = arith.constant 0 : index
      %c0_18 = arith.constant 0 : index
      %23 = vector.load %arg7[%c0_17, %c0_18] : memref<32x128xbf16, #tpu.memory_space<vmem>>, vector<32x128xbf16>
      tpu.vector_store %arg7[%c0_17, %c0_18], %22 {strides = array<i32>} : memref<32x128xbf16, #tpu.memory_space<vmem>>, vector<32x128xbf16>,
    } else {
    }
    return
  }
  func.func @transform_0(%arg0: i32, %arg1: i32, %arg2: i32) -> (i32, i32) {
    %c0_i32 = arith.constant 0 : i32
    return %arg0, %arg2 : i32, i32
  }
  func.func @transform_1(%arg0: i32, %arg1: i32, %arg2: i32) -> (i32, i32) {
    %c0_i32 = arith.constant 0 : i32
    %c0_i32_0 = arith.constant 0 : i32
    return %c0_i32, %arg2 : i32, i32
  }
  func.func @transform_2(%arg0: i32, %arg1: i32, %arg2: i32) -> (i32, i32) {
    %c0_i32 = arith.constant 0 : i32
    return %arg2, %arg1 : i32, i32
  }
  func.func @transform_3(%arg0: i32, %arg1: i32, %arg2: i32) -> (i32, i32) {
    %c0_i32 = arith.constant 0 : i32
    %c0_i32_0 = arith.constant 0 : i32
    return %c0_i32, %arg1 : i32, i32
  }
  func.func @transform_4(%arg0: i32, %arg1: i32, %arg2: i32) -> (i32, i32) {
    %c0_i32 = arith.constant 0 : i32
    return %arg0, %arg1 : i32, i32
  }
}

module attributes {stable_mosaic.version = 11 : i64} {
  func.func @_mm_kernel(%arg0: i32, %arg1: i32, %arg2: i32, %arg3: memref<32x32xbf16, #tpu.memory_space<vmem>>, %arg4: memref<32x32xbf16, #tpu.memory_space<vmem>>, %arg5: memref<1x32xbf16, #tpu.memory_space<vmem>>, %arg6: memref<32x32xbf16, #tpu.memory_space<vmem>>, %arg7: memref<32x32xbf16, #tpu.memory_space<vmem>>, %arg8: memref<32x32xf32, #tpu.memory_space<vmem>>) attributes {dimension_semantics = [#tpu.dimension_semantics<parallel>, #tpu.dimension_semantics<parallel>, #tpu.dimension_semantics<arbitrary>], iteration_bounds = array<i64: 1, 1, 1>, scalar_prefetch = 0 : i64, scratch_operands = 1 : i64, tpu.core_type = #tpu.core_type<tc>, window_params = [{transform_indices = @transform_0, window_bounds = array<i64: 32, 32>}, {transform_indices = @transform_1, window_bounds = array<i64: 32, 32>}, {transform_indices = @transform_2, window_bounds = array<i64: 1, 32>}, {transform_indices = @transform_3, window_bounds = array<i64: 32, 32>}, {transform_indices = @transform_4, window_bounds = array<i64: 32, 32>}]} {
    %c0_i32 = arith.constant 0 : i32
    %0 = arith.cmpi eq, %arg2, %c0_i32 : i32
    %1 = arith.extui %0 : i1 to i32
    %c0_i32_0 = arith.constant 0 : i32
    %2 = arith.cmpi ne, %1, %c0_i32_0 : i32
    scf.if %2 {
      %cst_10 = arith.constant 0.000000e+00 : f32
      %12 = vector.broadcast %cst_10 : f32 to vector<32x32xf32>
      %c0_11 = arith.constant 0 : index
      %c0_12 = arith.constant 0 : index
      %13 = vector.load %arg8[%c0_11, %c0_12] : memref<32x32xf32, #tpu.memory_space<vmem>>, vector<32x32xf32>
      tpu.vector_store %arg8[%c0_11, %c0_12], %12 {strides = array<i32>} : memref<32x32xf32, #tpu.memory_space<vmem>>, vector<32x32xf32>,
    } else {
    }
    %c0 = arith.constant 0 : index
    %c0_1 = arith.constant 0 : index
    %3 = vector.load %arg3[%c0, %c0_1] : memref<32x32xbf16, #tpu.memory_space<vmem>>, vector<32x32xbf16>
    %c0_2 = arith.constant 0 : index
    %c0_3 = arith.constant 0 : index
    %4 = vector.load %arg8[%c0_2, %c0_3] : memref<32x32xf32, #tpu.memory_space<vmem>>, vector<32x32xf32>
    %c0_4 = arith.constant 0 : index
    %c0_5 = arith.constant 0 : index
    %5 = vector.load %arg4[%c0_4, %c0_5] : memref<32x32xbf16, #tpu.memory_space<vmem>>, vector<32x32xbf16>
    %cst = arith.constant dense<0.000000e+00> : vector<32x32xf32>
    %6 = tpu.matmul %3, %5, %cst {dimension_numbers = #tpu.dot_dimension_numbers<[1], [0], [0], [1], [0, 0, 1, 1], [], []>} : vector<32x32xbf16>, vector<32x32xbf16>, vector<32x32xf32> -> vector<32x32xf32>
    %7 = arith.addf %4, %6 : vector<32x32xf32>
    %c0_6 = arith.constant 0 : index
    %c0_7 = arith.constant 0 : index
    %8 = vector.load %arg8[%c0_6, %c0_7] : memref<32x32xf32, #tpu.memory_space<vmem>>, vector<32x32xf32>
    tpu.vector_store %arg8[%c0_6, %c0_7], %7 {strides = array<i32>} : memref<32x32xf32, #tpu.memory_space<vmem>>, vector<32x32xf32>,
    %c0_i32_8 = arith.constant 0 : i32
    %9 = arith.cmpi eq, %arg2, %c0_i32_8 : i32
    %10 = arith.extui %9 : i1 to i32
    %c0_i32_9 = arith.constant 0 : i32
    %11 = arith.cmpi ne, %10, %c0_i32_9 : i32
    scf.if %11 {
      %c0_10 = arith.constant 0 : index
      %c0_11 = arith.constant 0 : index
      %12 = vector.load %arg8[%c0_10, %c0_11] : memref<32x32xf32, #tpu.memory_space<vmem>>, vector<32x32xf32>
      %c0_12 = arith.constant 0 : index
      %c0_13 = arith.constant 0 : index
      %13 = vector.load %arg5[%c0_12, %c0_13] : memref<1x32xbf16, #tpu.memory_space<vmem>>, vector<1x32xbf16>
      %14 = arith.extf %13 : vector<1x32xbf16> to vector<1x32xf32>
      %15 = vector.broadcast %14 : vector<1x32xf32> to vector<32x32xf32>
      %16 = arith.addf %12, %15 : vector<32x32xf32>
      %c0_14 = arith.constant 0 : index
      %c0_15 = arith.constant 0 : index
      %17 = vector.load %arg6[%c0_14, %c0_15] : memref<32x32xbf16, #tpu.memory_space<vmem>>, vector<32x32xbf16>
      %18 = arith.extf %17 : vector<32x32xbf16> to vector<32x32xf32>
      %19 = arith.addf %16, %18 : vector<32x32xf32>
      %20 = arith.truncf %19 : vector<32x32xf32> to vector<32x32xbf16>
      %c0_16 = arith.constant 0 : index
      %c0_17 = arith.constant 0 : index
      %21 = vector.load %arg7[%c0_16, %c0_17] : memref<32x32xbf16, #tpu.memory_space<vmem>>, vector<32x32xbf16>
      tpu.vector_store %arg7[%c0_16, %c0_17], %20 {strides = array<i32>} : memref<32x32xbf16, #tpu.memory_space<vmem>>, vector<32x32xbf16>,
    } else {
    }
    return
  }
  func.func @transform_0(%arg0: i32, %arg1: i32, %arg2: i32) -> (i32, i32) {
    %c0_i32 = arith.constant 0 : i32
    return %arg0, %arg2 : i32, i32
  }
  func.func @transform_1(%arg0: i32, %arg1: i32, %arg2: i32) -> (i32, i32) {
    %c0_i32 = arith.constant 0 : i32
    return %arg2, %arg1 : i32, i32
  }
  func.func @transform_2(%arg0: i32, %arg1: i32, %arg2: i32) -> (i32, i32) {
    %c0_i32 = arith.constant 0 : i32
    %c0_i32_0 = arith.constant 0 : i32
    return %c0_i32, %arg1 : i32, i32
  }
  func.func @transform_3(%arg0: i32, %arg1: i32, %arg2: i32) -> (i32, i32) {
    %c0_i32 = arith.constant 0 : i32
    return %arg0, %arg1 : i32, i32
  }
  func.func @transform_4(%arg0: i32, %arg1: i32, %arg2: i32) -> (i32, i32) {
    %c0_i32 = arith.constant 0 : i32
    return %arg0, %arg1 : i32, i32
  }
}

module attributes {stable_mosaic.version = 11 : i64} {
  func.func @_mm_kernel(%arg0: i32, %arg1: i32, %arg2: i32, %arg3: memref<32x128xbf16, #tpu.memory_space<vmem>>, %arg4: memref<128x32xbf16, #tpu.memory_space<vmem>>, %arg5: memref<1x32xbf16, #tpu.memory_space<vmem>>, %arg6: memref<32x32xbf16, #tpu.memory_space<vmem>>, %arg7: memref<32x32xbf16, #tpu.memory_space<vmem>>, %arg8: memref<32x32xbf16, #tpu.memory_space<vmem>>, %arg9: memref<32x32xf32, #tpu.memory_space<vmem>>) attributes {dimension_semantics = [#tpu.dimension_semantics<parallel>, #tpu.dimension_semantics<parallel>, #tpu.dimension_semantics<arbitrary>], iteration_bounds = array<i64: 1, 1, 1>, scalar_prefetch = 0 : i64, scratch_operands = 1 : i64, tpu.core_type = #tpu.core_type<tc>, window_params = [{transform_indices = @transform_0, window_bounds = array<i64: 32, 128>}, {transform_indices = @transform_1, window_bounds = array<i64: 128, 32>}, {transform_indices = @transform_2, window_bounds = array<i64: 1, 32>}, {transform_indices = @transform_3, window_bounds = array<i64: 32, 32>}, {transform_indices = @transform_4, window_bounds = array<i64: 32, 32>}, {transform_indices = @transform_5, window_bounds = array<i64: 32, 32>}]} {
    %c0_i32 = arith.constant 0 : i32
    %0 = arith.cmpi eq, %arg2, %c0_i32 : i32
    %1 = arith.extui %0 : i1 to i32
    %c0_i32_0 = arith.constant 0 : i32
    %2 = arith.cmpi ne, %1, %c0_i32_0 : i32
    scf.if %2 {
      %cst_10 = arith.constant 0.000000e+00 : f32
      %12 = vector.broadcast %cst_10 : f32 to vector<32x32xf32>
      %c0_11 = arith.constant 0 : index
      %c0_12 = arith.constant 0 : index
      %13 = vector.load %arg9[%c0_11, %c0_12] : memref<32x32xf32, #tpu.memory_space<vmem>>, vector<32x32xf32>
      tpu.vector_store %arg9[%c0_11, %c0_12], %12 {strides = array<i32>} : memref<32x32xf32, #tpu.memory_space<vmem>>, vector<32x32xf32>,
    } else {
    }
    %c0 = arith.constant 0 : index
    %c0_1 = arith.constant 0 : index
    %3 = vector.load %arg3[%c0, %c0_1] : memref<32x128xbf16, #tpu.memory_space<vmem>>, vector<32x128xbf16>
    %c0_2 = arith.constant 0 : index
    %c0_3 = arith.constant 0 : index
    %4 = vector.load %arg9[%c0_2, %c0_3] : memref<32x32xf32, #tpu.memory_space<vmem>>, vector<32x32xf32>
    %c0_4 = arith.constant 0 : index
    %c0_5 = arith.constant 0 : index
    %5 = vector.load %arg4[%c0_4, %c0_5] : memref<128x32xbf16, #tpu.memory_space<vmem>>, vector<128x32xbf16>
    %cst = arith.constant dense<0.000000e+00> : vector<32x32xf32>
    %6 = tpu.matmul %3, %5, %cst {dimension_numbers = #tpu.dot_dimension_numbers<[1], [0], [0], [1], [0, 0, 1, 1], [], []>} : vector<32x128xbf16>, vector<128x32xbf16>, vector<32x32xf32> -> vector<32x32xf32>
    %7 = arith.addf %4, %6 : vector<32x32xf32>
    %c0_6 = arith.constant 0 : index
    %c0_7 = arith.constant 0 : index
    %8 = vector.load %arg9[%c0_6, %c0_7] : memref<32x32xf32, #tpu.memory_space<vmem>>, vector<32x32xf32>
    tpu.vector_store %arg9[%c0_6, %c0_7], %7 {strides = array<i32>} : memref<32x32xf32, #tpu.memory_space<vmem>>, vector<32x32xf32>,
    %c0_i32_8 = arith.constant 0 : i32
    %9 = arith.cmpi eq, %arg2, %c0_i32_8 : i32
    %10 = arith.extui %9 : i1 to i32
    %c0_i32_9 = arith.constant 0 : i32
    %11 = arith.cmpi ne, %10, %c0_i32_9 : i32
    scf.if %11 {
      %c0_10 = arith.constant 0 : index
      %c0_11 = arith.constant 0 : index
      %12 = vector.load %arg9[%c0_10, %c0_11] : memref<32x32xf32, #tpu.memory_space<vmem>>, vector<32x32xf32>
      %c0_12 = arith.constant 0 : index
      %c0_13 = arith.constant 0 : index
      %13 = vector.load %arg5[%c0_12, %c0_13] : memref<1x32xbf16, #tpu.memory_space<vmem>>, vector<1x32xbf16>
      %14 = arith.extf %13 : vector<1x32xbf16> to vector<1x32xf32>
      %15 = vector.broadcast %14 : vector<1x32xf32> to vector<32x32xf32>
      %16 = arith.addf %12, %15 : vector<32x32xf32>
      %c0_14 = arith.constant 0 : index
      %c0_15 = arith.constant 0 : index
      %17 = vector.load %arg6[%c0_14, %c0_15] : memref<32x32xbf16, #tpu.memory_space<vmem>>, vector<32x32xbf16>
      %18 = arith.extf %17 : vector<32x32xbf16> to vector<32x32xf32>
      %19 = arith.addf %16, %18 : vector<32x32xf32>
      %c0_16 = arith.constant 0 : index
      %c0_17 = arith.constant 0 : index
      %20 = vector.load %arg7[%c0_16, %c0_17] : memref<32x32xbf16, #tpu.memory_space<vmem>>, vector<32x32xbf16>
      %21 = arith.extf %20 : vector<32x32xbf16> to vector<32x32xf32>
      %22 = arith.addf %19, %21 : vector<32x32xf32>
      %23 = arith.truncf %22 : vector<32x32xf32> to vector<32x32xbf16>
      %c0_18 = arith.constant 0 : index
      %c0_19 = arith.constant 0 : index
      %24 = vector.load %arg8[%c0_18, %c0_19] : memref<32x32xbf16, #tpu.memory_space<vmem>>, vector<32x32xbf16>
      tpu.vector_store %arg8[%c0_18, %c0_19], %23 {strides = array<i32>} : memref<32x32xbf16, #tpu.memory_space<vmem>>, vector<32x32xbf16>,
    } else {
    }
    return
  }
  func.func @transform_0(%arg0: i32, %arg1: i32, %arg2: i32) -> (i32, i32) {
    %c0_i32 = arith.constant 0 : i32
    return %arg0, %arg2 : i32, i32
  }
  func.func @transform_1(%arg0: i32, %arg1: i32, %arg2: i32) -> (i32, i32) {
    %c0_i32 = arith.constant 0 : i32
    return %arg2, %arg1 : i32, i32
  }
  func.func @transform_2(%arg0: i32, %arg1: i32, %arg2: i32) -> (i32, i32) {
    %c0_i32 = arith.constant 0 : i32
    %c0_i32_0 = arith.constant 0 : i32
    return %c0_i32, %arg1 : i32, i32
  }
  func.func @transform_3(%arg0: i32, %arg1: i32, %arg2: i32) -> (i32, i32) {
    %c0_i32 = arith.constant 0 : i32
    return %arg0, %arg1 : i32, i32
  }
  func.func @transform_4(%arg0: i32, %arg1: i32, %arg2: i32) -> (i32, i32) {
    %c0_i32 = arith.constant 0 : i32
    return %arg0, %arg1 : i32, i32
  }
  func.func @transform_5(%arg0: i32, %arg1: i32, %arg2: i32) -> (i32, i32) {
    %c0_i32 = arith.constant 0 : i32
    return %arg0, %arg1 : i32, i32
  }
}

module attributes {stable_mosaic.version = 11 : i64} {
  func.func @_rmsnorm_kernel(%arg0: i32, %arg1: memref<32x32xbf16, #tpu.memory_space<vmem>>, %arg2: memref<1x32xf32, #tpu.memory_space<vmem>>, %arg3: memref<32x32xf32, #tpu.memory_space<vmem>>) attributes {dimension_semantics = [#tpu.dimension_semantics<parallel>], iteration_bounds = array<i64: 1>, scalar_prefetch = 0 : i64, scratch_operands = 0 : i64, tpu.core_type = #tpu.core_type<tc>, window_params = [{transform_indices = @transform_0, window_bounds = array<i64: 32, 32>}, {pipeline_mode = #tpu.pipeline_mode<synchronous>, transform_indices = @transform_1, window_bounds = array<i64: 1, 32>}, {transform_indices = @transform_2, window_bounds = array<i64: 32, 32>}]} {
    %c0 = arith.constant 0 : index
    %c0_0 = arith.constant 0 : index
    %0 = vector.load %arg1[%c0, %c0_0] : memref<32x32xbf16, #tpu.memory_space<vmem>>, vector<32x32xbf16>
    %1 = arith.extf %0 : vector<32x32xbf16> to vector<32x32xf32>
    %2 = arith.mulf %1, %1 : vector<32x32xf32>
    %cst = arith.constant dense<0.000000e+00> : vector<32xf32>
    %3 = vector.multi_reduction <add>, %2, %cst [1] : vector<32x32xf32> to vector<32xf32>
    %4 = vector.shape_cast %3 : vector<32xf32> to vector<32x1xf32>
    %cst_1 = arith.constant 3.200000e+01 : f32
    %5 = vector.broadcast %cst_1 : f32 to vector<32x1xf32>
    %6 = arith.divf %4, %5 : vector<32x1xf32>
    %cst_2 = arith.constant 9.99999993E-9 : f32
    %7 = vector.broadcast %cst_2 : f32 to vector<32x1xf32>
    %8 = arith.addf %6, %7 : vector<32x1xf32>
    %9 = math.rsqrt %8 : vector<32x1xf32>
    %10 = vector.broadcast %9 : vector<32x1xf32> to vector<32x32xf32>
    %11 = arith.mulf %1, %10 : vector<32x32xf32>
    %c0_3 = arith.constant 0 : index
    %c0_4 = arith.constant 0 : index
    %12 = vector.load %arg2[%c0_3, %c0_4] : memref<1x32xf32, #tpu.memory_space<vmem>>, vector<1x32xf32>
    %13 = vector.broadcast %12 : vector<1x32xf32> to vector<32x32xf32>
    %14 = arith.mulf %11, %13 : vector<32x32xf32>
    %c0_5 = arith.constant 0 : index
    %c0_6 = arith.constant 0 : index
    %15 = vector.load %arg3[%c0_5, %c0_6] : memref<32x32xf32, #tpu.memory_space<vmem>>, vector<32x32xf32>
    tpu.vector_store %arg3[%c0_5, %c0_6], %14 {strides = array<i32>} : memref<32x32xf32, #tpu.memory_space<vmem>>, vector<32x32xf32>,
    return
  }
  func.func @transform_0(%arg0: i32) -> (i32, i32) {
    %c0_i32 = arith.constant 0 : i32
    %c0_i32_0 = arith.constant 0 : i32
    return %arg0, %c0_i32 : i32, i32
  }
  func.func @transform_1(%arg0: i32) -> (i32, i32) {
    %c0_i32 = arith.constant 0 : i32
    %c0_i32_0 = arith.constant 0 : i32
    %c0_i32_1 = arith.constant 0 : i32
    return %c0_i32, %c0_i32_0 : i32, i32
  }
  func.func @transform_2(%arg0: i32) -> (i32, i32) {
    %c0_i32 = arith.constant 0 : i32
    %c0_i32_0 = arith.constant 0 : i32
    return %arg0, %c0_i32 : i32, i32
  }
}

</mosaic_0001>

<llo_original>
// kernel: audio_encoder_forward.25
$region0: #{audio_encoder_forward.25}
  #allocation0 [shape = 'u32[]', space=smem, size = 0x4, offset = 0x4, fixed_abs, tag = 'smem constant byte address 0x4 - core index']
  #allocation1 [shape = 'u32[144,128]{1,0:T(1,128)}', space=vmem, size = 0x12000, scoped, tag = 'internal scratch']
  %s0 = inlined_call_operand.vmem [shape: bf16[2,34,32], index: 0, kind: input, shape index: {}]
  %s1 = inlined_call_operand.vmem [shape: bf16[2,34,32], index: 1, kind: input, shape index: {}]
  %s2 = inlined_call_operand.vmem [shape: bf16[5,32,32], index: 2, kind: input, shape index: {}]
  %s3 = inlined_call_operand.vmem [shape: bf16[1,32], index: 3, kind: input, shape index: {}]
  %s4 = inlined_call_operand.vmem [shape: bf16[2,32,32], index: 4, kind: output, shape index: {}]
  %s5 = sld [smem:[#allocation0]]
  $region49: #{audio_encoder_forward.25} parent=0
    _
  %s7 = ssub.s32 1, %s5
  %s8 = scalar_select 0, %s7, %s5
  loop: start=0, step=1, limit=4
  $region2: #{audio_encoder_forward.25} parent=0 // loop_pre_header
    _
  $region3: #{audio_encoder_forward.25} parent=0 // loop_header
    %s10 = sphi 0, %s14
    %p11 = scmp.ge.s32.totalorder %s10, 4
    %s17 = sphi 0, %s29
    %s18 = sphi 0, %s25
    %s19 = sphi 0, %s17
    %s20 = sphi 0, %s18
    %s21 = sphi 0, %s19
    %s22 = sphi 0, %s20
    %s32 = sphi 0, %s34
    %s35 = sphi 0, %s32
    %s36 = sphi 0, %s35
    %s52 = sphi 0, %s36
    %s58 = sphi 0, %s60
    %s61 = sphi 0, %s58
    %s62 = sphi 0, %s61
    %s78 = sphi 0, %s62
    %s84 = sphi 0, %s86
    %s87 = sphi 0, %s84
    %s88 = sphi 0, %s87
    %s104 = sphi 0, %s88
    %s110 = sphi 0, %s112
    %s113 = sphi 0, %s110
    %s114 = sphi 0, %s113
    %s130 = sphi 0, %s114
    %s138 = sphi 0, %s140
    %s141 = sphi 0, %s138
    %s142 = sphi 0, %s141
    %s158 = sphi 0, %s142
  $region4: #{audio_encoder_forward.25} parent=0 // loop_header_branch
    %13 = sbr.rel (%p11) target = $region8
  $region5: #{audio_encoder_forward.25} parent=0 // loop_body
    %s15 = ssub.s32 %s10, 1
    %s16 = ssub.s32 %s10, 2
    %s23 = sadd.s32 1, %s18
    %p24 = scmp.ge.s32.totalorder %s23, 1
    %s25 = scalar_select %p24, 0, %s23
    %s26 = sadd.s32 1, %s17
    %s27 = scalar_select %p24, %s26, %s17
    %p28 = scmp.ge.s32.totalorder %s27, 2
    %s29 = scalar_select %p28, 0, %s27
    %s30 = ssub.s32 %s17, %s29
    %p31 = scmp.eq.s32.totalorder %s30, 0
    %s33 = sadd.s32 %s32, 1
    %s34 = scalar_select %p31, %s32, %s33
    %p37 = pneg %p31
    %p38 = scmp.eq.s32.totalorder %s10, 1
    %p39 = por %p37, %p38
    %p40 = scmp.ne.s32.totalorder %s32, %s35
    %p41 = scmp.eq.s32.totalorder %s10, 0
    %p42 = por %p40, %p41
    %p43 = scmp.ne.s32.totalorder %s32, %s35
    %p44 = scmp.eq.s32.totalorder %s15, 1
    %p45 = por %p43, %p44
    %p46 = scmp.ne.s32.totalorder %s35, %s36
    %p47 = scmp.eq.s32.totalorder %s15, 0
    %p48 = por %p46, %p47
    %p49 = scmp.ne.s32.totalorder %s35, %s36
    %p50 = scmp.eq.s32.totalorder %s16, 1
    %p51 = por %p49, %p50
    %p53 = scmp.ne.s32.totalorder %s36, %s52
    %p54 = scmp.eq.s32.totalorder %s16, 0
    %p55 = por %p53, %p54
    %s56 = ssub.s32 %s17, %s29
    %p57 = scmp.eq.s32.totalorder %s56, 0
    %s59 = sadd.s32 %s58, 1
    %s60 = scalar_select %p57, %s58, %s59
    %p63 = pneg %p57
    %p64 = scmp.eq.s32.totalorder %s10, 1
    %p65 = por %p63, %p64
    %p66 = scmp.ne.s32.totalorder %s58, %s61
    %p67 = scmp.eq.s32.totalorder %s10, 0
    %p68 = por %p66, %p67
    %p69 = scmp.ne.s32.totalorder %s58, %s61
    %p70 = scmp.eq.s32.totalorder %s15, 1
    %p71 = por %p69, %p70
    %p72 = scmp.ne.s32.totalorder %s61, %s62
    %p73 = scmp.eq.s32.totalorder %s15, 0
    %p74 = por %p72, %p73
    %p75 = scmp.ne.s32.totalorder %s61, %s62
    %p76 = scmp.eq.s32.totalorder %s16, 1
    %p77 = por %p75, %p76
    %p79 = scmp.ne.s32.totalorder %s62, %s78
    %p80 = scmp.eq.s32.totalorder %s16, 0
    %p81 = por %p79, %p80
    %s82 = ssub.s32 %s18, %s25
    %p83 = scmp.eq.s32.totalorder %s82, 0
    %s85 = sadd.s32 %s84, 1
    %s86 = scalar_select %p83, %s84, %s85
    %p89 = pneg %p83
    %p90 = scmp.eq.s32.totalorder %s10, 1
    %p91 = por %p89, %p90
    %p92 = scmp.ne.s32.totalorder %s84, %s87
    %p93 = scmp.eq.s32.totalorder %s10, 0
    %p94 = por %p92, %p93
    %p95 = scmp.ne.s32.totalorder %s84, %s87
    %p96 = scmp.eq.s32.totalorder %s15, 1
    %p97 = por %p95, %p96
    %p98 = scmp.ne.s32.totalorder %s87, %s88
    %p99 = scmp.eq.s32.totalorder %s15, 0
    %p100 = por %p98, %p99
    %p101 = scmp.ne.s32.totalorder %s87, %s88
    %p102 = scmp.eq.s32.totalorder %s16, 1
    %p103 = por %p101, %p102
    %p105 = scmp.ne.s32.totalorder %s88, %s104
    %p106 = scmp.eq.s32.totalorder %s16, 0
    %p107 = por %p105, %p106
    %s108 = ssub.s32 %s18, %s25
    %p109 = scmp.eq.s32.totalorder %s108, 0
    %s111 = sadd.s32 %s110, 1
    %s112 = scalar_select %p109, %s110, %s111
    %p115 = pneg %p109
    %p116 = scmp.eq.s32.totalorder %s10, 1
    %p117 = por %p115, %p116
    %p118 = scmp.ne.s32.totalorder %s110, %s113
    %p119 = scmp.eq.s32.totalorder %s10, 0
    %p120 = por %p118, %p119
    %p121 = scmp.ne.s32.totalorder %s110, %s113
    %p122 = scmp.eq.s32.totalorder %s15, 1
    %p123 = por %p121, %p122
    %p124 = scmp.ne.s32.totalorder %s113, %s114
    %p125 = scmp.eq.s32.totalorder %s15, 0
    %p126 = por %p124, %p125
    %p127 = scmp.ne.s32.totalorder %s113, %s114
    %p128 = scmp.eq.s32.totalorder %s16, 1
    %p129 = por %p127, %p128
    %p131 = scmp.ne.s32.totalorder %s114, %s130
    %p132 = scmp.eq.s32.totalorder %s16, 0
    %p133 = por %p131, %p132
    %s134 = ssub.s32 %s17, %s29
    %s135 = ssub.s32 %s18, %s25
    %s136 = sor.u32 %s134, %s135
    %p137 = scmp.eq.s32.totalorder %s136, 0
    %s139 = sadd.s32 %s138, 1
    %s140 = scalar_select %p137, %s138, %s139
    %p143 = pneg %p137
    %p144 = scmp.eq.s32.totalorder %s10, 1
    %p145 = por %p143, %p144
    %p146 = scmp.ne.s32.totalorder %s138, %s141
    %p147 = scmp.eq.s32.totalorder %s10, 0
    %p148 = por %p146, %p147
    %p149 = scmp.ne.s32.totalorder %s138, %s141
    %p150 = scmp.eq.s32.totalorder %s15, 1
    %p151 = por %p149, %p150
    %p152 = scmp.ne.s32.totalorder %s141, %s142
    %p153 = scmp.eq.s32.totalorder %s15, 0
    %p154 = por %p152, %p153
    %p155 = scmp.ne.s32.totalorder %s141, %s142
    %p156 = scmp.eq.s32.totalorder %s16, 1
    %p157 = por %p155, %p156
    %p159 = scmp.ne.s32.totalorder %s142, %s158
    %p160 = scmp.eq.s32.totalorder %s16, 0
    %p161 = por %p159, %p160
    %p162 = scmp.le.s32.totalorder 1, %s10
    %p163 = scmp.lt.s32.totalorder %s10, 3
    %p164 = pnand %p162, %p163
    %p165 = pneg %p164
    // Predicated region
    $region9: #{audio_encoder_forward.25} parent=5 // pred_check
      _
    $region10: #{audio_encoder_forward.25} parent=5 // pred_check_branch
      %167 = sbr.rel (%p164) target = $region12
    $region11: #{audio_encoder_forward.25} parent=5 // pred_region
      %s168 = ssub.s32 %s10, 1
      // Predicated region
      $region13: #{audio_encoder_forward.25} parent=11 // pred_check
        %p169 = pneg %p100
      $region14: #{audio_encoder_forward.25} parent=11 // pred_check_branch
        %171 = sbr.rel (%p169) target = $region16
      $region15: #{audio_encoder_forward.25} parent=11 // pred_region
        %p172 = scmp.lt.s32.totalorder %s20, 0
        %s173 = scalar_select %p172, %s20, 0
        %s174 = smul.addr %s173, 4
        %s175 = scalar_lea.vmem %s2, %s174
      $region16: #{audio_encoder_forward.25} parent=11 // pred_fallthru
        _
      // Predicated region
      $region17: #{audio_encoder_forward.25} parent=11 // pred_check
        %p176 = pneg %p126
      $region18: #{audio_encoder_forward.25} parent=11 // pred_check_branch
        %178 = sbr.rel (%p176) target = $region20
      $region19: #{audio_encoder_forward.25} parent=11 // pred_region
        %p179 = scmp.lt.s32.totalorder %s20, 0
        %s180 = scalar_select %p179, %s20, 0
        %s181 = scalar_lea.vmem %s3, %s180
      $region20: #{audio_encoder_forward.25} parent=11 // pred_fallthru
        _
    $region12: #{audio_encoder_forward.25} parent=5 // pred_fallthru
      _
    %p182 = scmp.lt.s32.totalorder %s10, 2
    // Predicated region
    $region21: #{audio_encoder_forward.25} parent=5 // pred_check
      %p183 = pneg %p182
    $region22: #{audio_encoder_forward.25} parent=5 // pred_check_branch
      %185 = sbr.rel (%p183) target = $region24
    $region23: #{audio_encoder_forward.25} parent=5 // pred_region
      // Predicated region
      $region25: #{audio_encoder_forward.25} parent=23 // pred_check
        %p186 = pneg %p42
      $region26: #{audio_encoder_forward.25} parent=23 // pred_check_branch
        %188 = sbr.rel (%p186) target = $region28
      $region27: #{audio_encoder_forward.25} parent=23 // pred_region
        %p189 = scmp.lt.s32.totalorder %s17, 1
        %s190 = scalar_select %p189, %s17, 1
        %s191 = smul.addr %s190, 5
        %s192 = smul.addr %s191, 4
        %s193 = scalar_lea.vmem %s0, %s192
      $region28: #{audio_encoder_forward.25} parent=23 // pred_fallthru
        _
      // Predicated region
      $region29: #{audio_encoder_forward.25} parent=23 // pred_check
        %p194 = pneg %p68
      $region30: #{audio_encoder_forward.25} parent=23 // pred_check_branch
        %196 = sbr.rel (%p194) target = $region32
      $region31: #{audio_encoder_forward.25} parent=23 // pred_region
        %p197 = scmp.lt.s32.totalorder %s17, 1
        %s198 = scalar_select %p197, %s17, 1
        %s199 = smul.addr %s198, 5
        %s200 = smul.addr %s199, 4
        %s201 = scalar_lea.vmem %s1, %s200
      $region32: #{audio_encoder_forward.25} parent=23 // pred_fallthru
        _
    $region24: #{audio_encoder_forward.25} parent=5 // pred_fallthru
      _
    %p202 = scmp.le.s32.totalorder 1, %s10
    %p203 = scmp.lt.s32.totalorder %s10, 3
    %p204 = pnand %p202, %p203
    %p205 = pneg %p204
    // Predicated region
    $region33: #{audio_encoder_forward.25} parent=5 // pred_check
      _
    $region34: #{audio_encoder_forward.25} parent=5 // pred_check_branch
      %207 = sbr.rel (%p204) target = $region36
    $region35: #{audio_encoder_forward.25} parent=5 // pred_region
      %s208 = ssub.s32 %s10, 1
      %p209 = scmp.lt.s32.totalorder %s19, 1
      %s210 = scalar_select %p209, %s19, 1
      %s211 = smul.addr %s210, 5
      %s212 = smul.addr %s211, 4
      %s213 = scalar_lea.vmem %s0, %s212
      %p214 = pneg %p48
      %p215 = pneg %p45
      %p216 = scmp.lt.s32.totalorder %s19, 1
      %s217 = scalar_select %p216, %s19, 1
      %s218 = smul.addr %s217, 5
      %s219 = smul.addr %s218, 4
      %s220 = scalar_lea.vmem %s1, %s219
      %p221 = pneg %p74
      %p222 = pneg %p71
      %p223 = scmp.lt.s32.totalorder %s20, 0
      %s224 = scalar_select %p223, %s20, 0
      %s225 = smul.addr %s224, 4
      %s226 = scalar_lea.vmem %s2, %s225
      %p227 = pneg %p100
      %p228 = pneg %p97
      %p229 = scmp.lt.s32.totalorder %s20, 0
      %s230 = scalar_select %p229, %s20, 0
      %s231 = scalar_lea.vmem %s3, %s230
      %p232 = pneg %p126
      %p233 = pneg %p123
      %p234 = pneg %p154
      %p235 = pneg %p151
      %p236 = scmp.lt.s32.totalorder %s19, 1
      %s237 = scalar_select %p236, %s19, 1
      %p238 = scmp.lt.s32.totalorder %s20, 0
      %s239 = scalar_select %p238, %s20, 0
      %s240 = smul.addr %s237, 4
      %s241 = sadd.s32 %s239, %s240
      %s242 = smul.addr %s241, 4
      %s243 = scalar_lea.vmem %s4, %s242
      %p244 = scmp.lt.s32.totalorder %s19, 1
      %s245 = scalar_select %p244, %s19, 1
      %s246 = smul.addr %s245, 5
      %s247 = smul.addr %s246, 4
      %s248 = scalar_lea.vmem %s0, %s247
      %p249 = scmp.lt.s32.totalorder %s19, 1
      %s250 = scalar_select %p249, %s19, 1
      %s251 = smul.addr %s250, 5
      %s252 = smul.addr %s251, 4
      %s253 = scalar_lea.vmem %s1, %s252
      %p254 = scmp.lt.s32.totalorder %s20, 0
      %s255 = scalar_select %p254, %s20, 0
      %s256 = smul.addr %s255, 4
      %s257 = scalar_lea.vmem %s2, %s256
      %p258 = scmp.lt.s32.totalorder %s20, 0
      %s259 = scalar_select %p258, %s20, 0
      %s260 = scalar_lea.vmem %s3, %s259
      %p261 = scmp.lt.s32.totalorder %s19, 1
      %s262 = scalar_select %p261, %s19, 1
      %p263 = scmp.lt.s32.totalorder %s20, 0
      %s264 = scalar_select %p263, %s20, 0
      %s265 = smul.addr %s262, 4
      %s266 = sadd.s32 %s264, %s265
      %s267 = smul.addr %s266, 4
      %s268 = scalar_lea.vmem %s4, %s267
      %v270 = vld [vmem:[%s248] sm:$0xf]
      %v271 = vld [vmem:[%s248 + $0x4] sm:$0xf]
      %v272 = vld [vmem:[%s248 + $0x8] sm:$0xf]
      %v273 = vld [vmem:[%s248 + $0xc] sm:$0xf]
      %v274 = vld [vmem:[%s257] sm:$0xf]
      %v275 = vld [vmem:[%s257 + $0x4] sm:$0xf]
      %v276 = vld [vmem:[%s257 + $0x8] sm:$0xf]
      %v277 = vld [vmem:[%s257 + $0xc] sm:$0xf]
      %v278 = vld [vmem:[%s253] sm:$0xf]
      %v279 = vld [vmem:[%s253 + $0x4] sm:$0xf]
      %v280 = vld [vmem:[%s253 + $0x8] sm:$0xf]
      %v281 = vld [vmem:[%s253 + $0xc] sm:$0xf]
      %s282 = scalar_lea.vmem %s257, 16
      %v283 = vld [vmem:[%s282] sm:$0xf]
      %v284 = vld [vmem:[%s282 + $0x4] sm:$0xf]
      %v285 = vld [vmem:[%s282 + $0x8] sm:$0xf]
      %v286 = vld [vmem:[%s282 + $0xc] sm:$0xf]
      %v291 = vunpack.c.l.b16 %v278
      %v292 = vunpack.c.l.b16 %v279
      %v293 = vunpack.c.l.b16 %v280
      %v294 = vunpack.c.l.b16 %v281
      %v295 = vpack.c.b16 %v292, %v291
      %v296 = vpack.c.b16 %v294, %v293
      %v301 = vunpack.c.l.b16 %v283
      %v302 = vunpack.c.l.b16 %v284
      %v303 = vunpack.c.l.b16 %v285
      %v304 = vunpack.c.l.b16 %v286
      %v305 = vpack.c.b16 %v302, %v301
      %v306 = vpack.c.b16 %v304, %v303
      %vm309 = vcmask 261120
      %v311 = vsel %vm309, %v295, 0
      %v314 = vsel %vm309, %v296, 0
      %316 = vmatprep.subr.bf16.mxu0 0
      %317 = vmatpush1.bf16.msra.mxu0 %v305
      %318 = vmatprep.subr.bf16.mxu0 0
      %319 = vmatpush1.bf16.msra.mxu0 %v306
      %320 = vmatprep.subr.bf16.mxu0 0
      %321 = vmatpush1.bf16.msra.mxu0 0
      %322 = vmatprep.subr.bf16.mxu0 0
      %323 = vmatpush1.bf16.msra.mxu0 0
      %324 = vmatprep.subr.bf16.mxu0 0
      %325 = vmatpush1.bf16.msra.mxu0 0
      %326 = vmatprep.subr.bf16.mxu0 0
      %327 = vmatpush1.bf16.msra.mxu0 0
      %328 = vmatprep.subr.bf16.mxu0 0
      %329 = vmatpush1.bf16.msra.mxu0 0
      %330 = vmatprep.subr.bf16.mxu0 0
      %331 = vmatpush1.bf16.msra.mxu0 0
      %332 = vmatprep.subr.bf16.mxu0 0
      %333 = vmatpush1.bf16.msra.mxu0 0
      %334 = vmatprep.subr.bf16.mxu0 0
      %335 = vmatpush1.bf16.msra.mxu0 0
      %336 = vmatprep.subr.bf16.mxu0 0
      %337 = vmatpush1.bf16.msra.mxu0 0
      %338 = vmatprep.subr.bf16.mxu0 0
      %339 = vmatpush1.bf16.msra.mxu0 0
      %340 = vmatprep.subr.bf16.mxu0 0
      %341 = vmatpush1.bf16.msra.mxu0 0
      %342 = vmatprep.subr.bf16.mxu0 0
      %343 = vmatpush1.bf16.msra.mxu0 0
      %344 = vmatprep.subr.bf16.mxu0 0
      %345 = vmatpush1.bf16.msra.mxu0 0
      %346 = vmatprep.subr.bf16.mxu0 0
      %347 = vmatpush1.bf16.msra.mxu0 0
      %348 = vmatprep.mubr.bf16.mxu0 0
      %349 = vmatmul.mubr.bf16.gmra.mrb[0].mxu0 %v311
      %v350 = vpop.f32.mrb[0].mxu0
      %v351 = vadd.f32 0.0, %v350
      %v352 = vpop.f32.mrb[0].mxu0
      %v353 = vpop.f32.mrb[0].mxu0
      %v354 = vadd.f32 0.0, %v353
      %v355 = vpop.f32.mrb[0].mxu0
      %356 = vmatprep.mubr.bf16.mxu0 0
      %357 = vmatmul.mubr.bf16.gmra.mrb[0].mxu0 %v314
      %v358 = vpop.f32.mrb[0].mxu0
      %v359 = vadd.f32 0.0, %v358
      %v360 = vpop.f32.mrb[0].mxu0
      %v361 = vpop.f32.mrb[0].mxu0
      %v362 = vadd.f32 0.0, %v361
      %v363 = vpop.f32.mrb[0].mxu0
      %364 = vdwg.mxu0
      %v369 = vunpack.c.l.b16 %v270
      %v370 = vunpack.c.l.b16 %v271
      %v371 = vunpack.c.l.b16 %v272
      %v372 = vunpack.c.l.b16 %v273
      %v373 = vpack.c.b16 %v370, %v369
      %v374 = vpack.c.b16 %v372, %v371
      %v379 = vunpack.c.l.b16 %v274
      %v380 = vunpack.c.l.b16 %v275
      %v381 = vunpack.c.l.b16 %v276
      %v382 = vunpack.c.l.b16 %v277
      %v383 = vpack.c.b16 %v380, %v379
      %v384 = vpack.c.b16 %v382, %v381
      %v388 = vsel %vm309, %v373, 0
      %v391 = vsel %vm309, %v374, 0
      %393 = vmatprep.subr.bf16.mxu0 0
      %394 = vmatpush1.bf16.msra.mxu0 %v383
      %395 = vmatprep.subr.bf16.mxu0 0
      %396 = vmatpush1.bf16.msra.mxu0 %v384
      %397 = vmatprep.subr.bf16.mxu0 0
      %398 = vmatpush1.bf16.msra.mxu0 0
      %399 = vmatprep.subr.bf16.mxu0 0
      %400 = vmatpush1.bf16.msra.mxu0 0
      %401 = vmatprep.subr.bf16.mxu0 0
      %402 = vmatpush1.bf16.msra.mxu0 0
      %403 = vmatprep.subr.bf16.mxu0 0
      %404 = vmatpush1.bf16.msra.mxu0 0
      %405 = vmatprep.subr.bf16.mxu0 0
      %406 = vmatpush1.bf16.msra.mxu0 0
      %407 = vmatprep.subr.bf16.mxu0 0
      %408 = vmatpush1.bf16.msra.mxu0 0
      %409 = vmatprep.subr.bf16.mxu0 0
      %410 = vmatpush1.bf16.msra.mxu0 0
      %411 = vmatprep.subr.bf16.mxu0 0
      %412 = vmatpush1.bf16.msra.mxu0 0
      %413 = vmatprep.subr.bf16.mxu0 0
      %414 = vmatpush1.bf16.msra.mxu0 0
      %415 = vmatprep.subr.bf16.mxu0 0
      %416 = vmatpush1.bf16.msra.mxu0 0
      %417 = vmatprep.subr.bf16.mxu0 0
      %418 = vmatpush1.bf16.msra.mxu0 0
      %419 = vmatprep.subr.bf16.mxu0 0
      %420 = vmatpush1.bf16.msra.mxu0 0
      %421 = vmatprep.subr.bf16.mxu0 0
      %422 = vmatpush1.bf16.msra.mxu0 0
      %423 = vmatprep.subr.bf16.mxu0 0
      %424 = vmatpush1.bf16.msra.mxu0 0
      %425 = vmatprep.mubr.bf16.mxu0 0
      %426 = vmatmul.mubr.bf16.gmra.mrb[0].mxu0 %v388
      %v427 = vpop.f32.mrb[0].mxu0
      %v428 = vadd.f32 %v351, %v427
      %v429 = vpop.f32.mrb[0].mxu0
      %v430 = vpop.f32.mrb[0].mxu0
      %v431 = vadd.f32 %v354, %v430
      %v432 = vpop.f32.mrb[0].mxu0
      %433 = vmatprep.mubr.bf16.mxu0 0
      %434 = vmatmul.mubr.bf16.gmra.mrb[0].mxu0 %v391
      %v435 = vpop.f32.mrb[0].mxu0
      %v436 = vadd.f32 %v359, %v435
      %v437 = vpop.f32.mrb[0].mxu0
      %v438 = vpop.f32.mrb[0].mxu0
      %v439 = vadd.f32 %v362, %v438
      %v440 = vpop.f32.mrb[0].mxu0
      %441 = vdwg.mxu0
      %v442 = vld [vmem:[%s248] sm:$0xf]
      %v443 = vld [vmem:[%s248 + $0x4] sm:$0xf]
      %v444 = vld [vmem:[%s248 + $0x8] sm:$0xf]
      %v445 = vld [vmem:[%s248 + $0xc] sm:$0xf]
      %v446 = vld [vmem:[%s248 + $0x10] sm:$0x1]
      %s447 = scalar_lea.vmem %s257, 32
      %v448 = vld [vmem:[%s447] sm:$0xf]
      %v449 = vld [vmem:[%s447 + $0x4] sm:$0xf]
      %v450 = vld [vmem:[%s447 + $0x8] sm:$0xf]
      %v451 = vld [vmem:[%s447 + $0xc] sm:$0xf]
      %v457 = vunpack.c.l.b16 %v442
      %v458 = vunpack.c.l.b16 %v443
      %v459 = vunpack.c.l.b16 %v444
      %v460 = vunpack.c.l.b16 %v445
      %v461 = vunpack.c.l.b16 %v446
      %v462 = vpack.c.b16 %v458, %v457
      %v463 = vpack.c.b16 %v460, %v459
      %v464 = vpack.c.b16 %v461, %v461
      %vm465 = vsmask.f32 7424
      %v467 = vshrl.u32 %v462, 16
      %v469 = vshll.u32 %v462, 16
      %v471 = vrot.slane %v469, 1
      %v472 = vor.u32 %v467, %v471
      %v474 = vshll.u32 %v463, 16
      %v476 = vrot.slane %v474, 1
      %v477 = vsel %vm465, %v472, %v476
      %v478 = vshrl.u32 %v463, 16
      %v480 = vor.u32 %v478, %v476
      %v482 = vshll.u32 %v464, 16
      %v484 = vrot.slane %v482, 1
      %v485 = vsel %vm465, %v480, %v484
      %v490 = vunpack.c.l.b16 %v448
      %v491 = vunpack.c.l.b16 %v449
      %v492 = vunpack.c.l.b16 %v450
      %v493 = vunpack.c.l.b16 %v451
      %v494 = vpack.c.b16 %v491, %v490
      %v495 = vpack.c.b16 %v493, %v492
      %v499 = vsel %vm309, %v477, 0
      %v502 = vsel %vm309, %v485, 0
      %504 = vmatprep.subr.bf16.mxu0 0
      %505 = vmatpush1.bf16.msra.mxu0 %v494
      %506 = vmatprep.subr.bf16.mxu0 0
      %507 = vmatpush1.bf16.msra.mxu0 %v495
      %508 = vmatprep.subr.bf16.mxu0 0
      %509 = vmatpush1.bf16.msra.mxu0 0
      %510 = vmatprep.subr.bf16.mxu0 0
      %511 = vmatpush1.bf16.msra.mxu0 0
      %512 = vmatprep.subr.bf16.mxu0 0
      %513 = vmatpush1.bf16.msra.mxu0 0
      %514 = vmatprep.subr.bf16.mxu0 0
      %515 = vmatpush1.bf16.msra.mxu0 0
      %516 = vmatprep.subr.bf16.mxu0 0
      %517 = vmatpush1.bf16.msra.mxu0 0
      %518 = vmatprep.subr.bf16.mxu0 0
      %519 = vmatpush1.bf16.msra.mxu0 0
      %520 = vmatprep.subr.bf16.mxu0 0
      %521 = vmatpush1.bf16.msra.mxu0 0
      %522 = vmatprep.subr.bf16.mxu0 0
      %523 = vmatpush1.bf16.msra.mxu0 0
      %524 = vmatprep.subr.bf16.mxu0 0
      %525 = vmatpush1.bf16.msra.mxu0 0
      %526 = vmatprep.subr.bf16.mxu0 0
      %527 = vmatpush1.bf16.msra.mxu0 0
      %528 = vmatprep.subr.bf16.mxu0 0
      %529 = vmatpush1.bf16.msra.mxu0 0
      %530 = vmatprep.subr.bf16.mxu0 0
      %531 = vmatpush1.bf16.msra.mxu0 0
      %532 = vmatprep.subr.bf16.mxu0 0
      %533 = vmatpush1.bf16.msra.mxu0 0
      %534 = vmatprep.subr.bf16.mxu0 0
      %535 = vmatpush1.bf16.msra.mxu0 0
      %536 = vmatprep.mubr.bf16.mxu0 0
      %537 = vmatmul.mubr.bf16.gmra.mrb[0].mxu0 %v499
      %v538 = vpop.f32.mrb[0].mxu0
      %v539 = vadd.f32 0.0, %v538
      %v540 = vpop.f32.mrb[0].mxu0
      %v541 = vpop.f32.mrb[0].mxu0
      %v542 = vadd.f32 0.0, %v541
      %v543 = vpop.f32.mrb[0].mxu0
      %544 = vmatprep.mubr.bf16.mxu0 0
      %545 = vmatmul.mubr.bf16.gmra.mrb[0].mxu0 %v502
      %v546 = vpop.f32.mrb[0].mxu0
      %v547 = vadd.f32 0.0, %v546
      %v548 = vpop.f32.mrb[0].mxu0
      %v549 = vpop.f32.mrb[0].mxu0
      %v550 = vadd.f32 0.0, %v549
      %v551 = vpop.f32.mrb[0].mxu0
      %552 = vdwg.mxu0
      %v553 = vadd.f32 %v428, %v539
      %v554 = vadd.f32 %v431, %v542
      %v555 = vadd.f32 %v436, %v547
      %v556 = vadd.f32 %v439, %v550
      %v557 = vld [vmem:[%s253] sm:$0xf]
      %v558 = vld [vmem:[%s253 + $0x4] sm:$0xf]
      %v559 = vld [vmem:[%s253 + $0x8] sm:$0xf]
      %v560 = vld [vmem:[%s253 + $0xc] sm:$0xf]
      %v561 = vld [vmem:[%s253 + $0x10] sm:$0x1]
      %s562 = scalar_lea.vmem %s257, 48
      %v563 = vld [vmem:[%s562] sm:$0xf]
      %v564 = vld [vmem:[%s562 + $0x4] sm:$0xf]
      %v565 = vld [vmem:[%s562 + $0x8] sm:$0xf]
      %v566 = vld [vmem:[%s562 + $0xc] sm:$0xf]
      %v572 = vunpack.c.l.b16 %v557
      %v573 = vunpack.c.l.b16 %v558
      %v574 = vunpack.c.l.b16 %v559
      %v575 = vunpack.c.l.b16 %v560
      %v576 = vunpack.c.l.b16 %v561
      %v577 = vpack.c.b16 %v573, %v572
      %v578 = vpack.c.b16 %v575, %v574
      %v579 = vpack.c.b16 %v576, %v576
      %v581 = vshrl.u32 %v577, 16
      %v583 = vshll.u32 %v577, 16
      %v585 = vrot.slane %v583, 1
      %v586 = vor.u32 %v581, %v585
      %v588 = vshll.u32 %v578, 16
      %v590 = vrot.slane %v588, 1
      %v591 = vsel %vm465, %v586, %v590
      %v592 = vshrl.u32 %v578, 16
      %v594 = vor.u32 %v592, %v590
      %v596 = vshll.u32 %v579, 16
      %v598 = vrot.slane %v596, 1
      %v599 = vsel %vm465, %v594, %v598
      %v604 = vunpack.c.l.b16 %v563
      %v605 = vunpack.c.l.b16 %v564
      %v606 = vunpack.c.l.b16 %v565
      %v607 = vunpack.c.l.b16 %v566
      %v608 = vpack.c.b16 %v605, %v604
      %v609 = vpack.c.b16 %v607, %v606
      %v613 = vsel %vm309, %v591, 0
      %v616 = vsel %vm309, %v599, 0
      %618 = vmatprep.subr.bf16.mxu0 0
      %619 = vmatpush1.bf16.msra.mxu0 %v608
      %620 = vmatprep.subr.bf16.mxu0 0
      %621 = vmatpush1.bf16.msra.mxu0 %v609
      %622 = vmatprep.subr.bf16.mxu0 0
      %623 = vmatpush1.bf16.msra.mxu0 0
      %624 = vmatprep.subr.bf16.mxu0 0
      %625 = vmatpush1.bf16.msra.mxu0 0
      %626 = vmatprep.subr.bf16.mxu0 0
      %627 = vmatpush1.bf16.msra.mxu0 0
      %628 = vmatprep.subr.bf16.mxu0 0
      %629 = vmatpush1.bf16.msra.mxu0 0
      %630 = vmatprep.subr.bf16.mxu0 0
      %631 = vmatpush1.bf16.msra.mxu0 0
      %632 = vmatprep.subr.bf16.mxu0 0
      %633 = vmatpush1.bf16.msra.mxu0 0
      %634 = vmatprep.subr.bf16.mxu0 0
      %635 = vmatpush1.bf16.msra.mxu0 0
      %636 = vmatprep.subr.bf16.mxu0 0
      %637 = vmatpush1.bf16.msra.mxu0 0
      %638 = vmatprep.subr.bf16.mxu0 0
      %639 = vmatpush1.bf16.msra.mxu0 0
      %640 = vmatprep.subr.bf16.mxu0 0
      %641 = vmatpush1.bf16.msra.mxu0 0
      %642 = vmatprep.subr.bf16.mxu0 0
      %643 = vmatpush1.bf16.msra.mxu0 0
      %644 = vmatprep.subr.bf16.mxu0 0
      %645 = vmatpush1.bf16.msra.mxu0 0
      %646 = vmatprep.subr.bf16.mxu0 0
      %647 = vmatpush1.bf16.msra.mxu0 0
      %648 = vmatprep.subr.bf16.mxu0 0
      %649 = vmatpush1.bf16.msra.mxu0 0
      %650 = vmatprep.mubr.bf16.mxu0 0
      %651 = vmatmul.mubr.bf16.gmra.mrb[0].mxu0 %v613
      %v652 = vpop.f32.mrb[0].mxu0
      %v653 = vadd.f32 0.0, %v652
      %v654 = vpop.f32.mrb[0].mxu0
      %v655 = vpop.f32.mrb[0].mxu0
      %v656 = vadd.f32 0.0, %v655
      %v657 = vpop.f32.mrb[0].mxu0
      %658 = vmatprep.mubr.bf16.mxu0 0
      %659 = vmatmul.mubr.bf16.gmra.mrb[0].mxu0 %v616
      %v660 = vpop.f32.mrb[0].mxu0
      %v661 = vadd.f32 0.0, %v660
      %v662 = vpop.f32.mrb[0].mxu0
      %v663 = vpop.f32.mrb[0].mxu0
      %v664 = vadd.f32 0.0, %v663
      %v665 = vpop.f32.mrb[0].mxu0
      %666 = vdwg.mxu0
      %v667 = vadd.f32 %v553, %v653
      %v668 = vadd.f32 %v554, %v656
      %v669 = vadd.f32 %v555, %v661
      %v670 = vadd.f32 %v556, %v664
      %v671 = vld [vmem:[%s248] sm:$0xe]
      %s672 = scalar_lea.vmem %s257, 64
      %v673 = vld [vmem:[%s672] sm:$0xf]
      %v674 = vld [vmem:[%s672 + $0x4] sm:$0xf]
      %v675 = vld [vmem:[%s672 + $0x8] sm:$0xf]
      %v676 = vld [vmem:[%s672 + $0xc] sm:$0xf]
      %v678 = vunpack.c.l.b16 %v671
      %v679 = vpack.c.b16 %v458, %v678
      %vm680 = vcmask 1046528
      %v681 = vrot.slane %v679, 1
      %v682 = vrot.slane %v463, 1
      %v683 = vsel %vm680, %v681, %v682
      %v684 = vrot.slane %v464, 1
      %v685 = vsel %vm680, %v682, %v684
      %v690 = vunpack.c.l.b16 %v673
      %v691 = vunpack.c.l.b16 %v674
      %v692 = vunpack.c.l.b16 %v675
      %v693 = vunpack.c.l.b16 %v676
      %v694 = vpack.c.b16 %v691, %v690
      %v695 = vpack.c.b16 %v693, %v692
      %v699 = vsel %vm309, %v683, 0
      %v702 = vsel %vm309, %v685, 0
      %704 = vmatprep.subr.bf16.mxu0 0
      %705 = vmatpush1.bf16.msra.mxu0 %v694
      %706 = vmatprep.subr.bf16.mxu0 0
      %707 = vmatpush1.bf16.msra.mxu0 %v695
      %708 = vmatprep.subr.bf16.mxu0 0
      %709 = vmatpush1.bf16.msra.mxu0 0
      %710 = vmatprep.subr.bf16.mxu0 0
      %711 = vmatpush1.bf16.msra.mxu0 0
      %712 = vmatprep.subr.bf16.mxu0 0
      %713 = vmatpush1.bf16.msra.mxu0 0
      %714 = vmatprep.subr.bf16.mxu0 0
      %715 = vmatpush1.bf16.msra.mxu0 0
      %716 = vmatprep.subr.bf16.mxu0 0
      %717 = vmatpush1.bf16.msra.mxu0 0
      %718 = vmatprep.subr.bf16.mxu0 0
      %719 = vmatpush1.bf16.msra.mxu0 0
      %720 = vmatprep.subr.bf16.mxu0 0
      %721 = vmatpush1.bf16.msra.mxu0 0
      %722 = vmatprep.subr.bf16.mxu0 0
      %723 = vmatpush1.bf16.msra.mxu0 0
      %724 = vmatprep.subr.bf16.mxu0 0
      %725 = vmatpush1.bf16.msra.mxu0 0
      %726 = vmatprep.subr.bf16.mxu0 0
      %727 = vmatpush1.bf16.msra.mxu0 0
      %728 = vmatprep.subr.bf16.mxu0 0
      %729 = vmatpush1.bf16.msra.mxu0 0
      %730 = vmatprep.subr.bf16.mxu0 0
      %731 = vmatpush1.bf16.msra.mxu0 0
      %732 = vmatprep.subr.bf16.mxu0 0
      %733 = vmatpush1.bf16.msra.mxu0 0
      %734 = vmatprep.subr.bf16.mxu0 0
      %735 = vmatpush1.bf16.msra.mxu0 0
      %736 = vmatprep.mubr.bf16.mxu0 0
      %737 = vmatmul.mubr.bf16.gmra.mrb[0].mxu0 %v699
      %v738 = vpop.f32.mrb[0].mxu0
      %v739 = vadd.f32 0.0, %v738
      %v740 = vpop.f32.mrb[0].mxu0
      %v741 = vpop.f32.mrb[0].mxu0
      %v742 = vadd.f32 0.0, %v741
      %v743 = vpop.f32.mrb[0].mxu0
      %744 = vmatprep.mubr.bf16.mxu0 0
      %745 = vmatmul.mubr.bf16.gmra.mrb[0].mxu0 %v702
      %v746 = vpop.f32.mrb[0].mxu0
      %v747 = vadd.f32 0.0, %v746
      %v748 = vpop.f32.mrb[0].mxu0
      %v749 = vpop.f32.mrb[0].mxu0
      %v750 = vadd.f32 0.0, %v749
      %v751 = vpop.f32.mrb[0].mxu0
      %752 = vdwg.mxu0
      %v753 = vadd.f32 %v667, %v739
      %v754 = vadd.f32 %v668, %v742
      %v755 = vadd.f32 %v669, %v747
      %v756 = vadd.f32 %v670, %v750
      %v757 = vld [vmem:[%s260] sm:$0x1]
      %v758 = vunpack.c.l.bf16 %v757
      %v759 = vlaneseq
      %v760 = vshrl.u32 %v759, 7
      %v761 = vsub.s32 0, %v760
      %v762 = vrot.slane %v758, %v761
      %v763 = vadd.f32 %v753, %v762
      %v764 = vadd.f32 %v754, %v762
      %v765 = vadd.f32 %v755, %v762
      %v766 = vadd.f32 %v756, %v762
      %v767 = vmul.f32 %v763, 0.5
      %v768 = vmul.f32 %v764, 0.5
      %v769 = vmul.f32 %v765, 0.5
      %v770 = vmul.f32 %v766, 0.5
      %v771 = vmul.f32 %v763, 0.044715
      %v772 = vmul.f32 %v764, 0.044715
      %v773 = vmul.f32 %v765, 0.044715
      %v774 = vmul.f32 %v766, 0.044715
      %v775 = vmul.f32 %v771, %v763
      %v776 = vmul.f32 %v772, %v764
      %v777 = vmul.f32 %v773, %v765
      %v778 = vmul.f32 %v774, %v766
      %v779 = vmul.f32 %v775, %v763
      %v780 = vmul.f32 %v776, %v764
      %v781 = vmul.f32 %v777, %v765
      %v782 = vmul.f32 %v778, %v766
      %v783 = vadd.f32 %v763, %v779
      %v784 = vadd.f32 %v764, %v780
      %v785 = vadd.f32 %v765, %v781
      %v786 = vadd.f32 %v766, %v782
      %v787 = vmul.f32 %v783, 0.7978846
      %v788 = vmul.f32 %v784, 0.7978846
      %v789 = vmul.f32 %v785, 0.7978846
      %v790 = vmul.f32 %v786, 0.7978846
      %v791 = vtanh.pop %v787
      %v792 = vtanh.pop %v788
      %v793 = vtanh.pop %v789
      %v794 = vtanh.pop %v790
      %v795 = vadd.f32 %v791, 1.0
      %v796 = vadd.f32 %v792, 1.0
      %v797 = vadd.f32 %v793, 1.0
      %v798 = vadd.f32 %v794, 1.0
      %v799 = vmul.f32 %v767, %v795
      %v800 = vmul.f32 %v768, %v796
      %v801 = vmul.f32 %v769, %v797
      %v802 = vmul.f32 %v770, %v798
      %v803 = vpack.c.bf16 %v800, %v799
      %v804 = vpack.c.bf16 %v802, %v801
      %v807 = vunpack.c.l.b16 %v803
      %v808 = vunpack.c.h.b16 %v803
      %v809 = vunpack.c.l.b16 %v804
      %v810 = vunpack.c.h.b16 %v804
      %v811 = vpack.c.b16 %v807, %v807
      %v812 = vpack.c.b16 %v808, %v808
      %v813 = vpack.c.b16 %v809, %v809
      %v814 = vpack.c.b16 %v810, %v810
      %vm819 = vcmask 257024
      %820 = vst.msk [vmem:[%s268] sm:$0xf] %vm819, %v811
      %821 = vst.msk [vmem:[%s268 + $0x4] sm:$0xf] %vm819, %v812
      %822 = vst.msk [vmem:[%s268 + $0x8] sm:$0xf] %vm819, %v813
      %823 = vst.msk [vmem:[%s268 + $0xc] sm:$0xf] %vm819, %v814
      %p824 = scmp.lt.s32.totalorder %s19, 1
      %s825 = scalar_select %p824, %s19, 1
      %p826 = scmp.lt.s32.totalorder %s20, 0
      %s827 = scalar_select %p826, %s20, 0
      %s828 = smul.addr %s825, 4
      %s829 = sadd.s32 %s827, %s828
      %s830 = smul.addr %s829, 4
      %s831 = scalar_lea.vmem %s4, %s830
      // Predicated region
      $region37: #{audio_encoder_forward.25} parent=35 // pred_check
        %p832 = pneg %p151
      $region38: #{audio_encoder_forward.25} parent=35 // pred_check_branch
        %834 = sbr.rel (%p832) target = $region40
      $region39: #{audio_encoder_forward.25} parent=35 // pred_region
        _
      $region40: #{audio_encoder_forward.25} parent=35 // pred_fallthru
        _
    $region36: #{audio_encoder_forward.25} parent=5 // pred_fallthru
      _
    %p835 = scmp.le.s32.totalorder 2, %s10
    // Predicated region
    $region41: #{audio_encoder_forward.25} parent=5 // pred_check
      %p836 = pneg %p835
    $region42: #{audio_encoder_forward.25} parent=5 // pred_check_branch
      %838 = sbr.rel (%p836) target = $region44
    $region43: #{audio_encoder_forward.25} parent=5 // pred_region
      %s839 = ssub.s32 %s10, 2
      // Predicated region
      $region45: #{audio_encoder_forward.25} parent=43 // pred_check
        %p840 = pneg %p157
      $region46: #{audio_encoder_forward.25} parent=43 // pred_check_branch
        %842 = sbr.rel (%p840) target = $region48
      $region47: #{audio_encoder_forward.25} parent=43 // pred_region
        %p843 = scmp.lt.s32.totalorder %s21, 1
        %s844 = scalar_select %p843, %s21, 1
        %p845 = scmp.lt.s32.totalorder %s22, 0
        %s846 = scalar_select %p845, %s22, 0
        %s847 = smul.addr %s844, 4
        %s848 = sadd.s32 %s846, %s847
        %s849 = smul.addr %s848, 4
        %s850 = scalar_lea.vmem %s4, %s849
      $region48: #{audio_encoder_forward.25} parent=43 // pred_fallthru
        _
    $region44: #{audio_encoder_forward.25} parent=5 // pred_fallthru
      _
  $region6: #{audio_encoder_forward.25} parent=0 // loop_footer
    %s14 = sadd.s32 1, %s10
  $region7: #{audio_encoder_forward.25} parent=0 // loop_footer_branch
    %9 = sbr.rel target = $region3
  $region8: #{audio_encoder_forward.25} parent=0 // loop_exit
    _

// kernel: audio_encoder_forward.19
$region0: #{audio_encoder_forward.19}
  #allocation0 [shape = 'u32[]', space=smem, size = 0x4, offset = 0x4, fixed_abs, tag = 'smem constant byte address 0x4 - core index']
  #allocation1 [shape = 'u32[144,128]{1,0:T(1,128)}', space=vmem, size = 0x12000, scoped, tag = 'internal scratch']
  %s0 = inlined_call_operand.vmem [shape: bf16[2,18,8], index: 0, kind: input, shape index: {}]
  %s1 = inlined_call_operand.vmem [shape: bf16[3,8,32], index: 1, kind: input, shape index: {}]
  %s2 = inlined_call_operand.vmem [shape: bf16[1,32], index: 2, kind: input, shape index: {}]
  %s3 = inlined_call_operand.vmem [shape: bf16[2,16,32], index: 3, kind: output, shape index: {}]
  %s4 = sld [smem:[#allocation0]]
  $region45: #{audio_encoder_forward.19} parent=0
    _
  %s6 = ssub.s32 1, %s4
  %s7 = scalar_select 0, %s6, %s4
  loop: start=0, step=1, limit=4
  $region2: #{audio_encoder_forward.19} parent=0 // loop_pre_header
    _
  $region3: #{audio_encoder_forward.19} parent=0 // loop_header
    %s9 = sphi 0, %s13
    %p10 = scmp.ge.s32.totalorder %s9, 4
    %s16 = sphi 0, %s28
    %s17 = sphi 0, %s24
    %s18 = sphi 0, %s16
    %s19 = sphi 0, %s17
    %s20 = sphi 0, %s18
    %s21 = sphi 0, %s19
    %s31 = sphi 0, %s33
    %s34 = sphi 0, %s31
    %s35 = sphi 0, %s34
    %s51 = sphi 0, %s35
    %s57 = sphi 0, %s59
    %s60 = sphi 0, %s57
    %s61 = sphi 0, %s60
    %s77 = sphi 0, %s61
    %s83 = sphi 0, %s85
    %s86 = sphi 0, %s83
    %s87 = sphi 0, %s86
    %s103 = sphi 0, %s87
    %s111 = sphi 0, %s113
    %s114 = sphi 0, %s111
    %s115 = sphi 0, %s114
    %s131 = sphi 0, %s115
  $region4: #{audio_encoder_forward.19} parent=0 // loop_header_branch
    %12 = sbr.rel (%p10) target = $region8
  $region5: #{audio_encoder_forward.19} parent=0 // loop_body
    %s14 = ssub.s32 %s9, 1
    %s15 = ssub.s32 %s9, 2
    %s22 = sadd.s32 1, %s17
    %p23 = scmp.ge.s32.totalorder %s22, 1
    %s24 = scalar_select %p23, 0, %s22
    %s25 = sadd.s32 1, %s16
    %s26 = scalar_select %p23, %s25, %s16
    %p27 = scmp.ge.s32.totalorder %s26, 2
    %s28 = scalar_select %p27, 0, %s26
    %s29 = ssub.s32 %s16, %s28
    %p30 = scmp.eq.s32.totalorder %s29, 0
    %s32 = sadd.s32 %s31, 1
    %s33 = scalar_select %p30, %s31, %s32
    %p36 = pneg %p30
    %p37 = scmp.eq.s32.totalorder %s9, 1
    %p38 = por %p36, %p37
    %p39 = scmp.ne.s32.totalorder %s31, %s34
    %p40 = scmp.eq.s32.totalorder %s9, 0
    %p41 = por %p39, %p40
    %p42 = scmp.ne.s32.totalorder %s31, %s34
    %p43 = scmp.eq.s32.totalorder %s14, 1
    %p44 = por %p42, %p43
    %p45 = scmp.ne.s32.totalorder %s34, %s35
    %p46 = scmp.eq.s32.totalorder %s14, 0
    %p47 = por %p45, %p46
    %p48 = scmp.ne.s32.totalorder %s34, %s35
    %p49 = scmp.eq.s32.totalorder %s15, 1
    %p50 = por %p48, %p49
    %p52 = scmp.ne.s32.totalorder %s35, %s51
    %p53 = scmp.eq.s32.totalorder %s15, 0
    %p54 = por %p52, %p53
    %s55 = ssub.s32 %s17, %s24
    %p56 = scmp.eq.s32.totalorder %s55, 0
    %s58 = sadd.s32 %s57, 1
    %s59 = scalar_select %p56, %s57, %s58
    %p62 = pneg %p56
    %p63 = scmp.eq.s32.totalorder %s9, 1
    %p64 = por %p62, %p63
    %p65 = scmp.ne.s32.totalorder %s57, %s60
    %p66 = scmp.eq.s32.totalorder %s9, 0
    %p67 = por %p65, %p66
    %p68 = scmp.ne.s32.totalorder %s57, %s60
    %p69 = scmp.eq.s32.totalorder %s14, 1
    %p70 = por %p68, %p69
    %p71 = scmp.ne.s32.totalorder %s60, %s61
    %p72 = scmp.eq.s32.totalorder %s14, 0
    %p73 = por %p71, %p72
    %p74 = scmp.ne.s32.totalorder %s60, %s61
    %p75 = scmp.eq.s32.totalorder %s15, 1
    %p76 = por %p74, %p75
    %p78 = scmp.ne.s32.totalorder %s61, %s77
    %p79 = scmp.eq.s32.totalorder %s15, 0
    %p80 = por %p78, %p79
    %s81 = ssub.s32 %s17, %s24
    %p82 = scmp.eq.s32.totalorder %s81, 0
    %s84 = sadd.s32 %s83, 1
    %s85 = scalar_select %p82, %s83, %s84
    %p88 = pneg %p82
    %p89 = scmp.eq.s32.totalorder %s9, 1
    %p90 = por %p88, %p89
    %p91 = scmp.ne.s32.totalorder %s83, %s86
    %p92 = scmp.eq.s32.totalorder %s9, 0
    %p93 = por %p91, %p92
    %p94 = scmp.ne.s32.totalorder %s83, %s86
    %p95 = scmp.eq.s32.totalorder %s14, 1
    %p96 = por %p94, %p95
    %p97 = scmp.ne.s32.totalorder %s86, %s87
    %p98 = scmp.eq.s32.totalorder %s14, 0
    %p99 = por %p97, %p98
    %p100 = scmp.ne.s32.totalorder %s86, %s87
    %p101 = scmp.eq.s32.totalorder %s15, 1
    %p102 = por %p100, %p101
    %p104 = scmp.ne.s32.totalorder %s87, %s103
    %p105 = scmp.eq.s32.totalorder %s15, 0
    %p106 = por %p104, %p105
    %s107 = ssub.s32 %s16, %s28
    %s108 = ssub.s32 %s17, %s24
    %s109 = sor.u32 %s107, %s108
    %p110 = scmp.eq.s32.totalorder %s109, 0
    %s112 = sadd.s32 %s111, 1
    %s113 = scalar_select %p110, %s111, %s112
    %p116 = pneg %p110
    %p117 = scmp.eq.s32.totalorder %s9, 1
    %p118 = por %p116, %p117
    %p119 = scmp.ne.s32.totalorder %s111, %s114
    %p120 = scmp.eq.s32.totalorder %s9, 0
    %p121 = por %p119, %p120
    %p122 = scmp.ne.s32.totalorder %s111, %s114
    %p123 = scmp.eq.s32.totalorder %s14, 1
    %p124 = por %p122, %p123
    %p125 = scmp.ne.s32.totalorder %s114, %s115
    %p126 = scmp.eq.s32.totalorder %s14, 0
    %p127 = por %p125, %p126
    %p128 = scmp.ne.s32.totalorder %s114, %s115
    %p129 = scmp.eq.s32.totalorder %s15, 1
    %p130 = por %p128, %p129
    %p132 = scmp.ne.s32.totalorder %s115, %s131
    %p133 = scmp.eq.s32.totalorder %s15, 0
    %p134 = por %p132, %p133
    %p135 = scmp.le.s32.totalorder 1, %s9
    %p136 = scmp.lt.s32.totalorder %s9, 3
    %p137 = pnand %p135, %p136
    %p138 = pneg %p137
    // Predicated region
    $region9: #{audio_encoder_forward.19} parent=5 // pred_check
      _
    $region10: #{audio_encoder_forward.19} parent=5 // pred_check_branch
      %140 = sbr.rel (%p137) target = $region12
    $region11: #{audio_encoder_forward.19} parent=5 // pred_region
      %s141 = ssub.s32 %s9, 1
      // Predicated region
      $region13: #{audio_encoder_forward.19} parent=11 // pred_check
        %p142 = pneg %p73
      $region14: #{audio_encoder_forward.19} parent=11 // pred_check_branch
        %144 = sbr.rel (%p142) target = $region16
      $region15: #{audio_encoder_forward.19} parent=11 // pred_region
        %p145 = scmp.lt.s32.totalorder %s19, 0
        %s146 = scalar_select %p145, %s19, 0
        %s147 = smul.addr %s146, 4
        %s148 = scalar_lea.vmem %s1, %s147
      $region16: #{audio_encoder_forward.19} parent=11 // pred_fallthru
        _
      // Predicated region
      $region17: #{audio_encoder_forward.19} parent=11 // pred_check
        %p149 = pneg %p99
      $region18: #{audio_encoder_forward.19} parent=11 // pred_check_branch
        %151 = sbr.rel (%p149) target = $region20
      $region19: #{audio_encoder_forward.19} parent=11 // pred_region
        %p152 = scmp.lt.s32.totalorder %s19, 0
        %s153 = scalar_select %p152, %s19, 0
        %s154 = scalar_lea.vmem %s2, %s153
      $region20: #{audio_encoder_forward.19} parent=11 // pred_fallthru
        _
    $region12: #{audio_encoder_forward.19} parent=5 // pred_fallthru
      _
    %p155 = scmp.lt.s32.totalorder %s9, 2
    // Predicated region
    $region21: #{audio_encoder_forward.19} parent=5 // pred_check
      %p156 = pneg %p155
    $region22: #{audio_encoder_forward.19} parent=5 // pred_check_branch
      %158 = sbr.rel (%p156) target = $region24
    $region23: #{audio_encoder_forward.19} parent=5 // pred_region
      // Predicated region
      $region25: #{audio_encoder_forward.19} parent=23 // pred_check
        %p159 = pneg %p41
      $region26: #{audio_encoder_forward.19} parent=23 // pred_check_branch
        %161 = sbr.rel (%p159) target = $region28
      $region27: #{audio_encoder_forward.19} parent=23 // pred_region
        %p162 = scmp.lt.s32.totalorder %s16, 1
        %s163 = scalar_select %p162, %s16, 1
        %s164 = smul.addr %s163, 3
        %s165 = smul.addr %s164, 4
        %s166 = scalar_lea.vmem %s0, %s165
      $region28: #{audio_encoder_forward.19} parent=23 // pred_fallthru
        _
    $region24: #{audio_encoder_forward.19} parent=5 // pred_fallthru
      _
    %p167 = scmp.le.s32.totalorder 1, %s9
    %p168 = scmp.lt.s32.totalorder %s9, 3
    %p169 = pnand %p167, %p168
    %p170 = pneg %p169
    // Predicated region
    $region29: #{audio_encoder_forward.19} parent=5 // pred_check
      _
    $region30: #{audio_encoder_forward.19} parent=5 // pred_check_branch
      %172 = sbr.rel (%p169) target = $region32
    $region31: #{audio_encoder_forward.19} parent=5 // pred_region
      %s173 = ssub.s32 %s9, 1
      %p174 = scmp.lt.s32.totalorder %s18, 1
      %s175 = scalar_select %p174, %s18, 1
      %s176 = smul.addr %s175, 3
      %s177 = smul.addr %s176, 4
      %s178 = scalar_lea.vmem %s0, %s177
      %p179 = pneg %p47
      %p180 = pneg %p44
      %p181 = scmp.lt.s32.totalorder %s19, 0
      %s182 = scalar_select %p181, %s19, 0
      %s183 = smul.addr %s182, 4
      %s184 = scalar_lea.vmem %s1, %s183
      %p185 = pneg %p73
      %p186 = pneg %p70
      %p187 = scmp.lt.s32.totalorder %s19, 0
      %s188 = scalar_select %p187, %s19, 0
      %s189 = scalar_lea.vmem %s2, %s188
      %p190 = pneg %p99
      %p191 = pneg %p96
      %p192 = pneg %p127
      %p193 = pneg %p124
      %p194 = scmp.lt.s32.totalorder %s18, 1
      %s195 = scalar_select %p194, %s18, 1
      %p196 = scmp.lt.s32.totalorder %s19, 0
      %s197 = scalar_select %p196, %s19, 0
      %s198 = smul.addr %s195, 2
      %s199 = sadd.s32 %s197, %s198
      %s200 = smul.addr %s199, 4
      %s201 = scalar_lea.vmem %s3, %s200
      %p202 = scmp.lt.s32.totalorder %s18, 1
      %s203 = scalar_select %p202, %s18, 1
      %s204 = smul.addr %s203, 3
      %s205 = smul.addr %s204, 4
      %s206 = scalar_lea.vmem %s0, %s205
      %p207 = scmp.lt.s32.totalorder %s19, 0
      %s208 = scalar_select %p207, %s19, 0
      %s209 = smul.addr %s208, 4
      %s210 = scalar_lea.vmem %s1, %s209
      %p211 = scmp.lt.s32.totalorder %s19, 0
      %s212 = scalar_select %p211, %s19, 0
      %s213 = scalar_lea.vmem %s2, %s212
      %p214 = scmp.lt.s32.totalorder %s18, 1
      %s215 = scalar_select %p214, %s18, 1
      %p216 = scmp.lt.s32.totalorder %s19, 0
      %s217 = scalar_select %p216, %s19, 0
      %s218 = smul.addr %s215, 2
      %s219 = sadd.s32 %s217, %s218
      %s220 = smul.addr %s219, 4
      %s221 = scalar_lea.vmem %s3, %s220
      %v223 = vld [vmem:[%s206] sm:$0xf]
      %v224 = vld [vmem:[%s206 + $0x4] sm:$0xf]
      %v225 = vld [vmem:[%s210] sm:$0xf]
      %v226 = vld [vmem:[%s206 + $0x8] sm:$0x1]
      %s227 = scalar_lea.vmem %s210, 4
      %v228 = vld [vmem:[%s227] sm:$0xf]
      %v232 = vunpack.c.l.b16 %v223
      %v233 = vunpack.c.l.b16 %v224
      %v234 = vunpack.c.l.b16 %v226
      %v235 = vpack.c.b16 %v233, %v232
      %v236 = vpack.c.b16 %v234, %v234
      %vm237 = vsmask.f32 7424
      %v239 = vshrl.u32 %v235, 16
      %v241 = vshll.u32 %v235, 16
      %v243 = vrot.slane %v241, 1
      %v244 = vor.u32 %v239, %v243
      %v246 = vshll.u32 %v236, 16
      %v248 = vrot.slane %v246, 1
      %v249 = vsel %vm237, %v244, %v248
      %vm250 = vcmask 64512
      %v252 = vsel %vm250, %v249, 0
      %vm254 = vcmask 1043456
      %v256 = vsel %vm254, %v228, 0
      %258 = vmatprep.subr.bf16.mxu0 0
      %259 = vmatpush1.bf16.msra.mxu0 %v256
      %260 = vmatprep.subr.bf16.mxu0 0
      %261 = vmatpush1.bf16.msra.mxu0 0
      %262 = vmatprep.subr.bf16.mxu0 0
      %263 = vmatpush1.bf16.msra.mxu0 0
      %264 = vmatprep.subr.bf16.mxu0 0
      %265 = vmatpush1.bf16.msra.mxu0 0
      %266 = vmatprep.subr.bf16.mxu0 0
      %267 = vmatpush1.bf16.msra.mxu0 0
      %268 = vmatprep.subr.bf16.mxu0 0
      %269 = vmatpush1.bf16.msra.mxu0 0
      %270 = vmatprep.subr.bf16.mxu0 0
      %271 = vmatpush1.bf16.msra.mxu0 0
      %272 = vmatprep.subr.bf16.mxu0 0
      %273 = vmatpush1.bf16.msra.mxu0 0
      %274 = vmatprep.subr.bf16.mxu0 0
      %275 = vmatpush1.bf16.msra.mxu0 0
      %276 = vmatprep.subr.bf16.mxu0 0
      %277 = vmatpush1.bf16.msra.mxu0 0
      %278 = vmatprep.subr.bf16.mxu0 0
      %279 = vmatpush1.bf16.msra.mxu0 0
      %280 = vmatprep.subr.bf16.mxu0 0
      %281 = vmatpush1.bf16.msra.mxu0 0
      %282 = vmatprep.subr.bf16.mxu0 0
      %283 = vmatpush1.bf16.msra.mxu0 0
      %284 = vmatprep.subr.bf16.mxu0 0
      %285 = vmatpush1.bf16.msra.mxu0 0
      %286 = vmatprep.subr.bf16.mxu0 0
      %287 = vmatpush1.bf16.msra.mxu0 0
      %288 = vmatprep.subr.bf16.mxu0 0
      %289 = vmatpush1.bf16.msra.mxu0 0
      %290 = vmatprep.mubr.bf16.mxu0 0
      %291 = vmatmul.mubr.bf16.gmra.mrb[0].mxu0 %v252
      %v292 = vpop.f32.mrb[0].mxu0
      %v293 = vadd.f32 0.0, %v292
      %v294 = vpop.f32.mrb[0].mxu0
      %v295 = vpop.f32.mrb[0].mxu0
      %v296 = vadd.f32 0.0, %v295
      %v297 = vpop.f32.mrb[0].mxu0
      %298 = vdwg.mxu0
      %v299 = vsel %vm250, %v235, 0
      %v302 = vsel %vm254, %v225, 0
      %304 = vmatprep.subr.bf16.mxu0 0
      %305 = vmatpush1.bf16.msra.mxu0 %v302
      %306 = vmatprep.subr.bf16.mxu0 0
      %307 = vmatpush1.bf16.msra.mxu0 0
      %308 = vmatprep.subr.bf16.mxu0 0
      %309 = vmatpush1.bf16.msra.mxu0 0
      %310 = vmatprep.subr.bf16.mxu0 0
      %311 = vmatpush1.bf16.msra.mxu0 0
      %312 = vmatprep.subr.bf16.mxu0 0
      %313 = vmatpush1.bf16.msra.mxu0 0
      %314 = vmatprep.subr.bf16.mxu0 0
      %315 = vmatpush1.bf16.msra.mxu0 0
      %316 = vmatprep.subr.bf16.mxu0 0
      %317 = vmatpush1.bf16.msra.mxu0 0
      %318 = vmatprep.subr.bf16.mxu0 0
      %319 = vmatpush1.bf16.msra.mxu0 0
      %320 = vmatprep.subr.bf16.mxu0 0
      %321 = vmatpush1.bf16.msra.mxu0 0
      %322 = vmatprep.subr.bf16.mxu0 0
      %323 = vmatpush1.bf16.msra.mxu0 0
      %324 = vmatprep.subr.bf16.mxu0 0
      %325 = vmatpush1.bf16.msra.mxu0 0
      %326 = vmatprep.subr.bf16.mxu0 0
      %327 = vmatpush1.bf16.msra.mxu0 0
      %328 = vmatprep.subr.bf16.mxu0 0
      %329 = vmatpush1.bf16.msra.mxu0 0
      %330 = vmatprep.subr.bf16.mxu0 0
      %331 = vmatpush1.bf16.msra.mxu0 0
      %332 = vmatprep.subr.bf16.mxu0 0
      %333 = vmatpush1.bf16.msra.mxu0 0
      %334 = vmatprep.subr.bf16.mxu0 0
      %335 = vmatpush1.bf16.msra.mxu0 0
      %336 = vmatprep.mubr.bf16.mxu0 0
      %337 = vmatmul.mubr.bf16.gmra.mrb[0].mxu0 %v299
      %v338 = vpop.f32.mrb[0].mxu0
      %v339 = vadd.f32 %v293, %v338
      %v340 = vpop.f32.mrb[0].mxu0
      %v341 = vpop.f32.mrb[0].mxu0
      %v342 = vadd.f32 %v296, %v341
      %v343 = vpop.f32.mrb[0].mxu0
      %344 = vdwg.mxu0
      %v345 = vld [vmem:[%s206] sm:$0xe]
      %s346 = scalar_lea.vmem %s210, 8
      %v347 = vld [vmem:[%s346] sm:$0xf]
      %v349 = vunpack.c.l.b16 %v345
      %v350 = vpack.c.b16 %v233, %v349
      %vm351 = vcmask 1046528
      %v352 = vrot.slane %v350, 1
      %v353 = vrot.slane %v236, 1
      %v354 = vsel %vm351, %v352, %v353
      %v356 = vsel %vm250, %v354, 0
      %v359 = vsel %vm254, %v347, 0
      %361 = vmatprep.subr.bf16.mxu0 0
      %362 = vmatpush1.bf16.msra.mxu0 %v359
      %363 = vmatprep.subr.bf16.mxu0 0
      %364 = vmatpush1.bf16.msra.mxu0 0
      %365 = vmatprep.subr.bf16.mxu0 0
      %366 = vmatpush1.bf16.msra.mxu0 0
      %367 = vmatprep.subr.bf16.mxu0 0
      %368 = vmatpush1.bf16.msra.mxu0 0
      %369 = vmatprep.subr.bf16.mxu0 0
      %370 = vmatpush1.bf16.msra.mxu0 0
      %371 = vmatprep.subr.bf16.mxu0 0
      %372 = vmatpush1.bf16.msra.mxu0 0
      %373 = vmatprep.subr.bf16.mxu0 0
      %374 = vmatpush1.bf16.msra.mxu0 0
      %375 = vmatprep.subr.bf16.mxu0 0
      %376 = vmatpush1.bf16.msra.mxu0 0
      %377 = vmatprep.subr.bf16.mxu0 0
      %378 = vmatpush1.bf16.msra.mxu0 0
      %379 = vmatprep.subr.bf16.mxu0 0
      %380 = vmatpush1.bf16.msra.mxu0 0
      %381 = vmatprep.subr.bf16.mxu0 0
      %382 = vmatpush1.bf16.msra.mxu0 0
      %383 = vmatprep.subr.bf16.mxu0 0
      %384 = vmatpush1.bf16.msra.mxu0 0
      %385 = vmatprep.subr.bf16.mxu0 0
      %386 = vmatpush1.bf16.msra.mxu0 0
      %387 = vmatprep.subr.bf16.mxu0 0
      %388 = vmatpush1.bf16.msra.mxu0 0
      %389 = vmatprep.subr.bf16.mxu0 0
      %390 = vmatpush1.bf16.msra.mxu0 0
      %391 = vmatprep.subr.bf16.mxu0 0
      %392 = vmatpush1.bf16.msra.mxu0 0
      %393 = vmatprep.mubr.bf16.mxu0 0
      %394 = vmatmul.mubr.bf16.gmra.mrb[0].mxu0 %v356
      %v395 = vpop.f32.mrb[0].mxu0
      %v396 = vadd.f32 0.0, %v395
      %v397 = vpop.f32.mrb[0].mxu0
      %v398 = vpop.f32.mrb[0].mxu0
      %v399 = vadd.f32 0.0, %v398
      %v400 = vpop.f32.mrb[0].mxu0
      %401 = vdwg.mxu0
      %v402 = vadd.f32 %v339, %v396
      %v403 = vadd.f32 %v342, %v399
      %v404 = vld [vmem:[%s213] sm:$0x1]
      %v405 = vunpack.c.l.bf16 %v404
      %v406 = vlaneseq
      %v407 = vshrl.u32 %v406, 7
      %v408 = vsub.s32 0, %v407
      %v409 = vrot.slane %v405, %v408
      %v410 = vadd.f32 %v402, %v409
      %v411 = vadd.f32 %v403, %v409
      %v412 = vmul.f32 %v410, 0.5
      %v413 = vmul.f32 %v411, 0.5
      %v414 = vmul.f32 %v410, 0.044715
      %v415 = vmul.f32 %v411, 0.044715
      %v416 = vmul.f32 %v414, %v410
      %v417 = vmul.f32 %v415, %v411
      %v418 = vmul.f32 %v416, %v410
      %v419 = vmul.f32 %v417, %v411
      %v420 = vadd.f32 %v410, %v418
      %v421 = vadd.f32 %v411, %v419
      %v422 = vmul.f32 %v420, 0.7978846
      %v423 = vmul.f32 %v421, 0.7978846
      %v424 = vtanh.pop %v422
      %v425 = vtanh.pop %v423
      %v426 = vadd.f32 %v424, 1.0
      %v427 = vadd.f32 %v425, 1.0
      %v428 = vmul.f32 %v412, %v426
      %v429 = vmul.f32 %v413, %v427
      %v430 = vpack.c.bf16 %v429, %v428
      %v432 = vunpack.c.l.b16 %v430
      %v433 = vunpack.c.h.b16 %v430
      %v434 = vpack.c.b16 %v432, %v432
      %v435 = vpack.c.b16 %v433, %v433
      %vm438 = vcmask 257024
      %439 = vst.msk [vmem:[%s221] sm:$0xf] %vm438, %v434
      %440 = vst.msk [vmem:[%s221 + $0x4] sm:$0xf] %vm438, %v435
      %p441 = scmp.lt.s32.totalorder %s18, 1
      %s442 = scalar_select %p441, %s18, 1
      %p443 = scmp.lt.s32.totalorder %s19, 0
      %s444 = scalar_select %p443, %s19, 0
      %s445 = smul.addr %s442, 2
      %s446 = sadd.s32 %s444, %s445
      %s447 = smul.addr %s446, 4
      %s448 = scalar_lea.vmem %s3, %s447
      // Predicated region
      $region33: #{audio_encoder_forward.19} parent=31 // pred_check
        %p449 = pneg %p124
      $region34: #{audio_encoder_forward.19} parent=31 // pred_check_branch
        %451 = sbr.rel (%p449) target = $region36
      $region35: #{audio_encoder_forward.19} parent=31 // pred_region
        _
      $region36: #{audio_encoder_forward.19} parent=31 // pred_fallthru
        _
    $region32: #{audio_encoder_forward.19} parent=5 // pred_fallthru
      _
    %p452 = scmp.le.s32.totalorder 2, %s9
    // Predicated region
    $region37: #{audio_encoder_forward.19} parent=5 // pred_check
      %p453 = pneg %p452
    $region38: #{audio_encoder_forward.19} parent=5 // pred_check_branch
      %455 = sbr.rel (%p453) target = $region40
    $region39: #{audio_encoder_forward.19} parent=5 // pred_region
      %s456 = ssub.s32 %s9, 2
      // Predicated region
      $region41: #{audio_encoder_forward.19} parent=39 // pred_check
        %p457 = pneg %p130
      $region42: #{audio_encoder_forward.19} parent=39 // pred_check_branch
        %459 = sbr.rel (%p457) target = $region44
      $region43: #{audio_encoder_forward.19} parent=39 // pred_region
        %p460 = scmp.lt.s32.totalorder %s20, 1
        %s461 = scalar_select %p460, %s20, 1
        %p462 = scmp.lt.s32.totalorder %s21, 0
        %s463 = scalar_select %p462, %s21, 0
        %s464 = smul.addr %s461, 2
        %s465 = sadd.s32 %s463, %s464
        %s466 = smul.addr %s465, 4
        %s467 = scalar_lea.vmem %s3, %s466
      $region44: #{audio_encoder_forward.19} parent=39 // pred_fallthru
        _
    $region40: #{audio_encoder_forward.19} parent=5 // pred_fallthru
      _
  $region6: #{audio_encoder_forward.19} parent=0 // loop_footer
    %s13 = sadd.s32 1, %s9
  $region7: #{audio_encoder_forward.19} parent=0 // loop_footer_branch
    %8 = sbr.rel target = $region3
  $region8: #{audio_encoder_forward.19} parent=0 // loop_exit
    _

// kernel: audio_encoder_forward.20
$region0: #{audio_encoder_forward.20}
  #allocation0 [shape = 'u32[]', space=smem, size = 0x4, offset = 0x4, fixed_abs, tag = 'smem constant byte address 0x4 - core index']
  #allocation1 [shape = 'u32[144,128]{1,0:T(1,128)}', space=vmem, size = 0x12000, scoped, tag = 'internal scratch']
  %s0 = inlined_call_operand.vmem [shape: bf16[2,20,32], index: 0, kind: input, shape index: {}]
  %s1 = inlined_call_operand.vmem [shape: bf16[3,32,32], index: 1, kind: input, shape index: {}]
  %s2 = inlined_call_operand.vmem [shape: bf16[1,32], index: 2, kind: input, shape index: {}]
  %s3 = inlined_call_operand.vmem [shape: bf16[2,16,32], index: 3, kind: output, shape index: {}]
  %s4 = sld [smem:[#allocation0]]
  $region45: #{audio_encoder_forward.20} parent=0
    _
  %s6 = ssub.s32 1, %s4
  %s7 = scalar_select 0, %s6, %s4
  loop: start=0, step=1, limit=4
  $region2: #{audio_encoder_forward.20} parent=0 // loop_pre_header
    _
  $region3: #{audio_encoder_forward.20} parent=0 // loop_header
    %s9 = sphi 0, %s13
    %p10 = scmp.ge.s32.totalorder %s9, 4
    %s16 = sphi 0, %s28
    %s17 = sphi 0, %s24
    %s18 = sphi 0, %s16
    %s19 = sphi 0, %s17
    %s20 = sphi 0, %s18
    %s21 = sphi 0, %s19
    %s31 = sphi 0, %s33
    %s34 = sphi 0, %s31
    %s35 = sphi 0, %s34
    %s51 = sphi 0, %s35
    %s57 = sphi 0, %s59
    %s60 = sphi 0, %s57
    %s61 = sphi 0, %s60
    %s77 = sphi 0, %s61
    %s83 = sphi 0, %s85
    %s86 = sphi 0, %s83
    %s87 = sphi 0, %s86
    %s103 = sphi 0, %s87
    %s111 = sphi 0, %s113
    %s114 = sphi 0, %s111
    %s115 = sphi 0, %s114
    %s131 = sphi 0, %s115
  $region4: #{audio_encoder_forward.20} parent=0 // loop_header_branch
    %12 = sbr.rel (%p10) target = $region8
  $region5: #{audio_encoder_forward.20} parent=0 // loop_body
    %s14 = ssub.s32 %s9, 1
    %s15 = ssub.s32 %s9, 2
    %s22 = sadd.s32 1, %s17
    %p23 = scmp.ge.s32.totalorder %s22, 1
    %s24 = scalar_select %p23, 0, %s22
    %s25 = sadd.s32 1, %s16
    %s26 = scalar_select %p23, %s25, %s16
    %p27 = scmp.ge.s32.totalorder %s26, 2
    %s28 = scalar_select %p27, 0, %s26
    %s29 = ssub.s32 %s16, %s28
    %p30 = scmp.eq.s32.totalorder %s29, 0
    %s32 = sadd.s32 %s31, 1
    %s33 = scalar_select %p30, %s31, %s32
    %p36 = pneg %p30
    %p37 = scmp.eq.s32.totalorder %s9, 1
    %p38 = por %p36, %p37
    %p39 = scmp.ne.s32.totalorder %s31, %s34
    %p40 = scmp.eq.s32.totalorder %s9, 0
    %p41 = por %p39, %p40
    %p42 = scmp.ne.s32.totalorder %s31, %s34
    %p43 = scmp.eq.s32.totalorder %s14, 1
    %p44 = por %p42, %p43
    %p45 = scmp.ne.s32.totalorder %s34, %s35
    %p46 = scmp.eq.s32.totalorder %s14, 0
    %p47 = por %p45, %p46
    %p48 = scmp.ne.s32.totalorder %s34, %s35
    %p49 = scmp.eq.s32.totalorder %s15, 1
    %p50 = por %p48, %p49
    %p52 = scmp.ne.s32.totalorder %s35, %s51
    %p53 = scmp.eq.s32.totalorder %s15, 0
    %p54 = por %p52, %p53
    %s55 = ssub.s32 %s17, %s24
    %p56 = scmp.eq.s32.totalorder %s55, 0
    %s58 = sadd.s32 %s57, 1
    %s59 = scalar_select %p56, %s57, %s58
    %p62 = pneg %p56
    %p63 = scmp.eq.s32.totalorder %s9, 1
    %p64 = por %p62, %p63
    %p65 = scmp.ne.s32.totalorder %s57, %s60
    %p66 = scmp.eq.s32.totalorder %s9, 0
    %p67 = por %p65, %p66
    %p68 = scmp.ne.s32.totalorder %s57, %s60
    %p69 = scmp.eq.s32.totalorder %s14, 1
    %p70 = por %p68, %p69
    %p71 = scmp.ne.s32.totalorder %s60, %s61
    %p72 = scmp.eq.s32.totalorder %s14, 0
    %p73 = por %p71, %p72
    %p74 = scmp.ne.s32.totalorder %s60, %s61
    %p75 = scmp.eq.s32.totalorder %s15, 1
    %p76 = por %p74, %p75
    %p78 = scmp.ne.s32.totalorder %s61, %s77
    %p79 = scmp.eq.s32.totalorder %s15, 0
    %p80 = por %p78, %p79
    %s81 = ssub.s32 %s17, %s24
    %p82 = scmp.eq.s32.totalorder %s81, 0
    %s84 = sadd.s32 %s83, 1
    %s85 = scalar_select %p82, %s83, %s84
    %p88 = pneg %p82
    %p89 = scmp.eq.s32.totalorder %s9, 1
    %p90 = por %p88, %p89
    %p91 = scmp.ne.s32.totalorder %s83, %s86
    %p92 = scmp.eq.s32.totalorder %s9, 0
    %p93 = por %p91, %p92
    %p94 = scmp.ne.s32.totalorder %s83, %s86
    %p95 = scmp.eq.s32.totalorder %s14, 1
    %p96 = por %p94, %p95
    %p97 = scmp.ne.s32.totalorder %s86, %s87
    %p98 = scmp.eq.s32.totalorder %s14, 0
    %p99 = por %p97, %p98
    %p100 = scmp.ne.s32.totalorder %s86, %s87
    %p101 = scmp.eq.s32.totalorder %s15, 1
    %p102 = por %p100, %p101
    %p104 = scmp.ne.s32.totalorder %s87, %s103
    %p105 = scmp.eq.s32.totalorder %s15, 0
    %p106 = por %p104, %p105
    %s107 = ssub.s32 %s16, %s28
    %s108 = ssub.s32 %s17, %s24
    %s109 = sor.u32 %s107, %s108
    %p110 = scmp.eq.s32.totalorder %s109, 0
    %s112 = sadd.s32 %s111, 1
    %s113 = scalar_select %p110, %s111, %s112
    %p116 = pneg %p110
    %p117 = scmp.eq.s32.totalorder %s9, 1
    %p118 = por %p116, %p117
    %p119 = scmp.ne.s32.totalorder %s111, %s114
    %p120 = scmp.eq.s32.totalorder %s9, 0
    %p121 = por %p119, %p120
    %p122 = scmp.ne.s32.totalorder %s111, %s114
    %p123 = scmp.eq.s32.totalorder %s14, 1
    %p124 = por %p122, %p123
    %p125 = scmp.ne.s32.totalorder %s114, %s115
    %p126 = scmp.eq.s32.totalorder %s14, 0
    %p127 = por %p125, %p126
    %p128 = scmp.ne.s32.totalorder %s114, %s115
    %p129 = scmp.eq.s32.totalorder %s15, 1
    %p130 = por %p128, %p129
    %p132 = scmp.ne.s32.totalorder %s115, %s131
    %p133 = scmp.eq.s32.totalorder %s15, 0
    %p134 = por %p132, %p133
    %p135 = scmp.le.s32.totalorder 1, %s9
    %p136 = scmp.lt.s32.totalorder %s9, 3
    %p137 = pnand %p135, %p136
    %p138 = pneg %p137
    // Predicated region
    $region9: #{audio_encoder_forward.20} parent=5 // pred_check
      _
    $region10: #{audio_encoder_forward.20} parent=5 // pred_check_branch
      %140 = sbr.rel (%p137) target = $region12
    $region11: #{audio_encoder_forward.20} parent=5 // pred_region
      %s141 = ssub.s32 %s9, 1
      // Predicated region
      $region13: #{audio_encoder_forward.20} parent=11 // pred_check
        %p142 = pneg %p73
      $region14: #{audio_encoder_forward.20} parent=11 // pred_check_branch
        %144 = sbr.rel (%p142) target = $region16
      $region15: #{audio_encoder_forward.20} parent=11 // pred_region
        %p145 = scmp.lt.s32.totalorder %s19, 0
        %s146 = scalar_select %p145, %s19, 0
        %s147 = smul.addr %s146, 4
        %s148 = scalar_lea.vmem %s1, %s147
      $region16: #{audio_encoder_forward.20} parent=11 // pred_fallthru
        _
      // Predicated region
      $region17: #{audio_encoder_forward.20} parent=11 // pred_check
        %p149 = pneg %p99
      $region18: #{audio_encoder_forward.20} parent=11 // pred_check_branch
        %151 = sbr.rel (%p149) target = $region20
      $region19: #{audio_encoder_forward.20} parent=11 // pred_region
        %p152 = scmp.lt.s32.totalorder %s19, 0
        %s153 = scalar_select %p152, %s19, 0
        %s154 = scalar_lea.vmem %s2, %s153
      $region20: #{audio_encoder_forward.20} parent=11 // pred_fallthru
        _
    $region12: #{audio_encoder_forward.20} parent=5 // pred_fallthru
      _
    %p155 = scmp.lt.s32.totalorder %s9, 2
    // Predicated region
    $region21: #{audio_encoder_forward.20} parent=5 // pred_check
      %p156 = pneg %p155
    $region22: #{audio_encoder_forward.20} parent=5 // pred_check_branch
      %158 = sbr.rel (%p156) target = $region24
    $region23: #{audio_encoder_forward.20} parent=5 // pred_region
      // Predicated region
      $region25: #{audio_encoder_forward.20} parent=23 // pred_check
        %p159 = pneg %p41
      $region26: #{audio_encoder_forward.20} parent=23 // pred_check_branch
        %161 = sbr.rel (%p159) target = $region28
      $region27: #{audio_encoder_forward.20} parent=23 // pred_region
        %p162 = scmp.lt.s32.totalorder %s16, 1
        %s163 = scalar_select %p162, %s16, 1
        %s164 = smul.addr %s163, 3
        %s165 = smul.addr %s164, 4
        %s166 = scalar_lea.vmem %s0, %s165
      $region28: #{audio_encoder_forward.20} parent=23 // pred_fallthru
        _
    $region24: #{audio_encoder_forward.20} parent=5 // pred_fallthru
      _
    %p167 = scmp.le.s32.totalorder 1, %s9
    %p168 = scmp.lt.s32.totalorder %s9, 3
    %p169 = pnand %p167, %p168
    %p170 = pneg %p169
    // Predicated region
    $region29: #{audio_encoder_forward.20} parent=5 // pred_check
      _
    $region30: #{audio_encoder_forward.20} parent=5 // pred_check_branch
      %172 = sbr.rel (%p169) target = $region32
    $region31: #{audio_encoder_forward.20} parent=5 // pred_region
      %s173 = ssub.s32 %s9, 1
      %p174 = scmp.lt.s32.totalorder %s18, 1
      %s175 = scalar_select %p174, %s18, 1
      %s176 = smul.addr %s175, 3
      %s177 = smul.addr %s176, 4
      %s178 = scalar_lea.vmem %s0, %s177
      %p179 = pneg %p47
      %p180 = pneg %p44
      %p181 = scmp.lt.s32.totalorder %s19, 0
      %s182 = scalar_select %p181, %s19, 0
      %s183 = smul.addr %s182, 4
      %s184 = scalar_lea.vmem %s1, %s183
      %p185 = pneg %p73
      %p186 = pneg %p70
      %p187 = scmp.lt.s32.totalorder %s19, 0
      %s188 = scalar_select %p187, %s19, 0
      %s189 = scalar_lea.vmem %s2, %s188
      %p190 = pneg %p99
      %p191 = pneg %p96
      %p192 = pneg %p127
      %p193 = pneg %p124
      %p194 = scmp.lt.s32.totalorder %s18, 1
      %s195 = scalar_select %p194, %s18, 1
      %p196 = scmp.lt.s32.totalorder %s19, 0
      %s197 = scalar_select %p196, %s19, 0
      %s198 = smul.addr %s195, 2
      %s199 = sadd.s32 %s197, %s198
      %s200 = smul.addr %s199, 4
      %s201 = scalar_lea.vmem %s3, %s200
      %p202 = scmp.lt.s32.totalorder %s18, 1
      %s203 = scalar_select %p202, %s18, 1
      %s204 = smul.addr %s203, 3
      %s205 = smul.addr %s204, 4
      %s206 = scalar_lea.vmem %s0, %s205
      %p207 = scmp.lt.s32.totalorder %s19, 0
      %s208 = scalar_select %p207, %s19, 0
      %s209 = smul.addr %s208, 4
      %s210 = scalar_lea.vmem %s1, %s209
      %p211 = scmp.lt.s32.totalorder %s19, 0
      %s212 = scalar_select %p211, %s19, 0
      %s213 = scalar_lea.vmem %s2, %s212
      %p214 = scmp.lt.s32.totalorder %s18, 1
      %s215 = scalar_select %p214, %s18, 1
      %p216 = scmp.lt.s32.totalorder %s19, 0
      %s217 = scalar_select %p216, %s19, 0
      %s218 = smul.addr %s215, 2
      %s219 = sadd.s32 %s217, %s218
      %s220 = smul.addr %s219, 4
      %s221 = scalar_lea.vmem %s3, %s220
      %v223 = vld [vmem:[%s206] sm:$0xf]
      %v224 = vld [vmem:[%s206 + $0x4] sm:$0xf]
      %v225 = vld [vmem:[%s210] sm:$0xf]
      %v226 = vld [vmem:[%s210 + $0x4] sm:$0xf]
      %v227 = vld [vmem:[%s210 + $0x8] sm:$0xf]
      %v228 = vld [vmem:[%s210 + $0xc] sm:$0xf]
      %v229 = vld [vmem:[%s206] sm:$0xe]
      %v230 = vld [vmem:[%s206 + $0x8] sm:$0x1]
      %s231 = scalar_lea.vmem %s210, 16
      %v232 = vld [vmem:[%s231] sm:$0xf]
      %v233 = vld [vmem:[%s231 + $0x4] sm:$0xf]
      %v234 = vld [vmem:[%s231 + $0x8] sm:$0xf]
      %v235 = vld [vmem:[%s231 + $0xc] sm:$0xf]
      %v239 = vunpack.c.l.b16 %v229
      %v240 = vunpack.c.l.b16 %v224
      %v241 = vunpack.c.l.b16 %v230
      %v242 = vpack.c.b16 %v240, %v239
      %v243 = vpack.c.b16 %v241, %v241
      %vm244 = vcmask 1046528
      %v245 = vrot.slane %v242, 1
      %v246 = vrot.slane %v243, 1
      %v247 = vsel %vm244, %v245, %v246
      %v252 = vunpack.c.l.b16 %v232
      %v253 = vunpack.c.l.b16 %v233
      %v254 = vunpack.c.l.b16 %v234
      %v255 = vunpack.c.l.b16 %v235
      %v256 = vpack.c.b16 %v253, %v252
      %v257 = vpack.c.b16 %v255, %v254
      %vm260 = vcmask 261120
      %v262 = vsel %vm260, %v247, 0
      %264 = vmatprep.subr.bf16.mxu0 0
      %265 = vmatpush1.bf16.msra.mxu0 %v256
      %266 = vmatprep.subr.bf16.mxu0 0
      %267 = vmatpush1.bf16.msra.mxu0 %v257
      %268 = vmatprep.subr.bf16.mxu0 0
      %269 = vmatpush1.bf16.msra.mxu0 0
      %270 = vmatprep.subr.bf16.mxu0 0
      %271 = vmatpush1.bf16.msra.mxu0 0
      %272 = vmatprep.subr.bf16.mxu0 0
      %273 = vmatpush1.bf16.msra.mxu0 0
      %274 = vmatprep.subr.bf16.mxu0 0
      %275 = vmatpush1.bf16.msra.mxu0 0
      %276 = vmatprep.subr.bf16.mxu0 0
      %277 = vmatpush1.bf16.msra.mxu0 0
      %278 = vmatprep.subr.bf16.mxu0 0
      %279 = vmatpush1.bf16.msra.mxu0 0
      %280 = vmatprep.subr.bf16.mxu0 0
      %281 = vmatpush1.bf16.msra.mxu0 0
      %282 = vmatprep.subr.bf16.mxu0 0
      %283 = vmatpush1.bf16.msra.mxu0 0
      %284 = vmatprep.subr.bf16.mxu0 0
      %285 = vmatpush1.bf16.msra.mxu0 0
      %286 = vmatprep.subr.bf16.mxu0 0
      %287 = vmatpush1.bf16.msra.mxu0 0
      %288 = vmatprep.subr.bf16.mxu0 0
      %289 = vmatpush1.bf16.msra.mxu0 0
      %290 = vmatprep.subr.bf16.mxu0 0
      %291 = vmatpush1.bf16.msra.mxu0 0
      %292 = vmatprep.subr.bf16.mxu0 0
      %293 = vmatpush1.bf16.msra.mxu0 0
      %294 = vmatprep.subr.bf16.mxu0 0
      %295 = vmatpush1.bf16.msra.mxu0 0
      %296 = vmatprep.mubr.bf16.mxu0 0
      %297 = vmatmul.mubr.bf16.gmra.mrb[0].mxu0 %v262
      %v298 = vpop.f32.mrb[0].mxu0
      %v299 = vadd.f32 0.0, %v298
      %v300 = vpop.f32.mrb[0].mxu0
      %v301 = vpop.f32.mrb[0].mxu0
      %v302 = vadd.f32 0.0, %v301
      %v303 = vpop.f32.mrb[0].mxu0
      %304 = vdwg.mxu0
      %v306 = vunpack.c.l.b16 %v223
      %v307 = vpack.c.b16 %v240, %v306
      %v312 = vunpack.c.l.b16 %v225
      %v313 = vunpack.c.l.b16 %v226
      %v314 = vunpack.c.l.b16 %v227
      %v315 = vunpack.c.l.b16 %v228
      %v316 = vpack.c.b16 %v313, %v312
      %v317 = vpack.c.b16 %v315, %v314
      %v321 = vsel %vm260, %v307, 0
      %323 = vmatprep.subr.bf16.mxu0 0
      %324 = vmatpush1.bf16.msra.mxu0 %v316
      %325 = vmatprep.subr.bf16.mxu0 0
      %326 = vmatpush1.bf16.msra.mxu0 %v317
      %327 = vmatprep.subr.bf16.mxu0 0
      %328 = vmatpush1.bf16.msra.mxu0 0
      %329 = vmatprep.subr.bf16.mxu0 0
      %330 = vmatpush1.bf16.msra.mxu0 0
      %331 = vmatprep.subr.bf16.mxu0 0
      %332 = vmatpush1.bf16.msra.mxu0 0
      %333 = vmatprep.subr.bf16.mxu0 0
      %334 = vmatpush1.bf16.msra.mxu0 0
      %335 = vmatprep.subr.bf16.mxu0 0
      %336 = vmatpush1.bf16.msra.mxu0 0
      %337 = vmatprep.subr.bf16.mxu0 0
      %338 = vmatpush1.bf16.msra.mxu0 0
      %339 = vmatprep.subr.bf16.mxu0 0
      %340 = vmatpush1.bf16.msra.mxu0 0
      %341 = vmatprep.subr.bf16.mxu0 0
      %342 = vmatpush1.bf16.msra.mxu0 0
      %343 = vmatprep.subr.bf16.mxu0 0
      %344 = vmatpush1.bf16.msra.mxu0 0
      %345 = vmatprep.subr.bf16.mxu0 0
      %346 = vmatpush1.bf16.msra.mxu0 0
      %347 = vmatprep.subr.bf16.mxu0 0
      %348 = vmatpush1.bf16.msra.mxu0 0
      %349 = vmatprep.subr.bf16.mxu0 0
      %350 = vmatpush1.bf16.msra.mxu0 0
      %351 = vmatprep.subr.bf16.mxu0 0
      %352 = vmatpush1.bf16.msra.mxu0 0
      %353 = vmatprep.subr.bf16.mxu0 0
      %354 = vmatpush1.bf16.msra.mxu0 0
      %355 = vmatprep.mubr.bf16.mxu0 0
      %356 = vmatmul.mubr.bf16.gmra.mrb[0].mxu0 %v321
      %v357 = vpop.f32.mrb[0].mxu0
      %v358 = vadd.f32 %v299, %v357
      %v359 = vpop.f32.mrb[0].mxu0
      %v360 = vpop.f32.mrb[0].mxu0
      %v361 = vadd.f32 %v302, %v360
      %v362 = vpop.f32.mrb[0].mxu0
      %363 = vdwg.mxu0
      %v364 = vld [vmem:[%s206] sm:$0xc]
      %v365 = vld [vmem:[%s206 + $0x8] sm:$0x3]
      %s366 = scalar_lea.vmem %s210, 32
      %v367 = vld [vmem:[%s366] sm:$0xf]
      %v368 = vld [vmem:[%s366 + $0x4] sm:$0xf]
      %v369 = vld [vmem:[%s366 + $0x8] sm:$0xf]
      %v370 = vld [vmem:[%s366 + $0xc] sm:$0xf]
      %v373 = vunpack.c.l.b16 %v364
      %v374 = vunpack.c.l.b16 %v365
      %v375 = vpack.c.b16 %v240, %v373
      %v376 = vpack.c.b16 %v374, %v374
      %vm377 = vcmask 1045504
      %v378 = vrot.slane %v375, 2
      %v379 = vrot.slane %v376, 2
      %v380 = vsel %vm377, %v378, %v379
      %v385 = vunpack.c.l.b16 %v367
      %v386 = vunpack.c.l.b16 %v368
      %v387 = vunpack.c.l.b16 %v369
      %v388 = vunpack.c.l.b16 %v370
      %v389 = vpack.c.b16 %v386, %v385
      %v390 = vpack.c.b16 %v388, %v387
      %v394 = vsel %vm260, %v380, 0
      %396 = vmatprep.subr.bf16.mxu0 0
      %397 = vmatpush1.bf16.msra.mxu0 %v389
      %398 = vmatprep.subr.bf16.mxu0 0
      %399 = vmatpush1.bf16.msra.mxu0 %v390
      %400 = vmatprep.subr.bf16.mxu0 0
      %401 = vmatpush1.bf16.msra.mxu0 0
      %402 = vmatprep.subr.bf16.mxu0 0
      %403 = vmatpush1.bf16.msra.mxu0 0
      %404 = vmatprep.subr.bf16.mxu0 0
      %405 = vmatpush1.bf16.msra.mxu0 0
      %406 = vmatprep.subr.bf16.mxu0 0
      %407 = vmatpush1.bf16.msra.mxu0 0
      %408 = vmatprep.subr.bf16.mxu0 0
      %409 = vmatpush1.bf16.msra.mxu0 0
      %410 = vmatprep.subr.bf16.mxu0 0
      %411 = vmatpush1.bf16.msra.mxu0 0
      %412 = vmatprep.subr.bf16.mxu0 0
      %413 = vmatpush1.bf16.msra.mxu0 0
      %414 = vmatprep.subr.bf16.mxu0 0
      %415 = vmatpush1.bf16.msra.mxu0 0
      %416 = vmatprep.subr.bf16.mxu0 0
      %417 = vmatpush1.bf16.msra.mxu0 0
      %418 = vmatprep.subr.bf16.mxu0 0
      %419 = vmatpush1.bf16.msra.mxu0 0
      %420 = vmatprep.subr.bf16.mxu0 0
      %421 = vmatpush1.bf16.msra.mxu0 0
      %422 = vmatprep.subr.bf16.mxu0 0
      %423 = vmatpush1.bf16.msra.mxu0 0
      %424 = vmatprep.subr.bf16.mxu0 0
      %425 = vmatpush1.bf16.msra.mxu0 0
      %426 = vmatprep.subr.bf16.mxu0 0
      %427 = vmatpush1.bf16.msra.mxu0 0
      %428 = vmatprep.mubr.bf16.mxu0 0
      %429 = vmatmul.mubr.bf16.gmra.mrb[0].mxu0 %v394
      %v430 = vpop.f32.mrb[0].mxu0
      %v431 = vadd.f32 0.0, %v430
      %v432 = vpop.f32.mrb[0].mxu0
      %v433 = vpop.f32.mrb[0].mxu0
      %v434 = vadd.f32 0.0, %v433
      %v435 = vpop.f32.mrb[0].mxu0
      %436 = vdwg.mxu0
      %v437 = vadd.f32 %v358, %v431
      %v438 = vadd.f32 %v361, %v434
      %v439 = vld [vmem:[%s213] sm:$0x1]
      %v440 = vunpack.c.l.bf16 %v439
      %v441 = vlaneseq
      %v442 = vshrl.u32 %v441, 7
      %v443 = vsub.s32 0, %v442
      %v444 = vrot.slane %v440, %v443
      %v445 = vadd.f32 %v437, %v444
      %v446 = vadd.f32 %v438, %v444
      %v447 = vpack.c.bf16 %v446, %v445
      %v449 = vunpack.c.l.b16 %v447
      %v450 = vunpack.c.h.b16 %v447
      %v451 = vpack.c.b16 %v449, %v449
      %v452 = vpack.c.b16 %v450, %v450
      %vm455 = vcmask 257024
      %456 = vst.msk [vmem:[%s221] sm:$0xf] %vm455, %v451
      %457 = vst.msk [vmem:[%s221 + $0x4] sm:$0xf] %vm455, %v452
      %p458 = scmp.lt.s32.totalorder %s18, 1
      %s459 = scalar_select %p458, %s18, 1
      %p460 = scmp.lt.s32.totalorder %s19, 0
      %s461 = scalar_select %p460, %s19, 0
      %s462 = smul.addr %s459, 2
      %s463 = sadd.s32 %s461, %s462
      %s464 = smul.addr %s463, 4
      %s465 = scalar_lea.vmem %s3, %s464
      // Predicated region
      $region33: #{audio_encoder_forward.20} parent=31 // pred_check
        %p466 = pneg %p124
      $region34: #{audio_encoder_forward.20} parent=31 // pred_check_branch
        %468 = sbr.rel (%p466) target = $region36
      $region35: #{audio_encoder_forward.20} parent=31 // pred_region
        _
      $region36: #{audio_encoder_forward.20} parent=31 // pred_fallthru
        _
    $region32: #{audio_encoder_forward.20} parent=5 // pred_fallthru
      _
    %p469 = scmp.le.s32.totalorder 2, %s9
    // Predicated region
    $region37: #{audio_encoder_forward.20} parent=5 // pred_check
      %p470 = pneg %p469
    $region38: #{audio_encoder_forward.20} parent=5 // pred_check_branch
      %472 = sbr.rel (%p470) target = $region40
    $region39: #{audio_encoder_forward.20} parent=5 // pred_region
      %s473 = ssub.s32 %s9, 2
      // Predicated region
      $region41: #{audio_encoder_forward.20} parent=39 // pred_check
        %p474 = pneg %p130
      $region42: #{audio_encoder_forward.20} parent=39 // pred_check_branch
        %476 = sbr.rel (%p474) target = $region44
      $region43: #{audio_encoder_forward.20} parent=39 // pred_region
        %p477 = scmp.lt.s32.totalorder %s20, 1
        %s478 = scalar_select %p477, %s20, 1
        %p479 = scmp.lt.s32.totalorder %s21, 0
        %s480 = scalar_select %p479, %s21, 0
        %s481 = smul.addr %s478, 2
        %s482 = sadd.s32 %s480, %s481
        %s483 = smul.addr %s482, 4
        %s484 = scalar_lea.vmem %s3, %s483
      $region44: #{audio_encoder_forward.20} parent=39 // pred_fallthru
        _
    $region40: #{audio_encoder_forward.20} parent=5 // pred_fallthru
      _
  $region6: #{audio_encoder_forward.20} parent=0 // loop_footer
    %s13 = sadd.s32 1, %s9
  $region7: #{audio_encoder_forward.20} parent=0 // loop_footer_branch
    %8 = sbr.rel target = $region3
  $region8: #{audio_encoder_forward.20} parent=0 // loop_exit
    _

// kernel: audio_encoder_forward.24
$region0: #{audio_encoder_forward.24}
  #allocation0 [shape = 'u32[]', space=smem, size = 0x4, offset = 0x4, fixed_abs, tag = 'smem constant byte address 0x4 - core index']
  #allocation1 [shape = 'u32[144,128]{1,0:T(1,128)}', space=vmem, size = 0x12000, scoped, tag = 'internal scratch']
  %s0 = inlined_call_operand.vmem [shape: bf16[2,66,1], index: 0, kind: input, shape index: {}]
  %s1 = inlined_call_operand.vmem [shape: bf16[2,66,1], index: 1, kind: input, shape index: {}]
  %s2 = inlined_call_operand.vmem [shape: bf16[2,66,1], index: 2, kind: input, shape index: {}]
  %s3 = inlined_call_operand.vmem [shape: bf16[2,66,1], index: 3, kind: input, shape index: {}]
  %s4 = inlined_call_operand.vmem [shape: bf16[2,66,1], index: 4, kind: input, shape index: {}]
  %s5 = inlined_call_operand.vmem [shape: bf16[11,1,32], index: 5, kind: input, shape index: {}]
  %s6 = inlined_call_operand.vmem [shape: bf16[1,32], index: 6, kind: input, shape index: {}]
  %s7 = inlined_call_operand.vmem [shape: bf16[2,64,32], index: 7, kind: output, shape index: {}]
  %s8 = sld [smem:[#allocation0]]
  $region61: #{audio_encoder_forward.24} parent=0
    _
  %s10 = ssub.s32 1, %s8
  %s11 = scalar_select 0, %s10, %s8
  loop: start=0, step=1, limit=4
  $region2: #{audio_encoder_forward.24} parent=0 // loop_pre_header
    _
  $region3: #{audio_encoder_forward.24} parent=0 // loop_header
    %s13 = sphi 0, %s17
    %p14 = scmp.ge.s32.totalorder %s13, 4
    %s20 = sphi 0, %s32
    %s21 = sphi 0, %s28
    %s22 = sphi 0, %s20
    %s23 = sphi 0, %s21
    %s24 = sphi 0, %s22
    %s25 = sphi 0, %s23
    %s35 = sphi 0, %s37
    %s38 = sphi 0, %s35
    %s39 = sphi 0, %s38
    %s55 = sphi 0, %s39
    %s61 = sphi 0, %s63
    %s64 = sphi 0, %s61
    %s65 = sphi 0, %s64
    %s81 = sphi 0, %s65
    %s87 = sphi 0, %s89
    %s90 = sphi 0, %s87
    %s91 = sphi 0, %s90
    %s107 = sphi 0, %s91
    %s113 = sphi 0, %s115
    %s116 = sphi 0, %s113
    %s117 = sphi 0, %s116
    %s133 = sphi 0, %s117
    %s139 = sphi 0, %s141
    %s142 = sphi 0, %s139
    %s143 = sphi 0, %s142
    %s159 = sphi 0, %s143
    %s165 = sphi 0, %s167
    %s168 = sphi 0, %s165
    %s169 = sphi 0, %s168
    %s185 = sphi 0, %s169
    %s191 = sphi 0, %s193
    %s194 = sphi 0, %s191
    %s195 = sphi 0, %s194
    %s211 = sphi 0, %s195
    %s219 = sphi 0, %s221
    %s222 = sphi 0, %s219
    %s223 = sphi 0, %s222
    %s239 = sphi 0, %s223
  $region4: #{audio_encoder_forward.24} parent=0 // loop_header_branch
    %16 = sbr.rel (%p14) target = $region8
  $region5: #{audio_encoder_forward.24} parent=0 // loop_body
    %s18 = ssub.s32 %s13, 1
    %s19 = ssub.s32 %s13, 2
    %s26 = sadd.s32 1, %s21
    %p27 = scmp.ge.s32.totalorder %s26, 1
    %s28 = scalar_select %p27, 0, %s26
    %s29 = sadd.s32 1, %s20
    %s30 = scalar_select %p27, %s29, %s20
    %p31 = scmp.ge.s32.totalorder %s30, 2
    %s32 = scalar_select %p31, 0, %s30
    %s33 = ssub.s32 %s20, %s32
    %p34 = scmp.eq.s32.totalorder %s33, 0
    %s36 = sadd.s32 %s35, 1
    %s37 = scalar_select %p34, %s35, %s36
    %p40 = pneg %p34
    %p41 = scmp.eq.s32.totalorder %s13, 1
    %p42 = por %p40, %p41
    %p43 = scmp.ne.s32.totalorder %s35, %s38
    %p44 = scmp.eq.s32.totalorder %s13, 0
    %p45 = por %p43, %p44
    %p46 = scmp.ne.s32.totalorder %s35, %s38
    %p47 = scmp.eq.s32.totalorder %s18, 1
    %p48 = por %p46, %p47
    %p49 = scmp.ne.s32.totalorder %s38, %s39
    %p50 = scmp.eq.s32.totalorder %s18, 0
    %p51 = por %p49, %p50
    %p52 = scmp.ne.s32.totalorder %s38, %s39
    %p53 = scmp.eq.s32.totalorder %s19, 1
    %p54 = por %p52, %p53
    %p56 = scmp.ne.s32.totalorder %s39, %s55
    %p57 = scmp.eq.s32.totalorder %s19, 0
    %p58 = por %p56, %p57
    %s59 = ssub.s32 %s20, %s32
    %p60 = scmp.eq.s32.totalorder %s59, 0
    %s62 = sadd.s32 %s61, 1
    %s63 = scalar_select %p60, %s61, %s62
    %p66 = pneg %p60
    %p67 = scmp.eq.s32.totalorder %s13, 1
    %p68 = por %p66, %p67
    %p69 = scmp.ne.s32.totalorder %s61, %s64
    %p70 = scmp.eq.s32.totalorder %s13, 0
    %p71 = por %p69, %p70
    %p72 = scmp.ne.s32.totalorder %s61, %s64
    %p73 = scmp.eq.s32.totalorder %s18, 1
    %p74 = por %p72, %p73
    %p75 = scmp.ne.s32.totalorder %s64, %s65
    %p76 = scmp.eq.s32.totalorder %s18, 0
    %p77 = por %p75, %p76
    %p78 = scmp.ne.s32.totalorder %s64, %s65
    %p79 = scmp.eq.s32.totalorder %s19, 1
    %p80 = por %p78, %p79
    %p82 = scmp.ne.s32.totalorder %s65, %s81
    %p83 = scmp.eq.s32.totalorder %s19, 0
    %p84 = por %p82, %p83
    %s85 = ssub.s32 %s20, %s32
    %p86 = scmp.eq.s32.totalorder %s85, 0
    %s88 = sadd.s32 %s87, 1
    %s89 = scalar_select %p86, %s87, %s88
    %p92 = pneg %p86
    %p93 = scmp.eq.s32.totalorder %s13, 1
    %p94 = por %p92, %p93
    %p95 = scmp.ne.s32.totalorder %s87, %s90
    %p96 = scmp.eq.s32.totalorder %s13, 0
    %p97 = por %p95, %p96
    %p98 = scmp.ne.s32.totalorder %s87, %s90
    %p99 = scmp.eq.s32.totalorder %s18, 1
    %p100 = por %p98, %p99
    %p101 = scmp.ne.s32.totalorder %s90, %s91
    %p102 = scmp.eq.s32.totalorder %s18, 0
    %p103 = por %p101, %p102
    %p104 = scmp.ne.s32.totalorder %s90, %s91
    %p105 = scmp.eq.s32.totalorder %s19, 1
    %p106 = por %p104, %p105
    %p108 = scmp.ne.s32.totalorder %s91, %s107
    %p109 = scmp.eq.s32.totalorder %s19, 0
    %p110 = por %p108, %p109
    %s111 = ssub.s32 %s20, %s32
    %p112 = scmp.eq.s32.totalorder %s111, 0
    %s114 = sadd.s32 %s113, 1
    %s115 = scalar_select %p112, %s113, %s114
    %p118 = pneg %p112
    %p119 = scmp.eq.s32.totalorder %s13, 1
    %p120 = por %p118, %p119
    %p121 = scmp.ne.s32.totalorder %s113, %s116
    %p122 = scmp.eq.s32.totalorder %s13, 0
    %p123 = por %p121, %p122
    %p124 = scmp.ne.s32.totalorder %s113, %s116
    %p125 = scmp.eq.s32.totalorder %s18, 1
    %p126 = por %p124, %p125
    %p127 = scmp.ne.s32.totalorder %s116, %s117
    %p128 = scmp.eq.s32.totalorder %s18, 0
    %p129 = por %p127, %p128
    %p130 = scmp.ne.s32.totalorder %s116, %s117
    %p131 = scmp.eq.s32.totalorder %s19, 1
    %p132 = por %p130, %p131
    %p134 = scmp.ne.s32.totalorder %s117, %s133
    %p135 = scmp.eq.s32.totalorder %s19, 0
    %p136 = por %p134, %p135
    %s137 = ssub.s32 %s20, %s32
    %p138 = scmp.eq.s32.totalorder %s137, 0
    %s140 = sadd.s32 %s139, 1
    %s141 = scalar_select %p138, %s139, %s140
    %p144 = pneg %p138
    %p145 = scmp.eq.s32.totalorder %s13, 1
    %p146 = por %p144, %p145
    %p147 = scmp.ne.s32.totalorder %s139, %s142
    %p148 = scmp.eq.s32.totalorder %s13, 0
    %p149 = por %p147, %p148
    %p150 = scmp.ne.s32.totalorder %s139, %s142
    %p151 = scmp.eq.s32.totalorder %s18, 1
    %p152 = por %p150, %p151
    %p153 = scmp.ne.s32.totalorder %s142, %s143
    %p154 = scmp.eq.s32.totalorder %s18, 0
    %p155 = por %p153, %p154
    %p156 = scmp.ne.s32.totalorder %s142, %s143
    %p157 = scmp.eq.s32.totalorder %s19, 1
    %p158 = por %p156, %p157
    %p160 = scmp.ne.s32.totalorder %s143, %s159
    %p161 = scmp.eq.s32.totalorder %s19, 0
    %p162 = por %p160, %p161
    %s163 = ssub.s32 %s21, %s28
    %p164 = scmp.eq.s32.totalorder %s163, 0
    %s166 = sadd.s32 %s165, 1
    %s167 = scalar_select %p164, %s165, %s166
    %p170 = pneg %p164
    %p171 = scmp.eq.s32.totalorder %s13, 1
    %p172 = por %p170, %p171
    %p173 = scmp.ne.s32.totalorder %s165, %s168
    %p174 = scmp.eq.s32.totalorder %s13, 0
    %p175 = por %p173, %p174
    %p176 = scmp.ne.s32.totalorder %s165, %s168
    %p177 = scmp.eq.s32.totalorder %s18, 1
    %p178 = por %p176, %p177
    %p179 = scmp.ne.s32.totalorder %s168, %s169
    %p180 = scmp.eq.s32.totalorder %s18, 0
    %p181 = por %p179, %p180
    %p182 = scmp.ne.s32.totalorder %s168, %s169
    %p183 = scmp.eq.s32.totalorder %s19, 1
    %p184 = por %p182, %p183
    %p186 = scmp.ne.s32.totalorder %s169, %s185
    %p187 = scmp.eq.s32.totalorder %s19, 0
    %p188 = por %p186, %p187
    %s189 = ssub.s32 %s21, %s28
    %p190 = scmp.eq.s32.totalorder %s189, 0
    %s192 = sadd.s32 %s191, 1
    %s193 = scalar_select %p190, %s191, %s192
    %p196 = pneg %p190
    %p197 = scmp.eq.s32.totalorder %s13, 1
    %p198 = por %p196, %p197
    %p199 = scmp.ne.s32.totalorder %s191, %s194
    %p200 = scmp.eq.s32.totalorder %s13, 0
    %p201 = por %p199, %p200
    %p202 = scmp.ne.s32.totalorder %s191, %s194
    %p203 = scmp.eq.s32.totalorder %s18, 1
    %p204 = por %p202, %p203
    %p205 = scmp.ne.s32.totalorder %s194, %s195
    %p206 = scmp.eq.s32.totalorder %s18, 0
    %p207 = por %p205, %p206
    %p208 = scmp.ne.s32.totalorder %s194, %s195
    %p209 = scmp.eq.s32.totalorder %s19, 1
    %p210 = por %p208, %p209
    %p212 = scmp.ne.s32.totalorder %s195, %s211
    %p213 = scmp.eq.s32.totalorder %s19, 0
    %p214 = por %p212, %p213
    %s215 = ssub.s32 %s20, %s32
    %s216 = ssub.s32 %s21, %s28
    %s217 = sor.u32 %s215, %s216
    %p218 = scmp.eq.s32.totalorder %s217, 0
    %s220 = sadd.s32 %s219, 1
    %s221 = scalar_select %p218, %s219, %s220
    %p224 = pneg %p218
    %p225 = scmp.eq.s32.totalorder %s13, 1
    %p226 = por %p224, %p225
    %p227 = scmp.ne.s32.totalorder %s219, %s222
    %p228 = scmp.eq.s32.totalorder %s13, 0
    %p229 = por %p227, %p228
    %p230 = scmp.ne.s32.totalorder %s219, %s222
    %p231 = scmp.eq.s32.totalorder %s18, 1
    %p232 = por %p230, %p231
    %p233 = scmp.ne.s32.totalorder %s222, %s223
    %p234 = scmp.eq.s32.totalorder %s18, 0
    %p235 = por %p233, %p234
    %p236 = scmp.ne.s32.totalorder %s222, %s223
    %p237 = scmp.eq.s32.totalorder %s19, 1
    %p238 = por %p236, %p237
    %p240 = scmp.ne.s32.totalorder %s223, %s239
    %p241 = scmp.eq.s32.totalorder %s19, 0
    %p242 = por %p240, %p241
    %p243 = scmp.le.s32.totalorder 1, %s13
    %p244 = scmp.lt.s32.totalorder %s13, 3
    %p245 = pnand %p243, %p244
    %p246 = pneg %p245
    // Predicated region
    $region9: #{audio_encoder_forward.24} parent=5 // pred_check
      _
    $region10: #{audio_encoder_forward.24} parent=5 // pred_check_branch
      %248 = sbr.rel (%p245) target = $region12
    $region11: #{audio_encoder_forward.24} parent=5 // pred_region
      %s249 = ssub.s32 %s13, 1
      // Predicated region
      $region13: #{audio_encoder_forward.24} parent=11 // pred_check
        %p250 = pneg %p181
      $region14: #{audio_encoder_forward.24} parent=11 // pred_check_branch
        %252 = sbr.rel (%p250) target = $region16
      $region15: #{audio_encoder_forward.24} parent=11 // pred_region
        %p253 = scmp.lt.s32.totalorder %s23, 0
        %s254 = scalar_select %p253, %s23, 0
        %s255 = scalar_lea.vmem %s5, %s254
      $region16: #{audio_encoder_forward.24} parent=11 // pred_fallthru
        _
      // Predicated region
      $region17: #{audio_encoder_forward.24} parent=11 // pred_check
        %p256 = pneg %p207
      $region18: #{audio_encoder_forward.24} parent=11 // pred_check_branch
        %258 = sbr.rel (%p256) target = $region20
      $region19: #{audio_encoder_forward.24} parent=11 // pred_region
        %p259 = scmp.lt.s32.totalorder %s23, 0
        %s260 = scalar_select %p259, %s23, 0
        %s261 = scalar_lea.vmem %s6, %s260
      $region20: #{audio_encoder_forward.24} parent=11 // pred_fallthru
        _
    $region12: #{audio_encoder_forward.24} parent=5 // pred_fallthru
      _
    %p262 = scmp.lt.s32.totalorder %s13, 2
    // Predicated region
    $region21: #{audio_encoder_forward.24} parent=5 // pred_check
      %p263 = pneg %p262
    $region22: #{audio_encoder_forward.24} parent=5 // pred_check_branch
      %265 = sbr.rel (%p263) target = $region24
    $region23: #{audio_encoder_forward.24} parent=5 // pred_region
      // Predicated region
      $region25: #{audio_encoder_forward.24} parent=23 // pred_check
        %p266 = pneg %p45
      $region26: #{audio_encoder_forward.24} parent=23 // pred_check_branch
        %268 = sbr.rel (%p266) target = $region28
      $region27: #{audio_encoder_forward.24} parent=23 // pred_region
        %p269 = scmp.lt.s32.totalorder %s20, 1
        %s270 = scalar_select %p269, %s20, 1
        %s271 = smul.addr %s270, 9
        %s272 = smul.addr %s271, 4
        %s273 = scalar_lea.vmem %s0, %s272
      $region28: #{audio_encoder_forward.24} parent=23 // pred_fallthru
        _
      // Predicated region
      $region29: #{audio_encoder_forward.24} parent=23 // pred_check
        %p274 = pneg %p71
      $region30: #{audio_encoder_forward.24} parent=23 // pred_check_branch
        %276 = sbr.rel (%p274) target = $region32
      $region31: #{audio_encoder_forward.24} parent=23 // pred_region
        %p277 = scmp.lt.s32.totalorder %s20, 1
        %s278 = scalar_select %p277, %s20, 1
        %s279 = smul.addr %s278, 9
        %s280 = smul.addr %s279, 4
        %s281 = scalar_lea.vmem %s1, %s280
      $region32: #{audio_encoder_forward.24} parent=23 // pred_fallthru
        _
      // Predicated region
      $region33: #{audio_encoder_forward.24} parent=23 // pred_check
        %p282 = pneg %p97
      $region34: #{audio_encoder_forward.24} parent=23 // pred_check_branch
        %284 = sbr.rel (%p282) target = $region36
      $region35: #{audio_encoder_forward.24} parent=23 // pred_region
        %p285 = scmp.lt.s32.totalorder %s20, 1
        %s286 = scalar_select %p285, %s20, 1
        %s287 = smul.addr %s286, 9
        %s288 = smul.addr %s287, 4
        %s289 = scalar_lea.vmem %s2, %s288
      $region36: #{audio_encoder_forward.24} parent=23 // pred_fallthru
        _
      // Predicated region
      $region37: #{audio_encoder_forward.24} parent=23 // pred_check
        %p290 = pneg %p123
      $region38: #{audio_encoder_forward.24} parent=23 // pred_check_branch
        %292 = sbr.rel (%p290) target = $region40
      $region39: #{audio_encoder_forward.24} parent=23 // pred_region
        %p293 = scmp.lt.s32.totalorder %s20, 1
        %s294 = scalar_select %p293, %s20, 1
        %s295 = smul.addr %s294, 9
        %s296 = smul.addr %s295, 4
        %s297 = scalar_lea.vmem %s3, %s296
      $region40: #{audio_encoder_forward.24} parent=23 // pred_fallthru
        _
      // Predicated region
      $region41: #{audio_encoder_forward.24} parent=23 // pred_check
        %p298 = pneg %p149
      $region42: #{audio_encoder_forward.24} parent=23 // pred_check_branch
        %300 = sbr.rel (%p298) target = $region44
      $region43: #{audio_encoder_forward.24} parent=23 // pred_region
        %p301 = scmp.lt.s32.totalorder %s20, 1
        %s302 = scalar_select %p301, %s20, 1
        %s303 = smul.addr %s302, 9
        %s304 = smul.addr %s303, 4
        %s305 = scalar_lea.vmem %s4, %s304
      $region44: #{audio_encoder_forward.24} parent=23 // pred_fallthru
        _
    $region24: #{audio_encoder_forward.24} parent=5 // pred_fallthru
      _
    %p306 = scmp.le.s32.totalorder 1, %s13
    %p307 = scmp.lt.s32.totalorder %s13, 3
    %p308 = pnand %p306, %p307
    %p309 = pneg %p308
    // Predicated region
    $region45: #{audio_encoder_forward.24} parent=5 // pred_check
      _
    $region46: #{audio_encoder_forward.24} parent=5 // pred_check_branch
      %311 = sbr.rel (%p308) target = $region48
    $region47: #{audio_encoder_forward.24} parent=5 // pred_region
      %s312 = ssub.s32 %s13, 1
      %p313 = scmp.lt.s32.totalorder %s22, 1
      %s314 = scalar_select %p313, %s22, 1
      %s315 = smul.addr %s314, 9
      %s316 = smul.addr %s315, 4
      %s317 = scalar_lea.vmem %s0, %s316
      %p318 = pneg %p51
      %p319 = pneg %p48
      %p320 = scmp.lt.s32.totalorder %s22, 1
      %s321 = scalar_select %p320, %s22, 1
      %s322 = smul.addr %s321, 9
      %s323 = smul.addr %s322, 4
      %s324 = scalar_lea.vmem %s1, %s323
      %p325 = pneg %p77
      %p326 = pneg %p74
      %p327 = scmp.lt.s32.totalorder %s22, 1
      %s328 = scalar_select %p327, %s22, 1
      %s329 = smul.addr %s328, 9
      %s330 = smul.addr %s329, 4
      %s331 = scalar_lea.vmem %s2, %s330
      %p332 = pneg %p103
      %p333 = pneg %p100
      %p334 = scmp.lt.s32.totalorder %s22, 1
      %s335 = scalar_select %p334, %s22, 1
      %s336 = smul.addr %s335, 9
      %s337 = smul.addr %s336, 4
      %s338 = scalar_lea.vmem %s3, %s337
      %p339 = pneg %p129
      %p340 = pneg %p126
      %p341 = scmp.lt.s32.totalorder %s22, 1
      %s342 = scalar_select %p341, %s22, 1
      %s343 = smul.addr %s342, 9
      %s344 = smul.addr %s343, 4
      %s345 = scalar_lea.vmem %s4, %s344
      %p346 = pneg %p155
      %p347 = pneg %p152
      %p348 = scmp.lt.s32.totalorder %s23, 0
      %s349 = scalar_select %p348, %s23, 0
      %s350 = scalar_lea.vmem %s5, %s349
      %p351 = pneg %p181
      %p352 = pneg %p178
      %p353 = scmp.lt.s32.totalorder %s23, 0
      %s354 = scalar_select %p353, %s23, 0
      %s355 = scalar_lea.vmem %s6, %s354
      %p356 = pneg %p207
      %p357 = pneg %p204
      %p358 = pneg %p235
      %p359 = pneg %p232
      %p360 = scmp.lt.s32.totalorder %s22, 1
      %s361 = scalar_select %p360, %s22, 1
      %p362 = scmp.lt.s32.totalorder %s23, 0
      %s363 = scalar_select %p362, %s23, 0
      %s364 = smul.addr %s361, 8
      %s365 = sadd.s32 %s363, %s364
      %s366 = smul.addr %s365, 4
      %s367 = scalar_lea.vmem %s7, %s366
      %p368 = scmp.lt.s32.totalorder %s22, 1
      %s369 = scalar_select %p368, %s22, 1
      %s370 = smul.addr %s369, 9
      %s371 = smul.addr %s370, 4
      %s372 = scalar_lea.vmem %s0, %s371
      %p373 = scmp.lt.s32.totalorder %s22, 1
      %s374 = scalar_select %p373, %s22, 1
      %s375 = smul.addr %s374, 9
      %s376 = smul.addr %s375, 4
      %s377 = scalar_lea.vmem %s1, %s376
      %p378 = scmp.lt.s32.totalorder %s22, 1
      %s379 = scalar_select %p378, %s22, 1
      %s380 = smul.addr %s379, 9
      %s381 = smul.addr %s380, 4
      %s382 = scalar_lea.vmem %s2, %s381
      %p383 = scmp.lt.s32.totalorder %s22, 1
      %s384 = scalar_select %p383, %s22, 1
      %s385 = smul.addr %s384, 9
      %s386 = smul.addr %s385, 4
      %s387 = scalar_lea.vmem %s3, %s386
      %p388 = scmp.lt.s32.totalorder %s22, 1
      %s389 = scalar_select %p388, %s22, 1
      %s390 = smul.addr %s389, 9
      %s391 = smul.addr %s390, 4
      %s392 = scalar_lea.vmem %s4, %s391
      %p393 = scmp.lt.s32.totalorder %s23, 0
      %s394 = scalar_select %p393, %s23, 0
      %s395 = scalar_lea.vmem %s5, %s394
      %p396 = scmp.lt.s32.totalorder %s23, 0
      %s397 = scalar_select %p396, %s23, 0
      %s398 = scalar_lea.vmem %s6, %s397
      %p399 = scmp.lt.s32.totalorder %s22, 1
      %s400 = scalar_select %p399, %s22, 1
      %p401 = scmp.lt.s32.totalorder %s23, 0
      %s402 = scalar_select %p401, %s23, 0
      %s403 = smul.addr %s400, 8
      %s404 = sadd.s32 %s402, %s403
      %s405 = smul.addr %s404, 4
      %s406 = scalar_lea.vmem %s7, %s405
      %v407 = vld [vmem:[%s372] sm:$0xf]
      %v408 = vld [vmem:[%s372 + $0x4] sm:$0xf]
      %v409 = vld [vmem:[%s372 + $0x8] sm:$0xf]
      %v410 = vld [vmem:[%s372 + $0xc] sm:$0xf]
      %v411 = vld [vmem:[%s372 + $0x10] sm:$0xf]
      %v412 = vld [vmem:[%s372 + $0x14] sm:$0xf]
      %v413 = vld [vmem:[%s372 + $0x18] sm:$0xf]
      %v414 = vld [vmem:[%s372 + $0x1c] sm:$0xf]
      %v415 = vld [vmem:[%s395] sm:$0x1]
      %v416 = vunpack.c.l.bf16 %v407
      %v417 = vunpack.c.l.bf16 %v408
      %v418 = vunpack.c.l.bf16 %v409
      %v419 = vunpack.c.l.bf16 %v410
      %v420 = vunpack.c.l.bf16 %v411
      %v421 = vunpack.c.l.bf16 %v412
      %v422 = vunpack.c.l.bf16 %v413
      %v423 = vunpack.c.l.bf16 %v414
      %v424 = vunpack.c.l.bf16 %v415
      %426 = vset.pattern.permute.xlu0 0
      %427 = vperm.xlu0 %426, %v416
      %v428 = vpop.permute.xlu0 %427
      %431 = vset.pattern.permute.xlu0 0
      %432 = vperm.xlu0 %431, %v417
      %v433 = vpop.permute.xlu0 %432
      %436 = vset.pattern.permute.xlu0 0
      %437 = vperm.xlu0 %436, %v418
      %v438 = vpop.permute.xlu0 %437
      %441 = vset.pattern.permute.xlu0 0
      %442 = vperm.xlu0 %441, %v419
      %v443 = vpop.permute.xlu0 %442
      %446 = vset.pattern.permute.xlu0 0
      %447 = vperm.xlu0 %446, %v420
      %v448 = vpop.permute.xlu0 %447
      %451 = vset.pattern.permute.xlu0 0
      %452 = vperm.xlu0 %451, %v421
      %v453 = vpop.permute.xlu0 %452
      %456 = vset.pattern.permute.xlu0 0
      %457 = vperm.xlu0 %456, %v422
      %v458 = vpop.permute.xlu0 %457
      %461 = vset.pattern.permute.xlu0 0
      %462 = vperm.xlu0 %461, %v423
      %v463 = vpop.permute.xlu0 %462
      %v465 = vlaneseq
      %v466 = vshrl.u32 %v465, 7
      %v467 = vsub.s32 0, %v466
      %v468 = vrot.slane %v424, %v467
      %v469 = vmul.f32 %v428, %v468
      %v470 = vmul.f32 %v433, %v468
      %v471 = vmul.f32 %v438, %v468
      %v472 = vmul.f32 %v443, %v468
      %v473 = vmul.f32 %v448, %v468
      %v474 = vmul.f32 %v453, %v468
      %v475 = vmul.f32 %v458, %v468
      %v476 = vmul.f32 %v463, %v468
      %v477 = vadd.f32 %v469, 0.0
      %v478 = vadd.f32 %v470, 0.0
      %v479 = vadd.f32 %v471, 0.0
      %v480 = vadd.f32 %v472, 0.0
      %v481 = vadd.f32 %v473, 0.0
      %v482 = vadd.f32 %v474, 0.0
      %v483 = vadd.f32 %v475, 0.0
      %v484 = vadd.f32 %v476, 0.0
      %v485 = vld [vmem:[%s377] sm:$0xf]
      %v486 = vld [vmem:[%s377 + $0x4] sm:$0xf]
      %v487 = vld [vmem:[%s377 + $0x8] sm:$0xf]
      %v488 = vld [vmem:[%s377 + $0xc] sm:$0xf]
      %v489 = vld [vmem:[%s377 + $0x10] sm:$0xf]
      %v490 = vld [vmem:[%s377 + $0x14] sm:$0xf]
      %v491 = vld [vmem:[%s377 + $0x18] sm:$0xf]
      %v492 = vld [vmem:[%s377 + $0x1c] sm:$0xf]
      %s493 = scalar_lea.vmem %s395, 1
      %v494 = vld [vmem:[%s493] sm:$0x1]
      %v495 = vunpack.c.l.bf16 %v485
      %v496 = vunpack.c.l.bf16 %v486
      %v497 = vunpack.c.l.bf16 %v487
      %v498 = vunpack.c.l.bf16 %v488
      %v499 = vunpack.c.l.bf16 %v489
      %v500 = vunpack.c.l.bf16 %v490
      %v501 = vunpack.c.l.bf16 %v491
      %v502 = vunpack.c.l.bf16 %v492
      %v503 = vunpack.c.l.bf16 %v494
      %505 = vset.pattern.permute.xlu0 0
      %506 = vperm.xlu0 %505, %v495
      %v507 = vpop.permute.xlu0 %506
      %510 = vset.pattern.permute.xlu0 0
      %511 = vperm.xlu0 %510, %v496
      %v512 = vpop.permute.xlu0 %511
      %515 = vset.pattern.permute.xlu0 0
      %516 = vperm.xlu0 %515, %v497
      %v517 = vpop.permute.xlu0 %516
      %520 = vset.pattern.permute.xlu0 0
      %521 = vperm.xlu0 %520, %v498
      %v522 = vpop.permute.xlu0 %521
      %525 = vset.pattern.permute.xlu0 0
      %526 = vperm.xlu0 %525, %v499
      %v527 = vpop.permute.xlu0 %526
      %530 = vset.pattern.permute.xlu0 0
      %531 = vperm.xlu0 %530, %v500
      %v532 = vpop.permute.xlu0 %531
      %535 = vset.pattern.permute.xlu0 0
      %536 = vperm.xlu0 %535, %v501
      %v537 = vpop.permute.xlu0 %536
      %540 = vset.pattern.permute.xlu0 0
      %541 = vperm.xlu0 %540, %v502
      %v542 = vpop.permute.xlu0 %541
      %v544 = vlaneseq
      %v545 = vshrl.u32 %v544, 7
      %v546 = vsub.s32 0, %v545
      %v547 = vrot.slane %v503, %v546
      %v548 = vmul.f32 %v507, %v547
      %v549 = vmul.f32 %v512, %v547
      %v550 = vmul.f32 %v517, %v547
      %v551 = vmul.f32 %v522, %v547
      %v552 = vmul.f32 %v527, %v547
      %v553 = vmul.f32 %v532, %v547
      %v554 = vmul.f32 %v537, %v547
      %v555 = vmul.f32 %v542, %v547
      %v556 = vadd.f32 %v477, %v548
      %v557 = vadd.f32 %v478, %v549
      %v558 = vadd.f32 %v479, %v550
      %v559 = vadd.f32 %v480, %v551
      %v560 = vadd.f32 %v481, %v552
      %v561 = vadd.f32 %v482, %v553
      %v562 = vadd.f32 %v483, %v554
      %v563 = vadd.f32 %v484, %v555
      %v564 = vld [vmem:[%s382] sm:$0xf]
      %v565 = vld [vmem:[%s382 + $0x4] sm:$0xf]
      %v566 = vld [vmem:[%s382 + $0x8] sm:$0xf]
      %v567 = vld [vmem:[%s382 + $0xc] sm:$0xf]
      %v568 = vld [vmem:[%s382 + $0x10] sm:$0xf]
      %v569 = vld [vmem:[%s382 + $0x14] sm:$0xf]
      %v570 = vld [vmem:[%s382 + $0x18] sm:$0xf]
      %v571 = vld [vmem:[%s382 + $0x1c] sm:$0xf]
      %s572 = scalar_lea.vmem %s395, 2
      %v573 = vld [vmem:[%s572] sm:$0x1]
      %v574 = vunpack.c.l.bf16 %v564
      %v575 = vunpack.c.l.bf16 %v565
      %v576 = vunpack.c.l.bf16 %v566
      %v577 = vunpack.c.l.bf16 %v567
      %v578 = vunpack.c.l.bf16 %v568
      %v579 = vunpack.c.l.bf16 %v569
      %v580 = vunpack.c.l.bf16 %v570
      %v581 = vunpack.c.l.bf16 %v571
      %v582 = vunpack.c.l.bf16 %v573
      %584 = vset.pattern.permute.xlu0 0
      %585 = vperm.xlu0 %584, %v574
      %v586 = vpop.permute.xlu0 %585
      %589 = vset.pattern.permute.xlu0 0
      %590 = vperm.xlu0 %589, %v575
      %v591 = vpop.permute.xlu0 %590
      %594 = vset.pattern.permute.xlu0 0
      %595 = vperm.xlu0 %594, %v576
      %v596 = vpop.permute.xlu0 %595
      %599 = vset.pattern.permute.xlu0 0
      %600 = vperm.xlu0 %599, %v577
      %v601 = vpop.permute.xlu0 %600
      %604 = vset.pattern.permute.xlu0 0
      %605 = vperm.xlu0 %604, %v578
      %v606 = vpop.permute.xlu0 %605
      %609 = vset.pattern.permute.xlu0 0
      %610 = vperm.xlu0 %609, %v579
      %v611 = vpop.permute.xlu0 %610
      %614 = vset.pattern.permute.xlu0 0
      %615 = vperm.xlu0 %614, %v580
      %v616 = vpop.permute.xlu0 %615
      %619 = vset.pattern.permute.xlu0 0
      %620 = vperm.xlu0 %619, %v581
      %v621 = vpop.permute.xlu0 %620
      %v623 = vlaneseq
      %v624 = vshrl.u32 %v623, 7
      %v625 = vsub.s32 0, %v624
      %v626 = vrot.slane %v582, %v625
      %v627 = vmul.f32 %v586, %v626
      %v628 = vmul.f32 %v591, %v626
      %v629 = vmul.f32 %v596, %v626
      %v630 = vmul.f32 %v601, %v626
      %v631 = vmul.f32 %v606, %v626
      %v632 = vmul.f32 %v611, %v626
      %v633 = vmul.f32 %v616, %v626
      %v634 = vmul.f32 %v621, %v626
      %v635 = vadd.f32 %v556, %v627
      %v636 = vadd.f32 %v557, %v628
      %v637 = vadd.f32 %v558, %v629
      %v638 = vadd.f32 %v559, %v630
      %v639 = vadd.f32 %v560, %v631
      %v640 = vadd.f32 %v561, %v632
      %v641 = vadd.f32 %v562, %v633
      %v642 = vadd.f32 %v563, %v634
      %v643 = vld [vmem:[%s387] sm:$0xf]
      %v644 = vld [vmem:[%s387 + $0x4] sm:$0xf]
      %v645 = vld [vmem:[%s387 + $0x8] sm:$0xf]
      %v646 = vld [vmem:[%s387 + $0xc] sm:$0xf]
      %v647 = vld [vmem:[%s387 + $0x10] sm:$0xf]
      %v648 = vld [vmem:[%s387 + $0x14] sm:$0xf]
      %v649 = vld [vmem:[%s387 + $0x18] sm:$0xf]
      %v650 = vld [vmem:[%s387 + $0x1c] sm:$0xf]
      %s651 = scalar_lea.vmem %s395, 3
      %v652 = vld [vmem:[%s651] sm:$0x1]
      %v653 = vunpack.c.l.bf16 %v643
      %v654 = vunpack.c.l.bf16 %v644
      %v655 = vunpack.c.l.bf16 %v645
      %v656 = vunpack.c.l.bf16 %v646
      %v657 = vunpack.c.l.bf16 %v647
      %v658 = vunpack.c.l.bf16 %v648
      %v659 = vunpack.c.l.bf16 %v649
      %v660 = vunpack.c.l.bf16 %v650
      %v661 = vunpack.c.l.bf16 %v652
      %663 = vset.pattern.permute.xlu0 0
      %664 = vperm.xlu0 %663, %v653
      %v665 = vpop.permute.xlu0 %664
      %668 = vset.pattern.permute.xlu0 0
      %669 = vperm.xlu0 %668, %v654
      %v670 = vpop.permute.xlu0 %669
      %673 = vset.pattern.permute.xlu0 0
      %674 = vperm.xlu0 %673, %v655
      %v675 = vpop.permute.xlu0 %674
      %678 = vset.pattern.permute.xlu0 0
      %679 = vperm.xlu0 %678, %v656
      %v680 = vpop.permute.xlu0 %679
      %683 = vset.pattern.permute.xlu0 0
      %684 = vperm.xlu0 %683, %v657
      %v685 = vpop.permute.xlu0 %684
      %688 = vset.pattern.permute.xlu0 0
      %689 = vperm.xlu0 %688, %v658
      %v690 = vpop.permute.xlu0 %689
      %693 = vset.pattern.permute.xlu0 0
      %694 = vperm.xlu0 %693, %v659
      %v695 = vpop.permute.xlu0 %694
      %698 = vset.pattern.permute.xlu0 0
      %699 = vperm.xlu0 %698, %v660
      %v700 = vpop.permute.xlu0 %699
      %v702 = vlaneseq
      %v703 = vshrl.u32 %v702, 7
      %v704 = vsub.s32 0, %v703
      %v705 = vrot.slane %v661, %v704
      %v706 = vmul.f32 %v665, %v705
      %v707 = vmul.f32 %v670, %v705
      %v708 = vmul.f32 %v675, %v705
      %v709 = vmul.f32 %v680, %v705
      %v710 = vmul.f32 %v685, %v705
      %v711 = vmul.f32 %v690, %v705
      %v712 = vmul.f32 %v695, %v705
      %v713 = vmul.f32 %v700, %v705
      %v714 = vadd.f32 %v635, %v706
      %v715 = vadd.f32 %v636, %v707
      %v716 = vadd.f32 %v637, %v708
      %v717 = vadd.f32 %v638, %v709
      %v718 = vadd.f32 %v639, %v710
      %v719 = vadd.f32 %v640, %v711
      %v720 = vadd.f32 %v641, %v712
      %v721 = vadd.f32 %v642, %v713
      %v722 = vld [vmem:[%s392] sm:$0xf]
      %v723 = vld [vmem:[%s392 + $0x4] sm:$0xf]
      %v724 = vld [vmem:[%s392 + $0x8] sm:$0xf]
      %v725 = vld [vmem:[%s392 + $0xc] sm:$0xf]
      %v726 = vld [vmem:[%s392 + $0x10] sm:$0xf]
      %v727 = vld [vmem:[%s392 + $0x14] sm:$0xf]
      %v728 = vld [vmem:[%s392 + $0x18] sm:$0xf]
      %v729 = vld [vmem:[%s392 + $0x1c] sm:$0xf]
      %s730 = scalar_lea.vmem %s395, 4
      %v731 = vld [vmem:[%s730] sm:$0x1]
      %v732 = vunpack.c.l.bf16 %v722
      %v733 = vunpack.c.l.bf16 %v723
      %v734 = vunpack.c.l.bf16 %v724
      %v735 = vunpack.c.l.bf16 %v725
      %v736 = vunpack.c.l.bf16 %v726
      %v737 = vunpack.c.l.bf16 %v727
      %v738 = vunpack.c.l.bf16 %v728
      %v739 = vunpack.c.l.bf16 %v729
      %v740 = vunpack.c.l.bf16 %v731
      %742 = vset.pattern.permute.xlu0 0
      %743 = vperm.xlu0 %742, %v732
      %v744 = vpop.permute.xlu0 %743
      %747 = vset.pattern.permute.xlu0 0
      %748 = vperm.xlu0 %747, %v733
      %v749 = vpop.permute.xlu0 %748
      %752 = vset.pattern.permute.xlu0 0
      %753 = vperm.xlu0 %752, %v734
      %v754 = vpop.permute.xlu0 %753
      %757 = vset.pattern.permute.xlu0 0
      %758 = vperm.xlu0 %757, %v735
      %v759 = vpop.permute.xlu0 %758
      %762 = vset.pattern.permute.xlu0 0
      %763 = vperm.xlu0 %762, %v736
      %v764 = vpop.permute.xlu0 %763
      %767 = vset.pattern.permute.xlu0 0
      %768 = vperm.xlu0 %767, %v737
      %v769 = vpop.permute.xlu0 %768
      %772 = vset.pattern.permute.xlu0 0
      %773 = vperm.xlu0 %772, %v738
      %v774 = vpop.permute.xlu0 %773
      %777 = vset.pattern.permute.xlu0 0
      %778 = vperm.xlu0 %777, %v739
      %v779 = vpop.permute.xlu0 %778
      %v781 = vlaneseq
      %v782 = vshrl.u32 %v781, 7
      %v783 = vsub.s32 0, %v782
      %v784 = vrot.slane %v740, %v783
      %v785 = vmul.f32 %v744, %v784
      %v786 = vmul.f32 %v749, %v784
      %v787 = vmul.f32 %v754, %v784
      %v788 = vmul.f32 %v759, %v784
      %v789 = vmul.f32 %v764, %v784
      %v790 = vmul.f32 %v769, %v784
      %v791 = vmul.f32 %v774, %v784
      %v792 = vmul.f32 %v779, %v784
      %v793 = vadd.f32 %v714, %v785
      %v794 = vadd.f32 %v715, %v786
      %v795 = vadd.f32 %v716, %v787
      %v796 = vadd.f32 %v717, %v788
      %v797 = vadd.f32 %v718, %v789
      %v798 = vadd.f32 %v719, %v790
      %v799 = vadd.f32 %v720, %v791
      %v800 = vadd.f32 %v721, %v792
      %v801 = vld [vmem:[%s372] sm:$0xf]
      %v802 = vld [vmem:[%s372 + $0x4] sm:$0xf]
      %v803 = vld [vmem:[%s372 + $0x8] sm:$0xf]
      %v804 = vld [vmem:[%s372 + $0xc] sm:$0xf]
      %v805 = vld [vmem:[%s372 + $0x10] sm:$0xf]
      %v806 = vld [vmem:[%s372 + $0x14] sm:$0xf]
      %v807 = vld [vmem:[%s372 + $0x18] sm:$0xf]
      %v808 = vld [vmem:[%s372 + $0x1c] sm:$0xf]
      %v809 = vld [vmem:[%s372 + $0x20] sm:$0x1]
      %s810 = scalar_lea.vmem %s395, 5
      %v811 = vld [vmem:[%s810] sm:$0x1]
      %v812 = vunpack.c.l.bf16 %v801
      %v813 = vunpack.c.l.bf16 %v802
      %v814 = vunpack.c.l.bf16 %v803
      %v815 = vunpack.c.l.bf16 %v804
      %v816 = vunpack.c.l.bf16 %v805
      %v817 = vunpack.c.l.bf16 %v806
      %v818 = vunpack.c.l.bf16 %v807
      %v819 = vunpack.c.l.bf16 %v808
      %v820 = vunpack.c.l.bf16 %v809
      %v821 = vunpack.c.l.bf16 %v811
      %823 = vset.pattern.permute.xlu0 0
      %824 = vperm.xlu0 %823, %v812
      %v825 = vpop.permute.xlu0 %824
      %828 = vset.pattern.permute.xlu0 0
      %829 = vperm.xlu0 %828, %v813
      %v830 = vpop.permute.xlu0 %829
      %833 = vset.pattern.permute.xlu0 0
      %834 = vperm.xlu0 %833, %v814
      %v835 = vpop.permute.xlu0 %834
      %838 = vset.pattern.permute.xlu0 0
      %839 = vperm.xlu0 %838, %v815
      %v840 = vpop.permute.xlu0 %839
      %843 = vset.pattern.permute.xlu0 0
      %844 = vperm.xlu0 %843, %v816
      %v845 = vpop.permute.xlu0 %844
      %848 = vset.pattern.permute.xlu0 0
      %849 = vperm.xlu0 %848, %v817
      %v850 = vpop.permute.xlu0 %849
      %853 = vset.pattern.permute.xlu0 0
      %854 = vperm.xlu0 %853, %v818
      %v855 = vpop.permute.xlu0 %854
      %858 = vset.pattern.permute.xlu0 0
      %859 = vperm.xlu0 %858, %v819
      %v860 = vpop.permute.xlu0 %859
      %863 = vset.pattern.permute.xlu0 0
      %864 = vperm.xlu0 %863, %v820
      %v865 = vpop.permute.xlu0 %864
      %v867 = vlaneseq
      %v868 = vshrl.u32 %v867, 7
      %v869 = vsub.s32 0, %v868
      %v870 = vrot.slane %v821, %v869
      %v871 = vmul.f32 %v825, %v870
      %v872 = vmul.f32 %v830, %v870
      %v873 = vmul.f32 %v835, %v870
      %v874 = vmul.f32 %v840, %v870
      %v875 = vmul.f32 %v845, %v870
      %v876 = vmul.f32 %v850, %v870
      %v877 = vmul.f32 %v855, %v870
      %v878 = vmul.f32 %v860, %v870
      %v879 = vmul.f32 %v865, %v870
      %vm889 = vcmask 1046528
      %v890 = vrot.slane %v871, 1
      %v891 = vrot.slane %v872, 1
      %v892 = vsel %vm889, %v890, %v891
      %v893 = vrot.slane %v873, 1
      %v894 = vsel %vm889, %v891, %v893
      %v895 = vrot.slane %v874, 1
      %v896 = vsel %vm889, %v893, %v895
      %v897 = vrot.slane %v875, 1
      %v898 = vsel %vm889, %v895, %v897
      %v899 = vrot.slane %v876, 1
      %v900 = vsel %vm889, %v897, %v899
      %v901 = vrot.slane %v877, 1
      %v902 = vsel %vm889, %v899, %v901
      %v903 = vrot.slane %v878, 1
      %v904 = vsel %vm889, %v901, %v903
      %v905 = vrot.slane %v879, 1
      %v906 = vsel %vm889, %v903, %v905
      %v915 = vadd.f32 %v793, %v892
      %v916 = vadd.f32 %v794, %v894
      %v917 = vadd.f32 %v795, %v896
      %v918 = vadd.f32 %v796, %v898
      %v919 = vadd.f32 %v797, %v900
      %v920 = vadd.f32 %v798, %v902
      %v921 = vadd.f32 %v799, %v904
      %v922 = vadd.f32 %v800, %v906
      %v923 = vld [vmem:[%s377] sm:$0xf]
      %v924 = vld [vmem:[%s377 + $0x4] sm:$0xf]
      %v925 = vld [vmem:[%s377 + $0x8] sm:$0xf]
      %v926 = vld [vmem:[%s377 + $0xc] sm:$0xf]
      %v927 = vld [vmem:[%s377 + $0x10] sm:$0xf]
      %v928 = vld [vmem:[%s377 + $0x14] sm:$0xf]
      %v929 = vld [vmem:[%s377 + $0x18] sm:$0xf]
      %v930 = vld [vmem:[%s377 + $0x1c] sm:$0xf]
      %v931 = vld [vmem:[%s377 + $0x20] sm:$0x1]
      %s932 = scalar_lea.vmem %s395, 6
      %v933 = vld [vmem:[%s932] sm:$0x1]
      %v934 = vunpack.c.l.bf16 %v923
      %v935 = vunpack.c.l.bf16 %v924
      %v936 = vunpack.c.l.bf16 %v925
      %v937 = vunpack.c.l.bf16 %v926
      %v938 = vunpack.c.l.bf16 %v927
      %v939 = vunpack.c.l.bf16 %v928
      %v940 = vunpack.c.l.bf16 %v929
      %v941 = vunpack.c.l.bf16 %v930
      %v942 = vunpack.c.l.bf16 %v931
      %v943 = vunpack.c.l.bf16 %v933
      %945 = vset.pattern.permute.xlu0 0
      %946 = vperm.xlu0 %945, %v934
      %v947 = vpop.permute.xlu0 %946
      %950 = vset.pattern.permute.xlu0 0
      %951 = vperm.xlu0 %950, %v935
      %v952 = vpop.permute.xlu0 %951
      %955 = vset.pattern.permute.xlu0 0
      %956 = vperm.xlu0 %955, %v936
      %v957 = vpop.permute.xlu0 %956
      %960 = vset.pattern.permute.xlu0 0
      %961 = vperm.xlu0 %960, %v937
      %v962 = vpop.permute.xlu0 %961
      %965 = vset.pattern.permute.xlu0 0
      %966 = vperm.xlu0 %965, %v938
      %v967 = vpop.permute.xlu0 %966
      %970 = vset.pattern.permute.xlu0 0
      %971 = vperm.xlu0 %970, %v939
      %v972 = vpop.permute.xlu0 %971
      %975 = vset.pattern.permute.xlu0 0
      %976 = vperm.xlu0 %975, %v940
      %v977 = vpop.permute.xlu0 %976
      %980 = vset.pattern.permute.xlu0 0
      %981 = vperm.xlu0 %980, %v941
      %v982 = vpop.permute.xlu0 %981
      %985 = vset.pattern.permute.xlu0 0
      %986 = vperm.xlu0 %985, %v942
      %v987 = vpop.permute.xlu0 %986
      %v989 = vlaneseq
      %v990 = vshrl.u32 %v989, 7
      %v991 = vsub.s32 0, %v990
      %v992 = vrot.slane %v943, %v991
      %v993 = vmul.f32 %v947, %v992
      %v994 = vmul.f32 %v952, %v992
      %v995 = vmul.f32 %v957, %v992
      %v996 = vmul.f32 %v962, %v992
      %v997 = vmul.f32 %v967, %v992
      %v998 = vmul.f32 %v972, %v992
      %v999 = vmul.f32 %v977, %v992
      %v1000 = vmul.f32 %v982, %v992
      %v1001 = vmul.f32 %v987, %v992
      %v1011 = vrot.slane %v993, 1
      %v1012 = vrot.slane %v994, 1
      %v1013 = vsel %vm889, %v1011, %v1012
      %v1014 = vrot.slane %v995, 1
      %v1015 = vsel %vm889, %v1012, %v1014
      %v1016 = vrot.slane %v996, 1
      %v1017 = vsel %vm889, %v1014, %v1016
      %v1018 = vrot.slane %v997, 1
      %v1019 = vsel %vm889, %v1016, %v1018
      %v1020 = vrot.slane %v998, 1
      %v1021 = vsel %vm889, %v1018, %v1020
      %v1022 = vrot.slane %v999, 1
      %v1023 = vsel %vm889, %v1020, %v1022
      %v1024 = vrot.slane %v1000, 1
      %v1025 = vsel %vm889, %v1022, %v1024
      %v1026 = vrot.slane %v1001, 1
      %v1027 = vsel %vm889, %v1024, %v1026
      %v1036 = vadd.f32 %v915, %v1013
      %v1037 = vadd.f32 %v916, %v1015
      %v1038 = vadd.f32 %v917, %v1017
      %v1039 = vadd.f32 %v918, %v1019
      %v1040 = vadd.f32 %v919, %v1021
      %v1041 = vadd.f32 %v920, %v1023
      %v1042 = vadd.f32 %v921, %v1025
      %v1043 = vadd.f32 %v922, %v1027
      %v1044 = vld [vmem:[%s382] sm:$0xf]
      %v1045 = vld [vmem:[%s382 + $0x4] sm:$0xf]
      %v1046 = vld [vmem:[%s382 + $0x8] sm:$0xf]
      %v1047 = vld [vmem:[%s382 + $0xc] sm:$0xf]
      %v1048 = vld [vmem:[%s382 + $0x10] sm:$0xf]
      %v1049 = vld [vmem:[%s382 + $0x14] sm:$0xf]
      %v1050 = vld [vmem:[%s382 + $0x18] sm:$0xf]
      %v1051 = vld [vmem:[%s382 + $0x1c] sm:$0xf]
      %v1052 = vld [vmem:[%s382 + $0x20] sm:$0x1]
      %s1053 = scalar_lea.vmem %s395, 7
      %v1054 = vld [vmem:[%s1053] sm:$0x1]
      %v1055 = vunpack.c.l.bf16 %v1044
      %v1056 = vunpack.c.l.bf16 %v1045
      %v1057 = vunpack.c.l.bf16 %v1046
      %v1058 = vunpack.c.l.bf16 %v1047
      %v1059 = vunpack.c.l.bf16 %v1048
      %v1060 = vunpack.c.l.bf16 %v1049
      %v1061 = vunpack.c.l.bf16 %v1050
      %v1062 = vunpack.c.l.bf16 %v1051
      %v1063 = vunpack.c.l.bf16 %v1052
      %v1064 = vunpack.c.l.bf16 %v1054
      %1066 = vset.pattern.permute.xlu0 0
      %1067 = vperm.xlu0 %1066, %v1055
      %v1068 = vpop.permute.xlu0 %1067
      %1071 = vset.pattern.permute.xlu0 0
      %1072 = vperm.xlu0 %1071, %v1056
      %v1073 = vpop.permute.xlu0 %1072
      %1076 = vset.pattern.permute.xlu0 0
      %1077 = vperm.xlu0 %1076, %v1057
      %v1078 = vpop.permute.xlu0 %1077
      %1081 = vset.pattern.permute.xlu0 0
      %1082 = vperm.xlu0 %1081, %v1058
      %v1083 = vpop.permute.xlu0 %1082
      %1086 = vset.pattern.permute.xlu0 0
      %1087 = vperm.xlu0 %1086, %v1059
      %v1088 = vpop.permute.xlu0 %1087
      %1091 = vset.pattern.permute.xlu0 0
      %1092 = vperm.xlu0 %1091, %v1060
      %v1093 = vpop.permute.xlu0 %1092
      %1096 = vset.pattern.permute.xlu0 0
      %1097 = vperm.xlu0 %1096, %v1061
      %v1098 = vpop.permute.xlu0 %1097
      %1101 = vset.pattern.permute.xlu0 0
      %1102 = vperm.xlu0 %1101, %v1062
      %v1103 = vpop.permute.xlu0 %1102
      %1106 = vset.pattern.permute.xlu0 0
      %1107 = vperm.xlu0 %1106, %v1063
      %v1108 = vpop.permute.xlu0 %1107
      %v1110 = vlaneseq
      %v1111 = vshrl.u32 %v1110, 7
      %v1112 = vsub.s32 0, %v1111
      %v1113 = vrot.slane %v1064, %v1112
      %v1114 = vmul.f32 %v1068, %v1113
      %v1115 = vmul.f32 %v1073, %v1113
      %v1116 = vmul.f32 %v1078, %v1113
      %v1117 = vmul.f32 %v1083, %v1113
      %v1118 = vmul.f32 %v1088, %v1113
      %v1119 = vmul.f32 %v1093, %v1113
      %v1120 = vmul.f32 %v1098, %v1113
      %v1121 = vmul.f32 %v1103, %v1113
      %v1122 = vmul.f32 %v1108, %v1113
      %v1132 = vrot.slane %v1114, 1
      %v1133 = vrot.slane %v1115, 1
      %v1134 = vsel %vm889, %v1132, %v1133
      %v1135 = vrot.slane %v1116, 1
      %v1136 = vsel %vm889, %v1133, %v1135
      %v1137 = vrot.slane %v1117, 1
      %v1138 = vsel %vm889, %v1135, %v1137
      %v1139 = vrot.slane %v1118, 1
      %v1140 = vsel %vm889, %v1137, %v1139
      %v1141 = vrot.slane %v1119, 1
      %v1142 = vsel %vm889, %v1139, %v1141
      %v1143 = vrot.slane %v1120, 1
      %v1144 = vsel %vm889, %v1141, %v1143
      %v1145 = vrot.slane %v1121, 1
      %v1146 = vsel %vm889, %v1143, %v1145
      %v1147 = vrot.slane %v1122, 1
      %v1148 = vsel %vm889, %v1145, %v1147
      %v1157 = vadd.f32 %v1036, %v1134
      %v1158 = vadd.f32 %v1037, %v1136
      %v1159 = vadd.f32 %v1038, %v1138
      %v1160 = vadd.f32 %v1039, %v1140
      %v1161 = vadd.f32 %v1040, %v1142
      %v1162 = vadd.f32 %v1041, %v1144
      %v1163 = vadd.f32 %v1042, %v1146
      %v1164 = vadd.f32 %v1043, %v1148
      %v1165 = vld [vmem:[%s387] sm:$0xf]
      %v1166 = vld [vmem:[%s387 + $0x4] sm:$0xf]
      %v1167 = vld [vmem:[%s387 + $0x8] sm:$0xf]
      %v1168 = vld [vmem:[%s387 + $0xc] sm:$0xf]
      %v1169 = vld [vmem:[%s387 + $0x10] sm:$0xf]
      %v1170 = vld [vmem:[%s387 + $0x14] sm:$0xf]
      %v1171 = vld [vmem:[%s387 + $0x18] sm:$0xf]
      %v1172 = vld [vmem:[%s387 + $0x1c] sm:$0xf]
      %v1173 = vld [vmem:[%s387 + $0x20] sm:$0x1]
      %s1174 = scalar_lea.vmem %s395, 8
      %v1175 = vld [vmem:[%s1174] sm:$0x1]
      %v1176 = vunpack.c.l.bf16 %v1165
      %v1177 = vunpack.c.l.bf16 %v1166
      %v1178 = vunpack.c.l.bf16 %v1167
      %v1179 = vunpack.c.l.bf16 %v1168
      %v1180 = vunpack.c.l.bf16 %v1169
      %v1181 = vunpack.c.l.bf16 %v1170
      %v1182 = vunpack.c.l.bf16 %v1171
      %v1183 = vunpack.c.l.bf16 %v1172
      %v1184 = vunpack.c.l.bf16 %v1173
      %v1185 = vunpack.c.l.bf16 %v1175
      %1187 = vset.pattern.permute.xlu0 0
      %1188 = vperm.xlu0 %1187, %v1176
      %v1189 = vpop.permute.xlu0 %1188
      %1192 = vset.pattern.permute.xlu0 0
      %1193 = vperm.xlu0 %1192, %v1177
      %v1194 = vpop.permute.xlu0 %1193
      %1197 = vset.pattern.permute.xlu0 0
      %1198 = vperm.xlu0 %1197, %v1178
      %v1199 = vpop.permute.xlu0 %1198
      %1202 = vset.pattern.permute.xlu0 0
      %1203 = vperm.xlu0 %1202, %v1179
      %v1204 = vpop.permute.xlu0 %1203
      %1207 = vset.pattern.permute.xlu0 0
      %1208 = vperm.xlu0 %1207, %v1180
      %v1209 = vpop.permute.xlu0 %1208
      %1212 = vset.pattern.permute.xlu0 0
      %1213 = vperm.xlu0 %1212, %v1181
      %v1214 = vpop.permute.xlu0 %1213
      %1217 = vset.pattern.permute.xlu0 0
      %1218 = vperm.xlu0 %1217, %v1182
      %v1219 = vpop.permute.xlu0 %1218
      %1222 = vset.pattern.permute.xlu0 0
      %1223 = vperm.xlu0 %1222, %v1183
      %v1224 = vpop.permute.xlu0 %1223
      %1227 = vset.pattern.permute.xlu0 0
      %1228 = vperm.xlu0 %1227, %v1184
      %v1229 = vpop.permute.xlu0 %1228
      %v1231 = vlaneseq
      %v1232 = vshrl.u32 %v1231, 7
      %v1233 = vsub.s32 0, %v1232
      %v1234 = vrot.slane %v1185, %v1233
      %v1235 = vmul.f32 %v1189, %v1234
      %v1236 = vmul.f32 %v1194, %v1234
      %v1237 = vmul.f32 %v1199, %v1234
      %v1238 = vmul.f32 %v1204, %v1234
      %v1239 = vmul.f32 %v1209, %v1234
      %v1240 = vmul.f32 %v1214, %v1234
      %v1241 = vmul.f32 %v1219, %v1234
      %v1242 = vmul.f32 %v1224, %v1234
      %v1243 = vmul.f32 %v1229, %v1234
      %v1253 = vrot.slane %v1235, 1
      %v1254 = vrot.slane %v1236, 1
      %v1255 = vsel %vm889, %v1253, %v1254
      %v1256 = vrot.slane %v1237, 1
      %v1257 = vsel %vm889, %v1254, %v1256
      %v1258 = vrot.slane %v1238, 1
      %v1259 = vsel %vm889, %v1256, %v1258
      %v1260 = vrot.slane %v1239, 1
      %v1261 = vsel %vm889, %v1258, %v1260
      %v1262 = vrot.slane %v1240, 1
      %v1263 = vsel %vm889, %v1260, %v1262
      %v1264 = vrot.slane %v1241, 1
      %v1265 = vsel %vm889, %v1262, %v1264
      %v1266 = vrot.slane %v1242, 1
      %v1267 = vsel %vm889, %v1264, %v1266
      %v1268 = vrot.slane %v1243, 1
      %v1269 = vsel %vm889, %v1266, %v1268
      %v1278 = vadd.f32 %v1157, %v1255
      %v1279 = vadd.f32 %v1158, %v1257
      %v1280 = vadd.f32 %v1159, %v1259
      %v1281 = vadd.f32 %v1160, %v1261
      %v1282 = vadd.f32 %v1161, %v1263
      %v1283 = vadd.f32 %v1162, %v1265
      %v1284 = vadd.f32 %v1163, %v1267
      %v1285 = vadd.f32 %v1164, %v1269
      %v1286 = vld [vmem:[%s392] sm:$0xf]
      %v1287 = vld [vmem:[%s392 + $0x4] sm:$0xf]
      %v1288 = vld [vmem:[%s392 + $0x8] sm:$0xf]
      %v1289 = vld [vmem:[%s392 + $0xc] sm:$0xf]
      %v1290 = vld [vmem:[%s392 + $0x10] sm:$0xf]
      %v1291 = vld [vmem:[%s392 + $0x14] sm:$0xf]
      %v1292 = vld [vmem:[%s392 + $0x18] sm:$0xf]
      %v1293 = vld [vmem:[%s392 + $0x1c] sm:$0xf]
      %v1294 = vld [vmem:[%s392 + $0x20] sm:$0x1]
      %s1295 = scalar_lea.vmem %s395, 9
      %v1296 = vld [vmem:[%s1295] sm:$0x1]
      %v1297 = vunpack.c.l.bf16 %v1286
      %v1298 = vunpack.c.l.bf16 %v1287
      %v1299 = vunpack.c.l.bf16 %v1288
      %v1300 = vunpack.c.l.bf16 %v1289
      %v1301 = vunpack.c.l.bf16 %v1290
      %v1302 = vunpack.c.l.bf16 %v1291
      %v1303 = vunpack.c.l.bf16 %v1292
      %v1304 = vunpack.c.l.bf16 %v1293
      %v1305 = vunpack.c.l.bf16 %v1294
      %v1306 = vunpack.c.l.bf16 %v1296
      %1308 = vset.pattern.permute.xlu0 0
      %1309 = vperm.xlu0 %1308, %v1297
      %v1310 = vpop.permute.xlu0 %1309
      %1313 = vset.pattern.permute.xlu0 0
      %1314 = vperm.xlu0 %1313, %v1298
      %v1315 = vpop.permute.xlu0 %1314
      %1318 = vset.pattern.permute.xlu0 0
      %1319 = vperm.xlu0 %1318, %v1299
      %v1320 = vpop.permute.xlu0 %1319
      %1323 = vset.pattern.permute.xlu0 0
      %1324 = vperm.xlu0 %1323, %v1300
      %v1325 = vpop.permute.xlu0 %1324
      %1328 = vset.pattern.permute.xlu0 0
      %1329 = vperm.xlu0 %1328, %v1301
      %v1330 = vpop.permute.xlu0 %1329
      %1333 = vset.pattern.permute.xlu0 0
      %1334 = vperm.xlu0 %1333, %v1302
      %v1335 = vpop.permute.xlu0 %1334
      %1338 = vset.pattern.permute.xlu0 0
      %1339 = vperm.xlu0 %1338, %v1303
      %v1340 = vpop.permute.xlu0 %1339
      %1343 = vset.pattern.permute.xlu0 0
      %1344 = vperm.xlu0 %1343, %v1304
      %v1345 = vpop.permute.xlu0 %1344
      %1348 = vset.pattern.permute.xlu0 0
      %1349 = vperm.xlu0 %1348, %v1305
      %v1350 = vpop.permute.xlu0 %1349
      %v1352 = vlaneseq
      %v1353 = vshrl.u32 %v1352, 7
      %v1354 = vsub.s32 0, %v1353
      %v1355 = vrot.slane %v1306, %v1354
      %v1356 = vmul.f32 %v1310, %v1355
      %v1357 = vmul.f32 %v1315, %v1355
      %v1358 = vmul.f32 %v1320, %v1355
      %v1359 = vmul.f32 %v1325, %v1355
      %v1360 = vmul.f32 %v1330, %v1355
      %v1361 = vmul.f32 %v1335, %v1355
      %v1362 = vmul.f32 %v1340, %v1355
      %v1363 = vmul.f32 %v1345, %v1355
      %v1364 = vmul.f32 %v1350, %v1355
      %v1374 = vrot.slane %v1356, 1
      %v1375 = vrot.slane %v1357, 1
      %v1376 = vsel %vm889, %v1374, %v1375
      %v1377 = vrot.slane %v1358, 1
      %v1378 = vsel %vm889, %v1375, %v1377
      %v1379 = vrot.slane %v1359, 1
      %v1380 = vsel %vm889, %v1377, %v1379
      %v1381 = vrot.slane %v1360, 1
      %v1382 = vsel %vm889, %v1379, %v1381
      %v1383 = vrot.slane %v1361, 1
      %v1384 = vsel %vm889, %v1381, %v1383
      %v1385 = vrot.slane %v1362, 1
      %v1386 = vsel %vm889, %v1383, %v1385
      %v1387 = vrot.slane %v1363, 1
      %v1388 = vsel %vm889, %v1385, %v1387
      %v1389 = vrot.slane %v1364, 1
      %v1390 = vsel %vm889, %v1387, %v1389
      %v1399 = vadd.f32 %v1278, %v1376
      %v1400 = vadd.f32 %v1279, %v1378
      %v1401 = vadd.f32 %v1280, %v1380
      %v1402 = vadd.f32 %v1281, %v1382
      %v1403 = vadd.f32 %v1282, %v1384
      %v1404 = vadd.f32 %v1283, %v1386
      %v1405 = vadd.f32 %v1284, %v1388
      %v1406 = vadd.f32 %v1285, %v1390
      %v1407 = vld [vmem:[%s372] sm:$0xe]
      %s1408 = scalar_lea.vmem %s395, 10
      %v1409 = vld [vmem:[%s1408] sm:$0x1]
      %v1410 = vunpack.c.l.bf16 %v1407
      %v1411 = vunpack.c.l.bf16 %v1409
      %1413 = vset.pattern.permute.xlu0 0
      %1414 = vperm.xlu0 %1413, %v1410
      %v1415 = vpop.permute.xlu0 %1414
      %v1417 = vlaneseq
      %v1418 = vshrl.u32 %v1417, 7
      %v1419 = vsub.s32 0, %v1418
      %v1420 = vrot.slane %v1411, %v1419
      %v1421 = vmul.f32 %v1415, %v1420
      %v1422 = vmul.f32 %v830, %v1420
      %v1423 = vmul.f32 %v835, %v1420
      %v1424 = vmul.f32 %v840, %v1420
      %v1425 = vmul.f32 %v845, %v1420
      %v1426 = vmul.f32 %v850, %v1420
      %v1427 = vmul.f32 %v855, %v1420
      %v1428 = vmul.f32 %v860, %v1420
      %v1429 = vmul.f32 %v865, %v1420
      %vm1439 = vcmask 1045504
      %v1440 = vrot.slane %v1421, 2
      %v1441 = vrot.slane %v1422, 2
      %v1442 = vsel %vm1439, %v1440, %v1441
      %v1443 = vrot.slane %v1423, 2
      %v1444 = vsel %vm1439, %v1441, %v1443
      %v1445 = vrot.slane %v1424, 2
      %v1446 = vsel %vm1439, %v1443, %v1445
      %v1447 = vrot.slane %v1425, 2
      %v1448 = vsel %vm1439, %v1445, %v1447
      %v1449 = vrot.slane %v1426, 2
      %v1450 = vsel %vm1439, %v1447, %v1449
      %v1451 = vrot.slane %v1427, 2
      %v1452 = vsel %vm1439, %v1449, %v1451
      %v1453 = vrot.slane %v1428, 2
      %v1454 = vsel %vm1439, %v1451, %v1453
      %v1455 = vrot.slane %v1429, 2
      %v1456 = vsel %vm1439, %v1453, %v1455
      %v1465 = vadd.f32 %v1399, %v1442
      %v1466 = vadd.f32 %v1400, %v1444
      %v1467 = vadd.f32 %v1401, %v1446
      %v1468 = vadd.f32 %v1402, %v1448
      %v1469 = vadd.f32 %v1403, %v1450
      %v1470 = vadd.f32 %v1404, %v1452
      %v1471 = vadd.f32 %v1405, %v1454
      %v1472 = vadd.f32 %v1406, %v1456
      %v1473 = vld [vmem:[%s398] sm:$0x1]
      %v1474 = vunpack.c.l.bf16 %v1473
      %v1475 = vlaneseq
      %v1476 = vshrl.u32 %v1475, 7
      %v1477 = vsub.s32 0, %v1476
      %v1478 = vrot.slane %v1474, %v1477
      %v1479 = vadd.f32 %v1465, %v1478
      %v1480 = vadd.f32 %v1466, %v1478
      %v1481 = vadd.f32 %v1467, %v1478
      %v1482 = vadd.f32 %v1468, %v1478
      %v1483 = vadd.f32 %v1469, %v1478
      %v1484 = vadd.f32 %v1470, %v1478
      %v1485 = vadd.f32 %v1471, %v1478
      %v1486 = vadd.f32 %v1472, %v1478
      %v1487 = vmul.f32 %v1479, 0.5
      %v1488 = vmul.f32 %v1480, 0.5
      %v1489 = vmul.f32 %v1481, 0.5
      %v1490 = vmul.f32 %v1482, 0.5
      %v1491 = vmul.f32 %v1483, 0.5
      %v1492 = vmul.f32 %v1484, 0.5
      %v1493 = vmul.f32 %v1485, 0.5
      %v1494 = vmul.f32 %v1486, 0.5
      %v1495 = vmul.f32 %v1479, 0.044715
      %v1496 = vmul.f32 %v1480, 0.044715
      %v1497 = vmul.f32 %v1481, 0.044715
      %v1498 = vmul.f32 %v1482, 0.044715
      %v1499 = vmul.f32 %v1483, 0.044715
      %v1500 = vmul.f32 %v1484, 0.044715
      %v1501 = vmul.f32 %v1485, 0.044715
      %v1502 = vmul.f32 %v1486, 0.044715
      %v1503 = vmul.f32 %v1495, %v1479
      %v1504 = vmul.f32 %v1496, %v1480
      %v1505 = vmul.f32 %v1497, %v1481
      %v1506 = vmul.f32 %v1498, %v1482
      %v1507 = vmul.f32 %v1499, %v1483
      %v1508 = vmul.f32 %v1500, %v1484
      %v1509 = vmul.f32 %v1501, %v1485
      %v1510 = vmul.f32 %v1502, %v1486
      %v1511 = vmul.f32 %v1503, %v1479
      %v1512 = vmul.f32 %v1504, %v1480
      %v1513 = vmul.f32 %v1505, %v1481
      %v1514 = vmul.f32 %v1506, %v1482
      %v1515 = vmul.f32 %v1507, %v1483
      %v1516 = vmul.f32 %v1508, %v1484
      %v1517 = vmul.f32 %v1509, %v1485
      %v1518 = vmul.f32 %v1510, %v1486
      %v1519 = vadd.f32 %v1479, %v1511
      %v1520 = vadd.f32 %v1480, %v1512
      %v1521 = vadd.f32 %v1481, %v1513
      %v1522 = vadd.f32 %v1482, %v1514
      %v1523 = vadd.f32 %v1483, %v1515
      %v1524 = vadd.f32 %v1484, %v1516
      %v1525 = vadd.f32 %v1485, %v1517
      %v1526 = vadd.f32 %v1486, %v1518
      %v1527 = vmul.f32 %v1519, 0.7978846
      %v1528 = vmul.f32 %v1520, 0.7978846
      %v1529 = vmul.f32 %v1521, 0.7978846
      %v1530 = vmul.f32 %v1522, 0.7978846
      %v1531 = vmul.f32 %v1523, 0.7978846
      %v1532 = vmul.f32 %v1524, 0.7978846
      %v1533 = vmul.f32 %v1525, 0.7978846
      %v1534 = vmul.f32 %v1526, 0.7978846
      %v1535 = vtanh.pop %v1527
      %v1536 = vtanh.pop %v1528
      %v1537 = vtanh.pop %v1529
      %v1538 = vtanh.pop %v1530
      %v1539 = vtanh.pop %v1531
      %v1540 = vtanh.pop %v1532
      %v1541 = vtanh.pop %v1533
      %v1542 = vtanh.pop %v1534
      %v1543 = vadd.f32 %v1535, 1.0
      %v1544 = vadd.f32 %v1536, 1.0
      %v1545 = vadd.f32 %v1537, 1.0
      %v1546 = vadd.f32 %v1538, 1.0
      %v1547 = vadd.f32 %v1539, 1.0
      %v1548 = vadd.f32 %v1540, 1.0
      %v1549 = vadd.f32 %v1541, 1.0
      %v1550 = vadd.f32 %v1542, 1.0
      %v1551 = vmul.f32 %v1487, %v1543
      %v1552 = vmul.f32 %v1488, %v1544
      %v1553 = vmul.f32 %v1489, %v1545
      %v1554 = vmul.f32 %v1490, %v1546
      %v1555 = vmul.f32 %v1491, %v1547
      %v1556 = vmul.f32 %v1492, %v1548
      %v1557 = vmul.f32 %v1493, %v1549
      %v1558 = vmul.f32 %v1494, %v1550
      %v1559 = vpack.c.bf16 %v1552, %v1551
      %v1560 = vpack.c.bf16 %v1554, %v1553
      %v1561 = vpack.c.bf16 %v1556, %v1555
      %v1562 = vpack.c.bf16 %v1558, %v1557
      %v1567 = vunpack.c.l.b16 %v1559
      %v1568 = vunpack.c.h.b16 %v1559
      %v1569 = vunpack.c.l.b16 %v1560
      %v1570 = vunpack.c.h.b16 %v1560
      %v1571 = vunpack.c.l.b16 %v1561
      %v1572 = vunpack.c.h.b16 %v1561
      %v1573 = vunpack.c.l.b16 %v1562
      %v1574 = vunpack.c.h.b16 %v1562
      %v1575 = vpack.c.b16 %v1567, %v1567
      %v1576 = vpack.c.b16 %v1568, %v1568
      %v1577 = vpack.c.b16 %v1569, %v1569
      %v1578 = vpack.c.b16 %v1570, %v1570
      %v1579 = vpack.c.b16 %v1571, %v1571
      %v1580 = vpack.c.b16 %v1572, %v1572
      %v1581 = vpack.c.b16 %v1573, %v1573
      %v1582 = vpack.c.b16 %v1574, %v1574
      %vm1591 = vcmask 257024
      %1592 = vst.msk [vmem:[%s406] sm:$0xf] %vm1591, %v1575
      %1593 = vst.msk [vmem:[%s406 + $0x4] sm:$0xf] %vm1591, %v1576
      %1594 = vst.msk [vmem:[%s406 + $0x8] sm:$0xf] %vm1591, %v1577
      %1595 = vst.msk [vmem:[%s406 + $0xc] sm:$0xf] %vm1591, %v1578
      %1596 = vst.msk [vmem:[%s406 + $0x10] sm:$0xf] %vm1591, %v1579
      %1597 = vst.msk [vmem:[%s406 + $0x14] sm:$0xf] %vm1591, %v1580
      %1598 = vst.msk [vmem:[%s406 + $0x18] sm:$0xf] %vm1591, %v1581
      %1599 = vst.msk [vmem:[%s406 + $0x1c] sm:$0xf] %vm1591, %v1582
      %p1600 = scmp.lt.s32.totalorder %s22, 1
      %s1601 = scalar_select %p1600, %s22, 1
      %p1602 = scmp.lt.s32.totalorder %s23, 0
      %s1603 = scalar_select %p1602, %s23, 0
      %s1604 = smul.addr %s1601, 8
      %s1605 = sadd.s32 %s1603, %s1604
      %s1606 = smul.addr %s1605, 4
      %s1607 = scalar_lea.vmem %s7, %s1606
      // Predicated region
      $region49: #{audio_encoder_forward.24} parent=47 // pred_check
        %p1608 = pneg %p232
      $region50: #{audio_encoder_forward.24} parent=47 // pred_check_branch
        %1610 = sbr.rel (%p1608) target = $region52
      $region51: #{audio_encoder_forward.24} parent=47 // pred_region
        _
      $region52: #{audio_encoder_forward.24} parent=47 // pred_fallthru
        _
    $region48: #{audio_encoder_forward.24} parent=5 // pred_fallthru
      _
    %p1611 = scmp.le.s32.totalorder 2, %s13
    // Predicated region
    $region53: #{audio_encoder_forward.24} parent=5 // pred_check
      %p1612 = pneg %p1611
    $region54: #{audio_encoder_forward.24} parent=5 // pred_check_branch
      %1614 = sbr.rel (%p1612) target = $region56
    $region55: #{audio_encoder_forward.24} parent=5 // pred_region
      %s1615 = ssub.s32 %s13, 2
      // Predicated region
      $region57: #{audio_encoder_forward.24} parent=55 // pred_check
        %p1616 = pneg %p238
      $region58: #{audio_encoder_forward.24} parent=55 // pred_check_branch
        %1618 = sbr.rel (%p1616) target = $region60
      $region59: #{audio_encoder_forward.24} parent=55 // pred_region
        %p1619 = scmp.lt.s32.totalorder %s24, 1
        %s1620 = scalar_select %p1619, %s24, 1
        %p1621 = scmp.lt.s32.totalorder %s25, 0
        %s1622 = scalar_select %p1621, %s25, 0
        %s1623 = smul.addr %s1620, 8
        %s1624 = sadd.s32 %s1622, %s1623
        %s1625 = smul.addr %s1624, 4
        %s1626 = scalar_lea.vmem %s7, %s1625
      $region60: #{audio_encoder_forward.24} parent=55 // pred_fallthru
        _
    $region56: #{audio_encoder_forward.24} parent=5 // pred_fallthru
      _
  $region6: #{audio_encoder_forward.24} parent=0 // loop_footer
    %s17 = sadd.s32 1, %s13
  $region7: #{audio_encoder_forward.24} parent=0 // loop_footer_branch
    %12 = sbr.rel target = $region3
  $region8: #{audio_encoder_forward.24} parent=0 // loop_exit
    _

// kernel: audio_encoder_forward.26
$region0: #{audio_encoder_forward.26}
  #allocation0 [shape = 'u32[]', space=smem, size = 0x4, offset = 0x4, fixed_abs, tag = 'smem constant byte address 0x4 - core index']
  #allocation1 [shape = 'u32[144,128]{1,0:T(1,128)}', space=vmem, size = 0x12000, scoped, tag = 'internal scratch']
  #allocation2 [shape = 'f32[1,1]{1,0:T(1,128)S(6)}', space=smem, size = 0x200, scoped, tag = 'scoped memory for audio_encoder_forward.26']
  %s0 = inlined_call_operand.<no memory space> [shape: f32[1,1], index: 0, kind: input, shape index: {}]
  %s1 = inlined_call_operand.vmem [shape: bf16[2,16,32], index: 1, kind: input, shape index: {}]
  %s2 = inlined_call_operand.vmem [shape: bf16[2,16,32], index: 2, kind: input, shape index: {}]
  %s3 = inlined_call_operand.vmem [shape: bf16[16,32], index: 3, kind: input, shape index: {}]
  %s4 = inlined_call_operand.vmem [shape: bf16[2,16,32], index: 4, kind: output, shape index: {}]
  %s5 = sld [smem:[#allocation0]]
  $region49: #{audio_encoder_forward.26} parent=0
    _
  %s7 = ssub.s32 1, %s5
  %s8 = scalar_select 0, %s7, %s5
  %9 = sst [smem:[#allocation2]] %s0
  loop: start=0, step=1, limit=4
  $region2: #{audio_encoder_forward.26} parent=0 // loop_pre_header
    _
  $region3: #{audio_encoder_forward.26} parent=0 // loop_header
    %s11 = sphi 0, %s15
    %p12 = scmp.ge.s32.totalorder %s11, 4
    %s18 = sphi 0, %s30
    %s19 = sphi 0, %s26
    %s20 = sphi 0, %s18
    %s21 = sphi 0, %s19
    %s22 = sphi 0, %s20
    %s23 = sphi 0, %s21
    %s31 = sphi 0, %s31
    %s33 = sphi 0, %s31
    %s34 = sphi 0, %s33
    %s48 = sphi 0, %s34
    %s56 = sphi 0, %s58
    %s59 = sphi 0, %s56
    %s60 = sphi 0, %s59
    %s76 = sphi 0, %s60
    %s84 = sphi 0, %s86
    %s87 = sphi 0, %s84
    %s88 = sphi 0, %s87
    %s104 = sphi 0, %s88
    %s110 = sphi 0, %s112
    %s113 = sphi 0, %s110
    %s114 = sphi 0, %s113
    %s130 = sphi 0, %s114
    %s138 = sphi 0, %s140
    %s141 = sphi 0, %s138
    %s142 = sphi 0, %s141
    %s158 = sphi 0, %s142
  $region4: #{audio_encoder_forward.26} parent=0 // loop_header_branch
    %14 = sbr.rel (%p12) target = $region8
  $region5: #{audio_encoder_forward.26} parent=0 // loop_body
    %s16 = ssub.s32 %s11, 1
    %s17 = ssub.s32 %s11, 2
    %s24 = sadd.s32 1, %s19
    %p25 = scmp.ge.s32.totalorder %s24, 1
    %s26 = scalar_select %p25, 0, %s24
    %s27 = sadd.s32 1, %s18
    %s28 = scalar_select %p25, %s27, %s18
    %p29 = scmp.ge.s32.totalorder %s28, 2
    %s30 = scalar_select %p29, 0, %s28
    %s32 = sadd.s32 %s31, 1
    %p35 = scmp.eq.s32.totalorder %s11, 1
    %p36 = scmp.ne.s32.totalorder %s31, %s33
    %p37 = scmp.eq.s32.totalorder %s11, 0
    %p38 = por %p36, %p37
    %p39 = scmp.ne.s32.totalorder %s31, %s33
    %p40 = scmp.eq.s32.totalorder %s16, 1
    %p41 = por %p39, %p40
    %p42 = scmp.ne.s32.totalorder %s33, %s34
    %p43 = scmp.eq.s32.totalorder %s16, 0
    %p44 = por %p42, %p43
    %p45 = scmp.ne.s32.totalorder %s33, %s34
    %p46 = scmp.eq.s32.totalorder %s17, 1
    %p47 = por %p45, %p46
    %p49 = scmp.ne.s32.totalorder %s34, %s48
    %p50 = scmp.eq.s32.totalorder %s17, 0
    %p51 = por %p49, %p50
    %s52 = ssub.s32 %s18, %s30
    %s53 = ssub.s32 %s19, %s26
    %s54 = sor.u32 %s52, %s53
    %p55 = scmp.eq.s32.totalorder %s54, 0
    %s57 = sadd.s32 %s56, 1
    %s58 = scalar_select %p55, %s56, %s57
    %p61 = pneg %p55
    %p62 = scmp.eq.s32.totalorder %s11, 1
    %p63 = por %p61, %p62
    %p64 = scmp.ne.s32.totalorder %s56, %s59
    %p65 = scmp.eq.s32.totalorder %s11, 0
    %p66 = por %p64, %p65
    %p67 = scmp.ne.s32.totalorder %s56, %s59
    %p68 = scmp.eq.s32.totalorder %s16, 1
    %p69 = por %p67, %p68
    %p70 = scmp.ne.s32.totalorder %s59, %s60
    %p71 = scmp.eq.s32.totalorder %s16, 0
    %p72 = por %p70, %p71
    %p73 = scmp.ne.s32.totalorder %s59, %s60
    %p74 = scmp.eq.s32.totalorder %s17, 1
    %p75 = por %p73, %p74
    %p77 = scmp.ne.s32.totalorder %s60, %s76
    %p78 = scmp.eq.s32.totalorder %s17, 0
    %p79 = por %p77, %p78
    %s80 = ssub.s32 %s18, %s30
    %s81 = ssub.s32 %s19, %s26
    %s82 = sor.u32 %s80, %s81
    %p83 = scmp.eq.s32.totalorder %s82, 0
    %s85 = sadd.s32 %s84, 1
    %s86 = scalar_select %p83, %s84, %s85
    %p89 = pneg %p83
    %p90 = scmp.eq.s32.totalorder %s11, 1
    %p91 = por %p89, %p90
    %p92 = scmp.ne.s32.totalorder %s84, %s87
    %p93 = scmp.eq.s32.totalorder %s11, 0
    %p94 = por %p92, %p93
    %p95 = scmp.ne.s32.totalorder %s84, %s87
    %p96 = scmp.eq.s32.totalorder %s16, 1
    %p97 = por %p95, %p96
    %p98 = scmp.ne.s32.totalorder %s87, %s88
    %p99 = scmp.eq.s32.totalorder %s16, 0
    %p100 = por %p98, %p99
    %p101 = scmp.ne.s32.totalorder %s87, %s88
    %p102 = scmp.eq.s32.totalorder %s17, 1
    %p103 = por %p101, %p102
    %p105 = scmp.ne.s32.totalorder %s88, %s104
    %p106 = scmp.eq.s32.totalorder %s17, 0
    %p107 = por %p105, %p106
    %s108 = ssub.s32 %s19, %s26
    %p109 = scmp.eq.s32.totalorder %s108, 0
    %s111 = sadd.s32 %s110, 1
    %s112 = scalar_select %p109, %s110, %s111
    %p115 = pneg %p109
    %p116 = scmp.eq.s32.totalorder %s11, 1
    %p117 = por %p115, %p116
    %p118 = scmp.ne.s32.totalorder %s110, %s113
    %p119 = scmp.eq.s32.totalorder %s11, 0
    %p120 = por %p118, %p119
    %p121 = scmp.ne.s32.totalorder %s110, %s113
    %p122 = scmp.eq.s32.totalorder %s16, 1
    %p123 = por %p121, %p122
    %p124 = scmp.ne.s32.totalorder %s113, %s114
    %p125 = scmp.eq.s32.totalorder %s16, 0
    %p126 = por %p124, %p125
    %p127 = scmp.ne.s32.totalorder %s113, %s114
    %p128 = scmp.eq.s32.totalorder %s17, 1
    %p129 = por %p127, %p128
    %p131 = scmp.ne.s32.totalorder %s114, %s130
    %p132 = scmp.eq.s32.totalorder %s17, 0
    %p133 = por %p131, %p132
    %s134 = ssub.s32 %s18, %s30
    %s135 = ssub.s32 %s19, %s26
    %s136 = sor.u32 %s134, %s135
    %p137 = scmp.eq.s32.totalorder %s136, 0
    %s139 = sadd.s32 %s138, 1
    %s140 = scalar_select %p137, %s138, %s139
    %p143 = pneg %p137
    %p144 = scmp.eq.s32.totalorder %s11, 1
    %p145 = por %p143, %p144
    %p146 = scmp.ne.s32.totalorder %s138, %s141
    %p147 = scmp.eq.s32.totalorder %s11, 0
    %p148 = por %p146, %p147
    %p149 = scmp.ne.s32.totalorder %s138, %s141
    %p150 = scmp.eq.s32.totalorder %s16, 1
    %p151 = por %p149, %p150
    %p152 = scmp.ne.s32.totalorder %s141, %s142
    %p153 = scmp.eq.s32.totalorder %s16, 0
    %p154 = por %p152, %p153
    %p155 = scmp.ne.s32.totalorder %s141, %s142
    %p156 = scmp.eq.s32.totalorder %s17, 1
    %p157 = por %p155, %p156
    %p159 = scmp.ne.s32.totalorder %s142, %s158
    %p160 = scmp.eq.s32.totalorder %s17, 0
    %p161 = por %p159, %p160
    %p162 = scmp.le.s32.totalorder 1, %s11
    %p163 = scmp.lt.s32.totalorder %s11, 3
    %p164 = pnand %p162, %p163
    %p165 = pneg %p164
    // Predicated region
    $region9: #{audio_encoder_forward.26} parent=5 // pred_check
      _
    $region10: #{audio_encoder_forward.26} parent=5 // pred_check_branch
      %167 = sbr.rel (%p164) target = $region12
    $region11: #{audio_encoder_forward.26} parent=5 // pred_region
      %s168 = ssub.s32 %s11, 1
      // Predicated region
      $region13: #{audio_encoder_forward.26} parent=11 // pred_check
        %p169 = pneg %p44
      $region14: #{audio_encoder_forward.26} parent=11 // pred_check_branch
        %171 = sbr.rel (%p169) target = $region16
      $region15: #{audio_encoder_forward.26} parent=11 // pred_region
        _
      $region16: #{audio_encoder_forward.26} parent=11 // pred_fallthru
        _
      // Predicated region
      $region17: #{audio_encoder_forward.26} parent=11 // pred_check
        %p172 = pneg %p126
      $region18: #{audio_encoder_forward.26} parent=11 // pred_check_branch
        %174 = sbr.rel (%p172) target = $region20
      $region19: #{audio_encoder_forward.26} parent=11 // pred_region
        %s175 = smul.u32 2, %s21
        %p176 = scmp.lt.s32.totalorder %s175, 1
        %s177 = scalar_select %p176, %s175, 1
        %s178 = smul.addr %s177, 4
        %s179 = scalar_lea.vmem %s3, %s178
        %s180 = smul.u32 2, %s21
      $region20: #{audio_encoder_forward.26} parent=11 // pred_fallthru
        _
    $region12: #{audio_encoder_forward.26} parent=5 // pred_fallthru
      _
    %p181 = scmp.lt.s32.totalorder %s11, 2
    // Predicated region
    $region21: #{audio_encoder_forward.26} parent=5 // pred_check
      %p182 = pneg %p181
    $region22: #{audio_encoder_forward.26} parent=5 // pred_check_branch
      %184 = sbr.rel (%p182) target = $region24
    $region23: #{audio_encoder_forward.26} parent=5 // pred_region
      // Predicated region
      $region25: #{audio_encoder_forward.26} parent=23 // pred_check
        %p185 = pneg %p66
      $region26: #{audio_encoder_forward.26} parent=23 // pred_check_branch
        %187 = sbr.rel (%p185) target = $region28
      $region27: #{audio_encoder_forward.26} parent=23 // pred_region
        %s188 = smul.u32 2, %s19
        %p189 = scmp.lt.s32.totalorder %s18, 1
        %s190 = scalar_select %p189, %s18, 1
        %p191 = scmp.lt.s32.totalorder %s188, 1
        %s192 = scalar_select %p191, %s188, 1
        %s193 = smul.addr %s190, 2
        %s194 = sadd.s32 %s192, %s193
        %s195 = smul.addr %s194, 4
        %s196 = scalar_lea.vmem %s1, %s195
        %s197 = smul.u32 2, %s19
      $region28: #{audio_encoder_forward.26} parent=23 // pred_fallthru
        _
      // Predicated region
      $region29: #{audio_encoder_forward.26} parent=23 // pred_check
        %p198 = pneg %p94
      $region30: #{audio_encoder_forward.26} parent=23 // pred_check_branch
        %200 = sbr.rel (%p198) target = $region32
      $region31: #{audio_encoder_forward.26} parent=23 // pred_region
        %s201 = smul.u32 2, %s19
        %p202 = scmp.lt.s32.totalorder %s18, 1
        %s203 = scalar_select %p202, %s18, 1
        %p204 = scmp.lt.s32.totalorder %s201, 1
        %s205 = scalar_select %p204, %s201, 1
        %s206 = smul.addr %s203, 2
        %s207 = sadd.s32 %s205, %s206
        %s208 = smul.addr %s207, 4
        %s209 = scalar_lea.vmem %s2, %s208
        %s210 = smul.u32 2, %s19
      $region32: #{audio_encoder_forward.26} parent=23 // pred_fallthru
        _
    $region24: #{audio_encoder_forward.26} parent=5 // pred_fallthru
      _
    %p211 = scmp.le.s32.totalorder 1, %s11
    %p212 = scmp.lt.s32.totalorder %s11, 3
    %p213 = pnand %p211, %p212
    %p214 = pneg %p213
    // Predicated region
    $region33: #{audio_encoder_forward.26} parent=5 // pred_check
      _
    $region34: #{audio_encoder_forward.26} parent=5 // pred_check_branch
      %216 = sbr.rel (%p213) target = $region36
    $region35: #{audio_encoder_forward.26} parent=5 // pred_region
      %s217 = ssub.s32 %s11, 1
      %p218 = pneg %p44
      %p219 = pneg %p41
      %s220 = smul.u32 2, %s21
      %p221 = scmp.lt.s32.totalorder %s20, 1
      %s222 = scalar_select %p221, %s20, 1
      %p223 = scmp.lt.s32.totalorder %s220, 1
      %s224 = scalar_select %p223, %s220, 1
      %s225 = smul.addr %s222, 2
      %s226 = sadd.s32 %s224, %s225
      %s227 = smul.addr %s226, 4
      %s228 = scalar_lea.vmem %s1, %s227
      %p229 = pneg %p72
      %p230 = pneg %p69
      %s231 = smul.u32 2, %s21
      %p232 = scmp.lt.s32.totalorder %s20, 1
      %s233 = scalar_select %p232, %s20, 1
      %p234 = scmp.lt.s32.totalorder %s231, 1
      %s235 = scalar_select %p234, %s231, 1
      %s236 = smul.addr %s233, 2
      %s237 = sadd.s32 %s235, %s236
      %s238 = smul.addr %s237, 4
      %s239 = scalar_lea.vmem %s2, %s238
      %p240 = pneg %p100
      %p241 = pneg %p97
      %s242 = smul.u32 2, %s21
      %p243 = scmp.lt.s32.totalorder %s242, 1
      %s244 = scalar_select %p243, %s242, 1
      %s245 = smul.addr %s244, 4
      %s246 = scalar_lea.vmem %s3, %s245
      %p247 = pneg %p126
      %p248 = pneg %p123
      %p249 = pneg %p154
      %p250 = pneg %p151
      %s251 = smul.u32 2, %s21
      %p252 = scmp.lt.s32.totalorder %s20, 1
      %s253 = scalar_select %p252, %s20, 1
      %p254 = scmp.lt.s32.totalorder %s251, 1
      %s255 = scalar_select %p254, %s251, 1
      %s256 = smul.addr %s253, 2
      %s257 = sadd.s32 %s255, %s256
      %s258 = smul.addr %s257, 4
      %s259 = scalar_lea.vmem %s4, %s258
      %s260 = smul.u32 2, %s21
      %p261 = scmp.lt.s32.totalorder %s20, 1
      %s262 = scalar_select %p261, %s20, 1
      %p263 = scmp.lt.s32.totalorder %s260, 1
      %s264 = scalar_select %p263, %s260, 1
      %s265 = smul.addr %s262, 2
      %s266 = sadd.s32 %s264, %s265
      %s267 = smul.addr %s266, 4
      %s268 = scalar_lea.vmem %s1, %s267
      %s269 = smul.u32 2, %s21
      %s270 = smul.u32 2, %s21
      %p271 = scmp.lt.s32.totalorder %s20, 1
      %s272 = scalar_select %p271, %s20, 1
      %p273 = scmp.lt.s32.totalorder %s270, 1
      %s274 = scalar_select %p273, %s270, 1
      %s275 = smul.addr %s272, 2
      %s276 = sadd.s32 %s274, %s275
      %s277 = smul.addr %s276, 4
      %s278 = scalar_lea.vmem %s2, %s277
      %s279 = smul.u32 2, %s21
      %s280 = smul.u32 2, %s21
      %p281 = scmp.lt.s32.totalorder %s280, 1
      %s282 = scalar_select %p281, %s280, 1
      %s283 = smul.addr %s282, 4
      %s284 = scalar_lea.vmem %s3, %s283
      %s285 = smul.u32 2, %s21
      %s286 = smul.u32 2, %s21
      %p287 = scmp.lt.s32.totalorder %s20, 1
      %s288 = scalar_select %p287, %s20, 1
      %p289 = scmp.lt.s32.totalorder %s286, 1
      %s290 = scalar_select %p289, %s286, 1
      %s291 = smul.addr %s288, 2
      %s292 = sadd.s32 %s290, %s291
      %s293 = smul.addr %s292, 4
      %s294 = scalar_lea.vmem %s4, %s293
      %s295 = smul.u32 2, %s21
      %s296 = sld [smem:[#allocation2]]
      %v297 = vld [vmem:[%s268] sm:$0xf]
      %v298 = vld [vmem:[%s268 + $0x4] sm:$0xf]
      %v299 = vunpack.c.l.bf16 %v297
      %v300 = vunpack.c.l.bf16 %v298
      %v301 = vld [vmem:[%s278] sm:$0xf]
      %v302 = vld [vmem:[%s278 + $0x4] sm:$0xf]
      %v303 = vunpack.c.l.bf16 %v301
      %v304 = vunpack.c.l.bf16 %v302
      %v305 = vld [vmem:[%s284] sm:$0xf]
      %v306 = vld [vmem:[%s284 + $0x4] sm:$0xf]
      %v307 = vunpack.c.l.bf16 %v305
      %v308 = vunpack.c.l.bf16 %v306
      %v309 = vadd.f32 %v299, %v307
      %v310 = vadd.f32 %v300, %v308
      %v311 = vstv %s296
      %v312 = vmul.f32 %v311, %v309
      %v313 = vmul.f32 %v311, %v310
      %s314 = ssub.f32 1.0, %s296
      %v315 = vadd.f32 %v303, %v307
      %v316 = vadd.f32 %v304, %v308
      %v317 = vstv %s314
      %v318 = vmul.f32 %v317, %v315
      %v319 = vmul.f32 %v317, %v316
      %v320 = vadd.f32 %v312, %v318
      %v321 = vadd.f32 %v313, %v319
      %v322 = vpack.c.bf16 %v321, %v320
      %v324 = vunpack.c.l.b16 %v322
      %v325 = vunpack.c.h.b16 %v322
      %v326 = vpack.c.b16 %v324, %v324
      %v327 = vpack.c.b16 %v325, %v325
      %vm330 = vcmask 257024
      %331 = vst.msk [vmem:[%s294] sm:$0xf] %vm330, %v326
      %332 = vst.msk [vmem:[%s294 + $0x4] sm:$0xf] %vm330, %v327
      %s333 = smul.u32 2, %s21
      %p334 = scmp.lt.s32.totalorder %s20, 1
      %s335 = scalar_select %p334, %s20, 1
      %p336 = scmp.lt.s32.totalorder %s333, 1
      %s337 = scalar_select %p336, %s333, 1
      %s338 = smul.addr %s335, 2
      %s339 = sadd.s32 %s337, %s338
      %s340 = smul.addr %s339, 4
      %s341 = scalar_lea.vmem %s4, %s340
      // Predicated region
      $region37: #{audio_encoder_forward.26} parent=35 // pred_check
        %p342 = pneg %p151
      $region38: #{audio_encoder_forward.26} parent=35 // pred_check_branch
        %344 = sbr.rel (%p342) target = $region40
      $region39: #{audio_encoder_forward.26} parent=35 // pred_region
        %s345 = smul.u32 2, %s21
      $region40: #{audio_encoder_forward.26} parent=35 // pred_fallthru
        _
    $region36: #{audio_encoder_forward.26} parent=5 // pred_fallthru
      _
    %p346 = scmp.le.s32.totalorder 2, %s11
    // Predicated region
    $region41: #{audio_encoder_forward.26} parent=5 // pred_check
      %p347 = pneg %p346
    $region42: #{audio_encoder_forward.26} parent=5 // pred_check_branch
      %349 = sbr.rel (%p347) target = $region44
    $region43: #{audio_encoder_forward.26} parent=5 // pred_region
      %s350 = ssub.s32 %s11, 2
      // Predicated region
      $region45: #{audio_encoder_forward.26} parent=43 // pred_check
        %p351 = pneg %p157
      $region46: #{audio_encoder_forward.26} parent=43 // pred_check_branch
        %353 = sbr.rel (%p351) target = $region48
      $region47: #{audio_encoder_forward.26} parent=43 // pred_region
        %s354 = smul.u32 2, %s23
        %p355 = scmp.lt.s32.totalorder %s22, 1
        %s356 = scalar_select %p355, %s22, 1
        %p357 = scmp.lt.s32.totalorder %s354, 1
        %s358 = scalar_select %p357, %s354, 1
        %s359 = smul.addr %s356, 2
        %s360 = sadd.s32 %s358, %s359
        %s361 = smul.addr %s360, 4
        %s362 = scalar_lea.vmem %s4, %s361
      $region48: #{audio_encoder_forward.26} parent=43 // pred_fallthru
        _
    $region44: #{audio_encoder_forward.26} parent=5 // pred_fallthru
      _
  $region6: #{audio_encoder_forward.26} parent=0 // loop_footer
    %s15 = sadd.s32 1, %s11
  $region7: #{audio_encoder_forward.26} parent=0 // loop_footer_branch
    %10 = sbr.rel target = $region3
  $region8: #{audio_encoder_forward.26} parent=0 // loop_exit
    _

// kernel: audio_encoder_forward.22
$region0: #{audio_encoder_forward.22}
  #allocation0 [shape = 'u32[]', space=smem, size = 0x4, offset = 0x4, fixed_abs, tag = 'smem constant byte address 0x4 - core index']
  #allocation1 [shape = 'u32[144,128]{1,0:T(1,128)}', space=vmem, size = 0x12000, scoped, tag = 'internal scratch']
  %s0 = inlined_call_operand.vmem [shape: bf16[2,16,32], index: 0, kind: input, shape index: {}]
  %s1 = inlined_call_operand.vmem [shape: f32[32,2], index: 1, kind: input, shape index: {}]
  %s2 = inlined_call_operand.vmem [shape: f32[1,2], index: 2, kind: input, shape index: {}]
  %s3 = inlined_call_operand.vmem [shape: f32[2,32], index: 3, kind: input, shape index: {}]
  %s4 = inlined_call_operand.vmem [shape: f32[1,32], index: 4, kind: input, shape index: {}]
  %s5 = inlined_call_operand.vmem [shape: bf16[2,16,32], index: 5, kind: output, shape index: {}]
  %s6 = sld [smem:[#allocation0]]
  $region53: #{audio_encoder_forward.22} parent=0
    _
  %s8 = ssub.s32 1, %s6
  %s9 = scalar_select 0, %s8, %s6
  loop: start=0, step=1, limit=4
  $region2: #{audio_encoder_forward.22} parent=0 // loop_pre_header
    _
  $region3: #{audio_encoder_forward.22} parent=0 // loop_header
    %s11 = sphi 0, %s15
    %p12 = scmp.ge.s32.totalorder %s11, 4
    %s21 = sphi 0, %s23
    %s24 = sphi 0, %s21
    %s25 = sphi 0, %s24
    %s41 = sphi 0, %s25
    %s45 = sphi 0, %s45
    %s47 = sphi 0, %s45
    %s48 = sphi 0, %s47
    %s62 = sphi 0, %s48
    %s66 = sphi 0, %s66
    %s68 = sphi 0, %s66
    %s69 = sphi 0, %s68
    %s83 = sphi 0, %s69
    %s87 = sphi 0, %s87
    %s89 = sphi 0, %s87
    %s90 = sphi 0, %s89
    %s104 = sphi 0, %s90
    %s108 = sphi 0, %s108
    %s110 = sphi 0, %s108
    %s111 = sphi 0, %s110
    %s125 = sphi 0, %s111
    %s131 = sphi 0, %s133
    %s134 = sphi 0, %s131
    %s135 = sphi 0, %s134
    %s151 = sphi 0, %s135
  $region4: #{audio_encoder_forward.22} parent=0 // loop_header_branch
    %14 = sbr.rel (%p12) target = $region8
  $region5: #{audio_encoder_forward.22} parent=0 // loop_body
    %s16 = ssub.s32 %s11, 1
    %s17 = ssub.s32 %s11, 2
    %s18 = sadd.s32 %s11, 1
    %s19 = ssub.s32 %s11, %s18
    %p20 = scmp.eq.s32.totalorder %s19, 0
    %s22 = sadd.s32 %s21, 1
    %s23 = scalar_select %p20, %s21, %s22
    %p26 = pneg %p20
    %p27 = scmp.eq.s32.totalorder %s11, 1
    %p28 = por %p26, %p27
    %p29 = scmp.ne.s32.totalorder %s21, %s24
    %p30 = scmp.eq.s32.totalorder %s11, 0
    %p31 = por %p29, %p30
    %p32 = scmp.ne.s32.totalorder %s21, %s24
    %p33 = scmp.eq.s32.totalorder %s16, 1
    %p34 = por %p32, %p33
    %p35 = scmp.ne.s32.totalorder %s24, %s25
    %p36 = scmp.eq.s32.totalorder %s16, 0
    %p37 = por %p35, %p36
    %p38 = scmp.ne.s32.totalorder %s24, %s25
    %p39 = scmp.eq.s32.totalorder %s17, 1
    %p40 = por %p38, %p39
    %p42 = scmp.ne.s32.totalorder %s25, %s41
    %p43 = scmp.eq.s32.totalorder %s17, 0
    %p44 = por %p42, %p43
    %s46 = sadd.s32 %s45, 1
    %p49 = scmp.eq.s32.totalorder %s11, 1
    %p50 = scmp.ne.s32.totalorder %s45, %s47
    %p51 = scmp.eq.s32.totalorder %s11, 0
    %p52 = por %p50, %p51
    %p53 = scmp.ne.s32.totalorder %s45, %s47
    %p54 = scmp.eq.s32.totalorder %s16, 1
    %p55 = por %p53, %p54
    %p56 = scmp.ne.s32.totalorder %s47, %s48
    %p57 = scmp.eq.s32.totalorder %s16, 0
    %p58 = por %p56, %p57
    %p59 = scmp.ne.s32.totalorder %s47, %s48
    %p60 = scmp.eq.s32.totalorder %s17, 1
    %p61 = por %p59, %p60
    %p63 = scmp.ne.s32.totalorder %s48, %s62
    %p64 = scmp.eq.s32.totalorder %s17, 0
    %p65 = por %p63, %p64
    %s67 = sadd.s32 %s66, 1
    %p70 = scmp.eq.s32.totalorder %s11, 1
    %p71 = scmp.ne.s32.totalorder %s66, %s68
    %p72 = scmp.eq.s32.totalorder %s11, 0
    %p73 = por %p71, %p72
    %p74 = scmp.ne.s32.totalorder %s66, %s68
    %p75 = scmp.eq.s32.totalorder %s16, 1
    %p76 = por %p74, %p75
    %p77 = scmp.ne.s32.totalorder %s68, %s69
    %p78 = scmp.eq.s32.totalorder %s16, 0
    %p79 = por %p77, %p78
    %p80 = scmp.ne.s32.totalorder %s68, %s69
    %p81 = scmp.eq.s32.totalorder %s17, 1
    %p82 = por %p80, %p81
    %p84 = scmp.ne.s32.totalorder %s69, %s83
    %p85 = scmp.eq.s32.totalorder %s17, 0
    %p86 = por %p84, %p85
    %s88 = sadd.s32 %s87, 1
    %p91 = scmp.eq.s32.totalorder %s11, 1
    %p92 = scmp.ne.s32.totalorder %s87, %s89
    %p93 = scmp.eq.s32.totalorder %s11, 0
    %p94 = por %p92, %p93
    %p95 = scmp.ne.s32.totalorder %s87, %s89
    %p96 = scmp.eq.s32.totalorder %s16, 1
    %p97 = por %p95, %p96
    %p98 = scmp.ne.s32.totalorder %s89, %s90
    %p99 = scmp.eq.s32.totalorder %s16, 0
    %p100 = por %p98, %p99
    %p101 = scmp.ne.s32.totalorder %s89, %s90
    %p102 = scmp.eq.s32.totalorder %s17, 1
    %p103 = por %p101, %p102
    %p105 = scmp.ne.s32.totalorder %s90, %s104
    %p106 = scmp.eq.s32.totalorder %s17, 0
    %p107 = por %p105, %p106
    %s109 = sadd.s32 %s108, 1
    %p112 = scmp.eq.s32.totalorder %s11, 1
    %p113 = scmp.ne.s32.totalorder %s108, %s110
    %p114 = scmp.eq.s32.totalorder %s11, 0
    %p115 = por %p113, %p114
    %p116 = scmp.ne.s32.totalorder %s108, %s110
    %p117 = scmp.eq.s32.totalorder %s16, 1
    %p118 = por %p116, %p117
    %p119 = scmp.ne.s32.totalorder %s110, %s111
    %p120 = scmp.eq.s32.totalorder %s16, 0
    %p121 = por %p119, %p120
    %p122 = scmp.ne.s32.totalorder %s110, %s111
    %p123 = scmp.eq.s32.totalorder %s17, 1
    %p124 = por %p122, %p123
    %p126 = scmp.ne.s32.totalorder %s111, %s125
    %p127 = scmp.eq.s32.totalorder %s17, 0
    %p128 = por %p126, %p127
    %s129 = ssub.s32 %s11, %s18
    %p130 = scmp.eq.s32.totalorder %s129, 0
    %s132 = sadd.s32 %s131, 1
    %s133 = scalar_select %p130, %s131, %s132
    %p136 = pneg %p130
    %p137 = scmp.eq.s32.totalorder %s11, 1
    %p138 = por %p136, %p137
    %p139 = scmp.ne.s32.totalorder %s131, %s134
    %p140 = scmp.eq.s32.totalorder %s11, 0
    %p141 = por %p139, %p140
    %p142 = scmp.ne.s32.totalorder %s131, %s134
    %p143 = scmp.eq.s32.totalorder %s16, 1
    %p144 = por %p142, %p143
    %p145 = scmp.ne.s32.totalorder %s134, %s135
    %p146 = scmp.eq.s32.totalorder %s16, 0
    %p147 = por %p145, %p146
    %p148 = scmp.ne.s32.totalorder %s134, %s135
    %p149 = scmp.eq.s32.totalorder %s17, 1
    %p150 = por %p148, %p149
    %p152 = scmp.ne.s32.totalorder %s135, %s151
    %p153 = scmp.eq.s32.totalorder %s17, 0
    %p154 = por %p152, %p153
    %p155 = scmp.le.s32.totalorder 1, %s11
    %p156 = scmp.lt.s32.totalorder %s11, 3
    %p157 = pnand %p155, %p156
    %p158 = pneg %p157
    // Predicated region
    $region9: #{audio_encoder_forward.22} parent=5 // pred_check
      _
    $region10: #{audio_encoder_forward.22} parent=5 // pred_check_branch
      %160 = sbr.rel (%p157) target = $region12
    $region11: #{audio_encoder_forward.22} parent=5 // pred_region
      %s161 = ssub.s32 %s11, 1
      // Predicated region
      $region13: #{audio_encoder_forward.22} parent=11 // pred_check
        %p162 = pneg %p58
      $region14: #{audio_encoder_forward.22} parent=11 // pred_check_branch
        %164 = sbr.rel (%p162) target = $region16
      $region15: #{audio_encoder_forward.22} parent=11 // pred_region
        _
      $region16: #{audio_encoder_forward.22} parent=11 // pred_fallthru
        _
      // Predicated region
      $region17: #{audio_encoder_forward.22} parent=11 // pred_check
        %p165 = pneg %p79
      $region18: #{audio_encoder_forward.22} parent=11 // pred_check_branch
        %167 = sbr.rel (%p165) target = $region20
      $region19: #{audio_encoder_forward.22} parent=11 // pred_region
        _
      $region20: #{audio_encoder_forward.22} parent=11 // pred_fallthru
        _
      // Predicated region
      $region21: #{audio_encoder_forward.22} parent=11 // pred_check
        %p168 = pneg %p100
      $region22: #{audio_encoder_forward.22} parent=11 // pred_check_branch
        %170 = sbr.rel (%p168) target = $region24
      $region23: #{audio_encoder_forward.22} parent=11 // pred_region
        _
      $region24: #{audio_encoder_forward.22} parent=11 // pred_fallthru
        _
      // Predicated region
      $region25: #{audio_encoder_forward.22} parent=11 // pred_check
        %p171 = pneg %p121
      $region26: #{audio_encoder_forward.22} parent=11 // pred_check_branch
        %173 = sbr.rel (%p171) target = $region28
      $region27: #{audio_encoder_forward.22} parent=11 // pred_region
        _
      $region28: #{audio_encoder_forward.22} parent=11 // pred_fallthru
        _
    $region12: #{audio_encoder_forward.22} parent=5 // pred_fallthru
      _
    %p174 = scmp.lt.s32.totalorder %s11, 2
    // Predicated region
    $region29: #{audio_encoder_forward.22} parent=5 // pred_check
      %p175 = pneg %p174
    $region30: #{audio_encoder_forward.22} parent=5 // pred_check_branch
      %177 = sbr.rel (%p175) target = $region32
    $region31: #{audio_encoder_forward.22} parent=5 // pred_region
      // Predicated region
      $region33: #{audio_encoder_forward.22} parent=31 // pred_check
        %p178 = pneg %p31
      $region34: #{audio_encoder_forward.22} parent=31 // pred_check_branch
        %180 = sbr.rel (%p178) target = $region36
      $region35: #{audio_encoder_forward.22} parent=31 // pred_region
        %p181 = scmp.lt.s32.totalorder %s11, 1
        %s182 = scalar_select %p181, %s11, 1
        %s183 = smul.addr %s182, 2
        %s184 = smul.addr %s183, 4
        %s185 = scalar_lea.vmem %s0, %s184
      $region36: #{audio_encoder_forward.22} parent=31 // pred_fallthru
        _
    $region32: #{audio_encoder_forward.22} parent=5 // pred_fallthru
      _
    %p186 = scmp.le.s32.totalorder 1, %s11
    %p187 = scmp.lt.s32.totalorder %s11, 3
    %p188 = pnand %p186, %p187
    %p189 = pneg %p188
    // Predicated region
    $region37: #{audio_encoder_forward.22} parent=5 // pred_check
      _
    $region38: #{audio_encoder_forward.22} parent=5 // pred_check_branch
      %191 = sbr.rel (%p188) target = $region40
    $region39: #{audio_encoder_forward.22} parent=5 // pred_region
      %s192 = ssub.s32 %s11, 1
      %p193 = scmp.lt.s32.totalorder %s16, 1
      %s194 = scalar_select %p193, %s16, 1
      %s195 = smul.addr %s194, 2
      %s196 = smul.addr %s195, 4
      %s197 = scalar_lea.vmem %s0, %s196
      %p198 = pneg %p37
      %p199 = pneg %p34
      %p200 = pneg %p58
      %p201 = pneg %p55
      %p202 = pneg %p79
      %p203 = pneg %p76
      %p204 = pneg %p100
      %p205 = pneg %p97
      %p206 = pneg %p121
      %p207 = pneg %p118
      %p208 = pneg %p147
      %p209 = pneg %p144
      %p210 = scmp.lt.s32.totalorder %s16, 1
      %s211 = scalar_select %p210, %s16, 1
      %s212 = smul.addr %s211, 2
      %s213 = smul.addr %s212, 4
      %s214 = scalar_lea.vmem %s5, %s213
      %p215 = scmp.lt.s32.totalorder %s16, 1
      %s216 = scalar_select %p215, %s16, 1
      %s217 = smul.addr %s216, 2
      %s218 = smul.addr %s217, 4
      %s219 = scalar_lea.vmem %s0, %s218
      %p220 = scmp.lt.s32.totalorder %s16, 1
      %s221 = scalar_select %p220, %s16, 1
      %s222 = smul.addr %s221, 2
      %s223 = smul.addr %s222, 4
      %s224 = scalar_lea.vmem %s5, %s223
      %v225 = vld [vmem:[%s219] sm:$0xf]
      %v226 = vld [vmem:[%s219 + $0x4] sm:$0xf]
      %v227 = vunpack.c.l.bf16 %v225
      %v228 = vunpack.c.l.bf16 %v226
      %vm229 = vcmask 261120
      %v230 = vsel %vm229, %v227, 0.0
      %v231 = vsel %vm229, %v228, 0.0
      %v232 = vadd.f32 %v230, %v231
      %v233 = vrot.slane %v232, 4
      %v234 = vadd.f32 %v232, %v233
      %v235 = vrot.slane %v234, 2
      %v236 = vadd.f32 %v234, %v235
      %v237 = vrot.slane %v236, 1
      %v238 = vadd.f32 %v236, %v237
      %v239 = vrcp.pop 16.0
      %v240 = vmul.f32 %v238, %v239
      %v241 = vld [vmem:[%s1] sm:$0xff]
      %v242 = vld [vmem:[%s1 + $0x8] sm:$0xff]
      %v243 = vld [vmem:[%s1 + $0x10] sm:$0xff]
      %v244 = vld [vmem:[%s1 + $0x18] sm:$0xff]
      %v245 = vld [vmem:[%s2] sm:$0x1]
      %v247 = vsel %vm229, %v240, 0
      %249 = vmatprep.subr.mxu0 0.0
      %250 = vmatpush1.msra.mxu0 %v241
      %251 = vmatprep.subr.mxu0 0.0
      %252 = vmatpush1.msra.mxu0 %v242
      %253 = vmatprep.subr.mxu0 0.0
      %254 = vmatpush1.msra.mxu0 %v243
      %255 = vmatprep.subr.mxu0 0.0
      %256 = vmatpush1.msra.mxu0 %v244
      %257 = vmatprep.subr.mxu0 0.0
      %258 = vmatpush1.msra.mxu0 0.0
      %259 = vmatprep.subr.mxu0 0.0
      %260 = vmatpush1.msra.mxu0 0.0
      %261 = vmatprep.subr.mxu0 0.0
      %262 = vmatpush1.msra.mxu0 0.0
      %263 = vmatprep.subr.mxu0 0.0
      %264 = vmatpush1.msra.mxu0 0.0
      %265 = vmatprep.subr.mxu0 0.0
      %266 = vmatpush1.msra.mxu0 0.0
      %267 = vmatprep.subr.mxu0 0.0
      %268 = vmatpush1.msra.mxu0 0.0
      %269 = vmatprep.subr.mxu0 0.0
      %270 = vmatpush1.msra.mxu0 0.0
      %271 = vmatprep.subr.mxu0 0.0
      %272 = vmatpush1.msra.mxu0 0.0
      %273 = vmatprep.subr.mxu0 0.0
      %274 = vmatpush1.msra.mxu0 0.0
      %275 = vmatprep.subr.mxu0 0.0
      %276 = vmatpush1.msra.mxu0 0.0
      %277 = vmatprep.subr.mxu0 0.0
      %278 = vmatpush1.msra.mxu0 0.0
      %279 = vmatprep.subr.mxu0 0.0
      %280 = vmatpush1.msra.mxu0 0.0
      %281 = vmatprep.subr.mxu0 0.0
      %282 = vmatpush1.msra.mxu0 0.0
      %283 = vmatprep.subr.mxu0 0.0
      %284 = vmatpush1.msra.mxu0 0.0
      %285 = vmatprep.subr.mxu0 0.0
      %286 = vmatpush1.msra.mxu0 0.0
      %287 = vmatprep.subr.mxu0 0.0
      %288 = vmatpush1.msra.mxu0 0.0
      %289 = vmatprep.subr.mxu0 0.0
      %290 = vmatpush1.msra.mxu0 0.0
      %291 = vmatprep.subr.mxu0 0.0
      %292 = vmatpush1.msra.mxu0 0.0
      %293 = vmatprep.subr.mxu0 0.0
      %294 = vmatpush1.msra.mxu0 0.0
      %295 = vmatprep.subr.mxu0 0.0
      %296 = vmatpush1.msra.mxu0 0.0
      %297 = vmatprep.subr.mxu0 0.0
      %298 = vmatpush1.msra.mxu0 0.0
      %299 = vmatprep.subr.mxu0 0.0
      %300 = vmatpush1.msra.mxu0 0.0
      %301 = vmatprep.subr.mxu0 0.0
      %302 = vmatpush1.msra.mxu0 0.0
      %303 = vmatprep.subr.mxu0 0.0
      %304 = vmatpush1.msra.mxu0 0.0
      %305 = vmatprep.subr.mxu0 0.0
      %306 = vmatpush1.msra.mxu0 0.0
      %307 = vmatprep.subr.mxu0 0.0
      %308 = vmatpush1.msra.mxu0 0.0
      %309 = vmatprep.subr.mxu0 0.0
      %310 = vmatpush1.msra.mxu0 0.0
      %311 = vmatprep.subr.mxu0 0.0
      %312 = vmatpush1.msra.mxu0 0.0
      %313 = vmatprep.mubr.f32.mxu0 0.0
      %314 = vmatmul.mubr.f32.gmra.mrb[0].mxu0 %v247
      %v315 = vpop.f32.mrb[0].mxu0
      %v316 = vadd.f32 %v245, %v315
      %v317 = vpop.f32.mrb[0].mxu0
      %318 = vdwg.mxu0
      %v319 = vmax.f32 %v316, 0.0
      %v320 = vld [vmem:[%s3] sm:$0x3]
      %v321 = vld [vmem:[%s4] sm:$0x1]
      %vm322 = vcmask 15360
      %v324 = vsel %vm322, %v319, 0
      %vm326 = vcmask 1041408
      %v328 = vsel %vm326, %v320, 0
      %330 = vmatprep.subr.mxu0 0.0
      %331 = vmatpush1.msra.mxu0 %v328
      %332 = vmatprep.subr.mxu0 0.0
      %333 = vmatpush1.msra.mxu0 0.0
      %334 = vmatprep.subr.mxu0 0.0
      %335 = vmatpush1.msra.mxu0 0.0
      %336 = vmatprep.subr.mxu0 0.0
      %337 = vmatpush1.msra.mxu0 0.0
      %338 = vmatprep.subr.mxu0 0.0
      %339 = vmatpush1.msra.mxu0 0.0
      %340 = vmatprep.subr.mxu0 0.0
      %341 = vmatpush1.msra.mxu0 0.0
      %342 = vmatprep.subr.mxu0 0.0
      %343 = vmatpush1.msra.mxu0 0.0
      %344 = vmatprep.subr.mxu0 0.0
      %345 = vmatpush1.msra.mxu0 0.0
      %346 = vmatprep.subr.mxu0 0.0
      %347 = vmatpush1.msra.mxu0 0.0
      %348 = vmatprep.subr.mxu0 0.0
      %349 = vmatpush1.msra.mxu0 0.0
      %350 = vmatprep.subr.mxu0 0.0
      %351 = vmatpush1.msra.mxu0 0.0
      %352 = vmatprep.subr.mxu0 0.0
      %353 = vmatpush1.msra.mxu0 0.0
      %354 = vmatprep.subr.mxu0 0.0
      %355 = vmatpush1.msra.mxu0 0.0
      %356 = vmatprep.subr.mxu0 0.0
      %357 = vmatpush1.msra.mxu0 0.0
      %358 = vmatprep.subr.mxu0 0.0
      %359 = vmatpush1.msra.mxu0 0.0
      %360 = vmatprep.subr.mxu0 0.0
      %361 = vmatpush1.msra.mxu0 0.0
      %362 = vmatprep.subr.mxu0 0.0
      %363 = vmatpush1.msra.mxu0 0.0
      %364 = vmatprep.subr.mxu0 0.0
      %365 = vmatpush1.msra.mxu0 0.0
      %366 = vmatprep.subr.mxu0 0.0
      %367 = vmatpush1.msra.mxu0 0.0
      %368 = vmatprep.subr.mxu0 0.0
      %369 = vmatpush1.msra.mxu0 0.0
      %370 = vmatprep.subr.mxu0 0.0
      %371 = vmatpush1.msra.mxu0 0.0
      %372 = vmatprep.subr.mxu0 0.0
      %373 = vmatpush1.msra.mxu0 0.0
      %374 = vmatprep.subr.mxu0 0.0
      %375 = vmatpush1.msra.mxu0 0.0
      %376 = vmatprep.subr.mxu0 0.0
      %377 = vmatpush1.msra.mxu0 0.0
      %378 = vmatprep.subr.mxu0 0.0
      %379 = vmatpush1.msra.mxu0 0.0
      %380 = vmatprep.subr.mxu0 0.0
      %381 = vmatpush1.msra.mxu0 0.0
      %382 = vmatprep.subr.mxu0 0.0
      %383 = vmatpush1.msra.mxu0 0.0
      %384 = vmatprep.subr.mxu0 0.0
      %385 = vmatpush1.msra.mxu0 0.0
      %386 = vmatprep.subr.mxu0 0.0
      %387 = vmatpush1.msra.mxu0 0.0
      %388 = vmatprep.subr.mxu0 0.0
      %389 = vmatpush1.msra.mxu0 0.0
      %390 = vmatprep.subr.mxu0 0.0
      %391 = vmatpush1.msra.mxu0 0.0
      %392 = vmatprep.subr.mxu0 0.0
      %393 = vmatpush1.msra.mxu0 0.0
      %394 = vmatprep.mubr.f32.mxu0 0.0
      %395 = vmatmul.mubr.f32.gmra.mrb[0].mxu0 %v324
      %v396 = vpop.f32.mrb[0].mxu0
      %v397 = vadd.f32 %v321, %v396
      %v398 = vpop.f32.mrb[0].mxu0
      %399 = vdwg.mxu0
      %v400 = vxor.u32 %v397, 2147483648
      %v401 = vmul.f32 %v400, 1.442695
      %v402 = vpow.pop %v401
      %v403 = vadd.f32 %v402, 1.0
      %v404 = vrcp.pop %v403
      %v405 = vmul.f32 1.0, %v404
      %v406 = vlaneseq
      %v407 = vshrl.u32 %v406, 7
      %v408 = vsub.s32 0, %v407
      %v409 = vrot.slane %v405, %v408
      %v410 = vmul.f32 %v227, %v409
      %v411 = vmul.f32 %v228, %v409
      %v412 = vmul.f32 %v410, 0.5
      %v413 = vmul.f32 %v411, 0.5
      %v414 = vmul.f32 %v410, 0.044715
      %v415 = vmul.f32 %v411, 0.044715
      %v416 = vmul.f32 %v414, %v410
      %v417 = vmul.f32 %v415, %v411
      %v418 = vmul.f32 %v416, %v410
      %v419 = vmul.f32 %v417, %v411
      %v420 = vadd.f32 %v410, %v418
      %v421 = vadd.f32 %v411, %v419
      %v422 = vmul.f32 %v420, 0.7978846
      %v423 = vmul.f32 %v421, 0.7978846
      %v424 = vtanh.pop %v422
      %v425 = vtanh.pop %v423
      %v426 = vadd.f32 %v424, 1.0
      %v427 = vadd.f32 %v425, 1.0
      %v428 = vmul.f32 %v412, %v426
      %v429 = vmul.f32 %v413, %v427
      %v430 = vpack.c.bf16 %v429, %v428
      %v432 = vunpack.c.l.b16 %v430
      %v433 = vunpack.c.h.b16 %v430
      %v434 = vpack.c.b16 %v432, %v432
      %v435 = vpack.c.b16 %v433, %v433
      %vm438 = vcmask 257024
      %439 = vst.msk [vmem:[%s224] sm:$0xf] %vm438, %v434
      %440 = vst.msk [vmem:[%s224 + $0x4] sm:$0xf] %vm438, %v435
      %p441 = scmp.lt.s32.totalorder %s16, 1
      %s442 = scalar_select %p441, %s16, 1
      %s443 = smul.addr %s442, 2
      %s444 = smul.addr %s443, 4
      %s445 = scalar_lea.vmem %s5, %s444
      // Predicated region
      $region41: #{audio_encoder_forward.22} parent=39 // pred_check
        %p446 = pneg %p144
      $region42: #{audio_encoder_forward.22} parent=39 // pred_check_branch
        %448 = sbr.rel (%p446) target = $region44
      $region43: #{audio_encoder_forward.22} parent=39 // pred_region
        _
      $region44: #{audio_encoder_forward.22} parent=39 // pred_fallthru
        _
    $region40: #{audio_encoder_forward.22} parent=5 // pred_fallthru
      _
    %p449 = scmp.le.s32.totalorder 2, %s11
    // Predicated region
    $region45: #{audio_encoder_forward.22} parent=5 // pred_check
      %p450 = pneg %p449
    $region46: #{audio_encoder_forward.22} parent=5 // pred_check_branch
      %452 = sbr.rel (%p450) target = $region48
    $region47: #{audio_encoder_forward.22} parent=5 // pred_region
      %s453 = ssub.s32 %s11, 2
      // Predicated region
      $region49: #{audio_encoder_forward.22} parent=47 // pred_check
        %p454 = pneg %p150
      $region50: #{audio_encoder_forward.22} parent=47 // pred_check_branch
        %456 = sbr.rel (%p454) target = $region52
      $region51: #{audio_encoder_forward.22} parent=47 // pred_region
        %p457 = scmp.lt.s32.totalorder %s17, 1
        %s458 = scalar_select %p457, %s17, 1
        %s459 = smul.addr %s458, 2
        %s460 = smul.addr %s459, 4
        %s461 = scalar_lea.vmem %s5, %s460
      $region52: #{audio_encoder_forward.22} parent=47 // pred_fallthru
        _
    $region48: #{audio_encoder_forward.22} parent=5 // pred_fallthru
      _
  $region6: #{audio_encoder_forward.22} parent=0 // loop_footer
    %s15 = sadd.s32 1, %s11
  $region7: #{audio_encoder_forward.22} parent=0 // loop_footer_branch
    %10 = sbr.rel target = $region3
  $region8: #{audio_encoder_forward.22} parent=0 // loop_exit
    _

// kernel: audio_encoder_forward.23
$region0: #{audio_encoder_forward.23}
  #allocation0 [shape = 'u32[]', space=smem, size = 0x4, offset = 0x4, fixed_abs, tag = 'smem constant byte address 0x4 - core index']
  #allocation1 [shape = 'u32[144,128]{1,0:T(1,128)}', space=vmem, size = 0x12000, scoped, tag = 'internal scratch']
  %s0 = inlined_call_operand.vmem [shape: bf16[2,18,32], index: 0, kind: input, shape index: {}]
  %s1 = inlined_call_operand.vmem [shape: bf16[3,32,32], index: 1, kind: input, shape index: {}]
  %s2 = inlined_call_operand.vmem [shape: bf16[1,32], index: 2, kind: input, shape index: {}]
  %s3 = inlined_call_operand.vmem [shape: bf16[2,16,32], index: 3, kind: output, shape index: {}]
  %s4 = sld [smem:[#allocation0]]
  $region45: #{audio_encoder_forward.23} parent=0
    _
  %s6 = ssub.s32 1, %s4
  %s7 = scalar_select 0, %s6, %s4
  loop: start=0, step=1, limit=4
  $region2: #{audio_encoder_forward.23} parent=0 // loop_pre_header
    _
  $region3: #{audio_encoder_forward.23} parent=0 // loop_header
    %s9 = sphi 0, %s13
    %p10 = scmp.ge.s32.totalorder %s9, 4
    %s16 = sphi 0, %s28
    %s17 = sphi 0, %s24
    %s18 = sphi 0, %s16
    %s19 = sphi 0, %s17
    %s20 = sphi 0, %s18
    %s21 = sphi 0, %s19
    %s31 = sphi 0, %s33
    %s34 = sphi 0, %s31
    %s35 = sphi 0, %s34
    %s51 = sphi 0, %s35
    %s57 = sphi 0, %s59
    %s60 = sphi 0, %s57
    %s61 = sphi 0, %s60
    %s77 = sphi 0, %s61
    %s83 = sphi 0, %s85
    %s86 = sphi 0, %s83
    %s87 = sphi 0, %s86
    %s103 = sphi 0, %s87
    %s111 = sphi 0, %s113
    %s114 = sphi 0, %s111
    %s115 = sphi 0, %s114
    %s131 = sphi 0, %s115
  $region4: #{audio_encoder_forward.23} parent=0 // loop_header_branch
    %12 = sbr.rel (%p10) target = $region8
  $region5: #{audio_encoder_forward.23} parent=0 // loop_body
    %s14 = ssub.s32 %s9, 1
    %s15 = ssub.s32 %s9, 2
    %s22 = sadd.s32 1, %s17
    %p23 = scmp.ge.s32.totalorder %s22, 1
    %s24 = scalar_select %p23, 0, %s22
    %s25 = sadd.s32 1, %s16
    %s26 = scalar_select %p23, %s25, %s16
    %p27 = scmp.ge.s32.totalorder %s26, 2
    %s28 = scalar_select %p27, 0, %s26
    %s29 = ssub.s32 %s16, %s28
    %p30 = scmp.eq.s32.totalorder %s29, 0
    %s32 = sadd.s32 %s31, 1
    %s33 = scalar_select %p30, %s31, %s32
    %p36 = pneg %p30
    %p37 = scmp.eq.s32.totalorder %s9, 1
    %p38 = por %p36, %p37
    %p39 = scmp.ne.s32.totalorder %s31, %s34
    %p40 = scmp.eq.s32.totalorder %s9, 0
    %p41 = por %p39, %p40
    %p42 = scmp.ne.s32.totalorder %s31, %s34
    %p43 = scmp.eq.s32.totalorder %s14, 1
    %p44 = por %p42, %p43
    %p45 = scmp.ne.s32.totalorder %s34, %s35
    %p46 = scmp.eq.s32.totalorder %s14, 0
    %p47 = por %p45, %p46
    %p48 = scmp.ne.s32.totalorder %s34, %s35
    %p49 = scmp.eq.s32.totalorder %s15, 1
    %p50 = por %p48, %p49
    %p52 = scmp.ne.s32.totalorder %s35, %s51
    %p53 = scmp.eq.s32.totalorder %s15, 0
    %p54 = por %p52, %p53
    %s55 = ssub.s32 %s17, %s24
    %p56 = scmp.eq.s32.totalorder %s55, 0
    %s58 = sadd.s32 %s57, 1
    %s59 = scalar_select %p56, %s57, %s58
    %p62 = pneg %p56
    %p63 = scmp.eq.s32.totalorder %s9, 1
    %p64 = por %p62, %p63
    %p65 = scmp.ne.s32.totalorder %s57, %s60
    %p66 = scmp.eq.s32.totalorder %s9, 0
    %p67 = por %p65, %p66
    %p68 = scmp.ne.s32.totalorder %s57, %s60
    %p69 = scmp.eq.s32.totalorder %s14, 1
    %p70 = por %p68, %p69
    %p71 = scmp.ne.s32.totalorder %s60, %s61
    %p72 = scmp.eq.s32.totalorder %s14, 0
    %p73 = por %p71, %p72
    %p74 = scmp.ne.s32.totalorder %s60, %s61
    %p75 = scmp.eq.s32.totalorder %s15, 1
    %p76 = por %p74, %p75
    %p78 = scmp.ne.s32.totalorder %s61, %s77
    %p79 = scmp.eq.s32.totalorder %s15, 0
    %p80 = por %p78, %p79
    %s81 = ssub.s32 %s17, %s24
    %p82 = scmp.eq.s32.totalorder %s81, 0
    %s84 = sadd.s32 %s83, 1
    %s85 = scalar_select %p82, %s83, %s84
    %p88 = pneg %p82
    %p89 = scmp.eq.s32.totalorder %s9, 1
    %p90 = por %p88, %p89
    %p91 = scmp.ne.s32.totalorder %s83, %s86
    %p92 = scmp.eq.s32.totalorder %s9, 0
    %p93 = por %p91, %p92
    %p94 = scmp.ne.s32.totalorder %s83, %s86
    %p95 = scmp.eq.s32.totalorder %s14, 1
    %p96 = por %p94, %p95
    %p97 = scmp.ne.s32.totalorder %s86, %s87
    %p98 = scmp.eq.s32.totalorder %s14, 0
    %p99 = por %p97, %p98
    %p100 = scmp.ne.s32.totalorder %s86, %s87
    %p101 = scmp.eq.s32.totalorder %s15, 1
    %p102 = por %p100, %p101
    %p104 = scmp.ne.s32.totalorder %s87, %s103
    %p105 = scmp.eq.s32.totalorder %s15, 0
    %p106 = por %p104, %p105
    %s107 = ssub.s32 %s16, %s28
    %s108 = ssub.s32 %s17, %s24
    %s109 = sor.u32 %s107, %s108
    %p110 = scmp.eq.s32.totalorder %s109, 0
    %s112 = sadd.s32 %s111, 1
    %s113 = scalar_select %p110, %s111, %s112
    %p116 = pneg %p110
    %p117 = scmp.eq.s32.totalorder %s9, 1
    %p118 = por %p116, %p117
    %p119 = scmp.ne.s32.totalorder %s111, %s114
    %p120 = scmp.eq.s32.totalorder %s9, 0
    %p121 = por %p119, %p120
    %p122 = scmp.ne.s32.totalorder %s111, %s114
    %p123 = scmp.eq.s32.totalorder %s14, 1
    %p124 = por %p122, %p123
    %p125 = scmp.ne.s32.totalorder %s114, %s115
    %p126 = scmp.eq.s32.totalorder %s14, 0
    %p127 = por %p125, %p126
    %p128 = scmp.ne.s32.totalorder %s114, %s115
    %p129 = scmp.eq.s32.totalorder %s15, 1
    %p130 = por %p128, %p129
    %p132 = scmp.ne.s32.totalorder %s115, %s131
    %p133 = scmp.eq.s32.totalorder %s15, 0
    %p134 = por %p132, %p133
    %p135 = scmp.le.s32.totalorder 1, %s9
    %p136 = scmp.lt.s32.totalorder %s9, 3
    %p137 = pnand %p135, %p136
    %p138 = pneg %p137
    // Predicated region
    $region9: #{audio_encoder_forward.23} parent=5 // pred_check
      _
    $region10: #{audio_encoder_forward.23} parent=5 // pred_check_branch
      %140 = sbr.rel (%p137) target = $region12
    $region11: #{audio_encoder_forward.23} parent=5 // pred_region
      %s141 = ssub.s32 %s9, 1
      // Predicated region
      $region13: #{audio_encoder_forward.23} parent=11 // pred_check
        %p142 = pneg %p73
      $region14: #{audio_encoder_forward.23} parent=11 // pred_check_branch
        %144 = sbr.rel (%p142) target = $region16
      $region15: #{audio_encoder_forward.23} parent=11 // pred_region
        %p145 = scmp.lt.s32.totalorder %s19, 0
        %s146 = scalar_select %p145, %s19, 0
        %s147 = smul.addr %s146, 4
        %s148 = scalar_lea.vmem %s1, %s147
      $region16: #{audio_encoder_forward.23} parent=11 // pred_fallthru
        _
      // Predicated region
      $region17: #{audio_encoder_forward.23} parent=11 // pred_check
        %p149 = pneg %p99
      $region18: #{audio_encoder_forward.23} parent=11 // pred_check_branch
        %151 = sbr.rel (%p149) target = $region20
      $region19: #{audio_encoder_forward.23} parent=11 // pred_region
        %p152 = scmp.lt.s32.totalorder %s19, 0
        %s153 = scalar_select %p152, %s19, 0
        %s154 = scalar_lea.vmem %s2, %s153
      $region20: #{audio_encoder_forward.23} parent=11 // pred_fallthru
        _
    $region12: #{audio_encoder_forward.23} parent=5 // pred_fallthru
      _
    %p155 = scmp.lt.s32.totalorder %s9, 2
    // Predicated region
    $region21: #{audio_encoder_forward.23} parent=5 // pred_check
      %p156 = pneg %p155
    $region22: #{audio_encoder_forward.23} parent=5 // pred_check_branch
      %158 = sbr.rel (%p156) target = $region24
    $region23: #{audio_encoder_forward.23} parent=5 // pred_region
      // Predicated region
      $region25: #{audio_encoder_forward.23} parent=23 // pred_check
        %p159 = pneg %p41
      $region26: #{audio_encoder_forward.23} parent=23 // pred_check_branch
        %161 = sbr.rel (%p159) target = $region28
      $region27: #{audio_encoder_forward.23} parent=23 // pred_region
        %p162 = scmp.lt.s32.totalorder %s16, 1
        %s163 = scalar_select %p162, %s16, 1
        %s164 = smul.addr %s163, 3
        %s165 = smul.addr %s164, 4
        %s166 = scalar_lea.vmem %s0, %s165
      $region28: #{audio_encoder_forward.23} parent=23 // pred_fallthru
        _
    $region24: #{audio_encoder_forward.23} parent=5 // pred_fallthru
      _
    %p167 = scmp.le.s32.totalorder 1, %s9
    %p168 = scmp.lt.s32.totalorder %s9, 3
    %p169 = pnand %p167, %p168
    %p170 = pneg %p169
    // Predicated region
    $region29: #{audio_encoder_forward.23} parent=5 // pred_check
      _
    $region30: #{audio_encoder_forward.23} parent=5 // pred_check_branch
      %172 = sbr.rel (%p169) target = $region32
    $region31: #{audio_encoder_forward.23} parent=5 // pred_region
      %s173 = ssub.s32 %s9, 1
      %p174 = scmp.lt.s32.totalorder %s18, 1
      %s175 = scalar_select %p174, %s18, 1
      %s176 = smul.addr %s175, 3
      %s177 = smul.addr %s176, 4
      %s178 = scalar_lea.vmem %s0, %s177
      %p179 = pneg %p47
      %p180 = pneg %p44
      %p181 = scmp.lt.s32.totalorder %s19, 0
      %s182 = scalar_select %p181, %s19, 0
      %s183 = smul.addr %s182, 4
      %s184 = scalar_lea.vmem %s1, %s183
      %p185 = pneg %p73
      %p186 = pneg %p70
      %p187 = scmp.lt.s32.totalorder %s19, 0
      %s188 = scalar_select %p187, %s19, 0
      %s189 = scalar_lea.vmem %s2, %s188
      %p190 = pneg %p99
      %p191 = pneg %p96
      %p192 = pneg %p127
      %p193 = pneg %p124
      %p194 = scmp.lt.s32.totalorder %s18, 1
      %s195 = scalar_select %p194, %s18, 1
      %p196 = scmp.lt.s32.totalorder %s19, 0
      %s197 = scalar_select %p196, %s19, 0
      %s198 = smul.addr %s195, 2
      %s199 = sadd.s32 %s197, %s198
      %s200 = smul.addr %s199, 4
      %s201 = scalar_lea.vmem %s3, %s200
      %p202 = scmp.lt.s32.totalorder %s18, 1
      %s203 = scalar_select %p202, %s18, 1
      %s204 = smul.addr %s203, 3
      %s205 = smul.addr %s204, 4
      %s206 = scalar_lea.vmem %s0, %s205
      %p207 = scmp.lt.s32.totalorder %s19, 0
      %s208 = scalar_select %p207, %s19, 0
      %s209 = smul.addr %s208, 4
      %s210 = scalar_lea.vmem %s1, %s209
      %p211 = scmp.lt.s32.totalorder %s19, 0
      %s212 = scalar_select %p211, %s19, 0
      %s213 = scalar_lea.vmem %s2, %s212
      %p214 = scmp.lt.s32.totalorder %s18, 1
      %s215 = scalar_select %p214, %s18, 1
      %p216 = scmp.lt.s32.totalorder %s19, 0
      %s217 = scalar_select %p216, %s19, 0
      %s218 = smul.addr %s215, 2
      %s219 = sadd.s32 %s217, %s218
      %s220 = smul.addr %s219, 4
      %s221 = scalar_lea.vmem %s3, %s220
      %v223 = vld [vmem:[%s206] sm:$0xf]
      %v224 = vld [vmem:[%s206 + $0x4] sm:$0xf]
      %v225 = vld [vmem:[%s210] sm:$0xf]
      %v226 = vld [vmem:[%s210 + $0x4] sm:$0xf]
      %v227 = vld [vmem:[%s210 + $0x8] sm:$0xf]
      %v228 = vld [vmem:[%s210 + $0xc] sm:$0xf]
      %v229 = vld [vmem:[%s206 + $0x8] sm:$0x1]
      %s230 = scalar_lea.vmem %s210, 16
      %v231 = vld [vmem:[%s230] sm:$0xf]
      %v232 = vld [vmem:[%s230 + $0x4] sm:$0xf]
      %v233 = vld [vmem:[%s230 + $0x8] sm:$0xf]
      %v234 = vld [vmem:[%s230 + $0xc] sm:$0xf]
      %v238 = vunpack.c.l.b16 %v223
      %v239 = vunpack.c.l.b16 %v224
      %v240 = vunpack.c.l.b16 %v229
      %v241 = vpack.c.b16 %v239, %v238
      %v242 = vpack.c.b16 %v240, %v240
      %vm243 = vsmask.f32 7424
      %v245 = vshrl.u32 %v241, 16
      %v247 = vshll.u32 %v241, 16
      %v249 = vrot.slane %v247, 1
      %v250 = vor.u32 %v245, %v249
      %v252 = vshll.u32 %v242, 16
      %v254 = vrot.slane %v252, 1
      %v255 = vsel %vm243, %v250, %v254
      %v260 = vunpack.c.l.b16 %v231
      %v261 = vunpack.c.l.b16 %v232
      %v262 = vunpack.c.l.b16 %v233
      %v263 = vunpack.c.l.b16 %v234
      %v264 = vpack.c.b16 %v261, %v260
      %v265 = vpack.c.b16 %v263, %v262
      %vm268 = vcmask 261120
      %v270 = vsel %vm268, %v255, 0
      %272 = vmatprep.subr.bf16.mxu0 0
      %273 = vmatpush1.bf16.msra.mxu0 %v264
      %274 = vmatprep.subr.bf16.mxu0 0
      %275 = vmatpush1.bf16.msra.mxu0 %v265
      %276 = vmatprep.subr.bf16.mxu0 0
      %277 = vmatpush1.bf16.msra.mxu0 0
      %278 = vmatprep.subr.bf16.mxu0 0
      %279 = vmatpush1.bf16.msra.mxu0 0
      %280 = vmatprep.subr.bf16.mxu0 0
      %281 = vmatpush1.bf16.msra.mxu0 0
      %282 = vmatprep.subr.bf16.mxu0 0
      %283 = vmatpush1.bf16.msra.mxu0 0
      %284 = vmatprep.subr.bf16.mxu0 0
      %285 = vmatpush1.bf16.msra.mxu0 0
      %286 = vmatprep.subr.bf16.mxu0 0
      %287 = vmatpush1.bf16.msra.mxu0 0
      %288 = vmatprep.subr.bf16.mxu0 0
      %289 = vmatpush1.bf16.msra.mxu0 0
      %290 = vmatprep.subr.bf16.mxu0 0
      %291 = vmatpush1.bf16.msra.mxu0 0
      %292 = vmatprep.subr.bf16.mxu0 0
      %293 = vmatpush1.bf16.msra.mxu0 0
      %294 = vmatprep.subr.bf16.mxu0 0
      %295 = vmatpush1.bf16.msra.mxu0 0
      %296 = vmatprep.subr.bf16.mxu0 0
      %297 = vmatpush1.bf16.msra.mxu0 0
      %298 = vmatprep.subr.bf16.mxu0 0
      %299 = vmatpush1.bf16.msra.mxu0 0
      %300 = vmatprep.subr.bf16.mxu0 0
      %301 = vmatpush1.bf16.msra.mxu0 0
      %302 = vmatprep.subr.bf16.mxu0 0
      %303 = vmatpush1.bf16.msra.mxu0 0
      %304 = vmatprep.mubr.bf16.mxu0 0
      %305 = vmatmul.mubr.bf16.gmra.mrb[0].mxu0 %v270
      %v306 = vpop.f32.mrb[0].mxu0
      %v307 = vadd.f32 0.0, %v306
      %v308 = vpop.f32.mrb[0].mxu0
      %v309 = vpop.f32.mrb[0].mxu0
      %v310 = vadd.f32 0.0, %v309
      %v311 = vpop.f32.mrb[0].mxu0
      %312 = vdwg.mxu0
      %v317 = vunpack.c.l.b16 %v225
      %v318 = vunpack.c.l.b16 %v226
      %v319 = vunpack.c.l.b16 %v227
      %v320 = vunpack.c.l.b16 %v228
      %v321 = vpack.c.b16 %v318, %v317
      %v322 = vpack.c.b16 %v320, %v319
      %v325 = vsel %vm268, %v241, 0
      %327 = vmatprep.subr.bf16.mxu0 0
      %328 = vmatpush1.bf16.msra.mxu0 %v321
      %329 = vmatprep.subr.bf16.mxu0 0
      %330 = vmatpush1.bf16.msra.mxu0 %v322
      %331 = vmatprep.subr.bf16.mxu0 0
      %332 = vmatpush1.bf16.msra.mxu0 0
      %333 = vmatprep.subr.bf16.mxu0 0
      %334 = vmatpush1.bf16.msra.mxu0 0
      %335 = vmatprep.subr.bf16.mxu0 0
      %336 = vmatpush1.bf16.msra.mxu0 0
      %337 = vmatprep.subr.bf16.mxu0 0
      %338 = vmatpush1.bf16.msra.mxu0 0
      %339 = vmatprep.subr.bf16.mxu0 0
      %340 = vmatpush1.bf16.msra.mxu0 0
      %341 = vmatprep.subr.bf16.mxu0 0
      %342 = vmatpush1.bf16.msra.mxu0 0
      %343 = vmatprep.subr.bf16.mxu0 0
      %344 = vmatpush1.bf16.msra.mxu0 0
      %345 = vmatprep.subr.bf16.mxu0 0
      %346 = vmatpush1.bf16.msra.mxu0 0
      %347 = vmatprep.subr.bf16.mxu0 0
      %348 = vmatpush1.bf16.msra.mxu0 0
      %349 = vmatprep.subr.bf16.mxu0 0
      %350 = vmatpush1.bf16.msra.mxu0 0
      %351 = vmatprep.subr.bf16.mxu0 0
      %352 = vmatpush1.bf16.msra.mxu0 0
      %353 = vmatprep.subr.bf16.mxu0 0
      %354 = vmatpush1.bf16.msra.mxu0 0
      %355 = vmatprep.subr.bf16.mxu0 0
      %356 = vmatpush1.bf16.msra.mxu0 0
      %357 = vmatprep.subr.bf16.mxu0 0
      %358 = vmatpush1.bf16.msra.mxu0 0
      %359 = vmatprep.mubr.bf16.mxu0 0
      %360 = vmatmul.mubr.bf16.gmra.mrb[0].mxu0 %v325
      %v361 = vpop.f32.mrb[0].mxu0
      %v362 = vadd.f32 %v307, %v361
      %v363 = vpop.f32.mrb[0].mxu0
      %v364 = vpop.f32.mrb[0].mxu0
      %v365 = vadd.f32 %v310, %v364
      %v366 = vpop.f32.mrb[0].mxu0
      %367 = vdwg.mxu0
      %v368 = vld [vmem:[%s206] sm:$0xe]
      %s369 = scalar_lea.vmem %s210, 32
      %v370 = vld [vmem:[%s369] sm:$0xf]
      %v371 = vld [vmem:[%s369 + $0x4] sm:$0xf]
      %v372 = vld [vmem:[%s369 + $0x8] sm:$0xf]
      %v373 = vld [vmem:[%s369 + $0xc] sm:$0xf]
      %v375 = vunpack.c.l.b16 %v368
      %v376 = vpack.c.b16 %v239, %v375
      %vm377 = vcmask 1046528
      %v378 = vrot.slane %v376, 1
      %v379 = vrot.slane %v242, 1
      %v380 = vsel %vm377, %v378, %v379
      %v385 = vunpack.c.l.b16 %v370
      %v386 = vunpack.c.l.b16 %v371
      %v387 = vunpack.c.l.b16 %v372
      %v388 = vunpack.c.l.b16 %v373
      %v389 = vpack.c.b16 %v386, %v385
      %v390 = vpack.c.b16 %v388, %v387
      %v394 = vsel %vm268, %v380, 0
      %396 = vmatprep.subr.bf16.mxu0 0
      %397 = vmatpush1.bf16.msra.mxu0 %v389
      %398 = vmatprep.subr.bf16.mxu0 0
      %399 = vmatpush1.bf16.msra.mxu0 %v390
      %400 = vmatprep.subr.bf16.mxu0 0
      %401 = vmatpush1.bf16.msra.mxu0 0
      %402 = vmatprep.subr.bf16.mxu0 0
      %403 = vmatpush1.bf16.msra.mxu0 0
      %404 = vmatprep.subr.bf16.mxu0 0
      %405 = vmatpush1.bf16.msra.mxu0 0
      %406 = vmatprep.subr.bf16.mxu0 0
      %407 = vmatpush1.bf16.msra.mxu0 0
      %408 = vmatprep.subr.bf16.mxu0 0
      %409 = vmatpush1.bf16.msra.mxu0 0
      %410 = vmatprep.subr.bf16.mxu0 0
      %411 = vmatpush1.bf16.msra.mxu0 0
      %412 = vmatprep.subr.bf16.mxu0 0
      %413 = vmatpush1.bf16.msra.mxu0 0
      %414 = vmatprep.subr.bf16.mxu0 0
      %415 = vmatpush1.bf16.msra.mxu0 0
      %416 = vmatprep.subr.bf16.mxu0 0
      %417 = vmatpush1.bf16.msra.mxu0 0
      %418 = vmatprep.subr.bf16.mxu0 0
      %419 = vmatpush1.bf16.msra.mxu0 0
      %420 = vmatprep.subr.bf16.mxu0 0
      %421 = vmatpush1.bf16.msra.mxu0 0
      %422 = vmatprep.subr.bf16.mxu0 0
      %423 = vmatpush1.bf16.msra.mxu0 0
      %424 = vmatprep.subr.bf16.mxu0 0
      %425 = vmatpush1.bf16.msra.mxu0 0
      %426 = vmatprep.subr.bf16.mxu0 0
      %427 = vmatpush1.bf16.msra.mxu0 0
      %428 = vmatprep.mubr.bf16.mxu0 0
      %429 = vmatmul.mubr.bf16.gmra.mrb[0].mxu0 %v394
      %v430 = vpop.f32.mrb[0].mxu0
      %v431 = vadd.f32 0.0, %v430
      %v432 = vpop.f32.mrb[0].mxu0
      %v433 = vpop.f32.mrb[0].mxu0
      %v434 = vadd.f32 0.0, %v433
      %v435 = vpop.f32.mrb[0].mxu0
      %436 = vdwg.mxu0
      %v437 = vadd.f32 %v362, %v431
      %v438 = vadd.f32 %v365, %v434
      %v439 = vld [vmem:[%s213] sm:$0x1]
      %v440 = vunpack.c.l.bf16 %v439
      %v441 = vlaneseq
      %v442 = vshrl.u32 %v441, 7
      %v443 = vsub.s32 0, %v442
      %v444 = vrot.slane %v440, %v443
      %v445 = vadd.f32 %v437, %v444
      %v446 = vadd.f32 %v438, %v444
      %v447 = vpack.c.bf16 %v446, %v445
      %v449 = vunpack.c.l.b16 %v447
      %v450 = vunpack.c.h.b16 %v447
      %v451 = vpack.c.b16 %v449, %v449
      %v452 = vpack.c.b16 %v450, %v450
      %vm455 = vcmask 257024
      %456 = vst.msk [vmem:[%s221] sm:$0xf] %vm455, %v451
      %457 = vst.msk [vmem:[%s221 + $0x4] sm:$0xf] %vm455, %v452
      %p458 = scmp.lt.s32.totalorder %s18, 1
      %s459 = scalar_select %p458, %s18, 1
      %p460 = scmp.lt.s32.totalorder %s19, 0
      %s461 = scalar_select %p460, %s19, 0
      %s462 = smul.addr %s459, 2
      %s463 = sadd.s32 %s461, %s462
      %s464 = smul.addr %s463, 4
      %s465 = scalar_lea.vmem %s3, %s464
      // Predicated region
      $region33: #{audio_encoder_forward.23} parent=31 // pred_check
        %p466 = pneg %p124
      $region34: #{audio_encoder_forward.23} parent=31 // pred_check_branch
        %468 = sbr.rel (%p466) target = $region36
      $region35: #{audio_encoder_forward.23} parent=31 // pred_region
        _
      $region36: #{audio_encoder_forward.23} parent=31 // pred_fallthru
        _
    $region32: #{audio_encoder_forward.23} parent=5 // pred_fallthru
      _
    %p469 = scmp.le.s32.totalorder 2, %s9
    // Predicated region
    $region37: #{audio_encoder_forward.23} parent=5 // pred_check
      %p470 = pneg %p469
    $region38: #{audio_encoder_forward.23} parent=5 // pred_check_branch
      %472 = sbr.rel (%p470) target = $region40
    $region39: #{audio_encoder_forward.23} parent=5 // pred_region
      %s473 = ssub.s32 %s9, 2
      // Predicated region
      $region41: #{audio_encoder_forward.23} parent=39 // pred_check
        %p474 = pneg %p130
      $region42: #{audio_encoder_forward.23} parent=39 // pred_check_branch
        %476 = sbr.rel (%p474) target = $region44
      $region43: #{audio_encoder_forward.23} parent=39 // pred_region
        %p477 = scmp.lt.s32.totalorder %s20, 1
        %s478 = scalar_select %p477, %s20, 1
        %p479 = scmp.lt.s32.totalorder %s21, 0
        %s480 = scalar_select %p479, %s21, 0
        %s481 = smul.addr %s478, 2
        %s482 = sadd.s32 %s480, %s481
        %s483 = smul.addr %s482, 4
        %s484 = scalar_lea.vmem %s3, %s483
      $region44: #{audio_encoder_forward.23} parent=39 // pred_fallthru
        _
    $region40: #{audio_encoder_forward.23} parent=5 // pred_fallthru
      _
  $region6: #{audio_encoder_forward.23} parent=0 // loop_footer
    %s13 = sadd.s32 1, %s9
  $region7: #{audio_encoder_forward.23} parent=0 // loop_footer_branch
    %8 = sbr.rel target = $region3
  $region8: #{audio_encoder_forward.23} parent=0 // loop_exit
    _

// kernel: audio_encoder_forward.21
$region0: #{audio_encoder_forward.21}
  #allocation0 [shape = 'u32[]', space=smem, size = 0x4, offset = 0x4, fixed_abs, tag = 'smem constant byte address 0x4 - core index']
  #allocation1 [shape = 'u32[144,128]{1,0:T(1,128)}', space=vmem, size = 0x12000, scoped, tag = 'internal scratch']
  %s0 = inlined_call_operand.vmem [shape: bf16[2,18,32], index: 0, kind: input, shape index: {}]
  %s1 = inlined_call_operand.vmem [shape: bf16[3,32], index: 1, kind: input, shape index: {}]
  %s2 = inlined_call_operand.vmem [shape: bf16[1,32], index: 2, kind: input, shape index: {}]
  %s3 = inlined_call_operand.vmem [shape: bf16[32,32], index: 3, kind: input, shape index: {}]
  %s4 = inlined_call_operand.vmem [shape: bf16[1,32], index: 4, kind: input, shape index: {}]
  %s5 = inlined_call_operand.vmem [shape: bf16[2,16,32], index: 5, kind: output, shape index: {}]
  %s6 = sld [smem:[#allocation0]]
  $region53: #{audio_encoder_forward.21} parent=0
    _
  %s8 = ssub.s32 1, %s6
  %s9 = scalar_select 0, %s8, %s6
  loop: start=0, step=1, limit=4
  $region2: #{audio_encoder_forward.21} parent=0 // loop_pre_header
    _
  $region3: #{audio_encoder_forward.21} parent=0 // loop_header
    %s11 = sphi 0, %s15
    %p12 = scmp.ge.s32.totalorder %s11, 4
    %s21 = sphi 0, %s23
    %s24 = sphi 0, %s21
    %s25 = sphi 0, %s24
    %s41 = sphi 0, %s25
    %s45 = sphi 0, %s45
    %s47 = sphi 0, %s45
    %s48 = sphi 0, %s47
    %s62 = sphi 0, %s48
    %s66 = sphi 0, %s66
    %s68 = sphi 0, %s66
    %s69 = sphi 0, %s68
    %s83 = sphi 0, %s69
    %s87 = sphi 0, %s87
    %s89 = sphi 0, %s87
    %s90 = sphi 0, %s89
    %s104 = sphi 0, %s90
    %s108 = sphi 0, %s108
    %s110 = sphi 0, %s108
    %s111 = sphi 0, %s110
    %s125 = sphi 0, %s111
    %s131 = sphi 0, %s133
    %s134 = sphi 0, %s131
    %s135 = sphi 0, %s134
    %s151 = sphi 0, %s135
  $region4: #{audio_encoder_forward.21} parent=0 // loop_header_branch
    %14 = sbr.rel (%p12) target = $region8
  $region5: #{audio_encoder_forward.21} parent=0 // loop_body
    %s16 = ssub.s32 %s11, 1
    %s17 = ssub.s32 %s11, 2
    %s18 = sadd.s32 %s11, 1
    %s19 = ssub.s32 %s11, %s18
    %p20 = scmp.eq.s32.totalorder %s19, 0
    %s22 = sadd.s32 %s21, 1
    %s23 = scalar_select %p20, %s21, %s22
    %p26 = pneg %p20
    %p27 = scmp.eq.s32.totalorder %s11, 1
    %p28 = por %p26, %p27
    %p29 = scmp.ne.s32.totalorder %s21, %s24
    %p30 = scmp.eq.s32.totalorder %s11, 0
    %p31 = por %p29, %p30
    %p32 = scmp.ne.s32.totalorder %s21, %s24
    %p33 = scmp.eq.s32.totalorder %s16, 1
    %p34 = por %p32, %p33
    %p35 = scmp.ne.s32.totalorder %s24, %s25
    %p36 = scmp.eq.s32.totalorder %s16, 0
    %p37 = por %p35, %p36
    %p38 = scmp.ne.s32.totalorder %s24, %s25
    %p39 = scmp.eq.s32.totalorder %s17, 1
    %p40 = por %p38, %p39
    %p42 = scmp.ne.s32.totalorder %s25, %s41
    %p43 = scmp.eq.s32.totalorder %s17, 0
    %p44 = por %p42, %p43
    %s46 = sadd.s32 %s45, 1
    %p49 = scmp.eq.s32.totalorder %s11, 1
    %p50 = scmp.ne.s32.totalorder %s45, %s47
    %p51 = scmp.eq.s32.totalorder %s11, 0
    %p52 = por %p50, %p51
    %p53 = scmp.ne.s32.totalorder %s45, %s47
    %p54 = scmp.eq.s32.totalorder %s16, 1
    %p55 = por %p53, %p54
    %p56 = scmp.ne.s32.totalorder %s47, %s48
    %p57 = scmp.eq.s32.totalorder %s16, 0
    %p58 = por %p56, %p57
    %p59 = scmp.ne.s32.totalorder %s47, %s48
    %p60 = scmp.eq.s32.totalorder %s17, 1
    %p61 = por %p59, %p60
    %p63 = scmp.ne.s32.totalorder %s48, %s62
    %p64 = scmp.eq.s32.totalorder %s17, 0
    %p65 = por %p63, %p64
    %s67 = sadd.s32 %s66, 1
    %p70 = scmp.eq.s32.totalorder %s11, 1
    %p71 = scmp.ne.s32.totalorder %s66, %s68
    %p72 = scmp.eq.s32.totalorder %s11, 0
    %p73 = por %p71, %p72
    %p74 = scmp.ne.s32.totalorder %s66, %s68
    %p75 = scmp.eq.s32.totalorder %s16, 1
    %p76 = por %p74, %p75
    %p77 = scmp.ne.s32.totalorder %s68, %s69
    %p78 = scmp.eq.s32.totalorder %s16, 0
    %p79 = por %p77, %p78
    %p80 = scmp.ne.s32.totalorder %s68, %s69
    %p81 = scmp.eq.s32.totalorder %s17, 1
    %p82 = por %p80, %p81
    %p84 = scmp.ne.s32.totalorder %s69, %s83
    %p85 = scmp.eq.s32.totalorder %s17, 0
    %p86 = por %p84, %p85
    %s88 = sadd.s32 %s87, 1
    %p91 = scmp.eq.s32.totalorder %s11, 1
    %p92 = scmp.ne.s32.totalorder %s87, %s89
    %p93 = scmp.eq.s32.totalorder %s11, 0
    %p94 = por %p92, %p93
    %p95 = scmp.ne.s32.totalorder %s87, %s89
    %p96 = scmp.eq.s32.totalorder %s16, 1
    %p97 = por %p95, %p96
    %p98 = scmp.ne.s32.totalorder %s89, %s90
    %p99 = scmp.eq.s32.totalorder %s16, 0
    %p100 = por %p98, %p99
    %p101 = scmp.ne.s32.totalorder %s89, %s90
    %p102 = scmp.eq.s32.totalorder %s17, 1
    %p103 = por %p101, %p102
    %p105 = scmp.ne.s32.totalorder %s90, %s104
    %p106 = scmp.eq.s32.totalorder %s17, 0
    %p107 = por %p105, %p106
    %s109 = sadd.s32 %s108, 1
    %p112 = scmp.eq.s32.totalorder %s11, 1
    %p113 = scmp.ne.s32.totalorder %s108, %s110
    %p114 = scmp.eq.s32.totalorder %s11, 0
    %p115 = por %p113, %p114
    %p116 = scmp.ne.s32.totalorder %s108, %s110
    %p117 = scmp.eq.s32.totalorder %s16, 1
    %p118 = por %p116, %p117
    %p119 = scmp.ne.s32.totalorder %s110, %s111
    %p120 = scmp.eq.s32.totalorder %s16, 0
    %p121 = por %p119, %p120
    %p122 = scmp.ne.s32.totalorder %s110, %s111
    %p123 = scmp.eq.s32.totalorder %s17, 1
    %p124 = por %p122, %p123
    %p126 = scmp.ne.s32.totalorder %s111, %s125
    %p127 = scmp.eq.s32.totalorder %s17, 0
    %p128 = por %p126, %p127
    %s129 = ssub.s32 %s11, %s18
    %p130 = scmp.eq.s32.totalorder %s129, 0
    %s132 = sadd.s32 %s131, 1
    %s133 = scalar_select %p130, %s131, %s132
    %p136 = pneg %p130
    %p137 = scmp.eq.s32.totalorder %s11, 1
    %p138 = por %p136, %p137
    %p139 = scmp.ne.s32.totalorder %s131, %s134
    %p140 = scmp.eq.s32.totalorder %s11, 0
    %p141 = por %p139, %p140
    %p142 = scmp.ne.s32.totalorder %s131, %s134
    %p143 = scmp.eq.s32.totalorder %s16, 1
    %p144 = por %p142, %p143
    %p145 = scmp.ne.s32.totalorder %s134, %s135
    %p146 = scmp.eq.s32.totalorder %s16, 0
    %p147 = por %p145, %p146
    %p148 = scmp.ne.s32.totalorder %s134, %s135
    %p149 = scmp.eq.s32.totalorder %s17, 1
    %p150 = por %p148, %p149
    %p152 = scmp.ne.s32.totalorder %s135, %s151
    %p153 = scmp.eq.s32.totalorder %s17, 0
    %p154 = por %p152, %p153
    %p155 = scmp.le.s32.totalorder 1, %s11
    %p156 = scmp.lt.s32.totalorder %s11, 3
    %p157 = pnand %p155, %p156
    %p158 = pneg %p157
    // Predicated region
    $region9: #{audio_encoder_forward.21} parent=5 // pred_check
      _
    $region10: #{audio_encoder_forward.21} parent=5 // pred_check_branch
      %160 = sbr.rel (%p157) target = $region12
    $region11: #{audio_encoder_forward.21} parent=5 // pred_region
      %s161 = ssub.s32 %s11, 1
      // Predicated region
      $region13: #{audio_encoder_forward.21} parent=11 // pred_check
        %p162 = pneg %p58
      $region14: #{audio_encoder_forward.21} parent=11 // pred_check_branch
        %164 = sbr.rel (%p162) target = $region16
      $region15: #{audio_encoder_forward.21} parent=11 // pred_region
        _
      $region16: #{audio_encoder_forward.21} parent=11 // pred_fallthru
        _
      // Predicated region
      $region17: #{audio_encoder_forward.21} parent=11 // pred_check
        %p165 = pneg %p79
      $region18: #{audio_encoder_forward.21} parent=11 // pred_check_branch
        %167 = sbr.rel (%p165) target = $region20
      $region19: #{audio_encoder_forward.21} parent=11 // pred_region
        _
      $region20: #{audio_encoder_forward.21} parent=11 // pred_fallthru
        _
      // Predicated region
      $region21: #{audio_encoder_forward.21} parent=11 // pred_check
        %p168 = pneg %p100
      $region22: #{audio_encoder_forward.21} parent=11 // pred_check_branch
        %170 = sbr.rel (%p168) target = $region24
      $region23: #{audio_encoder_forward.21} parent=11 // pred_region
        _
      $region24: #{audio_encoder_forward.21} parent=11 // pred_fallthru
        _
      // Predicated region
      $region25: #{audio_encoder_forward.21} parent=11 // pred_check
        %p171 = pneg %p121
      $region26: #{audio_encoder_forward.21} parent=11 // pred_check_branch
        %173 = sbr.rel (%p171) target = $region28
      $region27: #{audio_encoder_forward.21} parent=11 // pred_region
        _
      $region28: #{audio_encoder_forward.21} parent=11 // pred_fallthru
        _
    $region12: #{audio_encoder_forward.21} parent=5 // pred_fallthru
      _
    %p174 = scmp.lt.s32.totalorder %s11, 2
    // Predicated region
    $region29: #{audio_encoder_forward.21} parent=5 // pred_check
      %p175 = pneg %p174
    $region30: #{audio_encoder_forward.21} parent=5 // pred_check_branch
      %177 = sbr.rel (%p175) target = $region32
    $region31: #{audio_encoder_forward.21} parent=5 // pred_region
      // Predicated region
      $region33: #{audio_encoder_forward.21} parent=31 // pred_check
        %p178 = pneg %p31
      $region34: #{audio_encoder_forward.21} parent=31 // pred_check_branch
        %180 = sbr.rel (%p178) target = $region36
      $region35: #{audio_encoder_forward.21} parent=31 // pred_region
        %p181 = scmp.lt.s32.totalorder %s11, 1
        %s182 = scalar_select %p181, %s11, 1
        %s183 = smul.addr %s182, 3
        %s184 = smul.addr %s183, 4
        %s185 = scalar_lea.vmem %s0, %s184
      $region36: #{audio_encoder_forward.21} parent=31 // pred_fallthru
        _
    $region32: #{audio_encoder_forward.21} parent=5 // pred_fallthru
      _
    %p186 = scmp.le.s32.totalorder 1, %s11
    %p187 = scmp.lt.s32.totalorder %s11, 3
    %p188 = pnand %p186, %p187
    %p189 = pneg %p188
    // Predicated region
    $region37: #{audio_encoder_forward.21} parent=5 // pred_check
      _
    $region38: #{audio_encoder_forward.21} parent=5 // pred_check_branch
      %191 = sbr.rel (%p188) target = $region40
    $region39: #{audio_encoder_forward.21} parent=5 // pred_region
      %s192 = ssub.s32 %s11, 1
      %p193 = scmp.lt.s32.totalorder %s16, 1
      %s194 = scalar_select %p193, %s16, 1
      %s195 = smul.addr %s194, 3
      %s196 = smul.addr %s195, 4
      %s197 = scalar_lea.vmem %s0, %s196
      %p198 = pneg %p37
      %p199 = pneg %p34
      %p200 = pneg %p58
      %p201 = pneg %p55
      %p202 = pneg %p79
      %p203 = pneg %p76
      %p204 = pneg %p100
      %p205 = pneg %p97
      %p206 = pneg %p121
      %p207 = pneg %p118
      %p208 = pneg %p147
      %p209 = pneg %p144
      %p210 = scmp.lt.s32.totalorder %s16, 1
      %s211 = scalar_select %p210, %s16, 1
      %s212 = smul.addr %s211, 2
      %s213 = smul.addr %s212, 4
      %s214 = scalar_lea.vmem %s5, %s213
      %p215 = scmp.lt.s32.totalorder %s16, 1
      %s216 = scalar_select %p215, %s16, 1
      %s217 = smul.addr %s216, 3
      %s218 = smul.addr %s217, 4
      %s219 = scalar_lea.vmem %s0, %s218
      %p220 = scmp.lt.s32.totalorder %s16, 1
      %s221 = scalar_select %p220, %s16, 1
      %s222 = smul.addr %s221, 2
      %s223 = smul.addr %s222, 4
      %s224 = scalar_lea.vmem %s5, %s223
      %v226 = vld [vmem:[%s219] sm:$0xf]
      %v227 = vld [vmem:[%s219 + $0x4] sm:$0xf]
      %v228 = vunpack.c.l.bf16 %v226
      %v229 = vunpack.c.l.bf16 %v227
      %v230 = vld [vmem:[%s1] sm:$0x1]
      %v231 = vunpack.c.l.bf16 %v230
      %v232 = vlaneseq
      %v233 = vshrl.u32 %v232, 7
      %v234 = vsub.s32 0, %v233
      %v235 = vrot.slane %v231, %v234
      %v236 = vmul.f32 %v228, %v235
      %v237 = vmul.f32 %v229, %v235
      %v238 = vadd.f32 %v236, 0.0
      %v239 = vadd.f32 %v237, 0.0
      %v240 = vld [vmem:[%s219 + $0x8] sm:$0x1]
      %v241 = vunpack.c.l.bf16 %v240
      %v242 = vlaneseq
      %v243 = vshrl.u32 %v242, 7
      %v244 = vsub.s32 1, %v243
      %v245 = vrot.slane %v231, %v244
      %v246 = vmul.f32 %v228, %v245
      %v247 = vmul.f32 %v229, %v245
      %v248 = vmul.f32 %v241, %v245
      %vm252 = vcmask 1046528
      %v253 = vrot.slane %v246, 1
      %v254 = vrot.slane %v247, 1
      %v255 = vsel %vm252, %v253, %v254
      %v256 = vrot.slane %v248, 1
      %v257 = vsel %vm252, %v254, %v256
      %v260 = vadd.f32 %v238, %v255
      %v261 = vadd.f32 %v239, %v257
      %v262 = vld [vmem:[%s219] sm:$0xe]
      %v263 = vunpack.c.l.bf16 %v262
      %v264 = vld [vmem:[%s1] sm:$0x2]
      %v265 = vunpack.c.l.bf16 %v264
      %v266 = vlaneseq
      %v267 = vshrl.u32 %v266, 7
      %v268 = vsub.s32 2, %v267
      %v269 = vrot.slane %v265, %v268
      %v270 = vmul.f32 %v263, %v269
      %v271 = vmul.f32 %v229, %v269
      %v272 = vmul.f32 %v241, %v269
      %vm276 = vcmask 1045504
      %v277 = vrot.slane %v270, 2
      %v278 = vrot.slane %v271, 2
      %v279 = vsel %vm276, %v277, %v278
      %v280 = vrot.slane %v272, 2
      %v281 = vsel %vm276, %v278, %v280
      %v284 = vadd.f32 %v260, %v279
      %v285 = vadd.f32 %v261, %v281
      %v286 = vld [vmem:[%s2] sm:$0x1]
      %v287 = vunpack.c.l.bf16 %v286
      %v288 = vlaneseq
      %v289 = vshrl.u32 %v288, 7
      %v290 = vsub.s32 0, %v289
      %v291 = vrot.slane %v287, %v290
      %v292 = vadd.f32 %v284, %v291
      %v293 = vadd.f32 %v285, %v291
      %v294 = vpack.c.bf16 %v293, %v292
      %v295 = vld [vmem:[%s3] sm:$0xf]
      %v296 = vld [vmem:[%s3 + $0x4] sm:$0xf]
      %v297 = vld [vmem:[%s3 + $0x8] sm:$0xf]
      %v298 = vld [vmem:[%s3 + $0xc] sm:$0xf]
      %v299 = vld [vmem:[%s4] sm:$0x1]
      %v300 = vunpack.c.l.bf16 %v299
      %v301 = vlaneseq
      %v302 = vshrl.u32 %v301, 7
      %v303 = vsub.s32 0, %v302
      %v304 = vrot.slane %v300, %v303
      %v309 = vunpack.c.l.b16 %v295
      %v310 = vunpack.c.l.b16 %v296
      %v311 = vunpack.c.l.b16 %v297
      %v312 = vunpack.c.l.b16 %v298
      %v313 = vpack.c.b16 %v310, %v309
      %v314 = vpack.c.b16 %v312, %v311
      %vm317 = vcmask 261120
      %v319 = vsel %vm317, %v294, 0
      %321 = vmatprep.subr.bf16.mxu0 0
      %322 = vmatpush1.bf16.msra.mxu0 %v313
      %323 = vmatprep.subr.bf16.mxu0 0
      %324 = vmatpush1.bf16.msra.mxu0 %v314
      %325 = vmatprep.subr.bf16.mxu0 0
      %326 = vmatpush1.bf16.msra.mxu0 0
      %327 = vmatprep.subr.bf16.mxu0 0
      %328 = vmatpush1.bf16.msra.mxu0 0
      %329 = vmatprep.subr.bf16.mxu0 0
      %330 = vmatpush1.bf16.msra.mxu0 0
      %331 = vmatprep.subr.bf16.mxu0 0
      %332 = vmatpush1.bf16.msra.mxu0 0
      %333 = vmatprep.subr.bf16.mxu0 0
      %334 = vmatpush1.bf16.msra.mxu0 0
      %335 = vmatprep.subr.bf16.mxu0 0
      %336 = vmatpush1.bf16.msra.mxu0 0
      %337 = vmatprep.subr.bf16.mxu0 0
      %338 = vmatpush1.bf16.msra.mxu0 0
      %339 = vmatprep.subr.bf16.mxu0 0
      %340 = vmatpush1.bf16.msra.mxu0 0
      %341 = vmatprep.subr.bf16.mxu0 0
      %342 = vmatpush1.bf16.msra.mxu0 0
      %343 = vmatprep.subr.bf16.mxu0 0
      %344 = vmatpush1.bf16.msra.mxu0 0
      %345 = vmatprep.subr.bf16.mxu0 0
      %346 = vmatpush1.bf16.msra.mxu0 0
      %347 = vmatprep.subr.bf16.mxu0 0
      %348 = vmatpush1.bf16.msra.mxu0 0
      %349 = vmatprep.subr.bf16.mxu0 0
      %350 = vmatpush1.bf16.msra.mxu0 0
      %351 = vmatprep.subr.bf16.mxu0 0
      %352 = vmatpush1.bf16.msra.mxu0 0
      %353 = vmatprep.mubr.bf16.mxu0 0
      %354 = vmatmul.mubr.bf16.gmra.mrb[0].mxu0 %v319
      %v355 = vpop.f32.mrb[0].mxu0
      %v356 = vadd.f32 %v304, %v355
      %v357 = vpop.f32.mrb[0].mxu0
      %v358 = vpop.f32.mrb[0].mxu0
      %v359 = vadd.f32 %v304, %v358
      %v360 = vpop.f32.mrb[0].mxu0
      %361 = vdwg.mxu0
      %v362 = vpack.c.bf16 %v359, %v356
      %v364 = vunpack.c.l.b16 %v362
      %v365 = vunpack.c.h.b16 %v362
      %v366 = vpack.c.b16 %v364, %v364
      %v367 = vpack.c.b16 %v365, %v365
      %vm370 = vcmask 257024
      %371 = vst.msk [vmem:[%s224] sm:$0xf] %vm370, %v366
      %372 = vst.msk [vmem:[%s224 + $0x4] sm:$0xf] %vm370, %v367
      %p373 = scmp.lt.s32.totalorder %s16, 1
      %s374 = scalar_select %p373, %s16, 1
      %s375 = smul.addr %s374, 2
      %s376 = smul.addr %s375, 4
      %s377 = scalar_lea.vmem %s5, %s376
      // Predicated region
      $region41: #{audio_encoder_forward.21} parent=39 // pred_check
        %p378 = pneg %p144
      $region42: #{audio_encoder_forward.21} parent=39 // pred_check_branch
        %380 = sbr.rel (%p378) target = $region44
      $region43: #{audio_encoder_forward.21} parent=39 // pred_region
        _
      $region44: #{audio_encoder_forward.21} parent=39 // pred_fallthru
        _
    $region40: #{audio_encoder_forward.21} parent=5 // pred_fallthru
      _
    %p381 = scmp.le.s32.totalorder 2, %s11
    // Predicated region
    $region45: #{audio_encoder_forward.21} parent=5 // pred_check
      %p382 = pneg %p381
    $region46: #{audio_encoder_forward.21} parent=5 // pred_check_branch
      %384 = sbr.rel (%p382) target = $region48
    $region47: #{audio_encoder_forward.21} parent=5 // pred_region
      %s385 = ssub.s32 %s11, 2
      // Predicated region
      $region49: #{audio_encoder_forward.21} parent=47 // pred_check
        %p386 = pneg %p150
      $region50: #{audio_encoder_forward.21} parent=47 // pred_check_branch
        %388 = sbr.rel (%p386) target = $region52
      $region51: #{audio_encoder_forward.21} parent=47 // pred_region
        %p389 = scmp.lt.s32.totalorder %s17, 1
        %s390 = scalar_select %p389, %s17, 1
        %s391 = smul.addr %s390, 2
        %s392 = smul.addr %s391, 4
        %s393 = scalar_lea.vmem %s5, %s392
      $region52: #{audio_encoder_forward.21} parent=47 // pred_fallthru
        _
    $region48: #{audio_encoder_forward.21} parent=5 // pred_fallthru
      _
  $region6: #{audio_encoder_forward.21} parent=0 // loop_footer
    %s15 = sadd.s32 1, %s11
  $region7: #{audio_encoder_forward.21} parent=0 // loop_footer_branch
    %10 = sbr.rel target = $region3
  $region8: #{audio_encoder_forward.21} parent=0 // loop_exit
    _

// kernel: audio_encoder_forward.27
$region0: #{audio_encoder_forward.27}
  #allocation0 [shape = 'u32[]', space=smem, size = 0x4, offset = 0x4, fixed_abs, tag = 'smem constant byte address 0x4 - core index']
  #allocation1 [shape = 'u32[144,128]{1,0:T(1,128)}', space=vmem, size = 0x12000, scoped, tag = 'internal scratch']
  #allocation2 [shape = 'f32[32,96]{1,0:T(8,128)}', space=vmem, size = 0x4000, scoped, tag = 'scratch operand']
  #allocation3 [shape = 'bf16[32,32]{1,0:T(16,128)(2,1)}', space=vmem, size = 0x2000, scoped, tag = 'scratch operand']
  %s0 = inlined_call_operand.vmem [shape: bf16[32,32], index: 0, kind: input, shape index: {}]
  %s1 = inlined_call_operand.vmem [shape: f32[1,32], index: 1, kind: input, shape index: {}]
  %s2 = inlined_call_operand.vmem [shape: bf16[32,96], index: 2, kind: input, shape index: {}]
  %s3 = inlined_call_operand.vmem [shape: bf16[1,96], index: 3, kind: input, shape index: {}]
  %s4 = inlined_call_operand.vmem [shape: bf16[32,96], index: 4, kind: output, shape index: {}]
  %s5 = sld [smem:[#allocation0]]
  $region38: #{audio_encoder_forward.27} parent=0
    _
  %s7 = ssub.s32 1, %s5
  %s8 = scalar_select 0, %s7, %s5
  // Predicated region
  $region2: #{audio_encoder_forward.27} parent=0 // pred_check
    _
  $region3: #{audio_encoder_forward.27} parent=0 // pred_check_branch
    %10 = sbr.rel (0) target = $region5
  $region4: #{audio_encoder_forward.27} parent=0 // pred_region
    _
  $region5: #{audio_encoder_forward.27} parent=0 // pred_fallthru
    _
  // Predicated region
  $region6: #{audio_encoder_forward.27} parent=0 // pred_check
    _
  $region7: #{audio_encoder_forward.27} parent=0 // pred_check_branch
    %12 = sbr.rel (0) target = $region9
  $region8: #{audio_encoder_forward.27} parent=0 // pred_region
    _
  $region9: #{audio_encoder_forward.27} parent=0 // pred_fallthru
    _
  // Predicated region
  $region10: #{audio_encoder_forward.27} parent=0 // pred_check
    _
  $region11: #{audio_encoder_forward.27} parent=0 // pred_check_branch
    %14 = sbr.rel (0) target = $region13
  $region12: #{audio_encoder_forward.27} parent=0 // pred_region
    _
  $region13: #{audio_encoder_forward.27} parent=0 // pred_fallthru
    _
  // Predicated region
  $region14: #{audio_encoder_forward.27} parent=0 // pred_check
    _
  $region15: #{audio_encoder_forward.27} parent=0 // pred_check_branch
    %16 = sbr.rel (0) target = $region17
  $region16: #{audio_encoder_forward.27} parent=0 // pred_region
    _
  $region17: #{audio_encoder_forward.27} parent=0 // pred_fallthru
    _
  %p18 = scmp.eq.s32.totalorder 0, 0
  // Predicated region
  $region18: #{audio_encoder_forward.27} parent=0 // pred_check
    %p19 = pneg %p18
  $region19: #{audio_encoder_forward.27} parent=0 // pred_check_branch
    %21 = sbr.rel (%p19) target = $region21
  $region20: #{audio_encoder_forward.27} parent=0 // pred_region
    %vm22 = vcmask 785408
    %23 = vst.msk [vmem:[#allocation2] sm:$0xff] %vm22, 0.0
    %24 = vst.msk [vmem:[#allocation2 + $0x8] sm:$0xff] %vm22, 0.0
    %25 = vst.msk [vmem:[#allocation2 + $0x10] sm:$0xff] %vm22, 0.0
    %26 = vst.msk [vmem:[#allocation2 + $0x18] sm:$0xff] %vm22, 0.0
  $region21: #{audio_encoder_forward.27} parent=0 // pred_fallthru
    _
  %p27 = scmp.eq.s32.totalorder 0, 0
  // Predicated region
  $region22: #{audio_encoder_forward.27} parent=0 // pred_check
    %p28 = pneg %p27
  $region23: #{audio_encoder_forward.27} parent=0 // pred_check_branch
    %30 = sbr.rel (%p28) target = $region25
  $region24: #{audio_encoder_forward.27} parent=0 // pred_region
    %v31 = vld [vmem:[%s0] sm:$0xf]
    %v32 = vld [vmem:[%s0 + $0x4] sm:$0xf]
    %v33 = vld [vmem:[%s0 + $0x8] sm:$0xf]
    %v34 = vld [vmem:[%s0 + $0xc] sm:$0xf]
    %v35 = vunpack.c.l.bf16 %v31
    %v36 = vunpack.c.l.bf16 %v32
    %v37 = vunpack.c.l.bf16 %v33
    %v38 = vunpack.c.l.bf16 %v34
    %v39 = vmul.f32 %v35, %v35
    %v40 = vmul.f32 %v36, %v36
    %v41 = vmul.f32 %v37, %v37
    %v42 = vmul.f32 %v38, %v38
    %vm43 = vcmask 261120
    %v44 = vsel %vm43, %v39, 0.0
    %45 = vadd.xlane.f32.xlu0 %v44
    %v46 = vpop.xlane.xlu0 %45
    %v47 = vsel %vm43, %v40, 0.0
    %48 = vadd.xlane.f32.xlu0 %v47
    %v49 = vpop.xlane.xlu0 %48
    %v50 = vsel %vm43, %v41, 0.0
    %51 = vadd.xlane.f32.xlu0 %v50
    %v52 = vpop.xlane.xlu0 %51
    %v53 = vsel %vm43, %v42, 0.0
    %54 = vadd.xlane.f32.xlu0 %v53
    %v55 = vpop.xlane.xlu0 %54
    %v56 = vrcp.pop 32.0
    %v57 = vmul.f32 %v46, %v56
    %v58 = vmul.f32 %v49, %v56
    %v59 = vmul.f32 %v52, %v56
    %v60 = vmul.f32 %v55, %v56
    %v61 = vadd.f32 %v57, 1e-08
    %v62 = vadd.f32 %v58, 1e-08
    %v63 = vadd.f32 %v59, 1e-08
    %v64 = vadd.f32 %v60, 1e-08
    %v65 = vrsqrt.pop %v61
    %v66 = vrsqrt.pop %v62
    %v67 = vrsqrt.pop %v63
    %v68 = vrsqrt.pop %v64
    %v69 = vmul.f32 %v35, %v65
    %v70 = vmul.f32 %v36, %v66
    %v71 = vmul.f32 %v37, %v67
    %v72 = vmul.f32 %v38, %v68
    %v73 = vld [vmem:[%s1] sm:$0x1]
    %v75 = vlaneseq
    %v76 = vshrl.u32 %v75, 7
    %v77 = vsub.s32 0, %v76
    %v78 = vrot.slane %v73, %v77
    %v80 = vmul.f32 %v69, %v78
    %v81 = vmul.f32 %v70, %v78
    %v82 = vmul.f32 %v71, %v78
    %v83 = vmul.f32 %v72, %v78
    %v84 = vpack.c.bf16 %v81, %v80
    %v85 = vpack.c.bf16 %v83, %v82
    %86 = vst.msk [vmem:[#allocation3] sm:$0xff] %vm43, %v84
    %87 = vst.msk [vmem:[#allocation3 + $0x8] sm:$0xff] %vm43, %v85
  $region25: #{audio_encoder_forward.27} parent=0 // pred_fallthru
    _
  %v88 = vld [vmem:[#allocation3] sm:$0xff]
  %v89 = vld [vmem:[#allocation3 + $0x8] sm:$0xff]
  %v90 = vld [vmem:[#allocation2] sm:$0xff]
  %v91 = vld [vmem:[#allocation2 + $0x8] sm:$0xff]
  %v92 = vld [vmem:[#allocation2 + $0x10] sm:$0xff]
  %v93 = vld [vmem:[#allocation2 + $0x18] sm:$0xff]
  %v94 = vld [vmem:[%s2] sm:$0xf]
  %v95 = vld [vmem:[%s2 + $0x4] sm:$0xf]
  %v96 = vld [vmem:[%s2 + $0x8] sm:$0xf]
  %v97 = vld [vmem:[%s2 + $0xc] sm:$0xf]
  %v102 = vunpack.c.l.b16 %v94
  %v103 = vunpack.c.l.b16 %v95
  %v104 = vunpack.c.l.b16 %v96
  %v105 = vunpack.c.l.b16 %v97
  %v106 = vpack.c.b16 %v103, %v102
  %v107 = vpack.c.b16 %v105, %v104
  %vm110 = vcmask 261120
  %v112 = vsel %vm110, %v88, 0
  %v115 = vsel %vm110, %v89, 0
  %117 = vmatprep.subr.bf16.mxu0 0
  %118 = vmatpush1.bf16.msra.mxu0 %v106
  %119 = vmatprep.subr.bf16.mxu0 0
  %120 = vmatpush1.bf16.msra.mxu0 %v107
  %121 = vmatprep.subr.bf16.mxu0 0
  %122 = vmatpush1.bf16.msra.mxu0 0
  %123 = vmatprep.subr.bf16.mxu0 0
  %124 = vmatpush1.bf16.msra.mxu0 0
  %125 = vmatprep.subr.bf16.mxu0 0
  %126 = vmatpush1.bf16.msra.mxu0 0
  %127 = vmatprep.subr.bf16.mxu0 0
  %128 = vmatpush1.bf16.msra.mxu0 0
  %129 = vmatprep.subr.bf16.mxu0 0
  %130 = vmatpush1.bf16.msra.mxu0 0
  %131 = vmatprep.subr.bf16.mxu0 0
  %132 = vmatpush1.bf16.msra.mxu0 0
  %133 = vmatprep.subr.bf16.mxu0 0
  %134 = vmatpush1.bf16.msra.mxu0 0
  %135 = vmatprep.subr.bf16.mxu0 0
  %136 = vmatpush1.bf16.msra.mxu0 0
  %137 = vmatprep.subr.bf16.mxu0 0
  %138 = vmatpush1.bf16.msra.mxu0 0
  %139 = vmatprep.subr.bf16.mxu0 0
  %140 = vmatpush1.bf16.msra.mxu0 0
  %141 = vmatprep.subr.bf16.mxu0 0
  %142 = vmatpush1.bf16.msra.mxu0 0
  %143 = vmatprep.subr.bf16.mxu0 0
  %144 = vmatpush1.bf16.msra.mxu0 0
  %145 = vmatprep.subr.bf16.mxu0 0
  %146 = vmatpush1.bf16.msra.mxu0 0
  %147 = vmatprep.subr.bf16.mxu0 0
  %148 = vmatpush1.bf16.msra.mxu0 0
  %149 = vmatprep.mubr.bf16.mxu0 0
  %150 = vmatmul.mubr.bf16.gmra.mrb[0].mxu0 %v112
  %v151 = vpop.f32.mrb[0].mxu0
  %v152 = vadd.f32 0.0, %v151
  %v153 = vpop.f32.mrb[0].mxu0
  %v154 = vpop.f32.mrb[0].mxu0
  %v155 = vadd.f32 0.0, %v154
  %v156 = vpop.f32.mrb[0].mxu0
  %157 = vmatprep.mubr.bf16.mxu0 0
  %158 = vmatmul.mubr.bf16.gmra.mrb[0].mxu0 %v115
  %v159 = vpop.f32.mrb[0].mxu0
  %v160 = vadd.f32 0.0, %v159
  %v161 = vpop.f32.mrb[0].mxu0
  %v162 = vpop.f32.mrb[0].mxu0
  %v163 = vadd.f32 0.0, %v162
  %v164 = vpop.f32.mrb[0].mxu0
  %165 = vdwg.mxu0
  %v166 = vadd.f32 %v90, %v152
  %v167 = vadd.f32 %v91, %v155
  %v168 = vadd.f32 %v92, %v160
  %v169 = vadd.f32 %v93, %v163
  %vm170 = vcmask 785408
  %171 = vst.msk [vmem:[#allocation2] sm:$0xff] %vm170, %v166
  %172 = vst.msk [vmem:[#allocation2 + $0x8] sm:$0xff] %vm170, %v167
  %173 = vst.msk [vmem:[#allocation2 + $0x10] sm:$0xff] %vm170, %v168
  %174 = vst.msk [vmem:[#allocation2 + $0x18] sm:$0xff] %vm170, %v169
  // Predicated region
  $region26: #{audio_encoder_forward.27} parent=0 // pred_check
    %p175 = pneg %p18
  $region27: #{audio_encoder_forward.27} parent=0 // pred_check_branch
    %177 = sbr.rel (%p175) target = $region29
  $region28: #{audio_encoder_forward.27} parent=0 // pred_region
    %v178 = vld [vmem:[#allocation2] sm:$0xff]
    %v179 = vld [vmem:[#allocation2 + $0x8] sm:$0xff]
    %v180 = vld [vmem:[#allocation2 + $0x10] sm:$0xff]
    %v181 = vld [vmem:[#allocation2 + $0x18] sm:$0xff]
    %v182 = vld [vmem:[%s3] sm:$0x1]
    %v183 = vunpack.c.l.bf16 %v182
    %v184 = vlaneseq
    %v185 = vshrl.u32 %v184, 7
    %v186 = vsub.s32 0, %v185
    %v187 = vrot.slane %v183, %v186
    %v188 = vadd.f32 %v178, %v187
    %v189 = vadd.f32 %v179, %v187
    %v190 = vadd.f32 %v180, %v187
    %v191 = vadd.f32 %v181, %v187
    %v192 = vpack.c.bf16 %v189, %v188
    %v193 = vpack.c.bf16 %v191, %v190
    %v196 = vunpack.c.l.b16 %v192
    %v197 = vunpack.c.h.b16 %v192
    %v198 = vunpack.c.l.b16 %v193
    %v199 = vunpack.c.h.b16 %v193
    %v200 = vpack.c.b16 %v196, %v196
    %v201 = vpack.c.b16 %v197, %v197
    %v202 = vpack.c.b16 %v198, %v198
    %v203 = vpack.c.b16 %v199, %v199
    %vm208 = vcmask 781312
    %209 = vst.msk [vmem:[%s4] sm:$0xf] %vm208, %v200
    %210 = vst.msk [vmem:[%s4 + $0x4] sm:$0xf] %vm208, %v201
    %211 = vst.msk [vmem:[%s4 + $0x8] sm:$0xf] %vm208, %v202
    %212 = vst.msk [vmem:[%s4 + $0xc] sm:$0xf] %vm208, %v203
  $region29: #{audio_encoder_forward.27} parent=0 // pred_fallthru
    _
  // Predicated region
  $region30: #{audio_encoder_forward.27} parent=0 // pred_check
    _
  $region31: #{audio_encoder_forward.27} parent=0 // pred_check_branch
    %214 = sbr.rel (0) target = $region33
  $region32: #{audio_encoder_forward.27} parent=0 // pred_region
    _
  $region33: #{audio_encoder_forward.27} parent=0 // pred_fallthru
    _
  // Predicated region
  $region34: #{audio_encoder_forward.27} parent=0 // pred_check
    _
  $region35: #{audio_encoder_forward.27} parent=0 // pred_check_branch
    %216 = sbr.rel (0) target = $region37
  $region36: #{audio_encoder_forward.27} parent=0 // pred_region
    _
  $region37: #{audio_encoder_forward.27} parent=0 // pred_fallthru
    _

// kernel: audio_encoder_forward.30
$region0: #{audio_encoder_forward.30}
  #allocation0 [shape = 'u32[]', space=smem, size = 0x4, offset = 0x4, fixed_abs, tag = 'smem constant byte address 0x4 - core index']
  #allocation1 [shape = 'u32[144,128]{1,0:T(1,128)}', space=vmem, size = 0x12000, scoped, tag = 'internal scratch']
  #allocation2 [shape = 'f32[32,128]{1,0:T(8,128)}', space=vmem, size = 0x4000, scoped, tag = 'scratch operand']
  #allocation3 [shape = 'bf16[32,32]{1,0:T(16,128)(2,1)}', space=vmem, size = 0x2000, scoped, tag = 'scratch operand']
  %s0 = inlined_call_operand.vmem [shape: bf16[32,32], index: 0, kind: input, shape index: {}]
  %s1 = inlined_call_operand.vmem [shape: f32[1,32], index: 1, kind: input, shape index: {}]
  %s2 = inlined_call_operand.vmem [shape: bf16[32,128], index: 2, kind: input, shape index: {}]
  %s3 = inlined_call_operand.vmem [shape: bf16[1,128], index: 3, kind: input, shape index: {}]
  %s4 = inlined_call_operand.vmem [shape: bf16[32,128], index: 4, kind: output, shape index: {}]
  %s5 = sld [smem:[#allocation0]]
  $region38: #{audio_encoder_forward.30} parent=0
    _
  %s7 = ssub.s32 1, %s5
  %s8 = scalar_select 0, %s7, %s5
  // Predicated region
  $region2: #{audio_encoder_forward.30} parent=0 // pred_check
    _
  $region3: #{audio_encoder_forward.30} parent=0 // pred_check_branch
    %10 = sbr.rel (0) target = $region5
  $region4: #{audio_encoder_forward.30} parent=0 // pred_region
    _
  $region5: #{audio_encoder_forward.30} parent=0 // pred_fallthru
    _
  // Predicated region
  $region6: #{audio_encoder_forward.30} parent=0 // pred_check
    _
  $region7: #{audio_encoder_forward.30} parent=0 // pred_check_branch
    %12 = sbr.rel (0) target = $region9
  $region8: #{audio_encoder_forward.30} parent=0 // pred_region
    _
  $region9: #{audio_encoder_forward.30} parent=0 // pred_fallthru
    _
  // Predicated region
  $region10: #{audio_encoder_forward.30} parent=0 // pred_check
    _
  $region11: #{audio_encoder_forward.30} parent=0 // pred_check_branch
    %14 = sbr.rel (0) target = $region13
  $region12: #{audio_encoder_forward.30} parent=0 // pred_region
    _
  $region13: #{audio_encoder_forward.30} parent=0 // pred_fallthru
    _
  // Predicated region
  $region14: #{audio_encoder_forward.30} parent=0 // pred_check
    _
  $region15: #{audio_encoder_forward.30} parent=0 // pred_check_branch
    %16 = sbr.rel (0) target = $region17
  $region16: #{audio_encoder_forward.30} parent=0 // pred_region
    _
  $region17: #{audio_encoder_forward.30} parent=0 // pred_fallthru
    _
  %p18 = scmp.eq.s32.totalorder 0, 0
  // Predicated region
  $region18: #{audio_encoder_forward.30} parent=0 // pred_check
    %p19 = pneg %p18
  $region19: #{audio_encoder_forward.30} parent=0 // pred_check_branch
    %21 = sbr.rel (%p19) target = $region21
  $region20: #{audio_encoder_forward.30} parent=0 // pred_region
    %22 = vst [vmem:[#allocation2] sm:$0xff] 0.0
    %23 = vst [vmem:[#allocation2 + $0x8] sm:$0xff] 0.0
    %24 = vst [vmem:[#allocation2 + $0x10] sm:$0xff] 0.0
    %25 = vst [vmem:[#allocation2 + $0x18] sm:$0xff] 0.0
  $region21: #{audio_encoder_forward.30} parent=0 // pred_fallthru
    _
  %p26 = scmp.eq.s32.totalorder 0, 0
  // Predicated region
  $region22: #{audio_encoder_forward.30} parent=0 // pred_check
    %p27 = pneg %p26
  $region23: #{audio_encoder_forward.30} parent=0 // pred_check_branch
    %29 = sbr.rel (%p27) target = $region25
  $region24: #{audio_encoder_forward.30} parent=0 // pred_region
    %v30 = vld [vmem:[%s0] sm:$0xf]
    %v31 = vld [vmem:[%s0 + $0x4] sm:$0xf]
    %v32 = vld [vmem:[%s0 + $0x8] sm:$0xf]
    %v33 = vld [vmem:[%s0 + $0xc] sm:$0xf]
    %v34 = vunpack.c.l.bf16 %v30
    %v35 = vunpack.c.l.bf16 %v31
    %v36 = vunpack.c.l.bf16 %v32
    %v37 = vunpack.c.l.bf16 %v33
    %v38 = vmul.f32 %v34, %v34
    %v39 = vmul.f32 %v35, %v35
    %v40 = vmul.f32 %v36, %v36
    %v41 = vmul.f32 %v37, %v37
    %vm42 = vcmask 261120
    %v43 = vsel %vm42, %v38, 0.0
    %44 = vadd.xlane.f32.xlu0 %v43
    %v45 = vpop.xlane.xlu0 %44
    %v46 = vsel %vm42, %v39, 0.0
    %47 = vadd.xlane.f32.xlu0 %v46
    %v48 = vpop.xlane.xlu0 %47
    %v49 = vsel %vm42, %v40, 0.0
    %50 = vadd.xlane.f32.xlu0 %v49
    %v51 = vpop.xlane.xlu0 %50
    %v52 = vsel %vm42, %v41, 0.0
    %53 = vadd.xlane.f32.xlu0 %v52
    %v54 = vpop.xlane.xlu0 %53
    %v55 = vrcp.pop 32.0
    %v56 = vmul.f32 %v45, %v55
    %v57 = vmul.f32 %v48, %v55
    %v58 = vmul.f32 %v51, %v55
    %v59 = vmul.f32 %v54, %v55
    %v60 = vadd.f32 %v56, 1e-08
    %v61 = vadd.f32 %v57, 1e-08
    %v62 = vadd.f32 %v58, 1e-08
    %v63 = vadd.f32 %v59, 1e-08
    %v64 = vrsqrt.pop %v60
    %v65 = vrsqrt.pop %v61
    %v66 = vrsqrt.pop %v62
    %v67 = vrsqrt.pop %v63
    %v68 = vmul.f32 %v34, %v64
    %v69 = vmul.f32 %v35, %v65
    %v70 = vmul.f32 %v36, %v66
    %v71 = vmul.f32 %v37, %v67
    %v72 = vld [vmem:[%s1] sm:$0x1]
    %v74 = vlaneseq
    %v75 = vshrl.u32 %v74, 7
    %v76 = vsub.s32 0, %v75
    %v77 = vrot.slane %v72, %v76
    %v79 = vmul.f32 %v68, %v77
    %v80 = vmul.f32 %v69, %v77
    %v81 = vmul.f32 %v70, %v77
    %v82 = vmul.f32 %v71, %v77
    %v83 = vpack.c.bf16 %v80, %v79
    %v84 = vpack.c.bf16 %v82, %v81
    %85 = vst.msk [vmem:[#allocation3] sm:$0xff] %vm42, %v83
    %86 = vst.msk [vmem:[#allocation3 + $0x8] sm:$0xff] %vm42, %v84
  $region25: #{audio_encoder_forward.30} parent=0 // pred_fallthru
    _
  %v87 = vld [vmem:[#allocation3] sm:$0xff]
  %v88 = vld [vmem:[#allocation3 + $0x8] sm:$0xff]
  %v89 = vld [vmem:[#allocation2] sm:$0xff]
  %v90 = vld [vmem:[#allocation2 + $0x8] sm:$0xff]
  %v91 = vld [vmem:[#allocation2 + $0x10] sm:$0xff]
  %v92 = vld [vmem:[#allocation2 + $0x18] sm:$0xff]
  %v93 = vld [vmem:[%s2] sm:$0xf]
  %v94 = vld [vmem:[%s2 + $0x4] sm:$0xf]
  %v95 = vld [vmem:[%s2 + $0x8] sm:$0xf]
  %v96 = vld [vmem:[%s2 + $0xc] sm:$0xf]
  %v101 = vunpack.c.l.b16 %v93
  %v102 = vunpack.c.l.b16 %v94
  %v103 = vunpack.c.l.b16 %v95
  %v104 = vunpack.c.l.b16 %v96
  %v105 = vpack.c.b16 %v102, %v101
  %v106 = vpack.c.b16 %v104, %v103
  %vm109 = vcmask 261120
  %v111 = vsel %vm109, %v87, 0
  %v114 = vsel %vm109, %v88, 0
  %116 = vmatprep.subr.bf16.mxu0 0
  %117 = vmatpush1.bf16.msra.mxu0 %v105
  %118 = vmatprep.subr.bf16.mxu0 0
  %119 = vmatpush1.bf16.msra.mxu0 %v106
  %120 = vmatprep.subr.bf16.mxu0 0
  %121 = vmatpush1.bf16.msra.mxu0 0
  %122 = vmatprep.subr.bf16.mxu0 0
  %123 = vmatpush1.bf16.msra.mxu0 0
  %124 = vmatprep.subr.bf16.mxu0 0
  %125 = vmatpush1.bf16.msra.mxu0 0
  %126 = vmatprep.subr.bf16.mxu0 0
  %127 = vmatpush1.bf16.msra.mxu0 0
  %128 = vmatprep.subr.bf16.mxu0 0
  %129 = vmatpush1.bf16.msra.mxu0 0
  %130 = vmatprep.subr.bf16.mxu0 0
  %131 = vmatpush1.bf16.msra.mxu0 0
  %132 = vmatprep.subr.bf16.mxu0 0
  %133 = vmatpush1.bf16.msra.mxu0 0
  %134 = vmatprep.subr.bf16.mxu0 0
  %135 = vmatpush1.bf16.msra.mxu0 0
  %136 = vmatprep.subr.bf16.mxu0 0
  %137 = vmatpush1.bf16.msra.mxu0 0
  %138 = vmatprep.subr.bf16.mxu0 0
  %139 = vmatpush1.bf16.msra.mxu0 0
  %140 = vmatprep.subr.bf16.mxu0 0
  %141 = vmatpush1.bf16.msra.mxu0 0
  %142 = vmatprep.subr.bf16.mxu0 0
  %143 = vmatpush1.bf16.msra.mxu0 0
  %144 = vmatprep.subr.bf16.mxu0 0
  %145 = vmatpush1.bf16.msra.mxu0 0
  %146 = vmatprep.subr.bf16.mxu0 0
  %147 = vmatpush1.bf16.msra.mxu0 0
  %148 = vmatprep.mubr.bf16.mxu0 0
  %149 = vmatmul.mubr.bf16.gmra.mrb[0].mxu0 %v111
  %v150 = vpop.f32.mrb[0].mxu0
  %v151 = vadd.f32 0.0, %v150
  %v152 = vpop.f32.mrb[0].mxu0
  %v153 = vpop.f32.mrb[0].mxu0
  %v154 = vadd.f32 0.0, %v153
  %v155 = vpop.f32.mrb[0].mxu0
  %156 = vmatprep.mubr.bf16.mxu0 0
  %157 = vmatmul.mubr.bf16.gmra.mrb[0].mxu0 %v114
  %v158 = vpop.f32.mrb[0].mxu0
  %v159 = vadd.f32 0.0, %v158
  %v160 = vpop.f32.mrb[0].mxu0
  %v161 = vpop.f32.mrb[0].mxu0
  %v162 = vadd.f32 0.0, %v161
  %v163 = vpop.f32.mrb[0].mxu0
  %164 = vdwg.mxu0
  %v165 = vadd.f32 %v89, %v151
  %v166 = vadd.f32 %v90, %v154
  %v167 = vadd.f32 %v91, %v159
  %v168 = vadd.f32 %v92, %v162
  %169 = vst [vmem:[#allocation2] sm:$0xff] %v165
  %170 = vst [vmem:[#allocation2 + $0x8] sm:$0xff] %v166
  %171 = vst [vmem:[#allocation2 + $0x10] sm:$0xff] %v167
  %172 = vst [vmem:[#allocation2 + $0x18] sm:$0xff] %v168
  // Predicated region
  $region26: #{audio_encoder_forward.30} parent=0 // pred_check
    %p173 = pneg %p18
  $region27: #{audio_encoder_forward.30} parent=0 // pred_check_branch
    %175 = sbr.rel (%p173) target = $region29
  $region28: #{audio_encoder_forward.30} parent=0 // pred_region
    %v176 = vld [vmem:[#allocation2] sm:$0xff]
    %v177 = vld [vmem:[#allocation2 + $0x8] sm:$0xff]
    %v178 = vld [vmem:[#allocation2 + $0x10] sm:$0xff]
    %v179 = vld [vmem:[#allocation2 + $0x18] sm:$0xff]
    %v180 = vld [vmem:[%s3] sm:$0x1]
    %v181 = vunpack.c.l.bf16 %v180
    %v182 = vlaneseq
    %v183 = vshrl.u32 %v182, 7
    %v184 = vsub.s32 0, %v183
    %v185 = vrot.slane %v181, %v184
    %v186 = vadd.f32 %v176, %v185
    %v187 = vadd.f32 %v177, %v185
    %v188 = vadd.f32 %v178, %v185
    %v189 = vadd.f32 %v179, %v185
    %v190 = vmax.f32 %v186, 0.0
    %v191 = vmax.f32 %v187, 0.0
    %v192 = vmax.f32 %v188, 0.0
    %v193 = vmax.f32 %v189, 0.0
    %v194 = vpack.c.bf16 %v191, %v190
    %v195 = vpack.c.bf16 %v193, %v192
    %v198 = vunpack.c.l.b16 %v194
    %v199 = vunpack.c.h.b16 %v194
    %v200 = vunpack.c.l.b16 %v195
    %v201 = vunpack.c.h.b16 %v195
    %v202 = vpack.c.b16 %v198, %v198
    %v203 = vpack.c.b16 %v199, %v199
    %v204 = vpack.c.b16 %v200, %v200
    %v205 = vpack.c.b16 %v201, %v201
    %210 = vst [vmem:[%s4] sm:$0xf] %v202
    %211 = vst [vmem:[%s4 + $0x4] sm:$0xf] %v203
    %212 = vst [vmem:[%s4 + $0x8] sm:$0xf] %v204
    %213 = vst [vmem:[%s4 + $0xc] sm:$0xf] %v205
  $region29: #{audio_encoder_forward.30} parent=0 // pred_fallthru
    _
  // Predicated region
  $region30: #{audio_encoder_forward.30} parent=0 // pred_check
    _
  $region31: #{audio_encoder_forward.30} parent=0 // pred_check_branch
    %215 = sbr.rel (0) target = $region33
  $region32: #{audio_encoder_forward.30} parent=0 // pred_region
    _
  $region33: #{audio_encoder_forward.30} parent=0 // pred_fallthru
    _
  // Predicated region
  $region34: #{audio_encoder_forward.30} parent=0 // pred_check
    _
  $region35: #{audio_encoder_forward.30} parent=0 // pred_check_branch
    %217 = sbr.rel (0) target = $region37
  $region36: #{audio_encoder_forward.30} parent=0 // pred_region
    _
  $region37: #{audio_encoder_forward.30} parent=0 // pred_fallthru
    _

// kernel: audio_encoder_forward.29
$region0: #{audio_encoder_forward.29}
  #allocation0 [shape = 'u32[]', space=smem, size = 0x4, offset = 0x4, fixed_abs, tag = 'smem constant byte address 0x4 - core index']
  #allocation1 [shape = 'u32[144,128]{1,0:T(1,128)}', space=vmem, size = 0x12000, scoped, tag = 'internal scratch']
  #allocation2 [shape = 'f32[32,32]{1,0:T(8,128)}', space=vmem, size = 0x4000, scoped, tag = 'scratch operand']
  %s0 = inlined_call_operand.vmem [shape: bf16[32,32], index: 0, kind: input, shape index: {}]
  %s1 = inlined_call_operand.vmem [shape: bf16[32,32], index: 1, kind: input, shape index: {}]
  %s2 = inlined_call_operand.vmem [shape: bf16[1,32], index: 2, kind: input, shape index: {}]
  %s3 = inlined_call_operand.vmem [shape: bf16[32,32], index: 3, kind: input, shape index: {}]
  %s4 = inlined_call_operand.vmem [shape: bf16[32,32], index: 4, kind: output, shape index: {}]
  %s5 = sld [smem:[#allocation0]]
  $region34: #{audio_encoder_forward.29} parent=0
    _
  %s7 = ssub.s32 1, %s5
  %s8 = scalar_select 0, %s7, %s5
  // Predicated region
  $region2: #{audio_encoder_forward.29} parent=0 // pred_check
    _
  $region3: #{audio_encoder_forward.29} parent=0 // pred_check_branch
    %10 = sbr.rel (0) target = $region5
  $region4: #{audio_encoder_forward.29} parent=0 // pred_region
    _
  $region5: #{audio_encoder_forward.29} parent=0 // pred_fallthru
    _
  // Predicated region
  $region6: #{audio_encoder_forward.29} parent=0 // pred_check
    _
  $region7: #{audio_encoder_forward.29} parent=0 // pred_check_branch
    %12 = sbr.rel (0) target = $region9
  $region8: #{audio_encoder_forward.29} parent=0 // pred_region
    _
  $region9: #{audio_encoder_forward.29} parent=0 // pred_fallthru
    _
  // Predicated region
  $region10: #{audio_encoder_forward.29} parent=0 // pred_check
    _
  $region11: #{audio_encoder_forward.29} parent=0 // pred_check_branch
    %14 = sbr.rel (0) target = $region13
  $region12: #{audio_encoder_forward.29} parent=0 // pred_region
    _
  $region13: #{audio_encoder_forward.29} parent=0 // pred_fallthru
    _
  // Predicated region
  $region14: #{audio_encoder_forward.29} parent=0 // pred_check
    _
  $region15: #{audio_encoder_forward.29} parent=0 // pred_check_branch
    %16 = sbr.rel (0) target = $region17
  $region16: #{audio_encoder_forward.29} parent=0 // pred_region
    _
  $region17: #{audio_encoder_forward.29} parent=0 // pred_fallthru
    _
  %p18 = scmp.eq.s32.totalorder 0, 0
  // Predicated region
  $region18: #{audio_encoder_forward.29} parent=0 // pred_check
    %p19 = pneg %p18
  $region19: #{audio_encoder_forward.29} parent=0 // pred_check_branch
    %21 = sbr.rel (%p19) target = $region21
  $region20: #{audio_encoder_forward.29} parent=0 // pred_region
    %vm22 = vcmask 261120
    %23 = vst.msk [vmem:[#allocation2] sm:$0xff] %vm22, 0.0
    %24 = vst.msk [vmem:[#allocation2 + $0x8] sm:$0xff] %vm22, 0.0
    %25 = vst.msk [vmem:[#allocation2 + $0x10] sm:$0xff] %vm22, 0.0
    %26 = vst.msk [vmem:[#allocation2 + $0x18] sm:$0xff] %vm22, 0.0
  $region21: #{audio_encoder_forward.29} parent=0 // pred_fallthru
    _
  %v27 = vld [vmem:[%s0] sm:$0xf]
  %v28 = vld [vmem:[%s0 + $0x4] sm:$0xf]
  %v29 = vld [vmem:[%s0 + $0x8] sm:$0xf]
  %v30 = vld [vmem:[%s0 + $0xc] sm:$0xf]
  %v31 = vld [vmem:[#allocation2] sm:$0xff]
  %v32 = vld [vmem:[#allocation2 + $0x8] sm:$0xff]
  %v33 = vld [vmem:[#allocation2 + $0x10] sm:$0xff]
  %v34 = vld [vmem:[#allocation2 + $0x18] sm:$0xff]
  %v35 = vld [vmem:[%s1] sm:$0xf]
  %v36 = vld [vmem:[%s1 + $0x4] sm:$0xf]
  %v37 = vld [vmem:[%s1 + $0x8] sm:$0xf]
  %v38 = vld [vmem:[%s1 + $0xc] sm:$0xf]
  %v43 = vunpack.c.l.b16 %v27
  %v44 = vunpack.c.l.b16 %v28
  %v45 = vunpack.c.l.b16 %v29
  %v46 = vunpack.c.l.b16 %v30
  %v47 = vpack.c.b16 %v44, %v43
  %v48 = vpack.c.b16 %v46, %v45
  %v53 = vunpack.c.l.b16 %v35
  %v54 = vunpack.c.l.b16 %v36
  %v55 = vunpack.c.l.b16 %v37
  %v56 = vunpack.c.l.b16 %v38
  %v57 = vpack.c.b16 %v54, %v53
  %v58 = vpack.c.b16 %v56, %v55
  %vm61 = vcmask 261120
  %v63 = vsel %vm61, %v47, 0
  %v66 = vsel %vm61, %v48, 0
  %68 = vmatprep.subr.bf16.mxu0 0
  %69 = vmatpush1.bf16.msra.mxu0 %v57
  %70 = vmatprep.subr.bf16.mxu0 0
  %71 = vmatpush1.bf16.msra.mxu0 %v58
  %72 = vmatprep.subr.bf16.mxu0 0
  %73 = vmatpush1.bf16.msra.mxu0 0
  %74 = vmatprep.subr.bf16.mxu0 0
  %75 = vmatpush1.bf16.msra.mxu0 0
  %76 = vmatprep.subr.bf16.mxu0 0
  %77 = vmatpush1.bf16.msra.mxu0 0
  %78 = vmatprep.subr.bf16.mxu0 0
  %79 = vmatpush1.bf16.msra.mxu0 0
  %80 = vmatprep.subr.bf16.mxu0 0
  %81 = vmatpush1.bf16.msra.mxu0 0
  %82 = vmatprep.subr.bf16.mxu0 0
  %83 = vmatpush1.bf16.msra.mxu0 0
  %84 = vmatprep.subr.bf16.mxu0 0
  %85 = vmatpush1.bf16.msra.mxu0 0
  %86 = vmatprep.subr.bf16.mxu0 0
  %87 = vmatpush1.bf16.msra.mxu0 0
  %88 = vmatprep.subr.bf16.mxu0 0
  %89 = vmatpush1.bf16.msra.mxu0 0
  %90 = vmatprep.subr.bf16.mxu0 0
  %91 = vmatpush1.bf16.msra.mxu0 0
  %92 = vmatprep.subr.bf16.mxu0 0
  %93 = vmatpush1.bf16.msra.mxu0 0
  %94 = vmatprep.subr.bf16.mxu0 0
  %95 = vmatpush1.bf16.msra.mxu0 0
  %96 = vmatprep.subr.bf16.mxu0 0
  %97 = vmatpush1.bf16.msra.mxu0 0
  %98 = vmatprep.subr.bf16.mxu0 0
  %99 = vmatpush1.bf16.msra.mxu0 0
  %100 = vmatprep.mubr.bf16.mxu0 0
  %101 = vmatmul.mubr.bf16.gmra.mrb[0].mxu0 %v63
  %v102 = vpop.f32.mrb[0].mxu0
  %v103 = vadd.f32 0.0, %v102
  %v104 = vpop.f32.mrb[0].mxu0
  %v105 = vpop.f32.mrb[0].mxu0
  %v106 = vadd.f32 0.0, %v105
  %v107 = vpop.f32.mrb[0].mxu0
  %108 = vmatprep.mubr.bf16.mxu0 0
  %109 = vmatmul.mubr.bf16.gmra.mrb[0].mxu0 %v66
  %v110 = vpop.f32.mrb[0].mxu0
  %v111 = vadd.f32 0.0, %v110
  %v112 = vpop.f32.mrb[0].mxu0
  %v113 = vpop.f32.mrb[0].mxu0
  %v114 = vadd.f32 0.0, %v113
  %v115 = vpop.f32.mrb[0].mxu0
  %116 = vdwg.mxu0
  %v117 = vadd.f32 %v31, %v103
  %v118 = vadd.f32 %v32, %v106
  %v119 = vadd.f32 %v33, %v111
  %v120 = vadd.f32 %v34, %v114
  %121 = vst.msk [vmem:[#allocation2] sm:$0xff] %vm61, %v117
  %122 = vst.msk [vmem:[#allocation2 + $0x8] sm:$0xff] %vm61, %v118
  %123 = vst.msk [vmem:[#allocation2 + $0x10] sm:$0xff] %vm61, %v119
  %124 = vst.msk [vmem:[#allocation2 + $0x18] sm:$0xff] %vm61, %v120
  // Predicated region
  $region22: #{audio_encoder_forward.29} parent=0 // pred_check
    %p125 = pneg %p18
  $region23: #{audio_encoder_forward.29} parent=0 // pred_check_branch
    %127 = sbr.rel (%p125) target = $region25
  $region24: #{audio_encoder_forward.29} parent=0 // pred_region
    %v128 = vld [vmem:[#allocation2] sm:$0xff]
    %v129 = vld [vmem:[#allocation2 + $0x8] sm:$0xff]
    %v130 = vld [vmem:[#allocation2 + $0x10] sm:$0xff]
    %v131 = vld [vmem:[#allocation2 + $0x18] sm:$0xff]
    %v132 = vld [vmem:[%s2] sm:$0x1]
    %v133 = vunpack.c.l.bf16 %v132
    %v134 = vlaneseq
    %v135 = vshrl.u32 %v134, 7
    %v136 = vsub.s32 0, %v135
    %v137 = vrot.slane %v133, %v136
    %v138 = vadd.f32 %v128, %v137
    %v139 = vadd.f32 %v129, %v137
    %v140 = vadd.f32 %v130, %v137
    %v141 = vadd.f32 %v131, %v137
    %v142 = vld [vmem:[%s3] sm:$0xf]
    %v143 = vld [vmem:[%s3 + $0x4] sm:$0xf]
    %v144 = vld [vmem:[%s3 + $0x8] sm:$0xf]
    %v145 = vld [vmem:[%s3 + $0xc] sm:$0xf]
    %v146 = vunpack.c.l.bf16 %v142
    %v147 = vunpack.c.l.bf16 %v143
    %v148 = vunpack.c.l.bf16 %v144
    %v149 = vunpack.c.l.bf16 %v145
    %v150 = vadd.f32 %v138, %v146
    %v151 = vadd.f32 %v139, %v147
    %v152 = vadd.f32 %v140, %v148
    %v153 = vadd.f32 %v141, %v149
    %v154 = vpack.c.bf16 %v151, %v150
    %v155 = vpack.c.bf16 %v153, %v152
    %v158 = vunpack.c.l.b16 %v154
    %v159 = vunpack.c.h.b16 %v154
    %v160 = vunpack.c.l.b16 %v155
    %v161 = vunpack.c.h.b16 %v155
    %v162 = vpack.c.b16 %v158, %v158
    %v163 = vpack.c.b16 %v159, %v159
    %v164 = vpack.c.b16 %v160, %v160
    %v165 = vpack.c.b16 %v161, %v161
    %vm170 = vcmask 257024
    %171 = vst.msk [vmem:[%s4] sm:$0xf] %vm170, %v162
    %172 = vst.msk [vmem:[%s4 + $0x4] sm:$0xf] %vm170, %v163
    %173 = vst.msk [vmem:[%s4 + $0x8] sm:$0xf] %vm170, %v164
    %174 = vst.msk [vmem:[%s4 + $0xc] sm:$0xf] %vm170, %v165
  $region25: #{audio_encoder_forward.29} parent=0 // pred_fallthru
    _
  // Predicated region
  $region26: #{audio_encoder_forward.29} parent=0 // pred_check
    _
  $region27: #{audio_encoder_forward.29} parent=0 // pred_check_branch
    %176 = sbr.rel (0) target = $region29
  $region28: #{audio_encoder_forward.29} parent=0 // pred_region
    _
  $region29: #{audio_encoder_forward.29} parent=0 // pred_fallthru
    _
  // Predicated region
  $region30: #{audio_encoder_forward.29} parent=0 // pred_check
    _
  $region31: #{audio_encoder_forward.29} parent=0 // pred_check_branch
    %178 = sbr.rel (0) target = $region33
  $region32: #{audio_encoder_forward.29} parent=0 // pred_region
    _
  $region33: #{audio_encoder_forward.29} parent=0 // pred_fallthru
    _

// kernel: audio_encoder_forward.28
$region0: #{audio_encoder_forward.28}
  #allocation0 [shape = 'u32[]', space=smem, size = 0x4, offset = 0x4, fixed_abs, tag = 'smem constant byte address 0x4 - core index']
  #allocation1 [shape = 'u32[144,128]{1,0:T(1,128)}', space=vmem, size = 0x12000, scoped, tag = 'internal scratch']
  #allocation2 [shape = 'f32[4,16,8]{2,1,0:T(8,128)}', space=vmem, size = 0x8000, scoped, tag = 'scratch operand']
  #allocation3 [shape = 'f32[1,1]{1,0:T(1,128)S(6)}', space=smem, size = 0x200, scoped, tag = 'scoped memory for audio_encoder_forward.28']
  %s0 = inlined_call_operand.<no memory space> [shape: f32[1,1], index: 0, kind: input, shape index: {}]
  %s1 = inlined_call_operand.vmem [shape: f32[16,4], index: 1, kind: input, shape index: {}, may-alias: {1,3}]
  %s2 = inlined_call_operand.vmem [shape: f32[16,4], index: 2, kind: input, shape index: {}, may-alias: {2,4}]
  %s3 = inlined_call_operand.vmem [shape: f32[16,4], index: 3, kind: input, shape index: {}, may-alias: {1,3}]
  %s4 = inlined_call_operand.vmem [shape: f32[16,4], index: 4, kind: input, shape index: {}, may-alias: {2,4}]
  %s5 = inlined_call_operand.vmem [shape: bf16[2,4,16,8], index: 5, kind: input, shape index: {}]
  %s6 = inlined_call_operand.vmem [shape: bf16[2,4,16,8], index: 6, kind: input, shape index: {}]
  %s7 = inlined_call_operand.vmem [shape: bf16[2,4,16,8], index: 7, kind: input, shape index: {}]
  %s8 = inlined_call_operand.vmem [shape: bf16[2,16,32], index: 8, kind: output, shape index: {}]
  %s9 = sld [smem:[#allocation0]]
  $region69: #{audio_encoder_forward.28} parent=0
    _
  %s11 = ssub.s32 1, %s9
  %s12 = scalar_select 0, %s11, %s9
  %13 = sst [smem:[#allocation3]] %s0
  loop: start=0, step=1, limit=10
  $region2: #{audio_encoder_forward.28} parent=0 // loop_pre_header
    _
  $region3: #{audio_encoder_forward.28} parent=0 // loop_header
    %s15 = sphi 0, %s19
    %p16 = scmp.ge.s32.totalorder %s15, 10
    %s22 = sphi 0, %s41
    %s23 = sphi 0, %s37
    %s24 = sphi 0, %s33
    %s25 = sphi 0, %s22
    %s26 = sphi 0, %s23
    %s27 = sphi 0, %s24
    %s28 = sphi 0, %s25
    %s29 = sphi 0, %s26
    %s30 = sphi 0, %s27
    %s42 = sphi 0, %s42
    %s44 = sphi 0, %s42
    %s45 = sphi 0, %s44
    %s59 = sphi 0, %s45
    %s65 = sphi 0, %s67
    %s68 = sphi 0, %s65
    %s69 = sphi 0, %s68
    %s85 = sphi 0, %s69
    %s91 = sphi 0, %s93
    %s94 = sphi 0, %s91
    %s95 = sphi 0, %s94
    %s111 = sphi 0, %s95
    %s115 = sphi 0, %s115
    %s117 = sphi 0, %s115
    %s118 = sphi 0, %s117
    %s132 = sphi 0, %s118
    %s136 = sphi 0, %s136
    %s138 = sphi 0, %s136
    %s139 = sphi 0, %s138
    %s153 = sphi 0, %s139
    %s163 = sphi 0, %s165
    %s166 = sphi 0, %s163
    %s167 = sphi 0, %s166
    %s183 = sphi 0, %s167
    %s191 = sphi 0, %s193
    %s194 = sphi 0, %s191
    %s195 = sphi 0, %s194
    %s211 = sphi 0, %s195
    %s219 = sphi 0, %s221
    %s222 = sphi 0, %s219
    %s223 = sphi 0, %s222
    %s239 = sphi 0, %s223
    %s247 = sphi 0, %s249
    %s250 = sphi 0, %s247
    %s251 = sphi 0, %s250
    %s267 = sphi 0, %s251
  $region4: #{audio_encoder_forward.28} parent=0 // loop_header_branch
    %18 = sbr.rel (%p16) target = $region8
  $region5: #{audio_encoder_forward.28} parent=0 // loop_body
    %s20 = ssub.s32 %s15, 1
    %s21 = ssub.s32 %s15, 2
    %s31 = sadd.s32 1, %s24
    %p32 = scmp.ge.s32.totalorder %s31, 4
    %s33 = scalar_select %p32, 0, %s31
    %s34 = sadd.s32 1, %s23
    %s35 = scalar_select %p32, %s34, %s23
    %p36 = scmp.ge.s32.totalorder %s35, 1
    %s37 = scalar_select %p36, 0, %s35
    %s38 = sadd.s32 1, %s22
    %s39 = scalar_select %p36, %s38, %s22
    %p40 = scmp.ge.s32.totalorder %s39, 2
    %s41 = scalar_select %p40, 0, %s39
    %s43 = sadd.s32 %s42, 1
    %p46 = scmp.eq.s32.totalorder %s15, 7
    %p47 = scmp.ne.s32.totalorder %s42, %s44
    %p48 = scmp.eq.s32.totalorder %s15, 0
    %p49 = por %p47, %p48
    %p50 = scmp.ne.s32.totalorder %s42, %s44
    %p51 = scmp.eq.s32.totalorder %s20, 7
    %p52 = por %p50, %p51
    %p53 = scmp.ne.s32.totalorder %s44, %s45
    %p54 = scmp.eq.s32.totalorder %s20, 0
    %p55 = por %p53, %p54
    %p56 = scmp.ne.s32.totalorder %s44, %s45
    %p57 = scmp.eq.s32.totalorder %s21, 7
    %p58 = por %p56, %p57
    %p60 = scmp.ne.s32.totalorder %s45, %s59
    %p61 = scmp.eq.s32.totalorder %s21, 0
    %p62 = por %p60, %p61
    %s63 = ssub.s32 %s23, %s37
    %p64 = scmp.eq.s32.totalorder %s63, 0
    %s66 = sadd.s32 %s65, 1
    %s67 = scalar_select %p64, %s65, %s66
    %p70 = pneg %p64
    %p71 = scmp.eq.s32.totalorder %s15, 7
    %p72 = por %p70, %p71
    %p73 = scmp.ne.s32.totalorder %s65, %s68
    %p74 = scmp.eq.s32.totalorder %s15, 0
    %p75 = por %p73, %p74
    %p76 = scmp.ne.s32.totalorder %s65, %s68
    %p77 = scmp.eq.s32.totalorder %s20, 7
    %p78 = por %p76, %p77
    %p79 = scmp.ne.s32.totalorder %s68, %s69
    %p80 = scmp.eq.s32.totalorder %s20, 0
    %p81 = por %p79, %p80
    %p82 = scmp.ne.s32.totalorder %s68, %s69
    %p83 = scmp.eq.s32.totalorder %s21, 7
    %p84 = por %p82, %p83
    %p86 = scmp.ne.s32.totalorder %s69, %s85
    %p87 = scmp.eq.s32.totalorder %s21, 0
    %p88 = por %p86, %p87
    %s89 = ssub.s32 %s23, %s37
    %p90 = scmp.eq.s32.totalorder %s89, 0
    %s92 = sadd.s32 %s91, 1
    %s93 = scalar_select %p90, %s91, %s92
    %p96 = pneg %p90
    %p97 = scmp.eq.s32.totalorder %s15, 7
    %p98 = por %p96, %p97
    %p99 = scmp.ne.s32.totalorder %s91, %s94
    %p100 = scmp.eq.s32.totalorder %s15, 0
    %p101 = por %p99, %p100
    %p102 = scmp.ne.s32.totalorder %s91, %s94
    %p103 = scmp.eq.s32.totalorder %s20, 7
    %p104 = por %p102, %p103
    %p105 = scmp.ne.s32.totalorder %s94, %s95
    %p106 = scmp.eq.s32.totalorder %s20, 0
    %p107 = por %p105, %p106
    %p108 = scmp.ne.s32.totalorder %s94, %s95
    %p109 = scmp.eq.s32.totalorder %s21, 7
    %p110 = por %p108, %p109
    %p112 = scmp.ne.s32.totalorder %s95, %s111
    %p113 = scmp.eq.s32.totalorder %s21, 0
    %p114 = por %p112, %p113
    %s116 = sadd.s32 %s115, 1
    %p119 = scmp.eq.s32.totalorder %s15, 7
    %p120 = scmp.ne.s32.totalorder %s115, %s117
    %p121 = scmp.eq.s32.totalorder %s15, 0
    %p122 = por %p120, %p121
    %p123 = scmp.ne.s32.totalorder %s115, %s117
    %p124 = scmp.eq.s32.totalorder %s20, 7
    %p125 = por %p123, %p124
    %p126 = scmp.ne.s32.totalorder %s117, %s118
    %p127 = scmp.eq.s32.totalorder %s20, 0
    %p128 = por %p126, %p127
    %p129 = scmp.ne.s32.totalorder %s117, %s118
    %p130 = scmp.eq.s32.totalorder %s21, 7
    %p131 = por %p129, %p130
    %p133 = scmp.ne.s32.totalorder %s118, %s132
    %p134 = scmp.eq.s32.totalorder %s21, 0
    %p135 = por %p133, %p134
    %s137 = sadd.s32 %s136, 1
    %p140 = scmp.eq.s32.totalorder %s15, 7
    %p141 = scmp.ne.s32.totalorder %s136, %s138
    %p142 = scmp.eq.s32.totalorder %s15, 0
    %p143 = por %p141, %p142
    %p144 = scmp.ne.s32.totalorder %s136, %s138
    %p145 = scmp.eq.s32.totalorder %s20, 7
    %p146 = por %p144, %p145
    %p147 = scmp.ne.s32.totalorder %s138, %s139
    %p148 = scmp.eq.s32.totalorder %s20, 0
    %p149 = por %p147, %p148
    %p150 = scmp.ne.s32.totalorder %s138, %s139
    %p151 = scmp.eq.s32.totalorder %s21, 7
    %p152 = por %p150, %p151
    %p154 = scmp.ne.s32.totalorder %s139, %s153
    %p155 = scmp.eq.s32.totalorder %s21, 0
    %p156 = por %p154, %p155
    %s157 = ssub.s32 %s22, %s41
    %s158 = ssub.s32 %s24, %s33
    %s159 = sor.u32 %s157, %s158
    %s160 = ssub.s32 %s23, %s37
    %s161 = sor.u32 %s159, %s160
    %p162 = scmp.eq.s32.totalorder %s161, 0
    %s164 = sadd.s32 %s163, 1
    %s165 = scalar_select %p162, %s163, %s164
    %p168 = pneg %p162
    %p169 = scmp.eq.s32.totalorder %s15, 7
    %p170 = por %p168, %p169
    %p171 = scmp.ne.s32.totalorder %s163, %s166
    %p172 = scmp.eq.s32.totalorder %s15, 0
    %p173 = por %p171, %p172
    %p174 = scmp.ne.s32.totalorder %s163, %s166
    %p175 = scmp.eq.s32.totalorder %s20, 7
    %p176 = por %p174, %p175
    %p177 = scmp.ne.s32.totalorder %s166, %s167
    %p178 = scmp.eq.s32.totalorder %s20, 0
    %p179 = por %p177, %p178
    %p180 = scmp.ne.s32.totalorder %s166, %s167
    %p181 = scmp.eq.s32.totalorder %s21, 7
    %p182 = por %p180, %p181
    %p184 = scmp.ne.s32.totalorder %s167, %s183
    %p185 = scmp.eq.s32.totalorder %s21, 0
    %p186 = por %p184, %p185
    %s187 = ssub.s32 %s22, %s41
    %s188 = ssub.s32 %s24, %s33
    %s189 = sor.u32 %s187, %s188
    %p190 = scmp.eq.s32.totalorder %s189, 0
    %s192 = sadd.s32 %s191, 1
    %s193 = scalar_select %p190, %s191, %s192
    %p196 = pneg %p190
    %p197 = scmp.eq.s32.totalorder %s15, 7
    %p198 = por %p196, %p197
    %p199 = scmp.ne.s32.totalorder %s191, %s194
    %p200 = scmp.eq.s32.totalorder %s15, 0
    %p201 = por %p199, %p200
    %p202 = scmp.ne.s32.totalorder %s191, %s194
    %p203 = scmp.eq.s32.totalorder %s20, 7
    %p204 = por %p202, %p203
    %p205 = scmp.ne.s32.totalorder %s194, %s195
    %p206 = scmp.eq.s32.totalorder %s20, 0
    %p207 = por %p205, %p206
    %p208 = scmp.ne.s32.totalorder %s194, %s195
    %p209 = scmp.eq.s32.totalorder %s21, 7
    %p210 = por %p208, %p209
    %p212 = scmp.ne.s32.totalorder %s195, %s211
    %p213 = scmp.eq.s32.totalorder %s21, 0
    %p214 = por %p212, %p213
    %s215 = ssub.s32 %s22, %s41
    %s216 = ssub.s32 %s24, %s33
    %s217 = sor.u32 %s215, %s216
    %p218 = scmp.eq.s32.totalorder %s217, 0
    %s220 = sadd.s32 %s219, 1
    %s221 = scalar_select %p218, %s219, %s220
    %p224 = pneg %p218
    %p225 = scmp.eq.s32.totalorder %s15, 7
    %p226 = por %p224, %p225
    %p227 = scmp.ne.s32.totalorder %s219, %s222
    %p228 = scmp.eq.s32.totalorder %s15, 0
    %p229 = por %p227, %p228
    %p230 = scmp.ne.s32.totalorder %s219, %s222
    %p231 = scmp.eq.s32.totalorder %s20, 7
    %p232 = por %p230, %p231
    %p233 = scmp.ne.s32.totalorder %s222, %s223
    %p234 = scmp.eq.s32.totalorder %s20, 0
    %p235 = por %p233, %p234
    %p236 = scmp.ne.s32.totalorder %s222, %s223
    %p237 = scmp.eq.s32.totalorder %s21, 7
    %p238 = por %p236, %p237
    %p240 = scmp.ne.s32.totalorder %s223, %s239
    %p241 = scmp.eq.s32.totalorder %s21, 0
    %p242 = por %p240, %p241
    %s243 = ssub.s32 %s22, %s41
    %s244 = ssub.s32 %s23, %s37
    %s245 = sor.u32 %s243, %s244
    %p246 = scmp.eq.s32.totalorder %s245, 0
    %s248 = sadd.s32 %s247, 1
    %s249 = scalar_select %p246, %s247, %s248
    %p252 = pneg %p246
    %p253 = scmp.eq.s32.totalorder %s15, 7
    %p254 = por %p252, %p253
    %p255 = scmp.ne.s32.totalorder %s247, %s250
    %p256 = scmp.eq.s32.totalorder %s15, 0
    %p257 = por %p255, %p256
    %p258 = scmp.ne.s32.totalorder %s247, %s250
    %p259 = scmp.eq.s32.totalorder %s20, 7
    %p260 = por %p258, %p259
    %p261 = scmp.ne.s32.totalorder %s250, %s251
    %p262 = scmp.eq.s32.totalorder %s20, 0
    %p263 = por %p261, %p262
    %p264 = scmp.ne.s32.totalorder %s250, %s251
    %p265 = scmp.eq.s32.totalorder %s21, 7
    %p266 = por %p264, %p265
    %p268 = scmp.ne.s32.totalorder %s251, %s267
    %p269 = scmp.eq.s32.totalorder %s21, 0
    %p270 = por %p268, %p269
    %p271 = scmp.le.s32.totalorder 1, %s15
    %p272 = scmp.lt.s32.totalorder %s15, 9
    %p273 = pnand %p271, %p272
    %p274 = pneg %p273
    // Predicated region
    $region9: #{audio_encoder_forward.28} parent=5 // pred_check
      _
    $region10: #{audio_encoder_forward.28} parent=5 // pred_check_branch
      %276 = sbr.rel (%p273) target = $region12
    $region11: #{audio_encoder_forward.28} parent=5 // pred_region
      %s277 = ssub.s32 %s15, 1
      // Predicated region
      $region13: #{audio_encoder_forward.28} parent=11 // pred_check
        %p278 = pneg %p55
      $region14: #{audio_encoder_forward.28} parent=11 // pred_check_branch
        %280 = sbr.rel (%p278) target = $region16
      $region15: #{audio_encoder_forward.28} parent=11 // pred_region
        _
      $region16: #{audio_encoder_forward.28} parent=11 // pred_fallthru
        _
      // Predicated region
      $region17: #{audio_encoder_forward.28} parent=11 // pred_check
        %p281 = pneg %p81
      $region18: #{audio_encoder_forward.28} parent=11 // pred_check_branch
        %283 = sbr.rel (%p281) target = $region20
      $region19: #{audio_encoder_forward.28} parent=11 // pred_region
        %s284 = smul.u32 2, %s26
        %p285 = scmp.lt.s32.totalorder %s284, 1
        %s286 = scalar_select %p285, %s284, 1
        %s287 = smul.addr %s286, 8
        %s288 = scalar_lea.vmem %s1, %s287
        %s289 = smul.u32 2, %s26
      $region20: #{audio_encoder_forward.28} parent=11 // pred_fallthru
        _
      // Predicated region
      $region21: #{audio_encoder_forward.28} parent=11 // pred_check
        %p290 = pneg %p107
      $region22: #{audio_encoder_forward.28} parent=11 // pred_check_branch
        %292 = sbr.rel (%p290) target = $region24
      $region23: #{audio_encoder_forward.28} parent=11 // pred_region
        %s293 = smul.u32 2, %s26
        %p294 = scmp.lt.s32.totalorder %s293, 1
        %s295 = scalar_select %p294, %s293, 1
        %s296 = smul.addr %s295, 8
        %s297 = scalar_lea.vmem %s2, %s296
        %s298 = smul.u32 2, %s26
      $region24: #{audio_encoder_forward.28} parent=11 // pred_fallthru
        _
      // Predicated region
      $region25: #{audio_encoder_forward.28} parent=11 // pred_check
        %p299 = pneg %p128
      $region26: #{audio_encoder_forward.28} parent=11 // pred_check_branch
        %301 = sbr.rel (%p299) target = $region28
      $region27: #{audio_encoder_forward.28} parent=11 // pred_region
        _
      $region28: #{audio_encoder_forward.28} parent=11 // pred_fallthru
        _
      // Predicated region
      $region29: #{audio_encoder_forward.28} parent=11 // pred_check
        %p302 = pneg %p149
      $region30: #{audio_encoder_forward.28} parent=11 // pred_check_branch
        %304 = sbr.rel (%p302) target = $region32
      $region31: #{audio_encoder_forward.28} parent=11 // pred_region
        _
      $region32: #{audio_encoder_forward.28} parent=11 // pred_fallthru
        _
    $region12: #{audio_encoder_forward.28} parent=5 // pred_fallthru
      _
    %p305 = scmp.lt.s32.totalorder %s15, 8
    // Predicated region
    $region33: #{audio_encoder_forward.28} parent=5 // pred_check
      %p306 = pneg %p305
    $region34: #{audio_encoder_forward.28} parent=5 // pred_check_branch
      %308 = sbr.rel (%p306) target = $region36
    $region35: #{audio_encoder_forward.28} parent=5 // pred_region
      // Predicated region
      $region37: #{audio_encoder_forward.28} parent=35 // pred_check
        %p309 = pneg %p173
      $region38: #{audio_encoder_forward.28} parent=35 // pred_check_branch
        %311 = sbr.rel (%p309) target = $region40
      $region39: #{audio_encoder_forward.28} parent=35 // pred_region
        %s312 = smul.u32 2, %s23
        %p313 = scmp.lt.s32.totalorder %s22, 1
        %s314 = scalar_select %p313, %s22, 1
        %p315 = scmp.lt.s32.totalorder %s24, 3
        %s316 = scalar_select %p315, %s24, 3
        %p317 = scmp.lt.s32.totalorder %s312, 1
        %s318 = scalar_select %p317, %s312, 1
        %s319 = smul.addr %s316, 2
        %s320 = sadd.s32 %s318, %s319
        %s321 = smul.addr %s314, 8
        %s322 = sadd.s32 %s320, %s321
        %s323 = smul.addr %s322, 4
        %s324 = scalar_lea.vmem %s5, %s323
        %s325 = smul.u32 2, %s23
      $region40: #{audio_encoder_forward.28} parent=35 // pred_fallthru
        _
      // Predicated region
      $region41: #{audio_encoder_forward.28} parent=35 // pred_check
        %p326 = pneg %p201
      $region42: #{audio_encoder_forward.28} parent=35 // pred_check_branch
        %328 = sbr.rel (%p326) target = $region44
      $region43: #{audio_encoder_forward.28} parent=35 // pred_region
        %p329 = scmp.lt.s32.totalorder %s22, 1
        %s330 = scalar_select %p329, %s22, 1
        %p331 = scmp.lt.s32.totalorder %s24, 3
        %s332 = scalar_select %p331, %s24, 3
        %s333 = smul.addr %s332, 2
        %s334 = smul.addr %s330, 8
        %s335 = sadd.s32 %s333, %s334
        %s336 = smul.addr %s335, 4
        %s337 = scalar_lea.vmem %s6, %s336
      $region44: #{audio_encoder_forward.28} parent=35 // pred_fallthru
        _
      // Predicated region
      $region45: #{audio_encoder_forward.28} parent=35 // pred_check
        %p338 = pneg %p229
      $region46: #{audio_encoder_forward.28} parent=35 // pred_check_branch
        %340 = sbr.rel (%p338) target = $region48
      $region47: #{audio_encoder_forward.28} parent=35 // pred_region
        %p341 = scmp.lt.s32.totalorder %s22, 1
        %s342 = scalar_select %p341, %s22, 1
        %p343 = scmp.lt.s32.totalorder %s24, 3
        %s344 = scalar_select %p343, %s24, 3
        %s345 = smul.addr %s344, 2
        %s346 = smul.addr %s342, 8
        %s347 = sadd.s32 %s345, %s346
        %s348 = smul.addr %s347, 4
        %s349 = scalar_lea.vmem %s7, %s348
      $region48: #{audio_encoder_forward.28} parent=35 // pred_fallthru
        _
    $region36: #{audio_encoder_forward.28} parent=5 // pred_fallthru
      _
    %p350 = scmp.le.s32.totalorder 1, %s15
    %p351 = scmp.lt.s32.totalorder %s15, 9
    %p352 = pnand %p350, %p351
    %p353 = pneg %p352
    // Predicated region
    $region49: #{audio_encoder_forward.28} parent=5 // pred_check
      _
    $region50: #{audio_encoder_forward.28} parent=5 // pred_check_branch
      %355 = sbr.rel (%p352) target = $region52
    $region51: #{audio_encoder_forward.28} parent=5 // pred_region
      %s356 = ssub.s32 %s15, 1
      %p357 = pneg %p55
      %p358 = pneg %p52
      %s359 = smul.u32 2, %s26
      %p360 = scmp.lt.s32.totalorder %s359, 1
      %s361 = scalar_select %p360, %s359, 1
      %s362 = smul.addr %s361, 8
      %s363 = scalar_lea.vmem %s1, %s362
      %p364 = pneg %p81
      %p365 = pneg %p78
      %s366 = smul.u32 2, %s26
      %p367 = scmp.lt.s32.totalorder %s366, 1
      %s368 = scalar_select %p367, %s366, 1
      %s369 = smul.addr %s368, 8
      %s370 = scalar_lea.vmem %s2, %s369
      %p371 = pneg %p107
      %p372 = pneg %p104
      %p373 = pneg %p128
      %p374 = pneg %p125
      %p375 = pneg %p149
      %p376 = pneg %p146
      %s377 = smul.u32 2, %s26
      %p378 = scmp.lt.s32.totalorder %s25, 1
      %s379 = scalar_select %p378, %s25, 1
      %p380 = scmp.lt.s32.totalorder %s27, 3
      %s381 = scalar_select %p380, %s27, 3
      %p382 = scmp.lt.s32.totalorder %s377, 1
      %s383 = scalar_select %p382, %s377, 1
      %s384 = smul.addr %s381, 2
      %s385 = sadd.s32 %s383, %s384
      %s386 = smul.addr %s379, 8
      %s387 = sadd.s32 %s385, %s386
      %s388 = smul.addr %s387, 4
      %s389 = scalar_lea.vmem %s5, %s388
      %p390 = pneg %p179
      %p391 = pneg %p176
      %p392 = scmp.lt.s32.totalorder %s25, 1
      %s393 = scalar_select %p392, %s25, 1
      %p394 = scmp.lt.s32.totalorder %s27, 3
      %s395 = scalar_select %p394, %s27, 3
      %s396 = smul.addr %s395, 2
      %s397 = smul.addr %s393, 8
      %s398 = sadd.s32 %s396, %s397
      %s399 = smul.addr %s398, 4
      %s400 = scalar_lea.vmem %s6, %s399
      %p401 = pneg %p207
      %p402 = pneg %p204
      %p403 = scmp.lt.s32.totalorder %s25, 1
      %s404 = scalar_select %p403, %s25, 1
      %p405 = scmp.lt.s32.totalorder %s27, 3
      %s406 = scalar_select %p405, %s27, 3
      %s407 = smul.addr %s406, 2
      %s408 = smul.addr %s404, 8
      %s409 = sadd.s32 %s407, %s408
      %s410 = smul.addr %s409, 4
      %s411 = scalar_lea.vmem %s7, %s410
      %p412 = pneg %p235
      %p413 = pneg %p232
      %p414 = pneg %p263
      %p415 = pneg %p260
      %s416 = smul.u32 2, %s26
      %p417 = scmp.lt.s32.totalorder %s25, 1
      %s418 = scalar_select %p417, %s25, 1
      %p419 = scmp.lt.s32.totalorder %s416, 1
      %s420 = scalar_select %p419, %s416, 1
      %s421 = smul.addr %s418, 2
      %s422 = sadd.s32 %s420, %s421
      %s423 = smul.addr %s422, 4
      %s424 = scalar_lea.vmem %s8, %s423
      %s425 = smul.u32 2, %s26
      %p426 = scmp.lt.s32.totalorder %s425, 1
      %s427 = scalar_select %p426, %s425, 1
      %s428 = smul.addr %s427, 8
      %s429 = scalar_lea.vmem %s1, %s428
      %s430 = smul.u32 2, %s26
      %s431 = smul.u32 2, %s26
      %p432 = scmp.lt.s32.totalorder %s431, 1
      %s433 = scalar_select %p432, %s431, 1
      %s434 = smul.addr %s433, 8
      %s435 = scalar_lea.vmem %s2, %s434
      %s436 = smul.u32 2, %s26
      %s437 = smul.u32 2, %s26
      %p438 = scmp.lt.s32.totalorder %s25, 1
      %s439 = scalar_select %p438, %s25, 1
      %p440 = scmp.lt.s32.totalorder %s27, 3
      %s441 = scalar_select %p440, %s27, 3
      %p442 = scmp.lt.s32.totalorder %s437, 1
      %s443 = scalar_select %p442, %s437, 1
      %s444 = smul.addr %s441, 2
      %s445 = sadd.s32 %s443, %s444
      %s446 = smul.addr %s439, 8
      %s447 = sadd.s32 %s445, %s446
      %s448 = smul.addr %s447, 4
      %s449 = scalar_lea.vmem %s5, %s448
      %s450 = smul.u32 2, %s26
      %p451 = scmp.lt.s32.totalorder %s25, 1
      %s452 = scalar_select %p451, %s25, 1
      %p453 = scmp.lt.s32.totalorder %s27, 3
      %s454 = scalar_select %p453, %s27, 3
      %s455 = smul.addr %s454, 2
      %s456 = smul.addr %s452, 8
      %s457 = sadd.s32 %s455, %s456
      %s458 = smul.addr %s457, 4
      %s459 = scalar_lea.vmem %s6, %s458
      %p460 = scmp.lt.s32.totalorder %s25, 1
      %s461 = scalar_select %p460, %s25, 1
      %p462 = scmp.lt.s32.totalorder %s27, 3
      %s463 = scalar_select %p462, %s27, 3
      %s464 = smul.addr %s463, 2
      %s465 = smul.addr %s461, 8
      %s466 = sadd.s32 %s464, %s465
      %s467 = smul.addr %s466, 4
      %s468 = scalar_lea.vmem %s7, %s467
      %s469 = smul.u32 2, %s26
      %p470 = scmp.lt.s32.totalorder %s25, 1
      %s471 = scalar_select %p470, %s25, 1
      %p472 = scmp.lt.s32.totalorder %s469, 1
      %s473 = scalar_select %p472, %s469, 1
      %s474 = smul.addr %s471, 2
      %s475 = sadd.s32 %s473, %s474
      %s476 = smul.addr %s475, 4
      %s477 = scalar_lea.vmem %s8, %s476
      %s478 = smul.u32 2, %s26
      %s480 = smul.u32 %s26, 16
      %s481 = sld [smem:[#allocation3]]
      %v482 = vld [vmem:[%s449] sm:$0xf]
      %v483 = vld [vmem:[%s449 + $0x4] sm:$0xf]
      %v484 = vunpack.c.l.bf16 %v482
      %v485 = vunpack.c.l.bf16 %v483
      %v486 = vld [vmem:[%s459] sm:$0xf]
      %v487 = vld [vmem:[%s459 + $0x4] sm:$0xf]
      %v488 = vunpack.c.l.bf16 %v486
      %v489 = vunpack.c.l.bf16 %v487
      %v490 = vld [vmem:[%s468] sm:$0xf]
      %v491 = vld [vmem:[%s468 + $0x4] sm:$0xf]
      %vm492 = vcmp.eq.f32.partialorder %v488, 0.0
      %vm493 = vcmp.eq.f32.partialorder %v489, 0.0
      %v494 = vstv %s481
      %v495 = vsel %vm492, %v494, 1.0
      %v496 = vsel %vm493, %v494, 1.0
      %v497 = vld [vmem:[%s429] sm:$0xff]
      %v498 = vld [vmem:[%s429 + $0x8] sm:$0xff]
      %v499 = vld [vmem:[%s435] sm:$0xff]
      %v500 = vld [vmem:[%s435 + $0x8] sm:$0xff]
      %v501 = vld [vmem:[%s3] sm:$0xff]
      %v502 = vld [vmem:[%s3 + $0x8] sm:$0xff]
      %v503 = vld [vmem:[%s4] sm:$0xff]
      %v504 = vld [vmem:[%s4 + $0x8] sm:$0xff]
      %v505 = vmul.f32 %v484, %v499
      %v506 = vmul.f32 %v485, %v500
      %509 = vrot.lane.b32.xlu0 %v497, 4
      %v510 = vpop.permute.xlu0 %509
      %511 = vrot.lane.b32.xlu0 %v498, 4
      %v512 = vpop.permute.xlu0 %511
      %v515 = vmul.f32 %v484, %v510
      %v516 = vmul.f32 %v485, %v512
      %519 = vrot.lane.b32.xlu0 %v515, 124
      %v520 = vpop.permute.xlu0 %519
      %521 = vrot.lane.b32.xlu0 %v516, 124
      %v522 = vpop.permute.xlu0 %521
      %v525 = vsub.f32 %v505, %v520
      %v526 = vsub.f32 %v506, %v522
      %v527 = vmul.f32 %v484, %v497
      %v528 = vmul.f32 %v485, %v498
      %531 = vrot.lane.b32.xlu0 %v499, 4
      %v532 = vpop.permute.xlu0 %531
      %533 = vrot.lane.b32.xlu0 %v500, 4
      %v534 = vpop.permute.xlu0 %533
      %v537 = vmul.f32 %v484, %v532
      %v538 = vmul.f32 %v485, %v534
      %541 = vrot.lane.b32.xlu0 %v537, 124
      %v542 = vpop.permute.xlu0 %541
      %543 = vrot.lane.b32.xlu0 %v538, 124
      %v544 = vpop.permute.xlu0 %543
      %v547 = vadd.f32 %v527, %v542
      %v548 = vadd.f32 %v528, %v544
      %551 = vrot.lane.b32.xlu0 %v547, 4
      %v552 = vpop.permute.xlu0 %551
      %553 = vrot.lane.b32.xlu0 %v548, 4
      %v554 = vpop.permute.xlu0 %553
      %vm557 = vcmask 31744
      %v558 = vsel %vm557, %v525, %v552
      %v559 = vsel %vm557, %v526, %v554
      %v560 = vmul.f32 %v488, %v503
      %v561 = vmul.f32 %v489, %v504
      %564 = vrot.lane.b32.xlu0 %v501, 4
      %v565 = vpop.permute.xlu0 %564
      %566 = vrot.lane.b32.xlu0 %v502, 4
      %v567 = vpop.permute.xlu0 %566
      %v570 = vmul.f32 %v488, %v565
      %v571 = vmul.f32 %v489, %v567
      %574 = vrot.lane.b32.xlu0 %v570, 124
      %v575 = vpop.permute.xlu0 %574
      %576 = vrot.lane.b32.xlu0 %v571, 124
      %v577 = vpop.permute.xlu0 %576
      %v580 = vsub.f32 %v560, %v575
      %v581 = vsub.f32 %v561, %v577
      %v582 = vmul.f32 %v488, %v501
      %v583 = vmul.f32 %v489, %v502
      %586 = vrot.lane.b32.xlu0 %v503, 4
      %v587 = vpop.permute.xlu0 %586
      %588 = vrot.lane.b32.xlu0 %v504, 4
      %v589 = vpop.permute.xlu0 %588
      %v592 = vmul.f32 %v488, %v587
      %v593 = vmul.f32 %v489, %v589
      %596 = vrot.lane.b32.xlu0 %v592, 124
      %v597 = vpop.permute.xlu0 %596
      %598 = vrot.lane.b32.xlu0 %v593, 124
      %v599 = vpop.permute.xlu0 %598
      %v602 = vadd.f32 %v582, %v597
      %v603 = vadd.f32 %v583, %v599
      %606 = vrot.lane.b32.xlu0 %v602, 4
      %v607 = vpop.permute.xlu0 %606
      %608 = vrot.lane.b32.xlu0 %v603, 4
      %v609 = vpop.permute.xlu0 %608
      %v612 = vsel %vm557, %v580, %v607
      %v613 = vsel %vm557, %v581, %v609
      %vm614 = vcmask 64512
      %v616 = vsel %vm614, %v558, 0
      %v619 = vsel %vm614, %v559, 0
      %v622 = vsel %vm614, %v612, 0
      %v625 = vsel %vm614, %v613, 0
      %627 = vmatprep.subr.mxu0 0.0
      %628 = vmatpush1.xpose.msra.mxu0 %v622
      %629 = vmatprep.subr.mxu0 0.0
      %630 = vmatpush1.xpose.msra.mxu0 %v625
      %631 = vmatprep.subr.mxu0 0.0
      %632 = vmatpush1.xpose.msra.mxu0 0.0
      %633 = vmatprep.subr.mxu0 0.0
      %634 = vmatpush1.xpose.msra.mxu0 0.0
      %635 = vmatprep.subr.mxu0 0.0
      %636 = vmatpush1.xpose.msra.mxu0 0.0
      %637 = vmatprep.subr.mxu0 0.0
      %638 = vmatpush1.xpose.msra.mxu0 0.0
      %639 = vmatprep.subr.mxu0 0.0
      %640 = vmatpush1.xpose.msra.mxu0 0.0
      %641 = vmatprep.subr.mxu0 0.0
      %642 = vmatpush1.xpose.msra.mxu0 0.0
      %643 = vmatprep.subr.mxu0 0.0
      %644 = vmatpush1.xpose.msra.mxu0 0.0
      %645 = vmatprep.subr.mxu0 0.0
      %646 = vmatpush1.xpose.msra.mxu0 0.0
      %647 = vmatprep.subr.mxu0 0.0
      %648 = vmatpush1.xpose.msra.mxu0 0.0
      %649 = vmatprep.subr.mxu0 0.0
      %650 = vmatpush1.xpose.msra.mxu0 0.0
      %651 = vmatprep.subr.mxu0 0.0
      %652 = vmatpush1.xpose.msra.mxu0 0.0
      %653 = vmatprep.subr.mxu0 0.0
      %654 = vmatpush1.xpose.msra.mxu0 0.0
      %655 = vmatprep.subr.mxu0 0.0
      %656 = vmatpush1.xpose.msra.mxu0 0.0
      %657 = vmatprep.subr.mxu0 0.0
      %658 = vmatpush1.xpose.msra.mxu0 0.0
      %659 = vmatprep.subr.mxu0 0.0
      %660 = vmatpush1.xpose.msra.mxu0 0.0
      %661 = vmatprep.subr.mxu0 0.0
      %662 = vmatpush1.xpose.msra.mxu0 0.0
      %663 = vmatprep.subr.mxu0 0.0
      %664 = vmatpush1.xpose.msra.mxu0 0.0
      %665 = vmatprep.subr.mxu0 0.0
      %666 = vmatpush1.xpose.msra.mxu0 0.0
      %667 = vmatprep.subr.mxu0 0.0
      %668 = vmatpush1.xpose.msra.mxu0 0.0
      %669 = vmatprep.subr.mxu0 0.0
      %670 = vmatpush1.xpose.msra.mxu0 0.0
      %671 = vmatprep.subr.mxu0 0.0
      %672 = vmatpush1.xpose.msra.mxu0 0.0
      %673 = vmatprep.subr.mxu0 0.0
      %674 = vmatpush1.xpose.msra.mxu0 0.0
      %675 = vmatprep.subr.mxu0 0.0
      %676 = vmatpush1.xpose.msra.mxu0 0.0
      %677 = vmatprep.subr.mxu0 0.0
      %678 = vmatpush1.xpose.msra.mxu0 0.0
      %679 = vmatprep.subr.mxu0 0.0
      %680 = vmatpush1.xpose.msra.mxu0 0.0
      %681 = vmatprep.subr.mxu0 0.0
      %682 = vmatpush1.xpose.msra.mxu0 0.0
      %683 = vmatprep.subr.mxu0 0.0
      %684 = vmatpush1.xpose.msra.mxu0 0.0
      %685 = vmatprep.subr.mxu0 0.0
      %686 = vmatpush1.xpose.msra.mxu0 0.0
      %687 = vmatprep.subr.mxu0 0.0
      %688 = vmatpush1.xpose.msra.mxu0 0.0
      %689 = vmatprep.subr.mxu0 0.0
      %690 = vmatpush1.xpose.msra.mxu0 0.0
      %691 = vmatprep.mubr.f32.mxu0 0.0
      %692 = vmatmul.mubr.f32.gmra.mrb[0].mxu0 %v616
      %v693 = vpop.f32.mrb[0].mxu0
      %v694 = vadd.f32 0.0, %v693
      %v695 = vpop.f32.mrb[0].mxu0
      %696 = vmatprep.mubr.f32.mxu0 0.0
      %697 = vmatmul.mubr.f32.gmra.mrb[0].mxu0 %v619
      %v698 = vpop.f32.mrb[0].mxu0
      %v699 = vadd.f32 0.0, %v698
      %v700 = vpop.f32.mrb[0].mxu0
      %701 = vdwg.mxu0
      %v702 = vmul.f32 %v694, 0.35355338
      %v703 = vmul.f32 %v699, 0.35355338
      %v704 = vlaneseq
      %v705 = vshrl.u32 %v704, 7
      %v706 = vadd.s32 %v705, 8
      %v707 = vstv %s480
      %v708 = vadd.s32 %v707, %v705
      %v709 = vadd.s32 %v707, %v706
      %v710 = vlaneseq
      %v711 = vand.u32 %v710, 127
      %vm712 = vcmp.le.s32.totalorder %v711, %v708
      %vm713 = vcmp.le.s32.totalorder %v711, %v709
      %v714 = vsel %vm712, 1, 0
      %v715 = vsel %vm713, 1, 0
      %v716 = vcvt.s32.f32 %v714
      %v717 = vcvt.s32.f32 %v715
      %720 = vset.pattern.permute.xlu0 0
      %721 = vperm.xlu0 %720, %v495
      %v722 = vpop.permute.xlu0 %721
      %723 = vset.pattern.permute.xlu0 0
      %724 = vperm.xlu0 %723, %v496
      %v725 = vpop.permute.xlu0 %724
      %v726 = vlaneseq
      %v727 = vshrl.u32 %v726, 7
      %v728 = vsub.s32 %v711, %v727
      %v729 = vrot.slane %v722, %v728
      %v730 = vadd.s32 %v711, 4294967288
      %v731 = vlaneseq
      %v732 = vshrl.u32 %v731, 7
      %v733 = vsub.s32 %v730, %v732
      %v734 = vrot.slane %v725, %v733
      %vm735 = vcmask 130112
      %v736 = vsel %vm735, %v734, %v729
      %vm737 = vcmask 1042434
      %v738 = vsel %vm737, %v736, %v736
      %vm739 = vcmask 1043459
      %v740 = vsel %vm739, %v736, %v738
      %vm741 = vcmask 1044484
      %v742 = vsel %vm741, %v736, %v740
      %vm743 = vcmask 1045509
      %v744 = vsel %vm743, %v736, %v742
      %vm745 = vcmask 1046534
      %v746 = vsel %vm745, %v736, %v744
      %vm747 = vcmask 1047559
      %v748 = vsel %vm747, %v736, %v746
      %v750 = vmul.f32 %v716, %v748
      %v751 = vmul.f32 %v717, %v748
      %v752 = vmul.f32 %v702, %v750
      %v753 = vmul.f32 %v703, %v751
      %vm754 = vcmask 130048
      %v755 = vsel %vm754, %v752, -inf
      %756 = vmax.xlane.f32.xlu0 %v755
      %v757 = vpop.xlane.xlu0 %756
      %v758 = vsel %vm754, %v753, -inf
      %759 = vmax.xlane.f32.xlu0 %v758
      %v760 = vpop.xlane.xlu0 %759
      %v761 = vsub.f32 %v752, %v757
      %v762 = vsub.f32 %v753, %v760
      %v763 = vmul.f32 %v761, 1.442695
      %v764 = vpow.pop %v763
      %v765 = vmul.f32 %v762, 1.442695
      %v766 = vpow.pop %v765
      %v767 = vsel %vm754, %v764, 0.0
      %768 = vadd.xlane.f32.xlu0 %v767
      %v769 = vpop.xlane.xlu0 %768
      %v770 = vsel %vm754, %v766, 0.0
      %771 = vadd.xlane.f32.xlu0 %v770
      %v772 = vpop.xlane.xlu0 %771
      %v773 = vrcp.pop %v769
      %v774 = vmul.f32 %v764, %v773
      %v775 = vrcp.pop %v772
      %v776 = vmul.f32 %v766, %v775
      %v777 = vpack.c.bf16 %v776, %v774
      %v780 = vunpack.c.l.b16 %v490
      %v781 = vunpack.c.l.b16 %v491
      %v782 = vpack.c.b16 %v781, %v780
      %v785 = vsel %vm754, %v777, 0
      %787 = vmatprep.subr.bf16.mxu0 0
      %788 = vmatpush1.bf16.msra.mxu0 %v782
      %789 = vmatprep.subr.bf16.mxu0 0
      %790 = vmatpush1.bf16.msra.mxu0 0
      %791 = vmatprep.subr.bf16.mxu0 0
      %792 = vmatpush1.bf16.msra.mxu0 0
      %793 = vmatprep.subr.bf16.mxu0 0
      %794 = vmatpush1.bf16.msra.mxu0 0
      %795 = vmatprep.subr.bf16.mxu0 0
      %796 = vmatpush1.bf16.msra.mxu0 0
      %797 = vmatprep.subr.bf16.mxu0 0
      %798 = vmatpush1.bf16.msra.mxu0 0
      %799 = vmatprep.subr.bf16.mxu0 0
      %800 = vmatpush1.bf16.msra.mxu0 0
      %801 = vmatprep.subr.bf16.mxu0 0
      %802 = vmatpush1.bf16.msra.mxu0 0
      %803 = vmatprep.subr.bf16.mxu0 0
      %804 = vmatpush1.bf16.msra.mxu0 0
      %805 = vmatprep.subr.bf16.mxu0 0
      %806 = vmatpush1.bf16.msra.mxu0 0
      %807 = vmatprep.subr.bf16.mxu0 0
      %808 = vmatpush1.bf16.msra.mxu0 0
      %809 = vmatprep.subr.bf16.mxu0 0
      %810 = vmatpush1.bf16.msra.mxu0 0
      %811 = vmatprep.subr.bf16.mxu0 0
      %812 = vmatpush1.bf16.msra.mxu0 0
      %813 = vmatprep.subr.bf16.mxu0 0
      %814 = vmatpush1.bf16.msra.mxu0 0
      %815 = vmatprep.subr.bf16.mxu0 0
      %816 = vmatpush1.bf16.msra.mxu0 0
      %817 = vmatprep.subr.bf16.mxu0 0
      %818 = vmatpush1.bf16.msra.mxu0 0
      %819 = vmatprep.mubr.bf16.mxu0 0
      %820 = vmatmul.mubr.bf16.gmra.mrb[0].mxu0 %v785
      %v821 = vpop.f32.mrb[0].mxu0
      %v822 = vadd.f32 0.0, %v821
      %v823 = vpop.f32.mrb[0].mxu0
      %v824 = vpop.f32.mrb[0].mxu0
      %v825 = vadd.f32 0.0, %v824
      %v826 = vpop.f32.mrb[0].mxu0
      %827 = vdwg.mxu0
      %s828 = smul.u32 %s27, 16
      %s829 = scalar_lea.vmem [#allocation2], %s828
      %830 = vst.msk [vmem:[%s829] sm:$0xff] %vm614, %v822
      %831 = vst.msk [vmem:[%s829 + $0x8] sm:$0xff] %vm614, %v825
      %p832 = scmp.eq.s32.totalorder %s27, 3
      // Predicated region
      $region53: #{audio_encoder_forward.28} parent=51 // pred_check
        %p833 = pneg %p832
      $region54: #{audio_encoder_forward.28} parent=51 // pred_check_branch
        %835 = sbr.rel (%p833) target = $region56
      $region55: #{audio_encoder_forward.28} parent=51 // pred_region
        %v836 = vld [vmem:[#allocation2] sm:$0xff]
        %v837 = vld [vmem:[#allocation2 + $0x8] sm:$0xff]
        %s838 = scalar_lea.vmem [#allocation2], 16
        %v839 = vld [vmem:[%s838] sm:$0xff]
        %v840 = vld [vmem:[%s838 + $0x8] sm:$0xff]
        %s841 = scalar_lea.vmem [#allocation2], 32
        %v842 = vld [vmem:[%s841] sm:$0xff]
        %v843 = vld [vmem:[%s841 + $0x8] sm:$0xff]
        %s844 = scalar_lea.vmem [#allocation2], 48
        %v845 = vld [vmem:[%s844] sm:$0xff]
        %v846 = vld [vmem:[%s844 + $0x8] sm:$0xff]
        %849 = vrot.lane.b32.xlu0 %v839, 8
        %v850 = vpop.permute.xlu0 %849
        %851 = vrot.lane.b32.xlu0 %v840, 8
        %v852 = vpop.permute.xlu0 %851
        %857 = vrot.lane.b32.xlu0 %v842, 16
        %v858 = vpop.permute.xlu0 %857
        %859 = vrot.lane.b32.xlu0 %v843, 16
        %v860 = vpop.permute.xlu0 %859
        %865 = vrot.lane.b32.xlu0 %v845, 24
        %v866 = vpop.permute.xlu0 %865
        %867 = vrot.lane.b32.xlu0 %v846, 24
        %v868 = vpop.permute.xlu0 %867
        %v871 = vsel %vm614, %v836, %v850
        %v872 = vsel %vm614, %v837, %v852
        %v873 = vsel %vm754, %v871, %v858
        %v874 = vsel %vm754, %v872, %v860
        %vm875 = vcmask 195584
        %v876 = vsel %vm875, %v873, %v866
        %v877 = vsel %vm875, %v874, %v868
        %v878 = vpack.c.bf16 %v877, %v876
        %v880 = vunpack.c.l.b16 %v878
        %v881 = vunpack.c.h.b16 %v878
        %v882 = vpack.c.b16 %v880, %v880
        %v883 = vpack.c.b16 %v881, %v881
        %vm886 = vcmask 257024
        %887 = vst.msk [vmem:[%s477] sm:$0xf] %vm886, %v882
        %888 = vst.msk [vmem:[%s477 + $0x4] sm:$0xf] %vm886, %v883
      $region56: #{audio_encoder_forward.28} parent=51 // pred_fallthru
        _
      %s889 = smul.u32 2, %s26
      %p890 = scmp.lt.s32.totalorder %s25, 1
      %s891 = scalar_select %p890, %s25, 1
      %p892 = scmp.lt.s32.totalorder %s889, 1
      %s893 = scalar_select %p892, %s889, 1
      %s894 = smul.addr %s891, 2
      %s895 = sadd.s32 %s893, %s894
      %s896 = smul.addr %s895, 4
      %s897 = scalar_lea.vmem %s8, %s896
      // Predicated region
      $region57: #{audio_encoder_forward.28} parent=51 // pred_check
        %p898 = pneg %p260
      $region58: #{audio_encoder_forward.28} parent=51 // pred_check_branch
        %900 = sbr.rel (%p898) target = $region60
      $region59: #{audio_encoder_forward.28} parent=51 // pred_region
        %s901 = smul.u32 2, %s26
      $region60: #{audio_encoder_forward.28} parent=51 // pred_fallthru
        _
    $region52: #{audio_encoder_forward.28} parent=5 // pred_fallthru
      _
    %p902 = scmp.le.s32.totalorder 2, %s15
    // Predicated region
    $region61: #{audio_encoder_forward.28} parent=5 // pred_check
      %p903 = pneg %p902
    $region62: #{audio_encoder_forward.28} parent=5 // pred_check_branch
      %905 = sbr.rel (%p903) target = $region64
    $region63: #{audio_encoder_forward.28} parent=5 // pred_region
      %s906 = ssub.s32 %s15, 2
      // Predicated region
      $region65: #{audio_encoder_forward.28} parent=63 // pred_check
        %p907 = pneg %p266
      $region66: #{audio_encoder_forward.28} parent=63 // pred_check_branch
        %909 = sbr.rel (%p907) target = $region68
      $region67: #{audio_encoder_forward.28} parent=63 // pred_region
        %s910 = smul.u32 2, %s29
        %p911 = scmp.lt.s32.totalorder %s28, 1
        %s912 = scalar_select %p911, %s28, 1
        %p913 = scmp.lt.s32.totalorder %s910, 1
        %s914 = scalar_select %p913, %s910, 1
        %s915 = smul.addr %s912, 2
        %s916 = sadd.s32 %s914, %s915
        %s917 = smul.addr %s916, 4
        %s918 = scalar_lea.vmem %s8, %s917
      $region68: #{audio_encoder_forward.28} parent=63 // pred_fallthru
        _
    $region64: #{audio_encoder_forward.28} parent=5 // pred_fallthru
      _
  $region6: #{audio_encoder_forward.28} parent=0 // loop_footer
    %s19 = sadd.s32 1, %s15
  $region7: #{audio_encoder_forward.28} parent=0 // loop_footer_branch
    %14 = sbr.rel target = $region3
  $region8: #{audio_encoder_forward.28} parent=0 // loop_exit
    _

// kernel: audio_encoder_forward.37
$region0: #{audio_encoder_forward.37}
  #allocation0 [shape = 'u32[]', space=smem, size = 0x4, offset = 0x4, fixed_abs, tag = 'smem constant byte address 0x4 - core index']
  #allocation1 [shape = 'u32[144,128]{1,0:T(1,128)}', space=vmem, size = 0x12000, scoped, tag = 'internal scratch']
  %s0 = inlined_call_operand.vmem [shape: bf16[32,32], index: 0, kind: input, shape index: {}]
  %s1 = inlined_call_operand.vmem [shape: f32[1,32], index: 1, kind: input, shape index: {}]
  %s2 = inlined_call_operand.hbm [shape: f32[32,32], index: 2, kind: output, shape index: {}]
  %s3 = sld [smem:[#allocation0]]
  $region18: #{audio_encoder_forward.37} parent=0
    _
  %s5 = ssub.s32 1, %s3
  %s6 = scalar_select 0, %s5, %s3
  $region1: #{audio_encoder_forward.37} parent=0
    #allocation2 [shape = 'u8[16384]{0}', space=vmem, size = 0x4000, scoped, tag = 'output window, operand 0, single buffered']
    #allocation3 [shape = 's32[1]{0}', space=sflag, size = 0x4, scoped, tag = 'scoped memory for audio_encoder_forward.37']
    %7 = vsyncpa [#allocation3], 0
    // Predicated region
    $region2: #{audio_encoder_forward.37} parent=1 // pred_check
      _
    $region3: #{audio_encoder_forward.37} parent=1 // pred_check_branch
      %9 = sbr.rel (0) target = $region5
    $region4: #{audio_encoder_forward.37} parent=1 // pred_region
      _
    $region5: #{audio_encoder_forward.37} parent=1 // pred_fallthru
      _
    // Predicated region
    $region6: #{audio_encoder_forward.37} parent=1 // pred_check
      _
    $region7: #{audio_encoder_forward.37} parent=1 // pred_check_branch
      %11 = sbr.rel (0) target = $region9
    $region8: #{audio_encoder_forward.37} parent=1 // pred_region
      _
    $region9: #{audio_encoder_forward.37} parent=1 // pred_fallthru
      _
    %v12 = vld [vmem:[%s0] sm:$0xf]
    %v13 = vld [vmem:[%s0 + $0x4] sm:$0xf]
    %v14 = vld [vmem:[%s0 + $0x8] sm:$0xf]
    %v15 = vld [vmem:[%s0 + $0xc] sm:$0xf]
    %v16 = vunpack.c.l.bf16 %v12
    %v17 = vunpack.c.l.bf16 %v13
    %v18 = vunpack.c.l.bf16 %v14
    %v19 = vunpack.c.l.bf16 %v15
    %v20 = vmul.f32 %v16, %v16
    %v21 = vmul.f32 %v17, %v17
    %v22 = vmul.f32 %v18, %v18
    %v23 = vmul.f32 %v19, %v19
    %vm24 = vcmask 261120
    %v25 = vsel %vm24, %v20, 0.0
    %26 = vadd.xlane.f32.xlu0 %v25
    %v27 = vpop.xlane.xlu0 %26
    %v28 = vsel %vm24, %v21, 0.0
    %29 = vadd.xlane.f32.xlu0 %v28
    %v30 = vpop.xlane.xlu0 %29
    %v31 = vsel %vm24, %v22, 0.0
    %32 = vadd.xlane.f32.xlu0 %v31
    %v33 = vpop.xlane.xlu0 %32
    %v34 = vsel %vm24, %v23, 0.0
    %35 = vadd.xlane.f32.xlu0 %v34
    %v36 = vpop.xlane.xlu0 %35
    %v37 = vrcp.pop 32.0
    %v38 = vmul.f32 %v27, %v37
    %v39 = vmul.f32 %v30, %v37
    %v40 = vmul.f32 %v33, %v37
    %v41 = vmul.f32 %v36, %v37
    %v42 = vadd.f32 %v38, 1e-08
    %v43 = vadd.f32 %v39, 1e-08
    %v44 = vadd.f32 %v40, 1e-08
    %v45 = vadd.f32 %v41, 1e-08
    %v46 = vrsqrt.pop %v42
    %v47 = vrsqrt.pop %v43
    %v48 = vrsqrt.pop %v44
    %v49 = vrsqrt.pop %v45
    %v50 = vmul.f32 %v16, %v46
    %v51 = vmul.f32 %v17, %v47
    %v52 = vmul.f32 %v18, %v48
    %v53 = vmul.f32 %v19, %v49
    %v54 = vld [vmem:[%s1] sm:$0x1]
    %v56 = vlaneseq
    %v57 = vshrl.u32 %v56, 7
    %v58 = vsub.s32 0, %v57
    %v59 = vrot.slane %v54, %v58
    %v61 = vmul.f32 %v50, %v59
    %v62 = vmul.f32 %v51, %v59
    %v63 = vmul.f32 %v52, %v59
    %v64 = vmul.f32 %v53, %v59
    %65 = vst.msk [vmem:[#allocation2] sm:$0xff] %vm24, %v61
    %66 = vst.msk [vmem:[#allocation2 + $0x8] sm:$0xff] %vm24, %v62
    %67 = vst.msk [vmem:[#allocation2 + $0x10] sm:$0xff] %vm24, %v63
    %68 = vst.msk [vmem:[#allocation2 + $0x18] sm:$0xff] %vm24, %v64
    // Predicated region
    $region10: #{audio_encoder_forward.37} parent=1 // pred_check
      _
    $region11: #{audio_encoder_forward.37} parent=1 // pred_check_branch
      %70 = sbr.rel (0) target = $region13
    $region12: #{audio_encoder_forward.37} parent=1 // pred_region
      %s72 = ssub.s32 512, 512
      %73 = vsyncadd [#allocation3], %s72
      %s74 = sshll.u32 [#allocation2], 4
      %s75 = int_to_ptr.vmem [resolvable:$true] %s74
      %80 = dma.vmem_to_hbm [thread:$0]  %s75, 512, %s2, [#allocation3], 128, 128, 8
    $region13: #{audio_encoder_forward.37} parent=1 // pred_fallthru
      _
    // Predicated region
    $region14: #{audio_encoder_forward.37} parent=1 // pred_check
      _
    $region15: #{audio_encoder_forward.37} parent=1 // pred_check_branch
      %82 = sbr.rel (0) target = $region17
    $region16: #{audio_encoder_forward.37} parent=1 // pred_region
      %83 = dma.done [#allocation3], 512
    $region17: #{audio_encoder_forward.37} parent=1 // pred_fallthru
      _
    %84 = vsyncpa [#allocation3], 1

// kernel: audio_encoder_forward.31
$region0: #{audio_encoder_forward.31}
  #allocation0 [shape = 'u32[]', space=smem, size = 0x4, offset = 0x4, fixed_abs, tag = 'smem constant byte address 0x4 - core index']
  #allocation1 [shape = 'u32[144,128]{1,0:T(1,128)}', space=vmem, size = 0x12000, scoped, tag = 'internal scratch']
  #allocation2 [shape = 'f32[32,32]{1,0:T(8,128)}', space=vmem, size = 0x4000, scoped, tag = 'scratch operand']
  %s0 = inlined_call_operand.vmem [shape: bf16[32,128], index: 0, kind: input, shape index: {}]
  %s1 = inlined_call_operand.vmem [shape: bf16[128,32], index: 1, kind: input, shape index: {}]
  %s2 = inlined_call_operand.vmem [shape: bf16[1,32], index: 2, kind: input, shape index: {}]
  %s3 = inlined_call_operand.vmem [shape: bf16[32,32], index: 3, kind: input, shape index: {}]
  %s4 = inlined_call_operand.vmem [shape: bf16[32,32], index: 4, kind: input, shape index: {}]
  %s5 = inlined_call_operand.vmem [shape: bf16[32,32], index: 5, kind: output, shape index: {}]
  %s6 = sld [smem:[#allocation0]]
  $region38: #{audio_encoder_forward.31} parent=0
    _
  %s8 = ssub.s32 1, %s6
  %s9 = scalar_select 0, %s8, %s6
  // Predicated region
  $region2: #{audio_encoder_forward.31} parent=0 // pred_check
    _
  $region3: #{audio_encoder_forward.31} parent=0 // pred_check_branch
    %11 = sbr.rel (0) target = $region5
  $region4: #{audio_encoder_forward.31} parent=0 // pred_region
    _
  $region5: #{audio_encoder_forward.31} parent=0 // pred_fallthru
    _
  // Predicated region
  $region6: #{audio_encoder_forward.31} parent=0 // pred_check
    _
  $region7: #{audio_encoder_forward.31} parent=0 // pred_check_branch
    %13 = sbr.rel (0) target = $region9
  $region8: #{audio_encoder_forward.31} parent=0 // pred_region
    _
  $region9: #{audio_encoder_forward.31} parent=0 // pred_fallthru
    _
  // Predicated region
  $region10: #{audio_encoder_forward.31} parent=0 // pred_check
    _
  $region11: #{audio_encoder_forward.31} parent=0 // pred_check_branch
    %15 = sbr.rel (0) target = $region13
  $region12: #{audio_encoder_forward.31} parent=0 // pred_region
    _
  $region13: #{audio_encoder_forward.31} parent=0 // pred_fallthru
    _
  // Predicated region
  $region14: #{audio_encoder_forward.31} parent=0 // pred_check
    _
  $region15: #{audio_encoder_forward.31} parent=0 // pred_check_branch
    %17 = sbr.rel (0) target = $region17
  $region16: #{audio_encoder_forward.31} parent=0 // pred_region
    _
  $region17: #{audio_encoder_forward.31} parent=0 // pred_fallthru
    _
  // Predicated region
  $region18: #{audio_encoder_forward.31} parent=0 // pred_check
    _
  $region19: #{audio_encoder_forward.31} parent=0 // pred_check_branch
    %19 = sbr.rel (0) target = $region21
  $region20: #{audio_encoder_forward.31} parent=0 // pred_region
    _
  $region21: #{audio_encoder_forward.31} parent=0 // pred_fallthru
    _
  %p21 = scmp.eq.s32.totalorder 0, 0
  // Predicated region
  $region22: #{audio_encoder_forward.31} parent=0 // pred_check
    %p22 = pneg %p21
  $region23: #{audio_encoder_forward.31} parent=0 // pred_check_branch
    %24 = sbr.rel (%p22) target = $region25
  $region24: #{audio_encoder_forward.31} parent=0 // pred_region
    %vm25 = vcmask 261120
    %26 = vst.msk [vmem:[#allocation2] sm:$0xff] %vm25, 0.0
    %27 = vst.msk [vmem:[#allocation2 + $0x8] sm:$0xff] %vm25, 0.0
    %28 = vst.msk [vmem:[#allocation2 + $0x10] sm:$0xff] %vm25, 0.0
    %29 = vst.msk [vmem:[#allocation2 + $0x18] sm:$0xff] %vm25, 0.0
  $region25: #{audio_encoder_forward.31} parent=0 // pred_fallthru
    _
  %v30 = vld [vmem:[%s0] sm:$0xf]
  %v31 = vld [vmem:[%s0 + $0x4] sm:$0xf]
  %v32 = vld [vmem:[%s0 + $0x8] sm:$0xf]
  %v33 = vld [vmem:[%s0 + $0xc] sm:$0xf]
  %v34 = vld [vmem:[#allocation2] sm:$0xff]
  %v35 = vld [vmem:[#allocation2 + $0x8] sm:$0xff]
  %v36 = vld [vmem:[#allocation2 + $0x10] sm:$0xff]
  %v37 = vld [vmem:[#allocation2 + $0x18] sm:$0xff]
  %v38 = vld [vmem:[%s1] sm:$0xf]
  %v39 = vld [vmem:[%s1 + $0x4] sm:$0xf]
  %v40 = vld [vmem:[%s1 + $0x8] sm:$0xf]
  %v41 = vld [vmem:[%s1 + $0xc] sm:$0xf]
  %v42 = vld [vmem:[%s1 + $0x10] sm:$0xf]
  %v43 = vld [vmem:[%s1 + $0x14] sm:$0xf]
  %v44 = vld [vmem:[%s1 + $0x18] sm:$0xf]
  %v45 = vld [vmem:[%s1 + $0x1c] sm:$0xf]
  %v46 = vld [vmem:[%s1 + $0x20] sm:$0xf]
  %v47 = vld [vmem:[%s1 + $0x24] sm:$0xf]
  %v48 = vld [vmem:[%s1 + $0x28] sm:$0xf]
  %v49 = vld [vmem:[%s1 + $0x2c] sm:$0xf]
  %v50 = vld [vmem:[%s1 + $0x30] sm:$0xf]
  %v51 = vld [vmem:[%s1 + $0x34] sm:$0xf]
  %v52 = vld [vmem:[%s1 + $0x38] sm:$0xf]
  %v53 = vld [vmem:[%s1 + $0x3c] sm:$0xf]
  %v58 = vunpack.c.l.b16 %v30
  %v59 = vunpack.c.l.b16 %v31
  %v60 = vunpack.c.l.b16 %v32
  %v61 = vunpack.c.l.b16 %v33
  %v62 = vpack.c.b16 %v59, %v58
  %v63 = vpack.c.b16 %v61, %v60
  %v82 = vunpack.c.l.b16 %v38
  %v83 = vunpack.c.l.b16 %v39
  %v84 = vunpack.c.l.b16 %v40
  %v85 = vunpack.c.l.b16 %v41
  %v86 = vunpack.c.l.b16 %v42
  %v87 = vunpack.c.l.b16 %v43
  %v88 = vunpack.c.l.b16 %v44
  %v89 = vunpack.c.l.b16 %v45
  %v90 = vunpack.c.l.b16 %v46
  %v91 = vunpack.c.l.b16 %v47
  %v92 = vunpack.c.l.b16 %v48
  %v93 = vunpack.c.l.b16 %v49
  %v94 = vunpack.c.l.b16 %v50
  %v95 = vunpack.c.l.b16 %v51
  %v96 = vunpack.c.l.b16 %v52
  %v97 = vunpack.c.l.b16 %v53
  %v98 = vpack.c.b16 %v83, %v82
  %v99 = vpack.c.b16 %v85, %v84
  %v100 = vpack.c.b16 %v87, %v86
  %v101 = vpack.c.b16 %v89, %v88
  %v102 = vpack.c.b16 %v91, %v90
  %v103 = vpack.c.b16 %v93, %v92
  %v104 = vpack.c.b16 %v95, %v94
  %v105 = vpack.c.b16 %v97, %v96
  %114 = vmatprep.subr.bf16.mxu0 0
  %115 = vmatpush1.bf16.msra.mxu0 %v98
  %116 = vmatprep.subr.bf16.mxu0 0
  %117 = vmatpush1.bf16.msra.mxu0 %v99
  %118 = vmatprep.subr.bf16.mxu0 0
  %119 = vmatpush1.bf16.msra.mxu0 %v100
  %120 = vmatprep.subr.bf16.mxu0 0
  %121 = vmatpush1.bf16.msra.mxu0 %v101
  %122 = vmatprep.subr.bf16.mxu0 0
  %123 = vmatpush1.bf16.msra.mxu0 %v102
  %124 = vmatprep.subr.bf16.mxu0 0
  %125 = vmatpush1.bf16.msra.mxu0 %v103
  %126 = vmatprep.subr.bf16.mxu0 0
  %127 = vmatpush1.bf16.msra.mxu0 %v104
  %128 = vmatprep.subr.bf16.mxu0 0
  %129 = vmatpush1.bf16.msra.mxu0 %v105
  %130 = vmatprep.subr.bf16.mxu0 0
  %131 = vmatpush1.bf16.msra.mxu0 0
  %132 = vmatprep.subr.bf16.mxu0 0
  %133 = vmatpush1.bf16.msra.mxu0 0
  %134 = vmatprep.subr.bf16.mxu0 0
  %135 = vmatpush1.bf16.msra.mxu0 0
  %136 = vmatprep.subr.bf16.mxu0 0
  %137 = vmatpush1.bf16.msra.mxu0 0
  %138 = vmatprep.subr.bf16.mxu0 0
  %139 = vmatpush1.bf16.msra.mxu0 0
  %140 = vmatprep.subr.bf16.mxu0 0
  %141 = vmatpush1.bf16.msra.mxu0 0
  %142 = vmatprep.subr.bf16.mxu0 0
  %143 = vmatpush1.bf16.msra.mxu0 0
  %144 = vmatprep.subr.bf16.mxu0 0
  %145 = vmatpush1.bf16.msra.mxu0 0
  %146 = vmatprep.mubr.bf16.mxu0 0
  %147 = vmatmul.mubr.bf16.gmra.mrb[0].mxu0 %v62
  %v148 = vpop.f32.mrb[0].mxu0
  %v149 = vadd.f32 0.0, %v148
  %v150 = vpop.f32.mrb[0].mxu0
  %v151 = vpop.f32.mrb[0].mxu0
  %v152 = vadd.f32 0.0, %v151
  %v153 = vpop.f32.mrb[0].mxu0
  %154 = vmatprep.mubr.bf16.mxu0 0
  %155 = vmatmul.mubr.bf16.gmra.mrb[0].mxu0 %v63
  %v156 = vpop.f32.mrb[0].mxu0
  %v157 = vadd.f32 0.0, %v156
  %v158 = vpop.f32.mrb[0].mxu0
  %v159 = vpop.f32.mrb[0].mxu0
  %v160 = vadd.f32 0.0, %v159
  %v161 = vpop.f32.mrb[0].mxu0
  %162 = vdwg.mxu0
  %v163 = vadd.f32 %v34, %v149
  %v164 = vadd.f32 %v35, %v152
  %v165 = vadd.f32 %v36, %v157
  %v166 = vadd.f32 %v37, %v160
  %vm167 = vcmask 261120
  %168 = vst.msk [vmem:[#allocation2] sm:$0xff] %vm167, %v163
  %169 = vst.msk [vmem:[#allocation2 + $0x8] sm:$0xff] %vm167, %v164
  %170 = vst.msk [vmem:[#allocation2 + $0x10] sm:$0xff] %vm167, %v165
  %171 = vst.msk [vmem:[#allocation2 + $0x18] sm:$0xff] %vm167, %v166
  // Predicated region
  $region26: #{audio_encoder_forward.31} parent=0 // pred_check
    %p172 = pneg %p21
  $region27: #{audio_encoder_forward.31} parent=0 // pred_check_branch
    %174 = sbr.rel (%p172) target = $region29
  $region28: #{audio_encoder_forward.31} parent=0 // pred_region
    %v175 = vld [vmem:[#allocation2] sm:$0xff]
    %v176 = vld [vmem:[#allocation2 + $0x8] sm:$0xff]
    %v177 = vld [vmem:[#allocation2 + $0x10] sm:$0xff]
    %v178 = vld [vmem:[#allocation2 + $0x18] sm:$0xff]
    %v179 = vld [vmem:[%s2] sm:$0x1]
    %v180 = vunpack.c.l.bf16 %v179
    %v181 = vlaneseq
    %v182 = vshrl.u32 %v181, 7
    %v183 = vsub.s32 0, %v182
    %v184 = vrot.slane %v180, %v183
    %v185 = vadd.f32 %v175, %v184
    %v186 = vadd.f32 %v176, %v184
    %v187 = vadd.f32 %v177, %v184
    %v188 = vadd.f32 %v178, %v184
    %v189 = vld [vmem:[%s3] sm:$0xf]
    %v190 = vld [vmem:[%s3 + $0x4] sm:$0xf]
    %v191 = vld [vmem:[%s3 + $0x8] sm:$0xf]
    %v192 = vld [vmem:[%s3 + $0xc] sm:$0xf]
    %v193 = vunpack.c.l.bf16 %v189
    %v194 = vunpack.c.l.bf16 %v190
    %v195 = vunpack.c.l.bf16 %v191
    %v196 = vunpack.c.l.bf16 %v192
    %v197 = vadd.f32 %v185, %v193
    %v198 = vadd.f32 %v186, %v194
    %v199 = vadd.f32 %v187, %v195
    %v200 = vadd.f32 %v188, %v196
    %v201 = vld [vmem:[%s4] sm:$0xf]
    %v202 = vld [vmem:[%s4 + $0x4] sm:$0xf]
    %v203 = vld [vmem:[%s4 + $0x8] sm:$0xf]
    %v204 = vld [vmem:[%s4 + $0xc] sm:$0xf]
    %v205 = vunpack.c.l.bf16 %v201
    %v206 = vunpack.c.l.bf16 %v202
    %v207 = vunpack.c.l.bf16 %v203
    %v208 = vunpack.c.l.bf16 %v204
    %v209 = vadd.f32 %v197, %v205
    %v210 = vadd.f32 %v198, %v206
    %v211 = vadd.f32 %v199, %v207
    %v212 = vadd.f32 %v200, %v208
    %v213 = vpack.c.bf16 %v210, %v209
    %v214 = vpack.c.bf16 %v212, %v211
    %v217 = vunpack.c.l.b16 %v213
    %v218 = vunpack.c.h.b16 %v213
    %v219 = vunpack.c.l.b16 %v214
    %v220 = vunpack.c.h.b16 %v214
    %v221 = vpack.c.b16 %v217, %v217
    %v222 = vpack.c.b16 %v218, %v218
    %v223 = vpack.c.b16 %v219, %v219
    %v224 = vpack.c.b16 %v220, %v220
    %vm229 = vcmask 257024
    %230 = vst.msk [vmem:[%s5] sm:$0xf] %vm229, %v221
    %231 = vst.msk [vmem:[%s5 + $0x4] sm:$0xf] %vm229, %v222
    %232 = vst.msk [vmem:[%s5 + $0x8] sm:$0xf] %vm229, %v223
    %233 = vst.msk [vmem:[%s5 + $0xc] sm:$0xf] %vm229, %v224
  $region29: #{audio_encoder_forward.31} parent=0 // pred_fallthru
    _
  // Predicated region
  $region30: #{audio_encoder_forward.31} parent=0 // pred_check
    _
  $region31: #{audio_encoder_forward.31} parent=0 // pred_check_branch
    %235 = sbr.rel (0) target = $region33
  $region32: #{audio_encoder_forward.31} parent=0 // pred_region
    _
  $region33: #{audio_encoder_forward.31} parent=0 // pred_fallthru
    _
  // Predicated region
  $region34: #{audio_encoder_forward.31} parent=0 // pred_check
    _
  $region35: #{audio_encoder_forward.31} parent=0 // pred_check_branch
    %237 = sbr.rel (0) target = $region37
  $region36: #{audio_encoder_forward.31} parent=0 // pred_region
    _
  $region37: #{audio_encoder_forward.31} parent=0 // pred_fallthru
    _

</llo_original>
